<compile_context>
chip_gen: v5e
topology: v5e:2x2
jax: 0.10.0
libtpu: 0.0.40
codegen_flags: <defaults>
</compile_context>

<pallas_src>
import functools

import jax
import jax.numpy as jnp
from jax.experimental import pallas as pl
from jax.experimental.pallas import tpu as pltpu

_BN_EPS = 1e-5
_ACT_DTYPE = jnp.bfloat16          # inter-layer activations / matmul operands
_VMEM_LIMIT = 32 * 1024 * 1024     # explicit scoped-VMEM budget (safe on v5e..v7x)


def _round_up(x, m):
    return (x + m - 1) // m * m


def _compiler_params(sem):
    return pltpu.CompilerParams(dimension_semantics=sem,
                                vmem_limit_bytes=_VMEM_LIMIT)


# --------------------------------------------------------------------------
# Pallas kernels
# --------------------------------------------------------------------------
def _mm_bn_act_kernel(x_ref, w_ref, s_ref, b_ref, o_ref, *, relu):
    """out = act((x @ w) * scale + bias); single-shot K, f32 accumulate."""
    acc = jnp.dot(x_ref[...], w_ref[...], preferred_element_type=jnp.float32)
    y = acc * s_ref[...] + b_ref[...]
    if relu:
        y = jnp.maximum(y, 0.0)
    o_ref[...] = y.astype(o_ref.dtype)


def _mm_bn_res_act_kernel(x_ref, w_ref, s_ref, b_ref, r_ref, o_ref, *, relu):
    """out = act((x @ w) * scale + bias + residual)."""
    acc = jnp.dot(x_ref[...], w_ref[...], preferred_element_type=jnp.float32)
    y = acc * s_ref[...] + b_ref[...] + r_ref[...].astype(jnp.float32)
    if relu:
        y = jnp.maximum(y, 0.0)
    o_ref[...] = y.astype(o_ref.dtype)


def _max9_kernel(x_ref, o_ref):
    # max over the 9 shifted views of the 3x3/stride-2 maxpool window,
    # tiled over rows so the pipeline can double-buffer.
    o_ref[...] = jnp.max(x_ref[...], axis=0)


def _head_kernel(x_ref, att_ref, pool_ref, acc_ref, *, inv_hw, inv_c):
    """Per-HW-tile: attention (channel mean) + accumulate spatial sums."""
    i = pl.program_id(0)

    @pl.when(i == 0)
    def _():
        acc_ref[...] = jnp.zeros_like(acc_ref)

    x = x_ref[...].astype(jnp.float32)                 # (B, t_hw, C)
    att_ref[...] = jnp.sum(x, axis=-1) * inv_c         # channel mean (B, t_hw)
    acc_ref[...] += jnp.sum(x, axis=1)                 # spatial sum  (B, C)

    @pl.when(i == pl.num_programs(0) - 1)
    def _():
        pool_ref[...] = acc_ref[...] * inv_hw          # global average pool


# --------------------------------------------------------------------------
# Pallas call wrappers
# --------------------------------------------------------------------------
def matmul_bn_act(x2d, w2d, scale, bias, *, relu, residual=None,
                  tm_max=256, tn_max=256):
    M, K = x2d.shape
    _, N = w2d.shape

    # M tiling: 256-row tiles when M is large; otherwise a single full block.
    tm = min(tm_max, _round_up(M, 8))
    Mp = _round_up(M, tm)
    # N tiling: 128/256 when N is a multiple of 128, else one full-extent block
    # (N < 128 only for the 64-channel layers) -> never pad N.
    if N % 128 == 0:
        tn = tn_max if N % tn_max == 0 else 128
    else:
        tn = N
    # K stays un-tiled (<= 2304 here): no K pad, no accumulator scratch.

    xp = x2d.astype(_ACT_DTYPE)
    if Mp != M:
        xp = jnp.pad(xp, ((0, Mp - M), (0, 0)))
    wp = w2d.astype(_ACT_DTYPE)
    s2 = scale.astype(jnp.float32).reshape(1, N)
    b2 = bias.astype(jnp.float32).reshape(1, N)

    in_specs = [
        pl.BlockSpec((tm, K), lambda m, n: (m, 0)),
        pl.BlockSpec((K, tn), lambda m, n: (0, n)),
        pl.BlockSpec((1, tn), lambda m, n: (0, n)),
        pl.BlockSpec((1, tn), lambda m, n: (0, n)),
    ]
    args = [xp, wp, s2, b2]
    if residual is not None:
        rp = residual.astype(_ACT_DTYPE)
        if Mp != M:
            rp = jnp.pad(rp, ((0, Mp - M), (0, 0)))
        in_specs.append(pl.BlockSpec((tm, tn), lambda m, n: (m, n)))
        args.append(rp)
        kernel = functools.partial(_mm_bn_res_act_kernel, relu=relu)
    else:
        kernel = functools.partial(_mm_bn_act_kernel, relu=relu)

    out = pl.pallas_call(
        kernel,
        out_shape=jax.ShapeDtypeStruct((Mp, N), _ACT_DTYPE),
        grid=(Mp // tm, N // tn),
        in_specs=in_specs,
        out_specs=pl.BlockSpec((tm, tn), lambda m, n: (m, n)),
        compiler_params=_compiler_params(("parallel", "parallel")),
    )(*args)
    return out if Mp == M else out[:M]


def _im2col(x, kh, kw, stride, padding):
    # TODO(synk): im2col patches are still materialized in HBM (BlockSpec index
    # maps cannot express overlapping/shifted windows); bf16 halves the cost.
    B, H, W, C = x.shape
    Ho = (H + 2 * padding - kh) // stride + 1
    Wo = (W + 2 * padding - kw) // stride + 1
    if padding > 0:
        x = jnp.pad(x, ((0, 0), (padding, padding), (padding, padding), (0, 0)))
    cols = [x[:, i:i + stride * (Ho - 1) + 1:stride,
              j:j + stride * (Wo - 1) + 1:stride, :]
            for i in range(kh) for j in range(kw)]
    patches = jnp.concatenate(cols, axis=-1)           # (B, Ho, Wo, kh*kw*C)
    return patches.reshape(B * Ho * Wo, kh * kw * C), (B, Ho, Wo)


def conv_bn_act(x, w_oihw, bn_scale, bn_bias, *, stride, padding,
                relu=True, residual=None):
    O, Ci, kh, kw = w_oihw.shape
    x2d, (B, Ho, Wo) = _im2col(x, kh, kw, stride, padding)
    w2d = jnp.transpose(w_oihw, (2, 3, 1, 0)).reshape(kh * kw * Ci, O)
    res2d = None if residual is None else residual.reshape(B * Ho * Wo, O)
    y2d = matmul_bn_act(x2d, w2d, bn_scale, bn_bias, relu=relu, residual=res2d)
    return y2d.reshape(B, Ho, Wo, O)


def maxpool_3x3_s2_p1(x, *, tile_rows=512):
    B, H, W, C = x.shape
    Ho = (H + 2 - 3) // 2 + 1
    Wo = (W + 2 - 3) // 2 + 1
    xp = jnp.pad(x, ((0, 0), (1, 1), (1, 1), (0, 0)),
                 constant_values=-jnp.inf)
    views = [xp[:, i:i + 2 * Ho - 1:2, j:j + 2 * Wo - 1:2, :]
             for i in range(3) for j in range(3)]
    R = B * Ho * Wo
    stacked = jnp.stack(views, axis=0).reshape(9, R, C)
    tr = min(tile_rows, _round_up(R, 8))
    Rp = _round_up(R, tr)
    if Rp != R:
        stacked = jnp.pad(stacked, ((0, 0), (0, Rp - R), (0, 0)))
    out = pl.pallas_call(
        _max9_kernel,
        out_shape=jax.ShapeDtypeStruct((Rp, C), x.dtype),
        grid=(Rp // tr,),
        in_specs=[pl.BlockSpec((9, tr, C), lambda r: (0, r, 0))],
        out_specs=pl.BlockSpec((tr, C), lambda r: (r, 0)),
        compiler_params=_compiler_params(("parallel",)),
    )(stacked)
    out = out if Rp == R else out[:R]
    return out.reshape(B, Ho, Wo, C)


def attention_head(feat, *, tile_hw=512):
    B, H, W, C = feat.shape
    HW = H * W
    x = feat.reshape(B, HW, C)
    # Lane-dense attention output: pad H*W to a multiple of 128 and tile it.
    t_hw = min(tile_hw, _round_up(HW, 128))
    HWp = _round_up(HW, t_hw)
    if HWp != HW:
        x = jnp.pad(x, ((0, 0), (0, HWp - HW), (0, 0)))
    att, pooled = pl.pallas_call(
        functools.partial(_head_kernel, inv_hw=1.0 / HW, inv_c=1.0 / C),
        out_shape=(jax.ShapeDtypeStruct((B, HWp), jnp.float32),
                   jax.ShapeDtypeStruct((B, C), jnp.float32)),
        grid=(HWp // t_hw,),
        in_specs=[pl.BlockSpec((B, t_hw, C), lambda i: (0, i, 0))],
        out_specs=(pl.BlockSpec((B, t_hw), lambda i: (0, i)),
                   pl.BlockSpec((B, C), lambda i: (0, 0))),
        scratch_shapes=[pltpu.VMEM((B, C), jnp.float32)],
        compiler_params=_compiler_params(("arbitrary",)),
    )(x)
    att = att[:, :HW].reshape(B, 1, H, W)
    return pooled, att


# --------------------------------------------------------------------------
# resnet18[:7] parameters (deterministic, synthetic; non-trivial BN stats)
# --------------------------------------------------------------------------
def _bn_params(key, c):
    kg, kb, km, kv = jax.random.split(key, 4)
    gamma = jax.random.uniform(kg, (c,), jnp.float32, 0.5, 1.5)
    beta = jax.random.normal(kb, (c,), jnp.float32) * 0.1
    mean = jax.random.normal(km, (c,), jnp.float32) * 0.1
    var = jax.random.uniform(kv, (c,), jnp.float32, 0.5, 1.5)
    scale = gamma / jnp.sqrt(var + _BN_EPS)
    bias = beta - mean * scale
    return scale, bias


def init_params(key):
    keys = iter(jax.random.split(key, 64))

    def conv_w(o, i, ksz):
        fan_in = i * ksz * ksz
        return (jax.random.normal(next(keys), (o, i, ksz, ksz), jnp.float32)
                * (2.0 / fan_in) ** 0.5)

    def bn(c):
        return _bn_params(next(keys), c)

    def block(cin, cout, downsample):
        bp = {"w1": conv_w(cout, cin, 3), "bn1": bn(cout),
              "w2": conv_w(cout, cout, 3), "bn2": bn(cout)}
        if downsample:
            bp["wd"] = conv_w(cout, cin, 1)
            bp["bnd"] = bn(cout)
        return bp

    p = {"conv1_w": conv_w(64, 3, 7), "bn1": bn(64)}
    p["l1b0"] = block(64, 64, False)
    p["l1b1"] = block(64, 64, False)
    p["l2b0"] = block(64, 128, True)
    p["l2b1"] = block(128, 128, False)
    p["l3b0"] = block(128, 256, True)
    p["l3b1"] = block(256, 256, False)
    return p


def basic_block(x, bp, stride):
    identity = x
    out = conv_bn_act(x, bp["w1"], *bp["bn1"], stride=stride, padding=1,
                      relu=True)
    if "wd" in bp:
        identity = conv_bn_act(x, bp["wd"], *bp["bnd"], stride=stride,
                               padding=0, relu=False)
    # conv2 -> bn2 -> (+ identity) -> relu, fused in one Pallas kernel
    out = conv_bn_act(out, bp["w2"], *bp["bn2"], stride=1, padding=1,
                      relu=True, residual=identity)
    return out


def feature_extractor_with_attention(x_nchw, p):
    x = jnp.transpose(x_nchw, (0, 2, 3, 1)).astype(_ACT_DTYPE)   # NCHW->NHWC
    x = conv_bn_act(x, p["conv1_w"], *p["bn1"], stride=2, padding=3, relu=True)
    x = maxpool_3x3_s2_p1(x)
    x = basic_block(x, p["l1b0"], 1)
    x = basic_block(x, p["l1b1"], 1)
    x = basic_block(x, p["l2b0"], 2)
    x = basic_block(x, p["l2b1"], 1)
    x = basic_block(x, p["l3b0"], 2)
    x = basic_block(x, p["l3b1"], 1)
    pooled, attention_map = attention_head(x)
    return pooled, attention_map          # matches torch: (x, attention_map)


# --------------------------------------------------------------------------
# Pure-JAX reference (same math / same bf16 casts, no Pallas)
# --------------------------------------------------------------------------
def _ref_conv(x, w, scale, bias, stride, padding, relu=True, residual=None):
    O, Ci, kh, kw = w.shape
    x2d, (B, Ho, Wo) = _im2col(x, kh, kw, stride, padding)
    w2d = jnp.transpose(w, (2, 3, 1, 0)).reshape(kh * kw * Ci, O)
    y = jnp.dot(x2d.astype(_ACT_DTYPE), w2d.astype(_ACT_DTYPE),
                preferred_element_type=jnp.float32)
    y = y * scale + bias
    if residual is not None:
        y = y + residual.reshape(B * Ho * Wo, O).astype(jnp.float32)
    if relu:
        y = jnp.maximum(y, 0.0)
    return y.astype(_ACT_DTYPE).reshape(B, Ho, Wo, O)


def _ref_block(x, bp, stride):
    identity = x
    out = _ref_conv(x, bp["w1"], *bp["bn1"], stride=stride, padding=1)
    if "wd" in bp:
        identity = _ref_conv(x, bp["wd"], *bp["bnd"], stride=stride,
                             padding=0, relu=False)
    return _ref_conv(out, bp["w2"], *bp["bn2"], stride=1, padding=1,
                     relu=True, residual=identity)


def _ref_forward(x_nchw, p):
    x = jnp.transpose(x_nchw, (0, 2, 3, 1)).astype(_ACT_DTYPE)
    x = _ref_conv(x, p["conv1_w"], *p["bn1"], stride=2, padding=3)
    B, H, W, C = x.shape
    Ho, Wo = (H - 1) // 2 + 1, (W - 1) // 2 + 1
    xp = jnp.pad(x, ((0, 0), (1, 1), (1, 1), (0, 0)),
                 constant_values=-jnp.inf)
    x = jnp.max(jnp.stack([xp[:, i:i + 2 * Ho - 1:2, j:j + 2 * Wo - 1:2, :]
                           for i in range(3) for j in range(3)], 0), axis=0)
    for name, s in [("l1b0", 1), ("l1b1", 1), ("l2b0", 2), ("l2b1", 1),
                    ("l3b0", 2), ("l3b1", 1)]:
        x = _ref_block(x, p[name], s)
    xf = x.astype(jnp.float32)
    att = jnp.mean(xf, axis=-1)[:, None, :, :]
    pooled = jnp.mean(xf, axis=(1, 2))
    return pooled, att


if __name__ == "__main__":
    key = jax.random.PRNGKey(0)
    k_param, k_x = jax.random.split(key)
    params = init_params(k_param)
    x = jax.random.normal(k_x, (2, 3, 32, 32), jnp.float32)   # NCHW input

    fwd = jax.jit(feature_extractor_with_attention)
    pooled, attention_map = fwd(x, params)
    jax.block_until_ready((pooled, attention_map))

    assert pooled.shape == (2, 256), pooled.shape
    assert attention_map.shape == (2, 1, 2, 2), attention_map.shape

    ref_pooled, ref_att = _ref_forward(x, params)
    assert jnp.allclose(pooled, ref_pooled, rtol=2e-2, atol=2e-2), (
        float(jnp.max(jnp.abs(pooled - ref_pooled))))
    assert jnp.allclose(attention_map, ref_att, rtol=2e-2, atol=2e-2), (
        float(jnp.max(jnp.abs(attention_map - ref_att))))

    print("KERNEL_OK")
</pallas_src>

<mosaic_0001>
module attributes {stable_mosaic.version = 11 : i64} {
  func.func @_mm_bn_act_kernel(%arg0: i32, %arg1: i32, %arg2: memref<256x147xbf16, #tpu.memory_space<vmem>>, %arg3: memref<147x64xbf16, #tpu.memory_space<vmem>>, %arg4: memref<1x64xf32, #tpu.memory_space<vmem>>, %arg5: memref<1x64xf32, #tpu.memory_space<vmem>>, %arg6: memref<256x64xbf16, #tpu.memory_space<vmem>>) attributes {dimension_semantics = [#tpu.dimension_semantics<parallel>, #tpu.dimension_semantics<parallel>], iteration_bounds = array<i64: 2, 1>, scalar_prefetch = 0 : i64, scratch_operands = 0 : i64, tpu.core_type = #tpu.core_type<tc>, window_params = [{transform_indices = @transform_0, window_bounds = array<i64: 256, 147>}, {transform_indices = @transform_1, window_bounds = array<i64: 147, 64>}, {transform_indices = @transform_2, window_bounds = array<i64: 1, 64>}, {transform_indices = @transform_3, window_bounds = array<i64: 1, 64>}, {transform_indices = @transform_4, window_bounds = array<i64: 256, 64>}]} {
    %c0 = arith.constant 0 : index
    %c0_0 = arith.constant 0 : index
    %0 = vector.load %arg2[%c0, %c0_0] : memref<256x147xbf16, #tpu.memory_space<vmem>>, vector<256x147xbf16>
    %c0_1 = arith.constant 0 : index
    %c0_2 = arith.constant 0 : index
    %1 = vector.load %arg3[%c0_1, %c0_2] : memref<147x64xbf16, #tpu.memory_space<vmem>>, vector<147x64xbf16>
    %cst = arith.constant dense<0.000000e+00> : vector<256x64xf32>
    %2 = tpu.matmul %0, %1, %cst {dimension_numbers = #tpu.dot_dimension_numbers<[1], [0], [0], [1], [0, 0, 1, 1], [], []>} : vector<256x147xbf16>, vector<147x64xbf16>, vector<256x64xf32> -> vector<256x64xf32>
    %c0_3 = arith.constant 0 : index
    %c0_4 = arith.constant 0 : index
    %3 = vector.load %arg4[%c0_3, %c0_4] : memref<1x64xf32, #tpu.memory_space<vmem>>, vector<1x64xf32>
    %4 = vector.broadcast %3 : vector<1x64xf32> to vector<256x64xf32>
    %5 = arith.mulf %2, %4 : vector<256x64xf32>
    %c0_5 = arith.constant 0 : index
    %c0_6 = arith.constant 0 : index
    %6 = vector.load %arg5[%c0_5, %c0_6] : memref<1x64xf32, #tpu.memory_space<vmem>>, vector<1x64xf32>
    %7 = vector.broadcast %6 : vector<1x64xf32> to vector<256x64xf32>
    %8 = arith.addf %5, %7 : vector<256x64xf32>
    %cst_7 = arith.constant 0.000000e+00 : f32
    %9 = vector.broadcast %cst_7 : f32 to vector<256x64xf32>
    %10 = arith.maximumf %8, %9 : vector<256x64xf32>
    %11 = arith.truncf %10 : vector<256x64xf32> to vector<256x64xbf16>
    %c0_8 = arith.constant 0 : index
    %c0_9 = arith.constant 0 : index
    %12 = vector.load %arg6[%c0_8, %c0_9] : memref<256x64xbf16, #tpu.memory_space<vmem>>, vector<256x64xbf16>
    tpu.vector_store %arg6[%c0_8, %c0_9], %11 {strides = array<i32>} : memref<256x64xbf16, #tpu.memory_space<vmem>>, vector<256x64xbf16>,
    return
  }
  func.func @transform_0(%arg0: i32, %arg1: i32) -> (i32, i32) {
    %c0_i32 = arith.constant 0 : i32
    %c0_i32_0 = arith.constant 0 : i32
    return %arg0, %c0_i32 : i32, i32
  }
  func.func @transform_1(%arg0: i32, %arg1: i32) -> (i32, i32) {
    %c0_i32 = arith.constant 0 : i32
    %c0_i32_0 = arith.constant 0 : i32
    return %c0_i32, %arg1 : i32, i32
  }
  func.func @transform_2(%arg0: i32, %arg1: i32) -> (i32, i32) {
    %c0_i32 = arith.constant 0 : i32
    %c0_i32_0 = arith.constant 0 : i32
    return %c0_i32, %arg1 : i32, i32
  }
  func.func @transform_3(%arg0: i32, %arg1: i32) -> (i32, i32) {
    %c0_i32 = arith.constant 0 : i32
    %c0_i32_0 = arith.constant 0 : i32
    return %c0_i32, %arg1 : i32, i32
  }
  func.func @transform_4(%arg0: i32, %arg1: i32) -> (i32, i32) {
    %c0_i32 = arith.constant 0 : i32
    return %arg0, %arg1 : i32, i32
  }
}

module attributes {stable_mosaic.version = 11 : i64} {
  func.func @_max9_kernel(%arg0: i32, %arg1: memref<9x128x64xbf16, #tpu.memory_space<vmem>>, %arg2: memref<128x64xbf16, #tpu.memory_space<vmem>>) attributes {dimension_semantics = [#tpu.dimension_semantics<parallel>], iteration_bounds = array<i64: 1>, scalar_prefetch = 0 : i64, scratch_operands = 0 : i64, tpu.core_type = #tpu.core_type<tc>, window_params = [{transform_indices = @transform_0, window_bounds = array<i64: 9, 128, 64>}, {transform_indices = @transform_1, window_bounds = array<i64: 128, 64>}]} {
    %c0 = arith.constant 0 : index
    %c0_0 = arith.constant 0 : index
    %c0_1 = arith.constant 0 : index
    %0 = vector.load %arg1[%c0, %c0_0, %c0_1] : memref<9x128x64xbf16, #tpu.memory_space<vmem>>, vector<9x128x64xbf16>
    %cst = arith.constant dense<0xFF80> : vector<128x64xbf16>
    %1 = vector.multi_reduction <maximumf>, %0, %cst [0] : vector<9x128x64xbf16> to vector<128x64xbf16>
    %c0_2 = arith.constant 0 : index
    %c0_3 = arith.constant 0 : index
    %2 = vector.load %arg2[%c0_2, %c0_3] : memref<128x64xbf16, #tpu.memory_space<vmem>>, vector<128x64xbf16>
    tpu.vector_store %arg2[%c0_2, %c0_3], %1 {strides = array<i32>} : memref<128x64xbf16, #tpu.memory_space<vmem>>, vector<128x64xbf16>,
    return
  }
  func.func @transform_0(%arg0: i32) -> (i32, i32, i32) {
    %c0_i32 = arith.constant 0 : i32
    %c0_i32_0 = arith.constant 0 : i32
    %c0_i32_1 = arith.constant 0 : i32
    return %c0_i32, %arg0, %c0_i32_0 : i32, i32, i32
  }
  func.func @transform_1(%arg0: i32) -> (i32, i32) {
    %c0_i32 = arith.constant 0 : i32
    %c0_i32_0 = arith.constant 0 : i32
    return %arg0, %c0_i32 : i32, i32
  }
}

module attributes {stable_mosaic.version = 11 : i64} {
  func.func @_mm_bn_act_kernel(%arg0: i32, %arg1: i32, %arg2: memref<128x576xbf16, #tpu.memory_space<vmem>>, %arg3: memref<576x64xbf16, #tpu.memory_space<vmem>>, %arg4: memref<1x64xf32, #tpu.memory_space<vmem>>, %arg5: memref<1x64xf32, #tpu.memory_space<vmem>>, %arg6: memref<128x64xbf16, #tpu.memory_space<vmem>>) attributes {dimension_semantics = [#tpu.dimension_semantics<parallel>, #tpu.dimension_semantics<parallel>], iteration_bounds = array<i64: 1, 1>, scalar_prefetch = 0 : i64, scratch_operands = 0 : i64, tpu.core_type = #tpu.core_type<tc>, window_params = [{transform_indices = @transform_0, window_bounds = array<i64: 128, 576>}, {transform_indices = @transform_1, window_bounds = array<i64: 576, 64>}, {transform_indices = @transform_2, window_bounds = array<i64: 1, 64>}, {transform_indices = @transform_3, window_bounds = array<i64: 1, 64>}, {transform_indices = @transform_4, window_bounds = array<i64: 128, 64>}]} {
    %c0 = arith.constant 0 : index
    %c0_0 = arith.constant 0 : index
    %0 = vector.load %arg2[%c0, %c0_0] : memref<128x576xbf16, #tpu.memory_space<vmem>>, vector<128x576xbf16>
    %c0_1 = arith.constant 0 : index
    %c0_2 = arith.constant 0 : index
    %1 = vector.load %arg3[%c0_1, %c0_2] : memref<576x64xbf16, #tpu.memory_space<vmem>>, vector<576x64xbf16>
    %cst = arith.constant dense<0.000000e+00> : vector<128x64xf32>
    %2 = tpu.matmul %0, %1, %cst {dimension_numbers = #tpu.dot_dimension_numbers<[1], [0], [0], [1], [0, 0, 1, 1], [], []>} : vector<128x576xbf16>, vector<576x64xbf16>, vector<128x64xf32> -> vector<128x64xf32>
    %c0_3 = arith.constant 0 : index
    %c0_4 = arith.constant 0 : index
    %3 = vector.load %arg4[%c0_3, %c0_4] : memref<1x64xf32, #tpu.memory_space<vmem>>, vector<1x64xf32>
    %4 = vector.broadcast %3 : vector<1x64xf32> to vector<128x64xf32>
    %5 = arith.mulf %2, %4 : vector<128x64xf32>
    %c0_5 = arith.constant 0 : index
    %c0_6 = arith.constant 0 : index
    %6 = vector.load %arg5[%c0_5, %c0_6] : memref<1x64xf32, #tpu.memory_space<vmem>>, vector<1x64xf32>
    %7 = vector.broadcast %6 : vector<1x64xf32> to vector<128x64xf32>
    %8 = arith.addf %5, %7 : vector<128x64xf32>
    %cst_7 = arith.constant 0.000000e+00 : f32
    %9 = vector.broadcast %cst_7 : f32 to vector<128x64xf32>
    %10 = arith.maximumf %8, %9 : vector<128x64xf32>
    %11 = arith.truncf %10 : vector<128x64xf32> to vector<128x64xbf16>
    %c0_8 = arith.constant 0 : index
    %c0_9 = arith.constant 0 : index
    %12 = vector.load %arg6[%c0_8, %c0_9] : memref<128x64xbf16, #tpu.memory_space<vmem>>, vector<128x64xbf16>
    tpu.vector_store %arg6[%c0_8, %c0_9], %11 {strides = array<i32>} : memref<128x64xbf16, #tpu.memory_space<vmem>>, vector<128x64xbf16>,
    return
  }
  func.func @transform_0(%arg0: i32, %arg1: i32) -> (i32, i32) {
    %c0_i32 = arith.constant 0 : i32
    %c0_i32_0 = arith.constant 0 : i32
    return %arg0, %c0_i32 : i32, i32
  }
  func.func @transform_1(%arg0: i32, %arg1: i32) -> (i32, i32) {
    %c0_i32 = arith.constant 0 : i32
    %c0_i32_0 = arith.constant 0 : i32
    return %c0_i32, %arg1 : i32, i32
  }
  func.func @transform_2(%arg0: i32, %arg1: i32) -> (i32, i32) {
    %c0_i32 = arith.constant 0 : i32
    %c0_i32_0 = arith.constant 0 : i32
    return %c0_i32, %arg1 : i32, i32
  }
  func.func @transform_3(%arg0: i32, %arg1: i32) -> (i32, i32) {
    %c0_i32 = arith.constant 0 : i32
    %c0_i32_0 = arith.constant 0 : i32
    return %c0_i32, %arg1 : i32, i32
  }
  func.func @transform_4(%arg0: i32, %arg1: i32) -> (i32, i32) {
    %c0_i32 = arith.constant 0 : i32
    return %arg0, %arg1 : i32, i32
  }
}

module attributes {stable_mosaic.version = 11 : i64} {
  func.func @_mm_bn_res_act_kernel(%arg0: i32, %arg1: i32, %arg2: memref<128x576xbf16, #tpu.memory_space<vmem>>, %arg3: memref<576x64xbf16, #tpu.memory_space<vmem>>, %arg4: memref<1x64xf32, #tpu.memory_space<vmem>>, %arg5: memref<1x64xf32, #tpu.memory_space<vmem>>, %arg6: memref<128x64xbf16, #tpu.memory_space<vmem>>, %arg7: memref<128x64xbf16, #tpu.memory_space<vmem>>) attributes {dimension_semantics = [#tpu.dimension_semantics<parallel>, #tpu.dimension_semantics<parallel>], iteration_bounds = array<i64: 1, 1>, scalar_prefetch = 0 : i64, scratch_operands = 0 : i64, tpu.core_type = #tpu.core_type<tc>, window_params = [{transform_indices = @transform_0, window_bounds = array<i64: 128, 576>}, {transform_indices = @transform_1, window_bounds = array<i64: 576, 64>}, {transform_indices = @transform_2, window_bounds = array<i64: 1, 64>}, {transform_indices = @transform_3, window_bounds = array<i64: 1, 64>}, {transform_indices = @transform_4, window_bounds = array<i64: 128, 64>}, {transform_indices = @transform_5, window_bounds = array<i64: 128, 64>}]} {
    %c0 = arith.constant 0 : index
    %c0_0 = arith.constant 0 : index
    %0 = vector.load %arg2[%c0, %c0_0] : memref<128x576xbf16, #tpu.memory_space<vmem>>, vector<128x576xbf16>
    %c0_1 = arith.constant 0 : index
    %c0_2 = arith.constant 0 : index
    %1 = vector.load %arg3[%c0_1, %c0_2] : memref<576x64xbf16, #tpu.memory_space<vmem>>, vector<576x64xbf16>
    %cst = arith.constant dense<0.000000e+00> : vector<128x64xf32>
    %2 = tpu.matmul %0, %1, %cst {dimension_numbers = #tpu.dot_dimension_numbers<[1], [0], [0], [1], [0, 0, 1, 1], [], []>} : vector<128x576xbf16>, vector<576x64xbf16>, vector<128x64xf32> -> vector<128x64xf32>
    %c0_3 = arith.constant 0 : index
    %c0_4 = arith.constant 0 : index
    %3 = vector.load %arg4[%c0_3, %c0_4] : memref<1x64xf32, #tpu.memory_space<vmem>>, vector<1x64xf32>
    %4 = vector.broadcast %3 : vector<1x64xf32> to vector<128x64xf32>
    %5 = arith.mulf %2, %4 : vector<128x64xf32>
    %c0_5 = arith.constant 0 : index
    %c0_6 = arith.constant 0 : index
    %6 = vector.load %arg5[%c0_5, %c0_6] : memref<1x64xf32, #tpu.memory_space<vmem>>, vector<1x64xf32>
    %7 = vector.broadcast %6 : vector<1x64xf32> to vector<128x64xf32>
    %8 = arith.addf %5, %7 : vector<128x64xf32>
    %c0_7 = arith.constant 0 : index
    %c0_8 = arith.constant 0 : index
    %9 = vector.load %arg6[%c0_7, %c0_8] : memref<128x64xbf16, #tpu.memory_space<vmem>>, vector<128x64xbf16>
    %10 = arith.extf %9 : vector<128x64xbf16> to vector<128x64xf32>
    %11 = arith.addf %8, %10 : vector<128x64xf32>
    %cst_9 = arith.constant 0.000000e+00 : f32
    %12 = vector.broadcast %cst_9 : f32 to vector<128x64xf32>
    %13 = arith.maximumf %11, %12 : vector<128x64xf32>
    %14 = arith.truncf %13 : vector<128x64xf32> to vector<128x64xbf16>
    %c0_10 = arith.constant 0 : index
    %c0_11 = arith.constant 0 : index
    %15 = vector.load %arg7[%c0_10, %c0_11] : memref<128x64xbf16, #tpu.memory_space<vmem>>, vector<128x64xbf16>
    tpu.vector_store %arg7[%c0_10, %c0_11], %14 {strides = array<i32>} : memref<128x64xbf16, #tpu.memory_space<vmem>>, vector<128x64xbf16>,
    return
  }
  func.func @transform_0(%arg0: i32, %arg1: i32) -> (i32, i32) {
    %c0_i32 = arith.constant 0 : i32
    %c0_i32_0 = arith.constant 0 : i32
    return %arg0, %c0_i32 : i32, i32
  }
  func.func @transform_1(%arg0: i32, %arg1: i32) -> (i32, i32) {
    %c0_i32 = arith.constant 0 : i32
    %c0_i32_0 = arith.constant 0 : i32
    return %c0_i32, %arg1 : i32, i32
  }
  func.func @transform_2(%arg0: i32, %arg1: i32) -> (i32, i32) {
    %c0_i32 = arith.constant 0 : i32
    %c0_i32_0 = arith.constant 0 : i32
    return %c0_i32, %arg1 : i32, i32
  }
  func.func @transform_3(%arg0: i32, %arg1: i32) -> (i32, i32) {
    %c0_i32 = arith.constant 0 : i32
    %c0_i32_0 = arith.constant 0 : i32
    return %c0_i32, %arg1 : i32, i32
  }
  func.func @transform_4(%arg0: i32, %arg1: i32) -> (i32, i32) {
    %c0_i32 = arith.constant 0 : i32
    return %arg0, %arg1 : i32, i32
  }
  func.func @transform_5(%arg0: i32, %arg1: i32) -> (i32, i32) {
    %c0_i32 = arith.constant 0 : i32
    return %arg0, %arg1 : i32, i32
  }
}

module attributes {stable_mosaic.version = 11 : i64} {
  func.func @_mm_bn_act_kernel(%arg0: i32, %arg1: i32, %arg2: memref<32x576xbf16, #tpu.memory_space<vmem>>, %arg3: memref<576x128xbf16, #tpu.memory_space<vmem>>, %arg4: memref<1x128xf32, #tpu.memory_space<vmem>>, %arg5: memref<1x128xf32, #tpu.memory_space<vmem>>, %arg6: memref<32x128xbf16, #tpu.memory_space<vmem>>) attributes {dimension_semantics = [#tpu.dimension_semantics<parallel>, #tpu.dimension_semantics<parallel>], iteration_bounds = array<i64: 1, 1>, scalar_prefetch = 0 : i64, scratch_operands = 0 : i64, tpu.core_type = #tpu.core_type<tc>, window_params = [{transform_indices = @transform_0, window_bounds = array<i64: 32, 576>}, {transform_indices = @transform_1, window_bounds = array<i64: 576, 128>}, {transform_indices = @transform_2, window_bounds = array<i64: 1, 128>}, {transform_indices = @transform_3, window_bounds = array<i64: 1, 128>}, {transform_indices = @transform_4, window_bounds = array<i64: 32, 128>}]} {
    %c0 = arith.constant 0 : index
    %c0_0 = arith.constant 0 : index
    %0 = vector.load %arg2[%c0, %c0_0] : memref<32x576xbf16, #tpu.memory_space<vmem>>, vector<32x576xbf16>
    %c0_1 = arith.constant 0 : index
    %c0_2 = arith.constant 0 : index
    %1 = vector.load %arg3[%c0_1, %c0_2] : memref<576x128xbf16, #tpu.memory_space<vmem>>, vector<576x128xbf16>
    %cst = arith.constant dense<0.000000e+00> : vector<32x128xf32>
    %2 = tpu.matmul %0, %1, %cst {dimension_numbers = #tpu.dot_dimension_numbers<[1], [0], [0], [1], [0, 0, 1, 1], [], []>} : vector<32x576xbf16>, vector<576x128xbf16>, vector<32x128xf32> -> vector<32x128xf32>
    %c0_3 = arith.constant 0 : index
    %c0_4 = arith.constant 0 : index
    %3 = vector.load %arg4[%c0_3, %c0_4] : memref<1x128xf32, #tpu.memory_space<vmem>>, vector<1x128xf32>
    %4 = vector.broadcast %3 : vector<1x128xf32> to vector<32x128xf32>
    %5 = arith.mulf %2, %4 : vector<32x128xf32>
    %c0_5 = arith.constant 0 : index
    %c0_6 = arith.constant 0 : index
    %6 = vector.load %arg5[%c0_5, %c0_6] : memref<1x128xf32, #tpu.memory_space<vmem>>, vector<1x128xf32>
    %7 = vector.broadcast %6 : vector<1x128xf32> to vector<32x128xf32>
    %8 = arith.addf %5, %7 : vector<32x128xf32>
    %cst_7 = arith.constant 0.000000e+00 : f32
    %9 = vector.broadcast %cst_7 : f32 to vector<32x128xf32>
    %10 = arith.maximumf %8, %9 : vector<32x128xf32>
    %11 = arith.truncf %10 : vector<32x128xf32> to vector<32x128xbf16>
    %c0_8 = arith.constant 0 : index
    %c0_9 = arith.constant 0 : index
    %12 = vector.load %arg6[%c0_8, %c0_9] : memref<32x128xbf16, #tpu.memory_space<vmem>>, vector<32x128xbf16>
    tpu.vector_store %arg6[%c0_8, %c0_9], %11 {strides = array<i32>} : memref<32x128xbf16, #tpu.memory_space<vmem>>, vector<32x128xbf16>,
    return
  }
  func.func @transform_0(%arg0: i32, %arg1: i32) -> (i32, i32) {
    %c0_i32 = arith.constant 0 : i32
    %c0_i32_0 = arith.constant 0 : i32
    return %arg0, %c0_i32 : i32, i32
  }
  func.func @transform_1(%arg0: i32, %arg1: i32) -> (i32, i32) {
    %c0_i32 = arith.constant 0 : i32
    %c0_i32_0 = arith.constant 0 : i32
    return %c0_i32, %arg1 : i32, i32
  }
  func.func @transform_2(%arg0: i32, %arg1: i32) -> (i32, i32) {
    %c0_i32 = arith.constant 0 : i32
    %c0_i32_0 = arith.constant 0 : i32
    return %c0_i32, %arg1 : i32, i32
  }
  func.func @transform_3(%arg0: i32, %arg1: i32) -> (i32, i32) {
    %c0_i32 = arith.constant 0 : i32
    %c0_i32_0 = arith.constant 0 : i32
    return %c0_i32, %arg1 : i32, i32
  }
  func.func @transform_4(%arg0: i32, %arg1: i32) -> (i32, i32) {
    %c0_i32 = arith.constant 0 : i32
    return %arg0, %arg1 : i32, i32
  }
}

module attributes {stable_mosaic.version = 11 : i64} {
  func.func @_mm_bn_act_kernel(%arg0: i32, %arg1: i32, %arg2: memref<32x64xbf16, #tpu.memory_space<vmem>>, %arg3: memref<64x128xbf16, #tpu.memory_space<vmem>>, %arg4: memref<1x128xf32, #tpu.memory_space<vmem>>, %arg5: memref<1x128xf32, #tpu.memory_space<vmem>>, %arg6: memref<32x128xbf16, #tpu.memory_space<vmem>>) attributes {dimension_semantics = [#tpu.dimension_semantics<parallel>, #tpu.dimension_semantics<parallel>], iteration_bounds = array<i64: 1, 1>, scalar_prefetch = 0 : i64, scratch_operands = 0 : i64, tpu.core_type = #tpu.core_type<tc>, window_params = [{transform_indices = @transform_0, window_bounds = array<i64: 32, 64>}, {transform_indices = @transform_1, window_bounds = array<i64: 64, 128>}, {transform_indices = @transform_2, window_bounds = array<i64: 1, 128>}, {transform_indices = @transform_3, window_bounds = array<i64: 1, 128>}, {transform_indices = @transform_4, window_bounds = array<i64: 32, 128>}]} {
    %c0 = arith.constant 0 : index
    %c0_0 = arith.constant 0 : index
    %0 = vector.load %arg2[%c0, %c0_0] : memref<32x64xbf16, #tpu.memory_space<vmem>>, vector<32x64xbf16>
    %c0_1 = arith.constant 0 : index
    %c0_2 = arith.constant 0 : index
    %1 = vector.load %arg3[%c0_1, %c0_2] : memref<64x128xbf16, #tpu.memory_space<vmem>>, vector<64x128xbf16>
    %cst = arith.constant dense<0.000000e+00> : vector<32x128xf32>
    %2 = tpu.matmul %0, %1, %cst {dimension_numbers = #tpu.dot_dimension_numbers<[1], [0], [0], [1], [0, 0, 1, 1], [], []>} : vector<32x64xbf16>, vector<64x128xbf16>, vector<32x128xf32> -> vector<32x128xf32>
    %c0_3 = arith.constant 0 : index
    %c0_4 = arith.constant 0 : index
    %3 = vector.load %arg4[%c0_3, %c0_4] : memref<1x128xf32, #tpu.memory_space<vmem>>, vector<1x128xf32>
    %4 = vector.broadcast %3 : vector<1x128xf32> to vector<32x128xf32>
    %5 = arith.mulf %2, %4 : vector<32x128xf32>
    %c0_5 = arith.constant 0 : index
    %c0_6 = arith.constant 0 : index
    %6 = vector.load %arg5[%c0_5, %c0_6] : memref<1x128xf32, #tpu.memory_space<vmem>>, vector<1x128xf32>
    %7 = vector.broadcast %6 : vector<1x128xf32> to vector<32x128xf32>
    %8 = arith.addf %5, %7 : vector<32x128xf32>
    %9 = arith.truncf %8 : vector<32x128xf32> to vector<32x128xbf16>
    %c0_7 = arith.constant 0 : index
    %c0_8 = arith.constant 0 : index
    %10 = vector.load %arg6[%c0_7, %c0_8] : memref<32x128xbf16, #tpu.memory_space<vmem>>, vector<32x128xbf16>
    tpu.vector_store %arg6[%c0_7, %c0_8], %9 {strides = array<i32>} : memref<32x128xbf16, #tpu.memory_space<vmem>>, vector<32x128xbf16>,
    return
  }
  func.func @transform_0(%arg0: i32, %arg1: i32) -> (i32, i32) {
    %c0_i32 = arith.constant 0 : i32
    %c0_i32_0 = arith.constant 0 : i32
    return %arg0, %c0_i32 : i32, i32
  }
  func.func @transform_1(%arg0: i32, %arg1: i32) -> (i32, i32) {
    %c0_i32 = arith.constant 0 : i32
    %c0_i32_0 = arith.constant 0 : i32
    return %c0_i32, %arg1 : i32, i32
  }
  func.func @transform_2(%arg0: i32, %arg1: i32) -> (i32, i32) {
    %c0_i32 = arith.constant 0 : i32
    %c0_i32_0 = arith.constant 0 : i32
    return %c0_i32, %arg1 : i32, i32
  }
  func.func @transform_3(%arg0: i32, %arg1: i32) -> (i32, i32) {
    %c0_i32 = arith.constant 0 : i32
    %c0_i32_0 = arith.constant 0 : i32
    return %c0_i32, %arg1 : i32, i32
  }
  func.func @transform_4(%arg0: i32, %arg1: i32) -> (i32, i32) {
    %c0_i32 = arith.constant 0 : i32
    return %arg0, %arg1 : i32, i32
  }
}

module attributes {stable_mosaic.version = 11 : i64} {
  func.func @_mm_bn_act_kernel(%arg0: i32, %arg1: i32, %arg2: memref<32x1152xbf16, #tpu.memory_space<vmem>>, %arg3: memref<1152x128xbf16, #tpu.memory_space<vmem>>, %arg4: memref<1x128xf32, #tpu.memory_space<vmem>>, %arg5: memref<1x128xf32, #tpu.memory_space<vmem>>, %arg6: memref<32x128xbf16, #tpu.memory_space<vmem>>) attributes {dimension_semantics = [#tpu.dimension_semantics<parallel>, #tpu.dimension_semantics<parallel>], iteration_bounds = array<i64: 1, 1>, scalar_prefetch = 0 : i64, scratch_operands = 0 : i64, tpu.core_type = #tpu.core_type<tc>, window_params = [{transform_indices = @transform_0, window_bounds = array<i64: 32, 1152>}, {transform_indices = @transform_1, window_bounds = array<i64: 1152, 128>}, {transform_indices = @transform_2, window_bounds = array<i64: 1, 128>}, {transform_indices = @transform_3, window_bounds = array<i64: 1, 128>}, {transform_indices = @transform_4, window_bounds = array<i64: 32, 128>}]} {
    %c0 = arith.constant 0 : index
    %c0_0 = arith.constant 0 : index
    %0 = vector.load %arg2[%c0, %c0_0] : memref<32x1152xbf16, #tpu.memory_space<vmem>>, vector<32x1152xbf16>
    %c0_1 = arith.constant 0 : index
    %c0_2 = arith.constant 0 : index
    %1 = vector.load %arg3[%c0_1, %c0_2] : memref<1152x128xbf16, #tpu.memory_space<vmem>>, vector<1152x128xbf16>
    %cst = arith.constant dense<0.000000e+00> : vector<32x128xf32>
    %2 = tpu.matmul %0, %1, %cst {dimension_numbers = #tpu.dot_dimension_numbers<[1], [0], [0], [1], [0, 0, 1, 1], [], []>} : vector<32x1152xbf16>, vector<1152x128xbf16>, vector<32x128xf32> -> vector<32x128xf32>
    %c0_3 = arith.constant 0 : index
    %c0_4 = arith.constant 0 : index
    %3 = vector.load %arg4[%c0_3, %c0_4] : memref<1x128xf32, #tpu.memory_space<vmem>>, vector<1x128xf32>
    %4 = vector.broadcast %3 : vector<1x128xf32> to vector<32x128xf32>
    %5 = arith.mulf %2, %4 : vector<32x128xf32>
    %c0_5 = arith.constant 0 : index
    %c0_6 = arith.constant 0 : index
    %6 = vector.load %arg5[%c0_5, %c0_6] : memref<1x128xf32, #tpu.memory_space<vmem>>, vector<1x128xf32>
    %7 = vector.broadcast %6 : vector<1x128xf32> to vector<32x128xf32>
    %8 = arith.addf %5, %7 : vector<32x128xf32>
    %cst_7 = arith.constant 0.000000e+00 : f32
    %9 = vector.broadcast %cst_7 : f32 to vector<32x128xf32>
    %10 = arith.maximumf %8, %9 : vector<32x128xf32>
    %11 = arith.truncf %10 : vector<32x128xf32> to vector<32x128xbf16>
    %c0_8 = arith.constant 0 : index
    %c0_9 = arith.constant 0 : index
    %12 = vector.load %arg6[%c0_8, %c0_9] : memref<32x128xbf16, #tpu.memory_space<vmem>>, vector<32x128xbf16>
    tpu.vector_store %arg6[%c0_8, %c0_9], %11 {strides = array<i32>} : memref<32x128xbf16, #tpu.memory_space<vmem>>, vector<32x128xbf16>,
    return
  }
  func.func @transform_0(%arg0: i32, %arg1: i32) -> (i32, i32) {
    %c0_i32 = arith.constant 0 : i32
    %c0_i32_0 = arith.constant 0 : i32
    return %arg0, %c0_i32 : i32, i32
  }
  func.func @transform_1(%arg0: i32, %arg1: i32) -> (i32, i32) {
    %c0_i32 = arith.constant 0 : i32
    %c0_i32_0 = arith.constant 0 : i32
    return %c0_i32, %arg1 : i32, i32
  }
  func.func @transform_2(%arg0: i32, %arg1: i32) -> (i32, i32) {
    %c0_i32 = arith.constant 0 : i32
    %c0_i32_0 = arith.constant 0 : i32
    return %c0_i32, %arg1 : i32, i32
  }
  func.func @transform_3(%arg0: i32, %arg1: i32) -> (i32, i32) {
    %c0_i32 = arith.constant 0 : i32
    %c0_i32_0 = arith.constant 0 : i32
    return %c0_i32, %arg1 : i32, i32
  }
  func.func @transform_4(%arg0: i32, %arg1: i32) -> (i32, i32) {
    %c0_i32 = arith.constant 0 : i32
    return %arg0, %arg1 : i32, i32
  }
}

module attributes {stable_mosaic.version = 11 : i64} {
  func.func @_mm_bn_res_act_kernel(%arg0: i32, %arg1: i32, %arg2: memref<32x1152xbf16, #tpu.memory_space<vmem>>, %arg3: memref<1152x128xbf16, #tpu.memory_space<vmem>>, %arg4: memref<1x128xf32, #tpu.memory_space<vmem>>, %arg5: memref<1x128xf32, #tpu.memory_space<vmem>>, %arg6: memref<32x128xbf16, #tpu.memory_space<vmem>>, %arg7: memref<32x128xbf16, #tpu.memory_space<vmem>>) attributes {dimension_semantics = [#tpu.dimension_semantics<parallel>, #tpu.dimension_semantics<parallel>], iteration_bounds = array<i64: 1, 1>, scalar_prefetch = 0 : i64, scratch_operands = 0 : i64, tpu.core_type = #tpu.core_type<tc>, window_params = [{transform_indices = @transform_0, window_bounds = array<i64: 32, 1152>}, {transform_indices = @transform_1, window_bounds = array<i64: 1152, 128>}, {transform_indices = @transform_2, window_bounds = array<i64: 1, 128>}, {transform_indices = @transform_3, window_bounds = array<i64: 1, 128>}, {transform_indices = @transform_4, window_bounds = array<i64: 32, 128>}, {transform_indices = @transform_5, window_bounds = array<i64: 32, 128>}]} {
    %c0 = arith.constant 0 : index
    %c0_0 = arith.constant 0 : index
    %0 = vector.load %arg2[%c0, %c0_0] : memref<32x1152xbf16, #tpu.memory_space<vmem>>, vector<32x1152xbf16>
    %c0_1 = arith.constant 0 : index
    %c0_2 = arith.constant 0 : index
    %1 = vector.load %arg3[%c0_1, %c0_2] : memref<1152x128xbf16, #tpu.memory_space<vmem>>, vector<1152x128xbf16>
    %cst = arith.constant dense<0.000000e+00> : vector<32x128xf32>
    %2 = tpu.matmul %0, %1, %cst {dimension_numbers = #tpu.dot_dimension_numbers<[1], [0], [0], [1], [0, 0, 1, 1], [], []>} : vector<32x1152xbf16>, vector<1152x128xbf16>, vector<32x128xf32> -> vector<32x128xf32>
    %c0_3 = arith.constant 0 : index
    %c0_4 = arith.constant 0 : index
    %3 = vector.load %arg4[%c0_3, %c0_4] : memref<1x128xf32, #tpu.memory_space<vmem>>, vector<1x128xf32>
    %4 = vector.broadcast %3 : vector<1x128xf32> to vector<32x128xf32>
    %5 = arith.mulf %2, %4 : vector<32x128xf32>
    %c0_5 = arith.constant 0 : index
    %c0_6 = arith.constant 0 : index
    %6 = vector.load %arg5[%c0_5, %c0_6] : memref<1x128xf32, #tpu.memory_space<vmem>>, vector<1x128xf32>
    %7 = vector.broadcast %6 : vector<1x128xf32> to vector<32x128xf32>
    %8 = arith.addf %5, %7 : vector<32x128xf32>
    %c0_7 = arith.constant 0 : index
    %c0_8 = arith.constant 0 : index
    %9 = vector.load %arg6[%c0_7, %c0_8] : memref<32x128xbf16, #tpu.memory_space<vmem>>, vector<32x128xbf16>
    %10 = arith.extf %9 : vector<32x128xbf16> to vector<32x128xf32>
    %11 = arith.addf %8, %10 : vector<32x128xf32>
    %cst_9 = arith.constant 0.000000e+00 : f32
    %12 = vector.broadcast %cst_9 : f32 to vector<32x128xf32>
    %13 = arith.maximumf %11, %12 : vector<32x128xf32>
    %14 = arith.truncf %13 : vector<32x128xf32> to vector<32x128xbf16>
    %c0_10 = arith.constant 0 : index
    %c0_11 = arith.constant 0 : index
    %15 = vector.load %arg7[%c0_10, %c0_11] : memref<32x128xbf16, #tpu.memory_space<vmem>>, vector<32x128xbf16>
    tpu.vector_store %arg7[%c0_10, %c0_11], %14 {strides = array<i32>} : memref<32x128xbf16, #tpu.memory_space<vmem>>, vector<32x128xbf16>,
    return
  }
  func.func @transform_0(%arg0: i32, %arg1: i32) -> (i32, i32) {
    %c0_i32 = arith.constant 0 : i32
    %c0_i32_0 = arith.constant 0 : i32
    return %arg0, %c0_i32 : i32, i32
  }
  func.func @transform_1(%arg0: i32, %arg1: i32) -> (i32, i32) {
    %c0_i32 = arith.constant 0 : i32
    %c0_i32_0 = arith.constant 0 : i32
    return %c0_i32, %arg1 : i32, i32
  }
  func.func @transform_2(%arg0: i32, %arg1: i32) -> (i32, i32) {
    %c0_i32 = arith.constant 0 : i32
    %c0_i32_0 = arith.constant 0 : i32
    return %c0_i32, %arg1 : i32, i32
  }
  func.func @transform_3(%arg0: i32, %arg1: i32) -> (i32, i32) {
    %c0_i32 = arith.constant 0 : i32
    %c0_i32_0 = arith.constant 0 : i32
    return %c0_i32, %arg1 : i32, i32
  }
  func.func @transform_4(%arg0: i32, %arg1: i32) -> (i32, i32) {
    %c0_i32 = arith.constant 0 : i32
    return %arg0, %arg1 : i32, i32
  }
  func.func @transform_5(%arg0: i32, %arg1: i32) -> (i32, i32) {
    %c0_i32 = arith.constant 0 : i32
    return %arg0, %arg1 : i32, i32
  }
}

module attributes {stable_mosaic.version = 11 : i64} {
  func.func @_mm_bn_act_kernel(%arg0: i32, %arg1: i32, %arg2: memref<8x1152xbf16, #tpu.memory_space<vmem>>, %arg3: memref<1152x256xbf16, #tpu.memory_space<vmem>>, %arg4: memref<1x256xf32, #tpu.memory_space<vmem>>, %arg5: memref<1x256xf32, #tpu.memory_space<vmem>>, %arg6: memref<8x256xbf16, #tpu.memory_space<vmem>>) attributes {dimension_semantics = [#tpu.dimension_semantics<parallel>, #tpu.dimension_semantics<parallel>], iteration_bounds = array<i64: 1, 1>, scalar_prefetch = 0 : i64, scratch_operands = 0 : i64, tpu.core_type = #tpu.core_type<tc>, window_params = [{transform_indices = @transform_0, window_bounds = array<i64: 8, 1152>}, {transform_indices = @transform_1, window_bounds = array<i64: 1152, 256>}, {transform_indices = @transform_2, window_bounds = array<i64: 1, 256>}, {transform_indices = @transform_3, window_bounds = array<i64: 1, 256>}, {transform_indices = @transform_4, window_bounds = array<i64: 8, 256>}]} {
    %c0 = arith.constant 0 : index
    %c0_0 = arith.constant 0 : index
    %0 = vector.load %arg2[%c0, %c0_0] : memref<8x1152xbf16, #tpu.memory_space<vmem>>, vector<8x1152xbf16>
    %c0_1 = arith.constant 0 : index
    %c0_2 = arith.constant 0 : index
    %1 = vector.load %arg3[%c0_1, %c0_2] : memref<1152x256xbf16, #tpu.memory_space<vmem>>, vector<1152x256xbf16>
    %cst = arith.constant dense<0.000000e+00> : vector<8x256xf32>
    %2 = tpu.matmul %0, %1, %cst {dimension_numbers = #tpu.dot_dimension_numbers<[1], [0], [0], [1], [0, 0, 1, 1], [], []>} : vector<8x1152xbf16>, vector<1152x256xbf16>, vector<8x256xf32> -> vector<8x256xf32>
    %c0_3 = arith.constant 0 : index
    %c0_4 = arith.constant 0 : index
    %3 = vector.load %arg4[%c0_3, %c0_4] : memref<1x256xf32, #tpu.memory_space<vmem>>, vector<1x256xf32>
    %4 = vector.broadcast %3 : vector<1x256xf32> to vector<8x256xf32>
    %5 = arith.mulf %2, %4 : vector<8x256xf32>
    %c0_5 = arith.constant 0 : index
    %c0_6 = arith.constant 0 : index
    %6 = vector.load %arg5[%c0_5, %c0_6] : memref<1x256xf32, #tpu.memory_space<vmem>>, vector<1x256xf32>
    %7 = vector.broadcast %6 : vector<1x256xf32> to vector<8x256xf32>
    %8 = arith.addf %5, %7 : vector<8x256xf32>
    %cst_7 = arith.constant 0.000000e+00 : f32
    %9 = vector.broadcast %cst_7 : f32 to vector<8x256xf32>
    %10 = arith.maximumf %8, %9 : vector<8x256xf32>
    %11 = arith.truncf %10 : vector<8x256xf32> to vector<8x256xbf16>
    %c0_8 = arith.constant 0 : index
    %c0_9 = arith.constant 0 : index
    %12 = vector.load %arg6[%c0_8, %c0_9] : memref<8x256xbf16, #tpu.memory_space<vmem>>, vector<8x256xbf16>
    tpu.vector_store %arg6[%c0_8, %c0_9], %11 {strides = array<i32>} : memref<8x256xbf16, #tpu.memory_space<vmem>>, vector<8x256xbf16>,
    return
  }
  func.func @transform_0(%arg0: i32, %arg1: i32) -> (i32, i32) {
    %c0_i32 = arith.constant 0 : i32
    %c0_i32_0 = arith.constant 0 : i32
    return %arg0, %c0_i32 : i32, i32
  }
  func.func @transform_1(%arg0: i32, %arg1: i32) -> (i32, i32) {
    %c0_i32 = arith.constant 0 : i32
    %c0_i32_0 = arith.constant 0 : i32
    return %c0_i32, %arg1 : i32, i32
  }
  func.func @transform_2(%arg0: i32, %arg1: i32) -> (i32, i32) {
    %c0_i32 = arith.constant 0 : i32
    %c0_i32_0 = arith.constant 0 : i32
    return %c0_i32, %arg1 : i32, i32
  }
  func.func @transform_3(%arg0: i32, %arg1: i32) -> (i32, i32) {
    %c0_i32 = arith.constant 0 : i32
    %c0_i32_0 = arith.constant 0 : i32
    return %c0_i32, %arg1 : i32, i32
  }
  func.func @transform_4(%arg0: i32, %arg1: i32) -> (i32, i32) {
    %c0_i32 = arith.constant 0 : i32
    return %arg0, %arg1 : i32, i32
  }
}

module attributes {stable_mosaic.version = 11 : i64} {
  func.func @_mm_bn_act_kernel(%arg0: i32, %arg1: i32, %arg2: memref<8x128xbf16, #tpu.memory_space<vmem>>, %arg3: memref<128x256xbf16, #tpu.memory_space<vmem>>, %arg4: memref<1x256xf32, #tpu.memory_space<vmem>>, %arg5: memref<1x256xf32, #tpu.memory_space<vmem>>, %arg6: memref<8x256xbf16, #tpu.memory_space<vmem>>) attributes {dimension_semantics = [#tpu.dimension_semantics<parallel>, #tpu.dimension_semantics<parallel>], iteration_bounds = array<i64: 1, 1>, scalar_prefetch = 0 : i64, scratch_operands = 0 : i64, tpu.core_type = #tpu.core_type<tc>, window_params = [{transform_indices = @transform_0, window_bounds = array<i64: 8, 128>}, {transform_indices = @transform_1, window_bounds = array<i64: 128, 256>}, {transform_indices = @transform_2, window_bounds = array<i64: 1, 256>}, {transform_indices = @transform_3, window_bounds = array<i64: 1, 256>}, {transform_indices = @transform_4, window_bounds = array<i64: 8, 256>}]} {
    %c0 = arith.constant 0 : index
    %c0_0 = arith.constant 0 : index
    %0 = vector.load %arg2[%c0, %c0_0] : memref<8x128xbf16, #tpu.memory_space<vmem>>, vector<8x128xbf16>
    %c0_1 = arith.constant 0 : index
    %c0_2 = arith.constant 0 : index
    %1 = vector.load %arg3[%c0_1, %c0_2] : memref<128x256xbf16, #tpu.memory_space<vmem>>, vector<128x256xbf16>
    %cst = arith.constant dense<0.000000e+00> : vector<8x256xf32>
    %2 = tpu.matmul %0, %1, %cst {dimension_numbers = #tpu.dot_dimension_numbers<[1], [0], [0], [1], [0, 0, 1, 1], [], []>} : vector<8x128xbf16>, vector<128x256xbf16>, vector<8x256xf32> -> vector<8x256xf32>
    %c0_3 = arith.constant 0 : index
    %c0_4 = arith.constant 0 : index
    %3 = vector.load %arg4[%c0_3, %c0_4] : memref<1x256xf32, #tpu.memory_space<vmem>>, vector<1x256xf32>
    %4 = vector.broadcast %3 : vector<1x256xf32> to vector<8x256xf32>
    %5 = arith.mulf %2, %4 : vector<8x256xf32>
    %c0_5 = arith.constant 0 : index
    %c0_6 = arith.constant 0 : index
    %6 = vector.load %arg5[%c0_5, %c0_6] : memref<1x256xf32, #tpu.memory_space<vmem>>, vector<1x256xf32>
    %7 = vector.broadcast %6 : vector<1x256xf32> to vector<8x256xf32>
    %8 = arith.addf %5, %7 : vector<8x256xf32>
    %9 = arith.truncf %8 : vector<8x256xf32> to vector<8x256xbf16>
    %c0_7 = arith.constant 0 : index
    %c0_8 = arith.constant 0 : index
    %10 = vector.load %arg6[%c0_7, %c0_8] : memref<8x256xbf16, #tpu.memory_space<vmem>>, vector<8x256xbf16>
    tpu.vector_store %arg6[%c0_7, %c0_8], %9 {strides = array<i32>} : memref<8x256xbf16, #tpu.memory_space<vmem>>, vector<8x256xbf16>,
    return
  }
  func.func @transform_0(%arg0: i32, %arg1: i32) -> (i32, i32) {
    %c0_i32 = arith.constant 0 : i32
    %c0_i32_0 = arith.constant 0 : i32
    return %arg0, %c0_i32 : i32, i32
  }
  func.func @transform_1(%arg0: i32, %arg1: i32) -> (i32, i32) {
    %c0_i32 = arith.constant 0 : i32
    %c0_i32_0 = arith.constant 0 : i32
    return %c0_i32, %arg1 : i32, i32
  }
  func.func @transform_2(%arg0: i32, %arg1: i32) -> (i32, i32) {
    %c0_i32 = arith.constant 0 : i32
    %c0_i32_0 = arith.constant 0 : i32
    return %c0_i32, %arg1 : i32, i32
  }
  func.func @transform_3(%arg0: i32, %arg1: i32) -> (i32, i32) {
    %c0_i32 = arith.constant 0 : i32
    %c0_i32_0 = arith.constant 0 : i32
    return %c0_i32, %arg1 : i32, i32
  }
  func.func @transform_4(%arg0: i32, %arg1: i32) -> (i32, i32) {
    %c0_i32 = arith.constant 0 : i32
    return %arg0, %arg1 : i32, i32
  }
}

module attributes {stable_mosaic.version = 11 : i64} {
  func.func @_mm_bn_res_act_kernel(%arg0: i32, %arg1: i32, %arg2: memref<8x2304xbf16, #tpu.memory_space<vmem>>, %arg3: memref<2304x256xbf16, #tpu.memory_space<vmem>>, %arg4: memref<1x256xf32, #tpu.memory_space<vmem>>, %arg5: memref<1x256xf32, #tpu.memory_space<vmem>>, %arg6: memref<8x256xbf16, #tpu.memory_space<vmem>>, %arg7: memref<8x256xbf16, #tpu.memory_space<vmem>>) attributes {dimension_semantics = [#tpu.dimension_semantics<parallel>, #tpu.dimension_semantics<parallel>], iteration_bounds = array<i64: 1, 1>, scalar_prefetch = 0 : i64, scratch_operands = 0 : i64, tpu.core_type = #tpu.core_type<tc>, window_params = [{transform_indices = @transform_0, window_bounds = array<i64: 8, 2304>}, {transform_indices = @transform_1, window_bounds = array<i64: 2304, 256>}, {transform_indices = @transform_2, window_bounds = array<i64: 1, 256>}, {transform_indices = @transform_3, window_bounds = array<i64: 1, 256>}, {transform_indices = @transform_4, window_bounds = array<i64: 8, 256>}, {transform_indices = @transform_5, window_bounds = array<i64: 8, 256>}]} {
    %c0 = arith.constant 0 : index
    %c0_0 = arith.constant 0 : index
    %0 = vector.load %arg2[%c0, %c0_0] : memref<8x2304xbf16, #tpu.memory_space<vmem>>, vector<8x2304xbf16>
    %c0_1 = arith.constant 0 : index
    %c0_2 = arith.constant 0 : index
    %1 = vector.load %arg3[%c0_1, %c0_2] : memref<2304x256xbf16, #tpu.memory_space<vmem>>, vector<2304x256xbf16>
    %cst = arith.constant dense<0.000000e+00> : vector<8x256xf32>
    %2 = tpu.matmul %0, %1, %cst {dimension_numbers = #tpu.dot_dimension_numbers<[1], [0], [0], [1], [0, 0, 1, 1], [], []>} : vector<8x2304xbf16>, vector<2304x256xbf16>, vector<8x256xf32> -> vector<8x256xf32>
    %c0_3 = arith.constant 0 : index
    %c0_4 = arith.constant 0 : index
    %3 = vector.load %arg4[%c0_3, %c0_4] : memref<1x256xf32, #tpu.memory_space<vmem>>, vector<1x256xf32>
    %4 = vector.broadcast %3 : vector<1x256xf32> to vector<8x256xf32>
    %5 = arith.mulf %2, %4 : vector<8x256xf32>
    %c0_5 = arith.constant 0 : index
    %c0_6 = arith.constant 0 : index
    %6 = vector.load %arg5[%c0_5, %c0_6] : memref<1x256xf32, #tpu.memory_space<vmem>>, vector<1x256xf32>
    %7 = vector.broadcast %6 : vector<1x256xf32> to vector<8x256xf32>
    %8 = arith.addf %5, %7 : vector<8x256xf32>
    %c0_7 = arith.constant 0 : index
    %c0_8 = arith.constant 0 : index
    %9 = vector.load %arg6[%c0_7, %c0_8] : memref<8x256xbf16, #tpu.memory_space<vmem>>, vector<8x256xbf16>
    %10 = arith.extf %9 : vector<8x256xbf16> to vector<8x256xf32>
    %11 = arith.addf %8, %10 : vector<8x256xf32>
    %cst_9 = arith.constant 0.000000e+00 : f32
    %12 = vector.broadcast %cst_9 : f32 to vector<8x256xf32>
    %13 = arith.maximumf %11, %12 : vector<8x256xf32>
    %14 = arith.truncf %13 : vector<8x256xf32> to vector<8x256xbf16>
    %c0_10 = arith.constant 0 : index
    %c0_11 = arith.constant 0 : index
    %15 = vector.load %arg7[%c0_10, %c0_11] : memref<8x256xbf16, #tpu.memory_space<vmem>>, vector<8x256xbf16>
    tpu.vector_store %arg7[%c0_10, %c0_11], %14 {strides = array<i32>} : memref<8x256xbf16, #tpu.memory_space<vmem>>, vector<8x256xbf16>,
    return
  }
  func.func @transform_0(%arg0: i32, %arg1: i32) -> (i32, i32) {
    %c0_i32 = arith.constant 0 : i32
    %c0_i32_0 = arith.constant 0 : i32
    return %arg0, %c0_i32 : i32, i32
  }
  func.func @transform_1(%arg0: i32, %arg1: i32) -> (i32, i32) {
    %c0_i32 = arith.constant 0 : i32
    %c0_i32_0 = arith.constant 0 : i32
    return %c0_i32, %arg1 : i32, i32
  }
  func.func @transform_2(%arg0: i32, %arg1: i32) -> (i32, i32) {
    %c0_i32 = arith.constant 0 : i32
    %c0_i32_0 = arith.constant 0 : i32
    return %c0_i32, %arg1 : i32, i32
  }
  func.func @transform_3(%arg0: i32, %arg1: i32) -> (i32, i32) {
    %c0_i32 = arith.constant 0 : i32
    %c0_i32_0 = arith.constant 0 : i32
    return %c0_i32, %arg1 : i32, i32
  }
  func.func @transform_4(%arg0: i32, %arg1: i32) -> (i32, i32) {
    %c0_i32 = arith.constant 0 : i32
    return %arg0, %arg1 : i32, i32
  }
  func.func @transform_5(%arg0: i32, %arg1: i32) -> (i32, i32) {
    %c0_i32 = arith.constant 0 : i32
    return %arg0, %arg1 : i32, i32
  }
}

module attributes {stable_mosaic.version = 11 : i64} {
  func.func @_mm_bn_act_kernel(%arg0: i32, %arg1: i32, %arg2: memref<8x2304xbf16, #tpu.memory_space<vmem>>, %arg3: memref<2304x256xbf16, #tpu.memory_space<vmem>>, %arg4: memref<1x256xf32, #tpu.memory_space<vmem>>, %arg5: memref<1x256xf32, #tpu.memory_space<vmem>>, %arg6: memref<8x256xbf16, #tpu.memory_space<vmem>>) attributes {dimension_semantics = [#tpu.dimension_semantics<parallel>, #tpu.dimension_semantics<parallel>], iteration_bounds = array<i64: 1, 1>, scalar_prefetch = 0 : i64, scratch_operands = 0 : i64, tpu.core_type = #tpu.core_type<tc>, window_params = [{transform_indices = @transform_0, window_bounds = array<i64: 8, 2304>}, {transform_indices = @transform_1, window_bounds = array<i64: 2304, 256>}, {transform_indices = @transform_2, window_bounds = array<i64: 1, 256>}, {transform_indices = @transform_3, window_bounds = array<i64: 1, 256>}, {transform_indices = @transform_4, window_bounds = array<i64: 8, 256>}]} {
    %c0 = arith.constant 0 : index
    %c0_0 = arith.constant 0 : index
    %0 = vector.load %arg2[%c0, %c0_0] : memref<8x2304xbf16, #tpu.memory_space<vmem>>, vector<8x2304xbf16>
    %c0_1 = arith.constant 0 : index
    %c0_2 = arith.constant 0 : index
    %1 = vector.load %arg3[%c0_1, %c0_2] : memref<2304x256xbf16, #tpu.memory_space<vmem>>, vector<2304x256xbf16>
    %cst = arith.constant dense<0.000000e+00> : vector<8x256xf32>
    %2 = tpu.matmul %0, %1, %cst {dimension_numbers = #tpu.dot_dimension_numbers<[1], [0], [0], [1], [0, 0, 1, 1], [], []>} : vector<8x2304xbf16>, vector<2304x256xbf16>, vector<8x256xf32> -> vector<8x256xf32>
    %c0_3 = arith.constant 0 : index
    %c0_4 = arith.constant 0 : index
    %3 = vector.load %arg4[%c0_3, %c0_4] : memref<1x256xf32, #tpu.memory_space<vmem>>, vector<1x256xf32>
    %4 = vector.broadcast %3 : vector<1x256xf32> to vector<8x256xf32>
    %5 = arith.mulf %2, %4 : vector<8x256xf32>
    %c0_5 = arith.constant 0 : index
    %c0_6 = arith.constant 0 : index
    %6 = vector.load %arg5[%c0_5, %c0_6] : memref<1x256xf32, #tpu.memory_space<vmem>>, vector<1x256xf32>
    %7 = vector.broadcast %6 : vector<1x256xf32> to vector<8x256xf32>
    %8 = arith.addf %5, %7 : vector<8x256xf32>
    %cst_7 = arith.constant 0.000000e+00 : f32
    %9 = vector.broadcast %cst_7 : f32 to vector<8x256xf32>
    %10 = arith.maximumf %8, %9 : vector<8x256xf32>
    %11 = arith.truncf %10 : vector<8x256xf32> to vector<8x256xbf16>
    %c0_8 = arith.constant 0 : index
    %c0_9 = arith.constant 0 : index
    %12 = vector.load %arg6[%c0_8, %c0_9] : memref<8x256xbf16, #tpu.memory_space<vmem>>, vector<8x256xbf16>
    tpu.vector_store %arg6[%c0_8, %c0_9], %11 {strides = array<i32>} : memref<8x256xbf16, #tpu.memory_space<vmem>>, vector<8x256xbf16>,
    return
  }
  func.func @transform_0(%arg0: i32, %arg1: i32) -> (i32, i32) {
    %c0_i32 = arith.constant 0 : i32
    %c0_i32_0 = arith.constant 0 : i32
    return %arg0, %c0_i32 : i32, i32
  }
  func.func @transform_1(%arg0: i32, %arg1: i32) -> (i32, i32) {
    %c0_i32 = arith.constant 0 : i32
    %c0_i32_0 = arith.constant 0 : i32
    return %c0_i32, %arg1 : i32, i32
  }
  func.func @transform_2(%arg0: i32, %arg1: i32) -> (i32, i32) {
    %c0_i32 = arith.constant 0 : i32
    %c0_i32_0 = arith.constant 0 : i32
    return %c0_i32, %arg1 : i32, i32
  }
  func.func @transform_3(%arg0: i32, %arg1: i32) -> (i32, i32) {
    %c0_i32 = arith.constant 0 : i32
    %c0_i32_0 = arith.constant 0 : i32
    return %c0_i32, %arg1 : i32, i32
  }
  func.func @transform_4(%arg0: i32, %arg1: i32) -> (i32, i32) {
    %c0_i32 = arith.constant 0 : i32
    return %arg0, %arg1 : i32, i32
  }
}

module attributes {stable_mosaic.version = 11 : i64} {
  func.func @_head_kernel(%arg0: i32, %arg1: memref<2x128x256xbf16, #tpu.memory_space<vmem>>, %arg2: memref<2x128xf32, #tpu.memory_space<vmem>>, %arg3: memref<2x256xf32, #tpu.memory_space<vmem>>, %arg4: memref<2x256xf32, #tpu.memory_space<vmem>>) attributes {dimension_semantics = [#tpu.dimension_semantics<arbitrary>], iteration_bounds = array<i64: 1>, scalar_prefetch = 0 : i64, scratch_operands = 1 : i64, tpu.core_type = #tpu.core_type<tc>, window_params = [{transform_indices = @transform_0, window_bounds = array<i64: 2, 128, 256>}, {transform_indices = @transform_1, window_bounds = array<i64: 2, 128>}, {pipeline_mode = #tpu.pipeline_mode<synchronous>, transform_indices = @transform_2, window_bounds = array<i64: 2, 256>}]} {
    %c0_i32 = arith.constant 0 : i32
    %0 = arith.cmpi eq, %arg0, %c0_i32 : i32
    %1 = arith.extui %0 : i1 to i32
    %c0_i32_0 = arith.constant 0 : i32
    %2 = arith.cmpi ne, %1, %c0_i32_0 : i32
    scf.if %2 {
      %cst_13 = arith.constant 0.000000e+00 : f32
      %16 = vector.broadcast %cst_13 : f32 to vector<2x256xf32>
      %c0_14 = arith.constant 0 : index
      %c0_15 = arith.constant 0 : index
      %17 = vector.load %arg4[%c0_14, %c0_15] : memref<2x256xf32, #tpu.memory_space<vmem>>, vector<2x256xf32>
      tpu.vector_store %arg4[%c0_14, %c0_15], %16 {strides = array<i32>} : memref<2x256xf32, #tpu.memory_space<vmem>>, vector<2x256xf32>,
    } else {
    }
    %c0 = arith.constant 0 : index
    %c0_1 = arith.constant 0 : index
    %c0_2 = arith.constant 0 : index
    %3 = vector.load %arg1[%c0, %c0_1, %c0_2] : memref<2x128x256xbf16, #tpu.memory_space<vmem>>, vector<2x128x256xbf16>
    %4 = arith.extf %3 : vector<2x128x256xbf16> to vector<2x128x256xf32>
    %cst = arith.constant dense<0.000000e+00> : vector<2x128xf32>
    %5 = vector.multi_reduction <add>, %4, %cst [2] : vector<2x128x256xf32> to vector<2x128xf32>
    %cst_3 = arith.constant 3.906250e-03 : f32
    %6 = vector.broadcast %cst_3 : f32 to vector<2x128xf32>
    %7 = arith.mulf %5, %6 : vector<2x128xf32>
    %c0_4 = arith.constant 0 : index
    %c0_5 = arith.constant 0 : index
    %8 = vector.load %arg2[%c0_4, %c0_5] : memref<2x128xf32, #tpu.memory_space<vmem>>, vector<2x128xf32>
    tpu.vector_store %arg2[%c0_4, %c0_5], %7 {strides = array<i32>} : memref<2x128xf32, #tpu.memory_space<vmem>>, vector<2x128xf32>,
    %c0_6 = arith.constant 0 : index
    %c0_7 = arith.constant 0 : index
    %9 = vector.load %arg4[%c0_6, %c0_7] : memref<2x256xf32, #tpu.memory_space<vmem>>, vector<2x256xf32>
    %cst_8 = arith.constant dense<0.000000e+00> : vector<2x256xf32>
    %10 = vector.multi_reduction <add>, %4, %cst_8 [1] : vector<2x128x256xf32> to vector<2x256xf32>
    %11 = arith.addf %9, %10 : vector<2x256xf32>
    %c0_9 = arith.constant 0 : index
    %c0_10 = arith.constant 0 : index
    %12 = vector.load %arg4[%c0_9, %c0_10] : memref<2x256xf32, #tpu.memory_space<vmem>>, vector<2x256xf32>
    tpu.vector_store %arg4[%c0_9, %c0_10], %11 {strides = array<i32>} : memref<2x256xf32, #tpu.memory_space<vmem>>, vector<2x256xf32>,
    %c0_i32_11 = arith.constant 0 : i32
    %13 = arith.cmpi eq, %arg0, %c0_i32_11 : i32
    %14 = arith.extui %13 : i1 to i32
    %c0_i32_12 = arith.constant 0 : i32
    %15 = arith.cmpi ne, %14, %c0_i32_12 : i32
    scf.if %15 {
      %c0_13 = arith.constant 0 : index
      %c0_14 = arith.constant 0 : index
      %16 = vector.load %arg4[%c0_13, %c0_14] : memref<2x256xf32, #tpu.memory_space<vmem>>, vector<2x256xf32>
      %cst_15 = arith.constant 2.500000e-01 : f32
      %17 = vector.broadcast %cst_15 : f32 to vector<2x256xf32>
      %18 = arith.mulf %16, %17 : vector<2x256xf32>
      %c0_16 = arith.constant 0 : index
      %c0_17 = arith.constant 0 : index
      %19 = vector.load %arg3[%c0_16, %c0_17] : memref<2x256xf32, #tpu.memory_space<vmem>>, vector<2x256xf32>
      tpu.vector_store %arg3[%c0_16, %c0_17], %18 {strides = array<i32>} : memref<2x256xf32, #tpu.memory_space<vmem>>, vector<2x256xf32>,
    } else {
    }
    return
  }
  func.func @transform_0(%arg0: i32) -> (i32, i32, i32) {
    %c0_i32 = arith.constant 0 : i32
    %c0_i32_0 = arith.constant 0 : i32
    %c0_i32_1 = arith.constant 0 : i32
    return %c0_i32, %arg0, %c0_i32_0 : i32, i32, i32
  }
  func.func @transform_1(%arg0: i32) -> (i32, i32) {
    %c0_i32 = arith.constant 0 : i32
    %c0_i32_0 = arith.constant 0 : i32
    return %c0_i32, %arg0 : i32, i32
  }
  func.func @transform_2(%arg0: i32) -> (i32, i32) {
    %c0_i32 = arith.constant 0 : i32
    %c0_i32_0 = arith.constant 0 : i32
    %c0_i32_1 = arith.constant 0 : i32
    return %c0_i32, %c0_i32_0 : i32, i32
  }
}

</mosaic_0001>

<llo_original>
// kernel: feature_extractor_with_attention.17
$region0: #{feature_extractor_with_attention.17}
  #allocation0 [shape = 'u32[]', space=smem, size = 0x4, offset = 0x4, fixed_abs, tag = 'smem constant byte address 0x4 - core index']
  #allocation1 [shape = 'u32[72,128]{1,0:T(1,128)}', space=vmem, size = 0x9000, scoped, tag = 'internal scratch']
  %s0 = inlined_call_operand.vmem [shape: bf16[512,147], index: 0, kind: input, shape index: {}]
  %s1 = inlined_call_operand.vmem [shape: bf16[147,64], index: 1, kind: input, shape index: {}]
  %s2 = inlined_call_operand.vmem [shape: f32[1,64], index: 2, kind: input, shape index: {}]
  %s3 = inlined_call_operand.vmem [shape: f32[1,64], index: 3, kind: input, shape index: {}]
  %s4 = inlined_call_operand.vmem [shape: bf16[512,64], index: 4, kind: output, shape index: {}]
  %s5 = sld [smem:[#allocation0]]
  $region49: #{feature_extractor_with_attention.17} parent=0
    _
  %s7 = ssub.s32 1, %s5
  %s8 = scalar_select 0, %s7, %s5
  loop: start=0, step=1, limit=4
  $region2: #{feature_extractor_with_attention.17} parent=0 // loop_pre_header
    _
  $region3: #{feature_extractor_with_attention.17} parent=0 // loop_header
    %s10 = sphi 0, %s14
    %p11 = scmp.ge.s32.totalorder %s10, 4
    %s17 = sphi 0, %s29
    %s18 = sphi 0, %s25
    %s19 = sphi 0, %s17
    %s20 = sphi 0, %s18
    %s21 = sphi 0, %s19
    %s22 = sphi 0, %s20
    %s32 = sphi 0, %s34
    %s35 = sphi 0, %s32
    %s36 = sphi 0, %s35
    %s52 = sphi 0, %s36
    %s58 = sphi 0, %s60
    %s61 = sphi 0, %s58
    %s62 = sphi 0, %s61
    %s78 = sphi 0, %s62
    %s84 = sphi 0, %s86
    %s87 = sphi 0, %s84
    %s88 = sphi 0, %s87
    %s104 = sphi 0, %s88
    %s110 = sphi 0, %s112
    %s113 = sphi 0, %s110
    %s114 = sphi 0, %s113
    %s130 = sphi 0, %s114
    %s138 = sphi 0, %s140
    %s141 = sphi 0, %s138
    %s142 = sphi 0, %s141
    %s158 = sphi 0, %s142
  $region4: #{feature_extractor_with_attention.17} parent=0 // loop_header_branch
    %13 = sbr.rel (%p11) target = $region8
  $region5: #{feature_extractor_with_attention.17} parent=0 // loop_body
    %s15 = ssub.s32 %s10, 1
    %s16 = ssub.s32 %s10, 2
    %s23 = sadd.s32 1, %s18
    %p24 = scmp.ge.s32.totalorder %s23, 1
    %s25 = scalar_select %p24, 0, %s23
    %s26 = sadd.s32 1, %s17
    %s27 = scalar_select %p24, %s26, %s17
    %p28 = scmp.ge.s32.totalorder %s27, 2
    %s29 = scalar_select %p28, 0, %s27
    %s30 = ssub.s32 %s17, %s29
    %p31 = scmp.eq.s32.totalorder %s30, 0
    %s33 = sadd.s32 %s32, 1
    %s34 = scalar_select %p31, %s32, %s33
    %p37 = pneg %p31
    %p38 = scmp.eq.s32.totalorder %s10, 1
    %p39 = por %p37, %p38
    %p40 = scmp.ne.s32.totalorder %s32, %s35
    %p41 = scmp.eq.s32.totalorder %s10, 0
    %p42 = por %p40, %p41
    %p43 = scmp.ne.s32.totalorder %s32, %s35
    %p44 = scmp.eq.s32.totalorder %s15, 1
    %p45 = por %p43, %p44
    %p46 = scmp.ne.s32.totalorder %s35, %s36
    %p47 = scmp.eq.s32.totalorder %s15, 0
    %p48 = por %p46, %p47
    %p49 = scmp.ne.s32.totalorder %s35, %s36
    %p50 = scmp.eq.s32.totalorder %s16, 1
    %p51 = por %p49, %p50
    %p53 = scmp.ne.s32.totalorder %s36, %s52
    %p54 = scmp.eq.s32.totalorder %s16, 0
    %p55 = por %p53, %p54
    %s56 = ssub.s32 %s18, %s25
    %p57 = scmp.eq.s32.totalorder %s56, 0
    %s59 = sadd.s32 %s58, 1
    %s60 = scalar_select %p57, %s58, %s59
    %p63 = pneg %p57
    %p64 = scmp.eq.s32.totalorder %s10, 1
    %p65 = por %p63, %p64
    %p66 = scmp.ne.s32.totalorder %s58, %s61
    %p67 = scmp.eq.s32.totalorder %s10, 0
    %p68 = por %p66, %p67
    %p69 = scmp.ne.s32.totalorder %s58, %s61
    %p70 = scmp.eq.s32.totalorder %s15, 1
    %p71 = por %p69, %p70
    %p72 = scmp.ne.s32.totalorder %s61, %s62
    %p73 = scmp.eq.s32.totalorder %s15, 0
    %p74 = por %p72, %p73
    %p75 = scmp.ne.s32.totalorder %s61, %s62
    %p76 = scmp.eq.s32.totalorder %s16, 1
    %p77 = por %p75, %p76
    %p79 = scmp.ne.s32.totalorder %s62, %s78
    %p80 = scmp.eq.s32.totalorder %s16, 0
    %p81 = por %p79, %p80
    %s82 = ssub.s32 %s18, %s25
    %p83 = scmp.eq.s32.totalorder %s82, 0
    %s85 = sadd.s32 %s84, 1
    %s86 = scalar_select %p83, %s84, %s85
    %p89 = pneg %p83
    %p90 = scmp.eq.s32.totalorder %s10, 1
    %p91 = por %p89, %p90
    %p92 = scmp.ne.s32.totalorder %s84, %s87
    %p93 = scmp.eq.s32.totalorder %s10, 0
    %p94 = por %p92, %p93
    %p95 = scmp.ne.s32.totalorder %s84, %s87
    %p96 = scmp.eq.s32.totalorder %s15, 1
    %p97 = por %p95, %p96
    %p98 = scmp.ne.s32.totalorder %s87, %s88
    %p99 = scmp.eq.s32.totalorder %s15, 0
    %p100 = por %p98, %p99
    %p101 = scmp.ne.s32.totalorder %s87, %s88
    %p102 = scmp.eq.s32.totalorder %s16, 1
    %p103 = por %p101, %p102
    %p105 = scmp.ne.s32.totalorder %s88, %s104
    %p106 = scmp.eq.s32.totalorder %s16, 0
    %p107 = por %p105, %p106
    %s108 = ssub.s32 %s18, %s25
    %p109 = scmp.eq.s32.totalorder %s108, 0
    %s111 = sadd.s32 %s110, 1
    %s112 = scalar_select %p109, %s110, %s111
    %p115 = pneg %p109
    %p116 = scmp.eq.s32.totalorder %s10, 1
    %p117 = por %p115, %p116
    %p118 = scmp.ne.s32.totalorder %s110, %s113
    %p119 = scmp.eq.s32.totalorder %s10, 0
    %p120 = por %p118, %p119
    %p121 = scmp.ne.s32.totalorder %s110, %s113
    %p122 = scmp.eq.s32.totalorder %s15, 1
    %p123 = por %p121, %p122
    %p124 = scmp.ne.s32.totalorder %s113, %s114
    %p125 = scmp.eq.s32.totalorder %s15, 0
    %p126 = por %p124, %p125
    %p127 = scmp.ne.s32.totalorder %s113, %s114
    %p128 = scmp.eq.s32.totalorder %s16, 1
    %p129 = por %p127, %p128
    %p131 = scmp.ne.s32.totalorder %s114, %s130
    %p132 = scmp.eq.s32.totalorder %s16, 0
    %p133 = por %p131, %p132
    %s134 = ssub.s32 %s17, %s29
    %s135 = ssub.s32 %s18, %s25
    %s136 = sor.u32 %s134, %s135
    %p137 = scmp.eq.s32.totalorder %s136, 0
    %s139 = sadd.s32 %s138, 1
    %s140 = scalar_select %p137, %s138, %s139
    %p143 = pneg %p137
    %p144 = scmp.eq.s32.totalorder %s10, 1
    %p145 = por %p143, %p144
    %p146 = scmp.ne.s32.totalorder %s138, %s141
    %p147 = scmp.eq.s32.totalorder %s10, 0
    %p148 = por %p146, %p147
    %p149 = scmp.ne.s32.totalorder %s138, %s141
    %p150 = scmp.eq.s32.totalorder %s15, 1
    %p151 = por %p149, %p150
    %p152 = scmp.ne.s32.totalorder %s141, %s142
    %p153 = scmp.eq.s32.totalorder %s15, 0
    %p154 = por %p152, %p153
    %p155 = scmp.ne.s32.totalorder %s141, %s142
    %p156 = scmp.eq.s32.totalorder %s16, 1
    %p157 = por %p155, %p156
    %p159 = scmp.ne.s32.totalorder %s142, %s158
    %p160 = scmp.eq.s32.totalorder %s16, 0
    %p161 = por %p159, %p160
    %p162 = scmp.le.s32.totalorder 1, %s10
    %p163 = scmp.lt.s32.totalorder %s10, 3
    %p164 = pnand %p162, %p163
    %p165 = pneg %p164
    // Predicated region
    $region9: #{feature_extractor_with_attention.17} parent=5 // pred_check
      _
    $region10: #{feature_extractor_with_attention.17} parent=5 // pred_check_branch
      %167 = sbr.rel (%p164) target = $region12
    $region11: #{feature_extractor_with_attention.17} parent=5 // pred_region
      %s168 = ssub.s32 %s10, 1
      // Predicated region
      $region13: #{feature_extractor_with_attention.17} parent=11 // pred_check
        %p169 = pneg %p74
      $region14: #{feature_extractor_with_attention.17} parent=11 // pred_check_branch
        %171 = sbr.rel (%p169) target = $region16
      $region15: #{feature_extractor_with_attention.17} parent=11 // pred_region
        %p172 = scmp.lt.s32.totalorder %s20, 0
        %s173 = scalar_select %p172, %s20, 0
        %s174 = smul.addr %s173, 4
        %s175 = scalar_lea.vmem %s1, %s174
      $region16: #{feature_extractor_with_attention.17} parent=11 // pred_fallthru
        _
      // Predicated region
      $region17: #{feature_extractor_with_attention.17} parent=11 // pred_check
        %p176 = pneg %p100
      $region18: #{feature_extractor_with_attention.17} parent=11 // pred_check_branch
        %178 = sbr.rel (%p176) target = $region20
      $region19: #{feature_extractor_with_attention.17} parent=11 // pred_region
        %p179 = scmp.lt.s32.totalorder %s20, 0
        %s180 = scalar_select %p179, %s20, 0
        %s181 = scalar_lea.vmem %s2, %s180
      $region20: #{feature_extractor_with_attention.17} parent=11 // pred_fallthru
        _
      // Predicated region
      $region21: #{feature_extractor_with_attention.17} parent=11 // pred_check
        %p182 = pneg %p126
      $region22: #{feature_extractor_with_attention.17} parent=11 // pred_check_branch
        %184 = sbr.rel (%p182) target = $region24
      $region23: #{feature_extractor_with_attention.17} parent=11 // pred_region
        %p185 = scmp.lt.s32.totalorder %s20, 0
        %s186 = scalar_select %p185, %s20, 0
        %s187 = scalar_lea.vmem %s3, %s186
      $region24: #{feature_extractor_with_attention.17} parent=11 // pred_fallthru
        _
    $region12: #{feature_extractor_with_attention.17} parent=5 // pred_fallthru
      _
    %p188 = scmp.lt.s32.totalorder %s10, 2
    // Predicated region
    $region25: #{feature_extractor_with_attention.17} parent=5 // pred_check
      %p189 = pneg %p188
    $region26: #{feature_extractor_with_attention.17} parent=5 // pred_check_branch
      %191 = sbr.rel (%p189) target = $region28
    $region27: #{feature_extractor_with_attention.17} parent=5 // pred_region
      // Predicated region
      $region29: #{feature_extractor_with_attention.17} parent=27 // pred_check
        %p192 = pneg %p42
      $region30: #{feature_extractor_with_attention.17} parent=27 // pred_check_branch
        %194 = sbr.rel (%p192) target = $region32
      $region31: #{feature_extractor_with_attention.17} parent=27 // pred_region
        %s195 = smul.u32 32, %s17
        %p196 = scmp.lt.s32.totalorder %s195, 63
        %s197 = scalar_select %p196, %s195, 63
        %s198 = smul.addr %s197, 2
        %s199 = smul.addr %s198, 4
        %s200 = scalar_lea.vmem %s0, %s199
        %s201 = smul.u32 32, %s17
      $region32: #{feature_extractor_with_attention.17} parent=27 // pred_fallthru
        _
    $region28: #{feature_extractor_with_attention.17} parent=5 // pred_fallthru
      _
    %p202 = scmp.le.s32.totalorder 1, %s10
    %p203 = scmp.lt.s32.totalorder %s10, 3
    %p204 = pnand %p202, %p203
    %p205 = pneg %p204
    // Predicated region
    $region33: #{feature_extractor_with_attention.17} parent=5 // pred_check
      _
    $region34: #{feature_extractor_with_attention.17} parent=5 // pred_check_branch
      %207 = sbr.rel (%p204) target = $region36
    $region35: #{feature_extractor_with_attention.17} parent=5 // pred_region
      %s208 = ssub.s32 %s10, 1
      %s209 = smul.u32 32, %s19
      %p210 = scmp.lt.s32.totalorder %s209, 63
      %s211 = scalar_select %p210, %s209, 63
      %s212 = smul.addr %s211, 2
      %s213 = smul.addr %s212, 4
      %s214 = scalar_lea.vmem %s0, %s213
      %p215 = pneg %p48
      %p216 = pneg %p45
      %p217 = scmp.lt.s32.totalorder %s20, 0
      %s218 = scalar_select %p217, %s20, 0
      %s219 = smul.addr %s218, 4
      %s220 = scalar_lea.vmem %s1, %s219
      %p221 = pneg %p74
      %p222 = pneg %p71
      %p223 = scmp.lt.s32.totalorder %s20, 0
      %s224 = scalar_select %p223, %s20, 0
      %s225 = scalar_lea.vmem %s2, %s224
      %p226 = pneg %p100
      %p227 = pneg %p97
      %p228 = scmp.lt.s32.totalorder %s20, 0
      %s229 = scalar_select %p228, %s20, 0
      %s230 = scalar_lea.vmem %s3, %s229
      %p231 = pneg %p126
      %p232 = pneg %p123
      %p233 = pneg %p154
      %p234 = pneg %p151
      %s235 = smul.u32 32, %s19
      %p236 = scmp.lt.s32.totalorder %s235, 63
      %s237 = scalar_select %p236, %s235, 63
      %p238 = scmp.lt.s32.totalorder %s20, 0
      %s239 = scalar_select %p238, %s20, 0
      %s240 = sadd.s32 %s239, %s237
      %s241 = smul.addr %s240, 4
      %s242 = scalar_lea.vmem %s4, %s241
      %s243 = smul.u32 32, %s19
      %p244 = scmp.lt.s32.totalorder %s243, 63
      %s245 = scalar_select %p244, %s243, 63
      %s246 = smul.addr %s245, 2
      %s247 = smul.addr %s246, 4
      %s248 = scalar_lea.vmem %s0, %s247
      %s249 = smul.u32 32, %s19
      %p250 = scmp.lt.s32.totalorder %s20, 0
      %s251 = scalar_select %p250, %s20, 0
      %s252 = smul.addr %s251, 4
      %s253 = scalar_lea.vmem %s1, %s252
      %p254 = scmp.lt.s32.totalorder %s20, 0
      %s255 = scalar_select %p254, %s20, 0
      %s256 = scalar_lea.vmem %s2, %s255
      %p257 = scmp.lt.s32.totalorder %s20, 0
      %s258 = scalar_select %p257, %s20, 0
      %s259 = scalar_lea.vmem %s3, %s258
      %s260 = smul.u32 32, %s19
      %p261 = scmp.lt.s32.totalorder %s260, 63
      %s262 = scalar_select %p261, %s260, 63
      %p263 = scmp.lt.s32.totalorder %s20, 0
      %s264 = scalar_select %p263, %s20, 0
      %s265 = sadd.s32 %s264, %s262
      %s266 = smul.addr %s265, 4
      %s267 = scalar_lea.vmem %s4, %s266
      %s268 = smul.u32 32, %s19
      %v270 = vld [vmem:[%s248] sm:$0xff]
      %v271 = vld [vmem:[%s248 + $0x8] sm:$0xff]
      %v272 = vld [vmem:[%s248 + $0x10] sm:$0xff]
      %v273 = vld [vmem:[%s248 + $0x18] sm:$0xff]
      %v274 = vld [vmem:[%s248 + $0x20] sm:$0xff]
      %v275 = vld [vmem:[%s248 + $0x28] sm:$0xff]
      %v276 = vld [vmem:[%s248 + $0x30] sm:$0xff]
      %v277 = vld [vmem:[%s248 + $0x38] sm:$0xff]
      %v278 = vld [vmem:[%s248 + $0x40] sm:$0xff]
      %v279 = vld [vmem:[%s248 + $0x48] sm:$0xff]
      %v280 = vld [vmem:[%s248 + $0x50] sm:$0xff]
      %v281 = vld [vmem:[%s248 + $0x58] sm:$0xff]
      %v282 = vld [vmem:[%s248 + $0x60] sm:$0xff]
      %v283 = vld [vmem:[%s248 + $0x68] sm:$0xff]
      %v284 = vld [vmem:[%s248 + $0x70] sm:$0xff]
      %v285 = vld [vmem:[%s248 + $0x78] sm:$0xff]
      %v286 = vld [vmem:[%s248 + $0x80] sm:$0xff]
      %v287 = vld [vmem:[%s248 + $0x88] sm:$0xff]
      %v288 = vld [vmem:[%s248 + $0x90] sm:$0xff]
      %v289 = vld [vmem:[%s248 + $0x98] sm:$0xff]
      %v290 = vld [vmem:[%s248 + $0xa0] sm:$0xff]
      %v291 = vld [vmem:[%s248 + $0xa8] sm:$0xff]
      %v292 = vld [vmem:[%s248 + $0xb0] sm:$0xff]
      %v293 = vld [vmem:[%s248 + $0xb8] sm:$0xff]
      %v294 = vld [vmem:[%s248 + $0xc0] sm:$0xff]
      %v295 = vld [vmem:[%s248 + $0xc8] sm:$0xff]
      %v296 = vld [vmem:[%s248 + $0xd0] sm:$0xff]
      %v297 = vld [vmem:[%s248 + $0xd8] sm:$0xff]
      %v298 = vld [vmem:[%s248 + $0xe0] sm:$0xff]
      %v299 = vld [vmem:[%s248 + $0xe8] sm:$0xff]
      %v300 = vld [vmem:[%s248 + $0xf0] sm:$0xff]
      %v301 = vld [vmem:[%s248 + $0xf8] sm:$0xff]
      %v302 = vld [vmem:[%s253] sm:$0xf]
      %v303 = vld [vmem:[%s253 + $0x4] sm:$0xf]
      %v304 = vld [vmem:[%s253 + $0x8] sm:$0xf]
      %v305 = vld [vmem:[%s253 + $0xc] sm:$0xf]
      %v306 = vld [vmem:[%s253 + $0x10] sm:$0xf]
      %v307 = vld [vmem:[%s253 + $0x14] sm:$0xf]
      %v308 = vld [vmem:[%s253 + $0x18] sm:$0xf]
      %v309 = vld [vmem:[%s253 + $0x1c] sm:$0xf]
      %v310 = vld [vmem:[%s253 + $0x20] sm:$0xf]
      %v311 = vld [vmem:[%s253 + $0x24] sm:$0xf]
      %v312 = vld [vmem:[%s253 + $0x28] sm:$0xf]
      %v313 = vld [vmem:[%s253 + $0x2c] sm:$0xf]
      %v314 = vld [vmem:[%s253 + $0x30] sm:$0xf]
      %v315 = vld [vmem:[%s253 + $0x34] sm:$0xf]
      %v316 = vld [vmem:[%s253 + $0x38] sm:$0xf]
      %v317 = vld [vmem:[%s253 + $0x3c] sm:$0xf]
      %v318 = vld [vmem:[%s253 + $0x40] sm:$0xf]
      %v319 = vld [vmem:[%s253 + $0x44] sm:$0xf]
      %v320 = vld [vmem:[%s253 + $0x48] sm:$0x3]
      %v353 = vunpack.c.l.b16 %v270
      %v354 = vunpack.c.h.b16 %v270
      %v355 = vunpack.c.l.b16 %v271
      %v356 = vunpack.c.h.b16 %v271
      %v357 = vunpack.c.l.b16 %v272
      %v358 = vunpack.c.h.b16 %v272
      %v359 = vunpack.c.l.b16 %v273
      %v360 = vunpack.c.h.b16 %v273
      %v361 = vunpack.c.l.b16 %v274
      %v362 = vunpack.c.h.b16 %v274
      %v363 = vunpack.c.l.b16 %v275
      %v364 = vunpack.c.h.b16 %v275
      %v365 = vunpack.c.l.b16 %v276
      %v366 = vunpack.c.h.b16 %v276
      %v367 = vunpack.c.l.b16 %v277
      %v368 = vunpack.c.h.b16 %v277
      %v369 = vunpack.c.l.b16 %v278
      %v370 = vunpack.c.h.b16 %v278
      %v371 = vunpack.c.l.b16 %v279
      %v372 = vunpack.c.h.b16 %v279
      %v373 = vunpack.c.l.b16 %v280
      %v374 = vunpack.c.h.b16 %v280
      %v375 = vunpack.c.l.b16 %v281
      %v376 = vunpack.c.h.b16 %v281
      %v377 = vunpack.c.l.b16 %v282
      %v378 = vunpack.c.h.b16 %v282
      %v379 = vunpack.c.l.b16 %v283
      %v380 = vunpack.c.h.b16 %v283
      %v381 = vunpack.c.l.b16 %v284
      %v382 = vunpack.c.h.b16 %v284
      %v383 = vunpack.c.l.b16 %v285
      %v384 = vunpack.c.h.b16 %v285
      %v385 = vunpack.c.l.b16 %v286
      %v386 = vunpack.c.h.b16 %v286
      %v387 = vunpack.c.l.b16 %v287
      %v388 = vunpack.c.h.b16 %v287
      %v389 = vunpack.c.l.b16 %v288
      %v390 = vunpack.c.h.b16 %v288
      %v391 = vunpack.c.l.b16 %v289
      %v392 = vunpack.c.h.b16 %v289
      %v393 = vunpack.c.l.b16 %v290
      %v394 = vunpack.c.h.b16 %v290
      %v395 = vunpack.c.l.b16 %v291
      %v396 = vunpack.c.h.b16 %v291
      %v397 = vunpack.c.l.b16 %v292
      %v398 = vunpack.c.h.b16 %v292
      %v399 = vunpack.c.l.b16 %v293
      %v400 = vunpack.c.h.b16 %v293
      %v401 = vunpack.c.l.b16 %v294
      %v402 = vunpack.c.h.b16 %v294
      %v403 = vunpack.c.l.b16 %v295
      %v404 = vunpack.c.h.b16 %v295
      %v405 = vunpack.c.l.b16 %v296
      %v406 = vunpack.c.h.b16 %v296
      %v407 = vunpack.c.l.b16 %v297
      %v408 = vunpack.c.h.b16 %v297
      %v409 = vunpack.c.l.b16 %v298
      %v410 = vunpack.c.h.b16 %v298
      %v411 = vunpack.c.l.b16 %v299
      %v412 = vunpack.c.h.b16 %v299
      %v413 = vunpack.c.l.b16 %v300
      %v414 = vunpack.c.h.b16 %v300
      %v415 = vunpack.c.l.b16 %v301
      %v416 = vunpack.c.h.b16 %v301
      %v417 = vpack.c.b16 %v355, %v353
      %v418 = vpack.c.b16 %v356, %v354
      %v419 = vpack.c.b16 %v359, %v357
      %v420 = vpack.c.b16 %v360, %v358
      %v421 = vpack.c.b16 %v363, %v361
      %v422 = vpack.c.b16 %v364, %v362
      %v423 = vpack.c.b16 %v367, %v365
      %v424 = vpack.c.b16 %v368, %v366
      %v425 = vpack.c.b16 %v371, %v369
      %v426 = vpack.c.b16 %v372, %v370
      %v427 = vpack.c.b16 %v375, %v373
      %v428 = vpack.c.b16 %v376, %v374
      %v429 = vpack.c.b16 %v379, %v377
      %v430 = vpack.c.b16 %v380, %v378
      %v431 = vpack.c.b16 %v383, %v381
      %v432 = vpack.c.b16 %v384, %v382
      %v433 = vpack.c.b16 %v387, %v385
      %v434 = vpack.c.b16 %v388, %v386
      %v435 = vpack.c.b16 %v391, %v389
      %v436 = vpack.c.b16 %v392, %v390
      %v437 = vpack.c.b16 %v395, %v393
      %v438 = vpack.c.b16 %v396, %v394
      %v439 = vpack.c.b16 %v399, %v397
      %v440 = vpack.c.b16 %v400, %v398
      %v441 = vpack.c.b16 %v403, %v401
      %v442 = vpack.c.b16 %v404, %v402
      %v443 = vpack.c.b16 %v407, %v405
      %v444 = vpack.c.b16 %v408, %v406
      %v445 = vpack.c.b16 %v411, %v409
      %v446 = vpack.c.b16 %v412, %v410
      %v447 = vpack.c.b16 %v415, %v413
      %v448 = vpack.c.b16 %v416, %v414
      %v484 = vunpack.c.l.b16 %v302
      %v485 = vunpack.c.l.b16 %v303
      %v486 = vunpack.c.l.b16 %v304
      %v487 = vunpack.c.l.b16 %v305
      %v488 = vunpack.c.l.b16 %v306
      %v489 = vunpack.c.l.b16 %v307
      %v490 = vunpack.c.l.b16 %v308
      %v491 = vunpack.c.l.b16 %v309
      %v492 = vunpack.c.l.b16 %v310
      %v493 = vunpack.c.l.b16 %v311
      %v494 = vunpack.c.l.b16 %v312
      %v495 = vunpack.c.l.b16 %v313
      %v496 = vunpack.c.l.b16 %v314
      %v497 = vunpack.c.l.b16 %v315
      %v498 = vunpack.c.l.b16 %v316
      %v499 = vunpack.c.l.b16 %v317
      %v500 = vunpack.c.l.b16 %v318
      %v501 = vunpack.c.l.b16 %v319
      %v502 = vunpack.c.l.b16 %v320
      %v503 = vpack.c.b16 %v485, %v484
      %v504 = vpack.c.b16 %v487, %v486
      %v505 = vpack.c.b16 %v489, %v488
      %v506 = vpack.c.b16 %v491, %v490
      %v507 = vpack.c.b16 %v493, %v492
      %v508 = vpack.c.b16 %v495, %v494
      %v509 = vpack.c.b16 %v497, %v496
      %v510 = vpack.c.b16 %v499, %v498
      %v511 = vpack.c.b16 %v501, %v500
      %v512 = vpack.c.b16 %v502, %v502
      %vm522 = vcmask 154624
      %v524 = vsel %vm522, %v418, 0
      %v527 = vsel %vm522, %v420, 0
      %v530 = vsel %vm522, %v422, 0
      %v533 = vsel %vm522, %v424, 0
      %v536 = vsel %vm522, %v426, 0
      %v539 = vsel %vm522, %v428, 0
      %v542 = vsel %vm522, %v430, 0
      %v545 = vsel %vm522, %v432, 0
      %v548 = vsel %vm522, %v434, 0
      %v551 = vsel %vm522, %v436, 0
      %v554 = vsel %vm522, %v438, 0
      %v557 = vsel %vm522, %v440, 0
      %v560 = vsel %vm522, %v442, 0
      %v563 = vsel %vm522, %v444, 0
      %v566 = vsel %vm522, %v446, 0
      %v569 = vsel %vm522, %v448, 0
      %vm571 = vcmask 1040384
      %vm572 = vcmask 1041408
      %v573 = vsel %vm571, 4294967295, 65535
      %v574 = vsel %vm572, %v573, 0
      %v576 = vand.u32 %v512, %v574
      %578 = vmatpush.bf16.msra.mxu0 %v510
      %579 = vmatpush.bf16.msra.mxu0 %v509
      %580 = vmatpush.bf16.msra.mxu0 %v508
      %581 = vmatpush.bf16.msra.mxu0 %v507
      %582 = vmatpush.bf16.msra.mxu0 %v506
      %583 = vmatpush.bf16.msra.mxu0 %v505
      %584 = vmatpush.bf16.msra.mxu0 %v504
      %585 = vmatpush.bf16.msra.mxu0 %v503
      %586 = vmatmul.bf16.gmra.mxu0 %v417
      %v587 = vpop.f32.mrf.mxu0
      %v588 = vadd.f32 0.0, %v587
      %v589 = vpop.f32.mrf.mxu0
      %v590 = vadd.f32 0.0, %v589
      %591 = vmatmul.bf16.gmra.mxu0 %v419
      %v592 = vpop.f32.mrf.mxu0
      %v593 = vadd.f32 0.0, %v592
      %v594 = vpop.f32.mrf.mxu0
      %v595 = vadd.f32 0.0, %v594
      %596 = vmatmul.bf16.gmra.mxu0 %v421
      %v597 = vpop.f32.mrf.mxu0
      %v598 = vadd.f32 0.0, %v597
      %v599 = vpop.f32.mrf.mxu0
      %v600 = vadd.f32 0.0, %v599
      %601 = vmatmul.bf16.gmra.mxu0 %v423
      %v602 = vpop.f32.mrf.mxu0
      %v603 = vadd.f32 0.0, %v602
      %v604 = vpop.f32.mrf.mxu0
      %v605 = vadd.f32 0.0, %v604
      %606 = vmatmul.bf16.gmra.mxu0 %v425
      %v607 = vpop.f32.mrf.mxu0
      %v608 = vadd.f32 0.0, %v607
      %v609 = vpop.f32.mrf.mxu0
      %v610 = vadd.f32 0.0, %v609
      %611 = vmatmul.bf16.gmra.mxu0 %v427
      %v612 = vpop.f32.mrf.mxu0
      %v613 = vadd.f32 0.0, %v612
      %v614 = vpop.f32.mrf.mxu0
      %v615 = vadd.f32 0.0, %v614
      %616 = vmatmul.bf16.gmra.mxu0 %v429
      %v617 = vpop.f32.mrf.mxu0
      %v618 = vadd.f32 0.0, %v617
      %v619 = vpop.f32.mrf.mxu0
      %v620 = vadd.f32 0.0, %v619
      %621 = vmatmul.bf16.gmra.mxu0 %v431
      %v622 = vpop.f32.mrf.mxu0
      %v623 = vadd.f32 0.0, %v622
      %v624 = vpop.f32.mrf.mxu0
      %v625 = vadd.f32 0.0, %v624
      %626 = vmatmul.bf16.gmra.mxu0 %v433
      %v627 = vpop.f32.mrf.mxu0
      %v628 = vadd.f32 0.0, %v627
      %v629 = vpop.f32.mrf.mxu0
      %v630 = vadd.f32 0.0, %v629
      %631 = vmatmul.bf16.gmra.mxu0 %v435
      %v632 = vpop.f32.mrf.mxu0
      %v633 = vadd.f32 0.0, %v632
      %v634 = vpop.f32.mrf.mxu0
      %v635 = vadd.f32 0.0, %v634
      %636 = vmatmul.bf16.gmra.mxu0 %v437
      %v637 = vpop.f32.mrf.mxu0
      %v638 = vadd.f32 0.0, %v637
      %v639 = vpop.f32.mrf.mxu0
      %v640 = vadd.f32 0.0, %v639
      %641 = vmatmul.bf16.gmra.mxu0 %v439
      %v642 = vpop.f32.mrf.mxu0
      %v643 = vadd.f32 0.0, %v642
      %v644 = vpop.f32.mrf.mxu0
      %v645 = vadd.f32 0.0, %v644
      %646 = vmatmul.bf16.gmra.mxu0 %v441
      %v647 = vpop.f32.mrf.mxu0
      %v648 = vadd.f32 0.0, %v647
      %v649 = vpop.f32.mrf.mxu0
      %v650 = vadd.f32 0.0, %v649
      %651 = vmatmul.bf16.gmra.mxu0 %v443
      %v652 = vpop.f32.mrf.mxu0
      %v653 = vadd.f32 0.0, %v652
      %v654 = vpop.f32.mrf.mxu0
      %v655 = vadd.f32 0.0, %v654
      %656 = vmatmul.bf16.gmra.mxu0 %v445
      %v657 = vpop.f32.mrf.mxu0
      %v658 = vadd.f32 0.0, %v657
      %v659 = vpop.f32.mrf.mxu0
      %v660 = vadd.f32 0.0, %v659
      %661 = vmatmul.bf16.gmra.mxu0 %v447
      %v662 = vpop.f32.mrf.mxu0
      %v663 = vadd.f32 0.0, %v662
      %v664 = vpop.f32.mrf.mxu0
      %v665 = vadd.f32 0.0, %v664
      %666 = vdwg.mxu0
      %667 = vmatpush.bf16.msra.mxu0 0
      %668 = vmatpush.bf16.msra.mxu0 0
      %669 = vmatpush.bf16.msra.mxu0 0
      %670 = vmatpush.bf16.msra.mxu0 0
      %671 = vmatpush.bf16.msra.mxu0 0
      %672 = vmatpush.bf16.msra.mxu0 0
      %673 = vmatpush.bf16.msra.mxu0 %v576
      %674 = vmatpush.bf16.msra.mxu0 %v511
      %675 = vmatmul.bf16.gmra.mxu0 %v524
      %v676 = vpop.f32.mrf.mxu0
      %v677 = vadd.f32 %v588, %v676
      %v678 = vpop.f32.mrf.mxu0
      %v679 = vadd.f32 %v590, %v678
      %680 = vmatmul.bf16.gmra.mxu0 %v527
      %v681 = vpop.f32.mrf.mxu0
      %v682 = vadd.f32 %v593, %v681
      %v683 = vpop.f32.mrf.mxu0
      %v684 = vadd.f32 %v595, %v683
      %685 = vmatmul.bf16.gmra.mxu0 %v530
      %v686 = vpop.f32.mrf.mxu0
      %v687 = vadd.f32 %v598, %v686
      %v688 = vpop.f32.mrf.mxu0
      %v689 = vadd.f32 %v600, %v688
      %690 = vmatmul.bf16.gmra.mxu0 %v533
      %v691 = vpop.f32.mrf.mxu0
      %v692 = vadd.f32 %v603, %v691
      %v693 = vpop.f32.mrf.mxu0
      %v694 = vadd.f32 %v605, %v693
      %695 = vmatmul.bf16.gmra.mxu0 %v536
      %v696 = vpop.f32.mrf.mxu0
      %v697 = vadd.f32 %v608, %v696
      %v698 = vpop.f32.mrf.mxu0
      %v699 = vadd.f32 %v610, %v698
      %700 = vmatmul.bf16.gmra.mxu0 %v539
      %v701 = vpop.f32.mrf.mxu0
      %v702 = vadd.f32 %v613, %v701
      %v703 = vpop.f32.mrf.mxu0
      %v704 = vadd.f32 %v615, %v703
      %705 = vmatmul.bf16.gmra.mxu0 %v542
      %v706 = vpop.f32.mrf.mxu0
      %v707 = vadd.f32 %v618, %v706
      %v708 = vpop.f32.mrf.mxu0
      %v709 = vadd.f32 %v620, %v708
      %710 = vmatmul.bf16.gmra.mxu0 %v545
      %v711 = vpop.f32.mrf.mxu0
      %v712 = vadd.f32 %v623, %v711
      %v713 = vpop.f32.mrf.mxu0
      %v714 = vadd.f32 %v625, %v713
      %715 = vmatmul.bf16.gmra.mxu0 %v548
      %v716 = vpop.f32.mrf.mxu0
      %v717 = vadd.f32 %v628, %v716
      %v718 = vpop.f32.mrf.mxu0
      %v719 = vadd.f32 %v630, %v718
      %720 = vmatmul.bf16.gmra.mxu0 %v551
      %v721 = vpop.f32.mrf.mxu0
      %v722 = vadd.f32 %v633, %v721
      %v723 = vpop.f32.mrf.mxu0
      %v724 = vadd.f32 %v635, %v723
      %725 = vmatmul.bf16.gmra.mxu0 %v554
      %v726 = vpop.f32.mrf.mxu0
      %v727 = vadd.f32 %v638, %v726
      %v728 = vpop.f32.mrf.mxu0
      %v729 = vadd.f32 %v640, %v728
      %730 = vmatmul.bf16.gmra.mxu0 %v557
      %v731 = vpop.f32.mrf.mxu0
      %v732 = vadd.f32 %v643, %v731
      %v733 = vpop.f32.mrf.mxu0
      %v734 = vadd.f32 %v645, %v733
      %735 = vmatmul.bf16.gmra.mxu0 %v560
      %v736 = vpop.f32.mrf.mxu0
      %v737 = vadd.f32 %v648, %v736
      %v738 = vpop.f32.mrf.mxu0
      %v739 = vadd.f32 %v650, %v738
      %740 = vmatmul.bf16.gmra.mxu0 %v563
      %v741 = vpop.f32.mrf.mxu0
      %v742 = vadd.f32 %v653, %v741
      %v743 = vpop.f32.mrf.mxu0
      %v744 = vadd.f32 %v655, %v743
      %745 = vmatmul.bf16.gmra.mxu0 %v566
      %v746 = vpop.f32.mrf.mxu0
      %v747 = vadd.f32 %v658, %v746
      %v748 = vpop.f32.mrf.mxu0
      %v749 = vadd.f32 %v660, %v748
      %750 = vmatmul.bf16.gmra.mxu0 %v569
      %v751 = vpop.f32.mrf.mxu0
      %v752 = vadd.f32 %v663, %v751
      %v753 = vpop.f32.mrf.mxu0
      %v754 = vadd.f32 %v665, %v753
      %755 = vdwg.mxu0
      %v756 = vld [vmem:[%s256] sm:$0x1]
      %v758 = vperm.slane %v756, 0
      %v760 = vmul.f32 %v677, %v758
      %v761 = vmul.f32 %v679, %v758
      %v762 = vmul.f32 %v682, %v758
      %v763 = vmul.f32 %v684, %v758
      %v764 = vmul.f32 %v687, %v758
      %v765 = vmul.f32 %v689, %v758
      %v766 = vmul.f32 %v692, %v758
      %v767 = vmul.f32 %v694, %v758
      %v768 = vmul.f32 %v697, %v758
      %v769 = vmul.f32 %v699, %v758
      %v770 = vmul.f32 %v702, %v758
      %v771 = vmul.f32 %v704, %v758
      %v772 = vmul.f32 %v707, %v758
      %v773 = vmul.f32 %v709, %v758
      %v774 = vmul.f32 %v712, %v758
      %v775 = vmul.f32 %v714, %v758
      %v776 = vmul.f32 %v717, %v758
      %v777 = vmul.f32 %v719, %v758
      %v778 = vmul.f32 %v722, %v758
      %v779 = vmul.f32 %v724, %v758
      %v780 = vmul.f32 %v727, %v758
      %v781 = vmul.f32 %v729, %v758
      %v782 = vmul.f32 %v732, %v758
      %v783 = vmul.f32 %v734, %v758
      %v784 = vmul.f32 %v737, %v758
      %v785 = vmul.f32 %v739, %v758
      %v786 = vmul.f32 %v742, %v758
      %v787 = vmul.f32 %v744, %v758
      %v788 = vmul.f32 %v747, %v758
      %v789 = vmul.f32 %v749, %v758
      %v790 = vmul.f32 %v752, %v758
      %v791 = vmul.f32 %v754, %v758
      %v792 = vld [vmem:[%s259] sm:$0x1]
      %v794 = vperm.slane %v792, 0
      %v796 = vadd.f32 %v760, %v794
      %v797 = vadd.f32 %v761, %v794
      %v798 = vadd.f32 %v762, %v794
      %v799 = vadd.f32 %v763, %v794
      %v800 = vadd.f32 %v764, %v794
      %v801 = vadd.f32 %v765, %v794
      %v802 = vadd.f32 %v766, %v794
      %v803 = vadd.f32 %v767, %v794
      %v804 = vadd.f32 %v768, %v794
      %v805 = vadd.f32 %v769, %v794
      %v806 = vadd.f32 %v770, %v794
      %v807 = vadd.f32 %v771, %v794
      %v808 = vadd.f32 %v772, %v794
      %v809 = vadd.f32 %v773, %v794
      %v810 = vadd.f32 %v774, %v794
      %v811 = vadd.f32 %v775, %v794
      %v812 = vadd.f32 %v776, %v794
      %v813 = vadd.f32 %v777, %v794
      %v814 = vadd.f32 %v778, %v794
      %v815 = vadd.f32 %v779, %v794
      %v816 = vadd.f32 %v780, %v794
      %v817 = vadd.f32 %v781, %v794
      %v818 = vadd.f32 %v782, %v794
      %v819 = vadd.f32 %v783, %v794
      %v820 = vadd.f32 %v784, %v794
      %v821 = vadd.f32 %v785, %v794
      %v822 = vadd.f32 %v786, %v794
      %v823 = vadd.f32 %v787, %v794
      %v824 = vadd.f32 %v788, %v794
      %v825 = vadd.f32 %v789, %v794
      %v826 = vadd.f32 %v790, %v794
      %v827 = vadd.f32 %v791, %v794
      %v828 = vmax.f32 %v796, 0.0
      %v829 = vmax.f32 %v797, 0.0
      %v830 = vmax.f32 %v798, 0.0
      %v831 = vmax.f32 %v799, 0.0
      %v832 = vmax.f32 %v800, 0.0
      %v833 = vmax.f32 %v801, 0.0
      %v834 = vmax.f32 %v802, 0.0
      %v835 = vmax.f32 %v803, 0.0
      %v836 = vmax.f32 %v804, 0.0
      %v837 = vmax.f32 %v805, 0.0
      %v838 = vmax.f32 %v806, 0.0
      %v839 = vmax.f32 %v807, 0.0
      %v840 = vmax.f32 %v808, 0.0
      %v841 = vmax.f32 %v809, 0.0
      %v842 = vmax.f32 %v810, 0.0
      %v843 = vmax.f32 %v811, 0.0
      %v844 = vmax.f32 %v812, 0.0
      %v845 = vmax.f32 %v813, 0.0
      %v846 = vmax.f32 %v814, 0.0
      %v847 = vmax.f32 %v815, 0.0
      %v848 = vmax.f32 %v816, 0.0
      %v849 = vmax.f32 %v817, 0.0
      %v850 = vmax.f32 %v818, 0.0
      %v851 = vmax.f32 %v819, 0.0
      %v852 = vmax.f32 %v820, 0.0
      %v853 = vmax.f32 %v821, 0.0
      %v854 = vmax.f32 %v822, 0.0
      %v855 = vmax.f32 %v823, 0.0
      %v856 = vmax.f32 %v824, 0.0
      %v857 = vmax.f32 %v825, 0.0
      %v858 = vmax.f32 %v826, 0.0
      %v859 = vmax.f32 %v827, 0.0
      %v860 = vpack.c.bf16 %v828, %v828
      %v861 = vpack.c.bf16 %v829, %v829
      %v862 = vpack.c.bf16 %v830, %v830
      %v863 = vpack.c.bf16 %v831, %v831
      %v864 = vpack.c.bf16 %v832, %v832
      %v865 = vpack.c.bf16 %v833, %v833
      %v866 = vpack.c.bf16 %v834, %v834
      %v867 = vpack.c.bf16 %v835, %v835
      %v868 = vpack.c.bf16 %v836, %v836
      %v869 = vpack.c.bf16 %v837, %v837
      %v870 = vpack.c.bf16 %v838, %v838
      %v871 = vpack.c.bf16 %v839, %v839
      %v872 = vpack.c.bf16 %v840, %v840
      %v873 = vpack.c.bf16 %v841, %v841
      %v874 = vpack.c.bf16 %v842, %v842
      %v875 = vpack.c.bf16 %v843, %v843
      %v876 = vpack.c.bf16 %v844, %v844
      %v877 = vpack.c.bf16 %v845, %v845
      %v878 = vpack.c.bf16 %v846, %v846
      %v879 = vpack.c.bf16 %v847, %v847
      %v880 = vpack.c.bf16 %v848, %v848
      %v881 = vpack.c.bf16 %v849, %v849
      %v882 = vpack.c.bf16 %v850, %v850
      %v883 = vpack.c.bf16 %v851, %v851
      %v884 = vpack.c.bf16 %v852, %v852
      %v885 = vpack.c.bf16 %v853, %v853
      %v886 = vpack.c.bf16 %v854, %v854
      %v887 = vpack.c.bf16 %v855, %v855
      %v888 = vpack.c.bf16 %v856, %v856
      %v889 = vpack.c.bf16 %v857, %v857
      %v890 = vpack.c.bf16 %v858, %v858
      %v891 = vpack.c.bf16 %v859, %v859
      %vm892 = vcmask 519168
      %893 = vst.msk [vmem:[%s267] sm:$0xf] %vm892, %v860
      %894 = vst.msk [vmem:[%s267 + $0x4] sm:$0xf] %vm892, %v861
      %895 = vst.msk [vmem:[%s267 + $0x8] sm:$0xf] %vm892, %v862
      %896 = vst.msk [vmem:[%s267 + $0xc] sm:$0xf] %vm892, %v863
      %897 = vst.msk [vmem:[%s267 + $0x10] sm:$0xf] %vm892, %v864
      %898 = vst.msk [vmem:[%s267 + $0x14] sm:$0xf] %vm892, %v865
      %899 = vst.msk [vmem:[%s267 + $0x18] sm:$0xf] %vm892, %v866
      %900 = vst.msk [vmem:[%s267 + $0x1c] sm:$0xf] %vm892, %v867
      %901 = vst.msk [vmem:[%s267 + $0x20] sm:$0xf] %vm892, %v868
      %902 = vst.msk [vmem:[%s267 + $0x24] sm:$0xf] %vm892, %v869
      %903 = vst.msk [vmem:[%s267 + $0x28] sm:$0xf] %vm892, %v870
      %904 = vst.msk [vmem:[%s267 + $0x2c] sm:$0xf] %vm892, %v871
      %905 = vst.msk [vmem:[%s267 + $0x30] sm:$0xf] %vm892, %v872
      %906 = vst.msk [vmem:[%s267 + $0x34] sm:$0xf] %vm892, %v873
      %907 = vst.msk [vmem:[%s267 + $0x38] sm:$0xf] %vm892, %v874
      %908 = vst.msk [vmem:[%s267 + $0x3c] sm:$0xf] %vm892, %v875
      %909 = vst.msk [vmem:[%s267 + $0x40] sm:$0xf] %vm892, %v876
      %910 = vst.msk [vmem:[%s267 + $0x44] sm:$0xf] %vm892, %v877
      %911 = vst.msk [vmem:[%s267 + $0x48] sm:$0xf] %vm892, %v878
      %912 = vst.msk [vmem:[%s267 + $0x4c] sm:$0xf] %vm892, %v879
      %913 = vst.msk [vmem:[%s267 + $0x50] sm:$0xf] %vm892, %v880
      %914 = vst.msk [vmem:[%s267 + $0x54] sm:$0xf] %vm892, %v881
      %915 = vst.msk [vmem:[%s267 + $0x58] sm:$0xf] %vm892, %v882
      %916 = vst.msk [vmem:[%s267 + $0x5c] sm:$0xf] %vm892, %v883
      %917 = vst.msk [vmem:[%s267 + $0x60] sm:$0xf] %vm892, %v884
      %918 = vst.msk [vmem:[%s267 + $0x64] sm:$0xf] %vm892, %v885
      %919 = vst.msk [vmem:[%s267 + $0x68] sm:$0xf] %vm892, %v886
      %920 = vst.msk [vmem:[%s267 + $0x6c] sm:$0xf] %vm892, %v887
      %921 = vst.msk [vmem:[%s267 + $0x70] sm:$0xf] %vm892, %v888
      %922 = vst.msk [vmem:[%s267 + $0x74] sm:$0xf] %vm892, %v889
      %923 = vst.msk [vmem:[%s267 + $0x78] sm:$0xf] %vm892, %v890
      %924 = vst.msk [vmem:[%s267 + $0x7c] sm:$0xf] %vm892, %v891
      %s925 = smul.u32 32, %s19
      %p926 = scmp.lt.s32.totalorder %s925, 63
      %s927 = scalar_select %p926, %s925, 63
      %p928 = scmp.lt.s32.totalorder %s20, 0
      %s929 = scalar_select %p928, %s20, 0
      %s930 = sadd.s32 %s929, %s927
      %s931 = smul.addr %s930, 4
      %s932 = scalar_lea.vmem %s4, %s931
      // Predicated region
      $region37: #{feature_extractor_with_attention.17} parent=35 // pred_check
        %p933 = pneg %p151
      $region38: #{feature_extractor_with_attention.17} parent=35 // pred_check_branch
        %935 = sbr.rel (%p933) target = $region40
      $region39: #{feature_extractor_with_attention.17} parent=35 // pred_region
        %s936 = smul.u32 32, %s19
      $region40: #{feature_extractor_with_attention.17} parent=35 // pred_fallthru
        _
    $region36: #{feature_extractor_with_attention.17} parent=5 // pred_fallthru
      _
    %p937 = scmp.le.s32.totalorder 2, %s10
    // Predicated region
    $region41: #{feature_extractor_with_attention.17} parent=5 // pred_check
      %p938 = pneg %p937
    $region42: #{feature_extractor_with_attention.17} parent=5 // pred_check_branch
      %940 = sbr.rel (%p938) target = $region44
    $region43: #{feature_extractor_with_attention.17} parent=5 // pred_region
      %s941 = ssub.s32 %s10, 2
      // Predicated region
      $region45: #{feature_extractor_with_attention.17} parent=43 // pred_check
        %p942 = pneg %p157
      $region46: #{feature_extractor_with_attention.17} parent=43 // pred_check_branch
        %944 = sbr.rel (%p942) target = $region48
      $region47: #{feature_extractor_with_attention.17} parent=43 // pred_region
        %s945 = smul.u32 32, %s21
        %p946 = scmp.lt.s32.totalorder %s945, 63
        %s947 = scalar_select %p946, %s945, 63
        %p948 = scmp.lt.s32.totalorder %s22, 0
        %s949 = scalar_select %p948, %s22, 0
        %s950 = sadd.s32 %s949, %s947
        %s951 = smul.addr %s950, 4
        %s952 = scalar_lea.vmem %s4, %s951
      $region48: #{feature_extractor_with_attention.17} parent=43 // pred_fallthru
        _
    $region44: #{feature_extractor_with_attention.17} parent=5 // pred_fallthru
      _
  $region6: #{feature_extractor_with_attention.17} parent=0 // loop_footer
    %s14 = sadd.s32 1, %s10
  $region7: #{feature_extractor_with_attention.17} parent=0 // loop_footer_branch
    %9 = sbr.rel target = $region3
  $region8: #{feature_extractor_with_attention.17} parent=0 // loop_exit
    _

// kernel: feature_extractor_with_attention.18
$region0: #{feature_extractor_with_attention.18}
  #allocation0 [shape = 'u32[]', space=smem, size = 0x4, offset = 0x4, fixed_abs, tag = 'smem constant byte address 0x4 - core index']
  #allocation1 [shape = 'u32[72,128]{1,0:T(1,128)}', space=vmem, size = 0x9000, scoped, tag = 'internal scratch']
  %s0 = inlined_call_operand.vmem [shape: bf16[9,128,64], index: 0, kind: input, shape index: {}]
  %s1 = inlined_call_operand.vmem [shape: bf16[128,64], index: 1, kind: output, shape index: {}]
  %s2 = sld [smem:[#allocation0]]
  $region14: #{feature_extractor_with_attention.18} parent=0
    _
  %s4 = ssub.s32 1, %s2
  %s5 = scalar_select 0, %s4, %s2
  // Predicated region
  $region2: #{feature_extractor_with_attention.18} parent=0 // pred_check
    _
  $region3: #{feature_extractor_with_attention.18} parent=0 // pred_check_branch
    %7 = sbr.rel (0) target = $region5
  $region4: #{feature_extractor_with_attention.18} parent=0 // pred_region
    _
  $region5: #{feature_extractor_with_attention.18} parent=0 // pred_fallthru
    _
  %v8 = vld [vmem:[%s0] sm:$0xf]
  %v9 = vld [vmem:[%s0 + $0x4] sm:$0xf]
  %v10 = vld [vmem:[%s0 + $0x8] sm:$0xf]
  %v11 = vld [vmem:[%s0 + $0xc] sm:$0xf]
  %v12 = vld [vmem:[%s0 + $0x10] sm:$0xf]
  %v13 = vld [vmem:[%s0 + $0x14] sm:$0xf]
  %v14 = vld [vmem:[%s0 + $0x18] sm:$0xf]
  %v15 = vld [vmem:[%s0 + $0x1c] sm:$0xf]
  %v16 = vld [vmem:[%s0 + $0x20] sm:$0xf]
  %v17 = vld [vmem:[%s0 + $0x24] sm:$0xf]
  %v18 = vld [vmem:[%s0 + $0x28] sm:$0xf]
  %v19 = vld [vmem:[%s0 + $0x2c] sm:$0xf]
  %v20 = vld [vmem:[%s0 + $0x30] sm:$0xf]
  %v21 = vld [vmem:[%s0 + $0x34] sm:$0xf]
  %v22 = vld [vmem:[%s0 + $0x38] sm:$0xf]
  %v23 = vld [vmem:[%s0 + $0x3c] sm:$0xf]
  %v24 = vld [vmem:[%s0 + $0x40] sm:$0xf]
  %v25 = vld [vmem:[%s0 + $0x44] sm:$0xf]
  %v26 = vld [vmem:[%s0 + $0x48] sm:$0xf]
  %v27 = vld [vmem:[%s0 + $0x4c] sm:$0xf]
  %v28 = vld [vmem:[%s0 + $0x50] sm:$0xf]
  %v29 = vld [vmem:[%s0 + $0x54] sm:$0xf]
  %v30 = vld [vmem:[%s0 + $0x58] sm:$0xf]
  %v31 = vld [vmem:[%s0 + $0x5c] sm:$0xf]
  %v32 = vld [vmem:[%s0 + $0x60] sm:$0xf]
  %v33 = vld [vmem:[%s0 + $0x64] sm:$0xf]
  %v34 = vld [vmem:[%s0 + $0x68] sm:$0xf]
  %v35 = vld [vmem:[%s0 + $0x6c] sm:$0xf]
  %v36 = vld [vmem:[%s0 + $0x70] sm:$0xf]
  %v37 = vld [vmem:[%s0 + $0x74] sm:$0xf]
  %v38 = vld [vmem:[%s0 + $0x78] sm:$0xf]
  %v39 = vld [vmem:[%s0 + $0x7c] sm:$0xf]
  %v40 = vld [vmem:[%s0 + $0x80] sm:$0xf]
  %v41 = vld [vmem:[%s0 + $0x84] sm:$0xf]
  %v42 = vld [vmem:[%s0 + $0x88] sm:$0xf]
  %v43 = vld [vmem:[%s0 + $0x8c] sm:$0xf]
  %v44 = vld [vmem:[%s0 + $0x90] sm:$0xf]
  %v45 = vld [vmem:[%s0 + $0x94] sm:$0xf]
  %v46 = vld [vmem:[%s0 + $0x98] sm:$0xf]
  %v47 = vld [vmem:[%s0 + $0x9c] sm:$0xf]
  %v48 = vld [vmem:[%s0 + $0xa0] sm:$0xf]
  %v49 = vld [vmem:[%s0 + $0xa4] sm:$0xf]
  %v50 = vld [vmem:[%s0 + $0xa8] sm:$0xf]
  %v51 = vld [vmem:[%s0 + $0xac] sm:$0xf]
  %v52 = vld [vmem:[%s0 + $0xb0] sm:$0xf]
  %v53 = vld [vmem:[%s0 + $0xb4] sm:$0xf]
  %v54 = vld [vmem:[%s0 + $0xb8] sm:$0xf]
  %v55 = vld [vmem:[%s0 + $0xbc] sm:$0xf]
  %v56 = vld [vmem:[%s0 + $0xc0] sm:$0xf]
  %v57 = vld [vmem:[%s0 + $0xc4] sm:$0xf]
  %v58 = vld [vmem:[%s0 + $0xc8] sm:$0xf]
  %v59 = vld [vmem:[%s0 + $0xcc] sm:$0xf]
  %v60 = vld [vmem:[%s0 + $0xd0] sm:$0xf]
  %v61 = vld [vmem:[%s0 + $0xd4] sm:$0xf]
  %v62 = vld [vmem:[%s0 + $0xd8] sm:$0xf]
  %v63 = vld [vmem:[%s0 + $0xdc] sm:$0xf]
  %v64 = vld [vmem:[%s0 + $0xe0] sm:$0xf]
  %v65 = vld [vmem:[%s0 + $0xe4] sm:$0xf]
  %v66 = vld [vmem:[%s0 + $0xe8] sm:$0xf]
  %v67 = vld [vmem:[%s0 + $0xec] sm:$0xf]
  %v68 = vld [vmem:[%s0 + $0xf0] sm:$0xf]
  %v69 = vld [vmem:[%s0 + $0xf4] sm:$0xf]
  %v70 = vld [vmem:[%s0 + $0xf8] sm:$0xf]
  %v71 = vld [vmem:[%s0 + $0xfc] sm:$0xf]
  %v72 = vld [vmem:[%s0 + $0x100] sm:$0xf]
  %v73 = vld [vmem:[%s0 + $0x104] sm:$0xf]
  %v74 = vld [vmem:[%s0 + $0x108] sm:$0xf]
  %v75 = vld [vmem:[%s0 + $0x10c] sm:$0xf]
  %v76 = vld [vmem:[%s0 + $0x110] sm:$0xf]
  %v77 = vld [vmem:[%s0 + $0x114] sm:$0xf]
  %v78 = vld [vmem:[%s0 + $0x118] sm:$0xf]
  %v79 = vld [vmem:[%s0 + $0x11c] sm:$0xf]
  %v80 = vld [vmem:[%s0 + $0x120] sm:$0xf]
  %v81 = vld [vmem:[%s0 + $0x124] sm:$0xf]
  %v82 = vld [vmem:[%s0 + $0x128] sm:$0xf]
  %v83 = vld [vmem:[%s0 + $0x12c] sm:$0xf]
  %v84 = vld [vmem:[%s0 + $0x130] sm:$0xf]
  %v85 = vld [vmem:[%s0 + $0x134] sm:$0xf]
  %v86 = vld [vmem:[%s0 + $0x138] sm:$0xf]
  %v87 = vld [vmem:[%s0 + $0x13c] sm:$0xf]
  %v88 = vld [vmem:[%s0 + $0x140] sm:$0xf]
  %v89 = vld [vmem:[%s0 + $0x144] sm:$0xf]
  %v90 = vld [vmem:[%s0 + $0x148] sm:$0xf]
  %v91 = vld [vmem:[%s0 + $0x14c] sm:$0xf]
  %v92 = vld [vmem:[%s0 + $0x150] sm:$0xf]
  %v93 = vld [vmem:[%s0 + $0x154] sm:$0xf]
  %v94 = vld [vmem:[%s0 + $0x158] sm:$0xf]
  %v95 = vld [vmem:[%s0 + $0x15c] sm:$0xf]
  %v96 = vld [vmem:[%s0 + $0x160] sm:$0xf]
  %v97 = vld [vmem:[%s0 + $0x164] sm:$0xf]
  %v98 = vld [vmem:[%s0 + $0x168] sm:$0xf]
  %v99 = vld [vmem:[%s0 + $0x16c] sm:$0xf]
  %v100 = vld [vmem:[%s0 + $0x170] sm:$0xf]
  %v101 = vld [vmem:[%s0 + $0x174] sm:$0xf]
  %v102 = vld [vmem:[%s0 + $0x178] sm:$0xf]
  %v103 = vld [vmem:[%s0 + $0x17c] sm:$0xf]
  %v104 = vld [vmem:[%s0 + $0x180] sm:$0xf]
  %v105 = vld [vmem:[%s0 + $0x184] sm:$0xf]
  %v106 = vld [vmem:[%s0 + $0x188] sm:$0xf]
  %v107 = vld [vmem:[%s0 + $0x18c] sm:$0xf]
  %v108 = vld [vmem:[%s0 + $0x190] sm:$0xf]
  %v109 = vld [vmem:[%s0 + $0x194] sm:$0xf]
  %v110 = vld [vmem:[%s0 + $0x198] sm:$0xf]
  %v111 = vld [vmem:[%s0 + $0x19c] sm:$0xf]
  %v112 = vld [vmem:[%s0 + $0x1a0] sm:$0xf]
  %v113 = vld [vmem:[%s0 + $0x1a4] sm:$0xf]
  %v114 = vld [vmem:[%s0 + $0x1a8] sm:$0xf]
  %v115 = vld [vmem:[%s0 + $0x1ac] sm:$0xf]
  %v116 = vld [vmem:[%s0 + $0x1b0] sm:$0xf]
  %v117 = vld [vmem:[%s0 + $0x1b4] sm:$0xf]
  %v118 = vld [vmem:[%s0 + $0x1b8] sm:$0xf]
  %v119 = vld [vmem:[%s0 + $0x1bc] sm:$0xf]
  %v120 = vld [vmem:[%s0 + $0x1c0] sm:$0xf]
  %v121 = vld [vmem:[%s0 + $0x1c4] sm:$0xf]
  %v122 = vld [vmem:[%s0 + $0x1c8] sm:$0xf]
  %v123 = vld [vmem:[%s0 + $0x1cc] sm:$0xf]
  %v124 = vld [vmem:[%s0 + $0x1d0] sm:$0xf]
  %v125 = vld [vmem:[%s0 + $0x1d4] sm:$0xf]
  %v126 = vld [vmem:[%s0 + $0x1d8] sm:$0xf]
  %v127 = vld [vmem:[%s0 + $0x1dc] sm:$0xf]
  %v128 = vld [vmem:[%s0 + $0x1e0] sm:$0xf]
  %v129 = vld [vmem:[%s0 + $0x1e4] sm:$0xf]
  %v130 = vld [vmem:[%s0 + $0x1e8] sm:$0xf]
  %v131 = vld [vmem:[%s0 + $0x1ec] sm:$0xf]
  %v132 = vld [vmem:[%s0 + $0x1f0] sm:$0xf]
  %v133 = vld [vmem:[%s0 + $0x1f4] sm:$0xf]
  %v134 = vld [vmem:[%s0 + $0x1f8] sm:$0xf]
  %v135 = vld [vmem:[%s0 + $0x1fc] sm:$0xf]
  %v136 = vld [vmem:[%s0 + $0x200] sm:$0xf]
  %v137 = vld [vmem:[%s0 + $0x204] sm:$0xf]
  %v138 = vld [vmem:[%s0 + $0x208] sm:$0xf]
  %v139 = vld [vmem:[%s0 + $0x20c] sm:$0xf]
  %v140 = vld [vmem:[%s0 + $0x210] sm:$0xf]
  %v141 = vld [vmem:[%s0 + $0x214] sm:$0xf]
  %v142 = vld [vmem:[%s0 + $0x218] sm:$0xf]
  %v143 = vld [vmem:[%s0 + $0x21c] sm:$0xf]
  %v144 = vld [vmem:[%s0 + $0x220] sm:$0xf]
  %v145 = vld [vmem:[%s0 + $0x224] sm:$0xf]
  %v146 = vld [vmem:[%s0 + $0x228] sm:$0xf]
  %v147 = vld [vmem:[%s0 + $0x22c] sm:$0xf]
  %v148 = vld [vmem:[%s0 + $0x230] sm:$0xf]
  %v149 = vld [vmem:[%s0 + $0x234] sm:$0xf]
  %v150 = vld [vmem:[%s0 + $0x238] sm:$0xf]
  %v151 = vld [vmem:[%s0 + $0x23c] sm:$0xf]
  %v152 = vunpack.c.l.bf16 %v8
  %v153 = vunpack.c.l.bf16 %v9
  %v154 = vunpack.c.l.bf16 %v10
  %v155 = vunpack.c.l.bf16 %v11
  %v156 = vunpack.c.l.bf16 %v12
  %v157 = vunpack.c.l.bf16 %v13
  %v158 = vunpack.c.l.bf16 %v14
  %v159 = vunpack.c.l.bf16 %v15
  %v160 = vunpack.c.l.bf16 %v16
  %v161 = vunpack.c.l.bf16 %v17
  %v162 = vunpack.c.l.bf16 %v18
  %v163 = vunpack.c.l.bf16 %v19
  %v164 = vunpack.c.l.bf16 %v20
  %v165 = vunpack.c.l.bf16 %v21
  %v166 = vunpack.c.l.bf16 %v22
  %v167 = vunpack.c.l.bf16 %v23
  %v168 = vunpack.c.l.bf16 %v24
  %v169 = vunpack.c.l.bf16 %v25
  %v170 = vunpack.c.l.bf16 %v26
  %v171 = vunpack.c.l.bf16 %v27
  %v172 = vunpack.c.l.bf16 %v28
  %v173 = vunpack.c.l.bf16 %v29
  %v174 = vunpack.c.l.bf16 %v30
  %v175 = vunpack.c.l.bf16 %v31
  %v176 = vunpack.c.l.bf16 %v32
  %v177 = vunpack.c.l.bf16 %v33
  %v178 = vunpack.c.l.bf16 %v34
  %v179 = vunpack.c.l.bf16 %v35
  %v180 = vunpack.c.l.bf16 %v36
  %v181 = vunpack.c.l.bf16 %v37
  %v182 = vunpack.c.l.bf16 %v38
  %v183 = vunpack.c.l.bf16 %v39
  %v184 = vunpack.c.l.bf16 %v40
  %v185 = vunpack.c.l.bf16 %v41
  %v186 = vunpack.c.l.bf16 %v42
  %v187 = vunpack.c.l.bf16 %v43
  %v188 = vunpack.c.l.bf16 %v44
  %v189 = vunpack.c.l.bf16 %v45
  %v190 = vunpack.c.l.bf16 %v46
  %v191 = vunpack.c.l.bf16 %v47
  %v192 = vunpack.c.l.bf16 %v48
  %v193 = vunpack.c.l.bf16 %v49
  %v194 = vunpack.c.l.bf16 %v50
  %v195 = vunpack.c.l.bf16 %v51
  %v196 = vunpack.c.l.bf16 %v52
  %v197 = vunpack.c.l.bf16 %v53
  %v198 = vunpack.c.l.bf16 %v54
  %v199 = vunpack.c.l.bf16 %v55
  %v200 = vunpack.c.l.bf16 %v56
  %v201 = vunpack.c.l.bf16 %v57
  %v202 = vunpack.c.l.bf16 %v58
  %v203 = vunpack.c.l.bf16 %v59
  %v204 = vunpack.c.l.bf16 %v60
  %v205 = vunpack.c.l.bf16 %v61
  %v206 = vunpack.c.l.bf16 %v62
  %v207 = vunpack.c.l.bf16 %v63
  %v208 = vunpack.c.l.bf16 %v64
  %v209 = vunpack.c.l.bf16 %v65
  %v210 = vunpack.c.l.bf16 %v66
  %v211 = vunpack.c.l.bf16 %v67
  %v212 = vunpack.c.l.bf16 %v68
  %v213 = vunpack.c.l.bf16 %v69
  %v214 = vunpack.c.l.bf16 %v70
  %v215 = vunpack.c.l.bf16 %v71
  %v216 = vunpack.c.l.bf16 %v72
  %v217 = vunpack.c.l.bf16 %v73
  %v218 = vunpack.c.l.bf16 %v74
  %v219 = vunpack.c.l.bf16 %v75
  %v220 = vunpack.c.l.bf16 %v76
  %v221 = vunpack.c.l.bf16 %v77
  %v222 = vunpack.c.l.bf16 %v78
  %v223 = vunpack.c.l.bf16 %v79
  %v224 = vunpack.c.l.bf16 %v80
  %v225 = vunpack.c.l.bf16 %v81
  %v226 = vunpack.c.l.bf16 %v82
  %v227 = vunpack.c.l.bf16 %v83
  %v228 = vunpack.c.l.bf16 %v84
  %v229 = vunpack.c.l.bf16 %v85
  %v230 = vunpack.c.l.bf16 %v86
  %v231 = vunpack.c.l.bf16 %v87
  %v232 = vunpack.c.l.bf16 %v88
  %v233 = vunpack.c.l.bf16 %v89
  %v234 = vunpack.c.l.bf16 %v90
  %v235 = vunpack.c.l.bf16 %v91
  %v236 = vunpack.c.l.bf16 %v92
  %v237 = vunpack.c.l.bf16 %v93
  %v238 = vunpack.c.l.bf16 %v94
  %v239 = vunpack.c.l.bf16 %v95
  %v240 = vunpack.c.l.bf16 %v96
  %v241 = vunpack.c.l.bf16 %v97
  %v242 = vunpack.c.l.bf16 %v98
  %v243 = vunpack.c.l.bf16 %v99
  %v244 = vunpack.c.l.bf16 %v100
  %v245 = vunpack.c.l.bf16 %v101
  %v246 = vunpack.c.l.bf16 %v102
  %v247 = vunpack.c.l.bf16 %v103
  %v248 = vunpack.c.l.bf16 %v104
  %v249 = vunpack.c.l.bf16 %v105
  %v250 = vunpack.c.l.bf16 %v106
  %v251 = vunpack.c.l.bf16 %v107
  %v252 = vunpack.c.l.bf16 %v108
  %v253 = vunpack.c.l.bf16 %v109
  %v254 = vunpack.c.l.bf16 %v110
  %v255 = vunpack.c.l.bf16 %v111
  %v256 = vunpack.c.l.bf16 %v112
  %v257 = vunpack.c.l.bf16 %v113
  %v258 = vunpack.c.l.bf16 %v114
  %v259 = vunpack.c.l.bf16 %v115
  %v260 = vunpack.c.l.bf16 %v116
  %v261 = vunpack.c.l.bf16 %v117
  %v262 = vunpack.c.l.bf16 %v118
  %v263 = vunpack.c.l.bf16 %v119
  %v264 = vunpack.c.l.bf16 %v120
  %v265 = vunpack.c.l.bf16 %v121
  %v266 = vunpack.c.l.bf16 %v122
  %v267 = vunpack.c.l.bf16 %v123
  %v268 = vunpack.c.l.bf16 %v124
  %v269 = vunpack.c.l.bf16 %v125
  %v270 = vunpack.c.l.bf16 %v126
  %v271 = vunpack.c.l.bf16 %v127
  %v272 = vunpack.c.l.bf16 %v128
  %v273 = vunpack.c.l.bf16 %v129
  %v274 = vunpack.c.l.bf16 %v130
  %v275 = vunpack.c.l.bf16 %v131
  %v276 = vunpack.c.l.bf16 %v132
  %v277 = vunpack.c.l.bf16 %v133
  %v278 = vunpack.c.l.bf16 %v134
  %v279 = vunpack.c.l.bf16 %v135
  %v280 = vunpack.c.l.bf16 %v136
  %v281 = vunpack.c.l.bf16 %v137
  %v282 = vunpack.c.l.bf16 %v138
  %v283 = vunpack.c.l.bf16 %v139
  %v284 = vunpack.c.l.bf16 %v140
  %v285 = vunpack.c.l.bf16 %v141
  %v286 = vunpack.c.l.bf16 %v142
  %v287 = vunpack.c.l.bf16 %v143
  %v288 = vunpack.c.l.bf16 %v144
  %v289 = vunpack.c.l.bf16 %v145
  %v290 = vunpack.c.l.bf16 %v146
  %v291 = vunpack.c.l.bf16 %v147
  %v292 = vunpack.c.l.bf16 %v148
  %v293 = vunpack.c.l.bf16 %v149
  %v294 = vunpack.c.l.bf16 %v150
  %v295 = vunpack.c.l.bf16 %v151
  %vm296 = vcmask 523264
  %v297 = vsel %vm296, %v152, -inf
  %v298 = vsel %vm296, %v168, -inf
  %v299 = vmax.f32 %v297, %v298
  %v300 = vsel %vm296, %v184, -inf
  %v301 = vmax.f32 %v299, %v300
  %v302 = vsel %vm296, %v200, -inf
  %v303 = vmax.f32 %v301, %v302
  %v304 = vsel %vm296, %v216, -inf
  %v305 = vmax.f32 %v303, %v304
  %v306 = vsel %vm296, %v232, -inf
  %v307 = vmax.f32 %v305, %v306
  %v308 = vsel %vm296, %v248, -inf
  %v309 = vmax.f32 %v307, %v308
  %v310 = vsel %vm296, %v264, -inf
  %v311 = vmax.f32 %v309, %v310
  %v312 = vsel %vm296, %v280, -inf
  %v313 = vmax.f32 %v311, %v312
  %v314 = vsel %vm296, %v153, -inf
  %v315 = vsel %vm296, %v169, -inf
  %v316 = vmax.f32 %v314, %v315
  %v317 = vsel %vm296, %v185, -inf
  %v318 = vmax.f32 %v316, %v317
  %v319 = vsel %vm296, %v201, -inf
  %v320 = vmax.f32 %v318, %v319
  %v321 = vsel %vm296, %v217, -inf
  %v322 = vmax.f32 %v320, %v321
  %v323 = vsel %vm296, %v233, -inf
  %v324 = vmax.f32 %v322, %v323
  %v325 = vsel %vm296, %v249, -inf
  %v326 = vmax.f32 %v324, %v325
  %v327 = vsel %vm296, %v265, -inf
  %v328 = vmax.f32 %v326, %v327
  %v329 = vsel %vm296, %v281, -inf
  %v330 = vmax.f32 %v328, %v329
  %v331 = vsel %vm296, %v154, -inf
  %v332 = vsel %vm296, %v170, -inf
  %v333 = vmax.f32 %v331, %v332
  %v334 = vsel %vm296, %v186, -inf
  %v335 = vmax.f32 %v333, %v334
  %v336 = vsel %vm296, %v202, -inf
  %v337 = vmax.f32 %v335, %v336
  %v338 = vsel %vm296, %v218, -inf
  %v339 = vmax.f32 %v337, %v338
  %v340 = vsel %vm296, %v234, -inf
  %v341 = vmax.f32 %v339, %v340
  %v342 = vsel %vm296, %v250, -inf
  %v343 = vmax.f32 %v341, %v342
  %v344 = vsel %vm296, %v266, -inf
  %v345 = vmax.f32 %v343, %v344
  %v346 = vsel %vm296, %v282, -inf
  %v347 = vmax.f32 %v345, %v346
  %v348 = vsel %vm296, %v155, -inf
  %v349 = vsel %vm296, %v171, -inf
  %v350 = vmax.f32 %v348, %v349
  %v351 = vsel %vm296, %v187, -inf
  %v352 = vmax.f32 %v350, %v351
  %v353 = vsel %vm296, %v203, -inf
  %v354 = vmax.f32 %v352, %v353
  %v355 = vsel %vm296, %v219, -inf
  %v356 = vmax.f32 %v354, %v355
  %v357 = vsel %vm296, %v235, -inf
  %v358 = vmax.f32 %v356, %v357
  %v359 = vsel %vm296, %v251, -inf
  %v360 = vmax.f32 %v358, %v359
  %v361 = vsel %vm296, %v267, -inf
  %v362 = vmax.f32 %v360, %v361
  %v363 = vsel %vm296, %v283, -inf
  %v364 = vmax.f32 %v362, %v363
  %v365 = vsel %vm296, %v156, -inf
  %v366 = vsel %vm296, %v172, -inf
  %v367 = vmax.f32 %v365, %v366
  %v368 = vsel %vm296, %v188, -inf
  %v369 = vmax.f32 %v367, %v368
  %v370 = vsel %vm296, %v204, -inf
  %v371 = vmax.f32 %v369, %v370
  %v372 = vsel %vm296, %v220, -inf
  %v373 = vmax.f32 %v371, %v372
  %v374 = vsel %vm296, %v236, -inf
  %v375 = vmax.f32 %v373, %v374
  %v376 = vsel %vm296, %v252, -inf
  %v377 = vmax.f32 %v375, %v376
  %v378 = vsel %vm296, %v268, -inf
  %v379 = vmax.f32 %v377, %v378
  %v380 = vsel %vm296, %v284, -inf
  %v381 = vmax.f32 %v379, %v380
  %v382 = vsel %vm296, %v157, -inf
  %v383 = vsel %vm296, %v173, -inf
  %v384 = vmax.f32 %v382, %v383
  %v385 = vsel %vm296, %v189, -inf
  %v386 = vmax.f32 %v384, %v385
  %v387 = vsel %vm296, %v205, -inf
  %v388 = vmax.f32 %v386, %v387
  %v389 = vsel %vm296, %v221, -inf
  %v390 = vmax.f32 %v388, %v389
  %v391 = vsel %vm296, %v237, -inf
  %v392 = vmax.f32 %v390, %v391
  %v393 = vsel %vm296, %v253, -inf
  %v394 = vmax.f32 %v392, %v393
  %v395 = vsel %vm296, %v269, -inf
  %v396 = vmax.f32 %v394, %v395
  %v397 = vsel %vm296, %v285, -inf
  %v398 = vmax.f32 %v396, %v397
  %v399 = vsel %vm296, %v158, -inf
  %v400 = vsel %vm296, %v174, -inf
  %v401 = vmax.f32 %v399, %v400
  %v402 = vsel %vm296, %v190, -inf
  %v403 = vmax.f32 %v401, %v402
  %v404 = vsel %vm296, %v206, -inf
  %v405 = vmax.f32 %v403, %v404
  %v406 = vsel %vm296, %v222, -inf
  %v407 = vmax.f32 %v405, %v406
  %v408 = vsel %vm296, %v238, -inf
  %v409 = vmax.f32 %v407, %v408
  %v410 = vsel %vm296, %v254, -inf
  %v411 = vmax.f32 %v409, %v410
  %v412 = vsel %vm296, %v270, -inf
  %v413 = vmax.f32 %v411, %v412
  %v414 = vsel %vm296, %v286, -inf
  %v415 = vmax.f32 %v413, %v414
  %v416 = vsel %vm296, %v159, -inf
  %v417 = vsel %vm296, %v175, -inf
  %v418 = vmax.f32 %v416, %v417
  %v419 = vsel %vm296, %v191, -inf
  %v420 = vmax.f32 %v418, %v419
  %v421 = vsel %vm296, %v207, -inf
  %v422 = vmax.f32 %v420, %v421
  %v423 = vsel %vm296, %v223, -inf
  %v424 = vmax.f32 %v422, %v423
  %v425 = vsel %vm296, %v239, -inf
  %v426 = vmax.f32 %v424, %v425
  %v427 = vsel %vm296, %v255, -inf
  %v428 = vmax.f32 %v426, %v427
  %v429 = vsel %vm296, %v271, -inf
  %v430 = vmax.f32 %v428, %v429
  %v431 = vsel %vm296, %v287, -inf
  %v432 = vmax.f32 %v430, %v431
  %v433 = vsel %vm296, %v160, -inf
  %v434 = vsel %vm296, %v176, -inf
  %v435 = vmax.f32 %v433, %v434
  %v436 = vsel %vm296, %v192, -inf
  %v437 = vmax.f32 %v435, %v436
  %v438 = vsel %vm296, %v208, -inf
  %v439 = vmax.f32 %v437, %v438
  %v440 = vsel %vm296, %v224, -inf
  %v441 = vmax.f32 %v439, %v440
  %v442 = vsel %vm296, %v240, -inf
  %v443 = vmax.f32 %v441, %v442
  %v444 = vsel %vm296, %v256, -inf
  %v445 = vmax.f32 %v443, %v444
  %v446 = vsel %vm296, %v272, -inf
  %v447 = vmax.f32 %v445, %v446
  %v448 = vsel %vm296, %v288, -inf
  %v449 = vmax.f32 %v447, %v448
  %v450 = vsel %vm296, %v161, -inf
  %v451 = vsel %vm296, %v177, -inf
  %v452 = vmax.f32 %v450, %v451
  %v453 = vsel %vm296, %v193, -inf
  %v454 = vmax.f32 %v452, %v453
  %v455 = vsel %vm296, %v209, -inf
  %v456 = vmax.f32 %v454, %v455
  %v457 = vsel %vm296, %v225, -inf
  %v458 = vmax.f32 %v456, %v457
  %v459 = vsel %vm296, %v241, -inf
  %v460 = vmax.f32 %v458, %v459
  %v461 = vsel %vm296, %v257, -inf
  %v462 = vmax.f32 %v460, %v461
  %v463 = vsel %vm296, %v273, -inf
  %v464 = vmax.f32 %v462, %v463
  %v465 = vsel %vm296, %v289, -inf
  %v466 = vmax.f32 %v464, %v465
  %v467 = vsel %vm296, %v162, -inf
  %v468 = vsel %vm296, %v178, -inf
  %v469 = vmax.f32 %v467, %v468
  %v470 = vsel %vm296, %v194, -inf
  %v471 = vmax.f32 %v469, %v470
  %v472 = vsel %vm296, %v210, -inf
  %v473 = vmax.f32 %v471, %v472
  %v474 = vsel %vm296, %v226, -inf
  %v475 = vmax.f32 %v473, %v474
  %v476 = vsel %vm296, %v242, -inf
  %v477 = vmax.f32 %v475, %v476
  %v478 = vsel %vm296, %v258, -inf
  %v479 = vmax.f32 %v477, %v478
  %v480 = vsel %vm296, %v274, -inf
  %v481 = vmax.f32 %v479, %v480
  %v482 = vsel %vm296, %v290, -inf
  %v483 = vmax.f32 %v481, %v482
  %v484 = vsel %vm296, %v163, -inf
  %v485 = vsel %vm296, %v179, -inf
  %v486 = vmax.f32 %v484, %v485
  %v487 = vsel %vm296, %v195, -inf
  %v488 = vmax.f32 %v486, %v487
  %v489 = vsel %vm296, %v211, -inf
  %v490 = vmax.f32 %v488, %v489
  %v491 = vsel %vm296, %v227, -inf
  %v492 = vmax.f32 %v490, %v491
  %v493 = vsel %vm296, %v243, -inf
  %v494 = vmax.f32 %v492, %v493
  %v495 = vsel %vm296, %v259, -inf
  %v496 = vmax.f32 %v494, %v495
  %v497 = vsel %vm296, %v275, -inf
  %v498 = vmax.f32 %v496, %v497
  %v499 = vsel %vm296, %v291, -inf
  %v500 = vmax.f32 %v498, %v499
  %v501 = vsel %vm296, %v164, -inf
  %v502 = vsel %vm296, %v180, -inf
  %v503 = vmax.f32 %v501, %v502
  %v504 = vsel %vm296, %v196, -inf
  %v505 = vmax.f32 %v503, %v504
  %v506 = vsel %vm296, %v212, -inf
  %v507 = vmax.f32 %v505, %v506
  %v508 = vsel %vm296, %v228, -inf
  %v509 = vmax.f32 %v507, %v508
  %v510 = vsel %vm296, %v244, -inf
  %v511 = vmax.f32 %v509, %v510
  %v512 = vsel %vm296, %v260, -inf
  %v513 = vmax.f32 %v511, %v512
  %v514 = vsel %vm296, %v276, -inf
  %v515 = vmax.f32 %v513, %v514
  %v516 = vsel %vm296, %v292, -inf
  %v517 = vmax.f32 %v515, %v516
  %v518 = vsel %vm296, %v165, -inf
  %v519 = vsel %vm296, %v181, -inf
  %v520 = vmax.f32 %v518, %v519
  %v521 = vsel %vm296, %v197, -inf
  %v522 = vmax.f32 %v520, %v521
  %v523 = vsel %vm296, %v213, -inf
  %v524 = vmax.f32 %v522, %v523
  %v525 = vsel %vm296, %v229, -inf
  %v526 = vmax.f32 %v524, %v525
  %v527 = vsel %vm296, %v245, -inf
  %v528 = vmax.f32 %v526, %v527
  %v529 = vsel %vm296, %v261, -inf
  %v530 = vmax.f32 %v528, %v529
  %v531 = vsel %vm296, %v277, -inf
  %v532 = vmax.f32 %v530, %v531
  %v533 = vsel %vm296, %v293, -inf
  %v534 = vmax.f32 %v532, %v533
  %v535 = vsel %vm296, %v166, -inf
  %v536 = vsel %vm296, %v182, -inf
  %v537 = vmax.f32 %v535, %v536
  %v538 = vsel %vm296, %v198, -inf
  %v539 = vmax.f32 %v537, %v538
  %v540 = vsel %vm296, %v214, -inf
  %v541 = vmax.f32 %v539, %v540
  %v542 = vsel %vm296, %v230, -inf
  %v543 = vmax.f32 %v541, %v542
  %v544 = vsel %vm296, %v246, -inf
  %v545 = vmax.f32 %v543, %v544
  %v546 = vsel %vm296, %v262, -inf
  %v547 = vmax.f32 %v545, %v546
  %v548 = vsel %vm296, %v278, -inf
  %v549 = vmax.f32 %v547, %v548
  %v550 = vsel %vm296, %v294, -inf
  %v551 = vmax.f32 %v549, %v550
  %v552 = vsel %vm296, %v167, -inf
  %v553 = vsel %vm296, %v183, -inf
  %v554 = vmax.f32 %v552, %v553
  %v555 = vsel %vm296, %v199, -inf
  %v556 = vmax.f32 %v554, %v555
  %v557 = vsel %vm296, %v215, -inf
  %v558 = vmax.f32 %v556, %v557
  %v559 = vsel %vm296, %v231, -inf
  %v560 = vmax.f32 %v558, %v559
  %v561 = vsel %vm296, %v247, -inf
  %v562 = vmax.f32 %v560, %v561
  %v563 = vsel %vm296, %v263, -inf
  %v564 = vmax.f32 %v562, %v563
  %v565 = vsel %vm296, %v279, -inf
  %v566 = vmax.f32 %v564, %v565
  %v567 = vsel %vm296, %v295, -inf
  %v568 = vmax.f32 %v566, %v567
  %v569 = vpack.c.bf16 %v313, %v313
  %v570 = vpack.c.bf16 %v330, %v330
  %v571 = vpack.c.bf16 %v347, %v347
  %v572 = vpack.c.bf16 %v364, %v364
  %v573 = vpack.c.bf16 %v381, %v381
  %v574 = vpack.c.bf16 %v398, %v398
  %v575 = vpack.c.bf16 %v415, %v415
  %v576 = vpack.c.bf16 %v432, %v432
  %v577 = vpack.c.bf16 %v449, %v449
  %v578 = vpack.c.bf16 %v466, %v466
  %v579 = vpack.c.bf16 %v483, %v483
  %v580 = vpack.c.bf16 %v500, %v500
  %v581 = vpack.c.bf16 %v517, %v517
  %v582 = vpack.c.bf16 %v534, %v534
  %v583 = vpack.c.bf16 %v551, %v551
  %v584 = vpack.c.bf16 %v568, %v568
  %vm585 = vcmask 519168
  %586 = vst.msk [vmem:[%s1] sm:$0xf] %vm585, %v569
  %587 = vst.msk [vmem:[%s1 + $0x4] sm:$0xf] %vm585, %v570
  %588 = vst.msk [vmem:[%s1 + $0x8] sm:$0xf] %vm585, %v571
  %589 = vst.msk [vmem:[%s1 + $0xc] sm:$0xf] %vm585, %v572
  %590 = vst.msk [vmem:[%s1 + $0x10] sm:$0xf] %vm585, %v573
  %591 = vst.msk [vmem:[%s1 + $0x14] sm:$0xf] %vm585, %v574
  %592 = vst.msk [vmem:[%s1 + $0x18] sm:$0xf] %vm585, %v575
  %593 = vst.msk [vmem:[%s1 + $0x1c] sm:$0xf] %vm585, %v576
  %594 = vst.msk [vmem:[%s1 + $0x20] sm:$0xf] %vm585, %v577
  %595 = vst.msk [vmem:[%s1 + $0x24] sm:$0xf] %vm585, %v578
  %596 = vst.msk [vmem:[%s1 + $0x28] sm:$0xf] %vm585, %v579
  %597 = vst.msk [vmem:[%s1 + $0x2c] sm:$0xf] %vm585, %v580
  %598 = vst.msk [vmem:[%s1 + $0x30] sm:$0xf] %vm585, %v581
  %599 = vst.msk [vmem:[%s1 + $0x34] sm:$0xf] %vm585, %v582
  %600 = vst.msk [vmem:[%s1 + $0x38] sm:$0xf] %vm585, %v583
  %601 = vst.msk [vmem:[%s1 + $0x3c] sm:$0xf] %vm585, %v584
  // Predicated region
  $region6: #{feature_extractor_with_attention.18} parent=0 // pred_check
    _
  $region7: #{feature_extractor_with_attention.18} parent=0 // pred_check_branch
    %603 = sbr.rel (0) target = $region9
  $region8: #{feature_extractor_with_attention.18} parent=0 // pred_region
    _
  $region9: #{feature_extractor_with_attention.18} parent=0 // pred_fallthru
    _
  // Predicated region
  $region10: #{feature_extractor_with_attention.18} parent=0 // pred_check
    _
  $region11: #{feature_extractor_with_attention.18} parent=0 // pred_check_branch
    %605 = sbr.rel (0) target = $region13
  $region12: #{feature_extractor_with_attention.18} parent=0 // pred_region
    _
  $region13: #{feature_extractor_with_attention.18} parent=0 // pred_fallthru
    _

// kernel: feature_extractor_with_attention.19
$region0: #{feature_extractor_with_attention.19}
  #allocation0 [shape = 'u32[]', space=smem, size = 0x4, offset = 0x4, fixed_abs, tag = 'smem constant byte address 0x4 - core index']
  #allocation1 [shape = 'u32[72,128]{1,0:T(1,128)}', space=vmem, size = 0x9000, scoped, tag = 'internal scratch']
  %s0 = inlined_call_operand.vmem [shape: bf16[128,576], index: 0, kind: input, shape index: {}]
  %s1 = inlined_call_operand.vmem [shape: bf16[576,64], index: 1, kind: input, shape index: {}]
  %s2 = inlined_call_operand.vmem [shape: f32[1,64], index: 2, kind: input, shape index: {}]
  %s3 = inlined_call_operand.vmem [shape: f32[1,64], index: 3, kind: input, shape index: {}]
  %s4 = inlined_call_operand.vmem [shape: bf16[128,64], index: 4, kind: output, shape index: {}]
  %s5 = sld [smem:[#allocation0]]
  $region26: #{feature_extractor_with_attention.19} parent=0
    _
  %s7 = ssub.s32 1, %s5
  %s8 = scalar_select 0, %s7, %s5
  // Predicated region
  $region2: #{feature_extractor_with_attention.19} parent=0 // pred_check
    _
  $region3: #{feature_extractor_with_attention.19} parent=0 // pred_check_branch
    %10 = sbr.rel (0) target = $region5
  $region4: #{feature_extractor_with_attention.19} parent=0 // pred_region
    _
  $region5: #{feature_extractor_with_attention.19} parent=0 // pred_fallthru
    _
  // Predicated region
  $region6: #{feature_extractor_with_attention.19} parent=0 // pred_check
    _
  $region7: #{feature_extractor_with_attention.19} parent=0 // pred_check_branch
    %12 = sbr.rel (0) target = $region9
  $region8: #{feature_extractor_with_attention.19} parent=0 // pred_region
    _
  $region9: #{feature_extractor_with_attention.19} parent=0 // pred_fallthru
    _
  // Predicated region
  $region10: #{feature_extractor_with_attention.19} parent=0 // pred_check
    _
  $region11: #{feature_extractor_with_attention.19} parent=0 // pred_check_branch
    %14 = sbr.rel (0) target = $region13
  $region12: #{feature_extractor_with_attention.19} parent=0 // pred_region
    _
  $region13: #{feature_extractor_with_attention.19} parent=0 // pred_fallthru
    _
  // Predicated region
  $region14: #{feature_extractor_with_attention.19} parent=0 // pred_check
    _
  $region15: #{feature_extractor_with_attention.19} parent=0 // pred_check_branch
    %16 = sbr.rel (0) target = $region17
  $region16: #{feature_extractor_with_attention.19} parent=0 // pred_region
    _
  $region17: #{feature_extractor_with_attention.19} parent=0 // pred_fallthru
    _
  %v18 = vld [vmem:[%s0] sm:$0xff]
  %v19 = vld [vmem:[%s0 + $0x8] sm:$0xff]
  %v20 = vld [vmem:[%s0 + $0x10] sm:$0xf]
  %v21 = vld [vmem:[%s0 + $0x14] sm:$0xff]
  %v22 = vld [vmem:[%s0 + $0x1c] sm:$0xff]
  %v23 = vld [vmem:[%s0 + $0x24] sm:$0xf]
  %v24 = vld [vmem:[%s0 + $0x28] sm:$0xff]
  %v25 = vld [vmem:[%s0 + $0x30] sm:$0xff]
  %v26 = vld [vmem:[%s0 + $0x38] sm:$0xf]
  %v27 = vld [vmem:[%s0 + $0x3c] sm:$0xff]
  %v28 = vld [vmem:[%s0 + $0x44] sm:$0xff]
  %v29 = vld [vmem:[%s0 + $0x4c] sm:$0xf]
  %v30 = vld [vmem:[%s0 + $0x50] sm:$0xff]
  %v31 = vld [vmem:[%s0 + $0x58] sm:$0xff]
  %v32 = vld [vmem:[%s0 + $0x60] sm:$0xf]
  %v33 = vld [vmem:[%s0 + $0x64] sm:$0xff]
  %v34 = vld [vmem:[%s0 + $0x6c] sm:$0xff]
  %v35 = vld [vmem:[%s0 + $0x74] sm:$0xf]
  %v36 = vld [vmem:[%s0 + $0x78] sm:$0xff]
  %v37 = vld [vmem:[%s0 + $0x80] sm:$0xff]
  %v38 = vld [vmem:[%s0 + $0x88] sm:$0xf]
  %v39 = vld [vmem:[%s0 + $0x8c] sm:$0xff]
  %v40 = vld [vmem:[%s0 + $0x94] sm:$0xff]
  %v41 = vld [vmem:[%s0 + $0x9c] sm:$0xf]
  %v42 = vld [vmem:[%s0 + $0xa0] sm:$0xff]
  %v43 = vld [vmem:[%s0 + $0xa8] sm:$0xff]
  %v44 = vld [vmem:[%s0 + $0xb0] sm:$0xf]
  %v45 = vld [vmem:[%s0 + $0xb4] sm:$0xff]
  %v46 = vld [vmem:[%s0 + $0xbc] sm:$0xff]
  %v47 = vld [vmem:[%s0 + $0xc4] sm:$0xf]
  %v48 = vld [vmem:[%s0 + $0xc8] sm:$0xff]
  %v49 = vld [vmem:[%s0 + $0xd0] sm:$0xff]
  %v50 = vld [vmem:[%s0 + $0xd8] sm:$0xf]
  %v51 = vld [vmem:[%s0 + $0xdc] sm:$0xff]
  %v52 = vld [vmem:[%s0 + $0xe4] sm:$0xff]
  %v53 = vld [vmem:[%s0 + $0xec] sm:$0xf]
  %v54 = vld [vmem:[%s0 + $0xf0] sm:$0xff]
  %v55 = vld [vmem:[%s0 + $0xf8] sm:$0xff]
  %v56 = vld [vmem:[%s0 + $0x100] sm:$0xf]
  %v57 = vld [vmem:[%s0 + $0x104] sm:$0xff]
  %v58 = vld [vmem:[%s0 + $0x10c] sm:$0xff]
  %v59 = vld [vmem:[%s0 + $0x114] sm:$0xf]
  %v60 = vld [vmem:[%s0 + $0x118] sm:$0xff]
  %v61 = vld [vmem:[%s0 + $0x120] sm:$0xff]
  %v62 = vld [vmem:[%s0 + $0x128] sm:$0xf]
  %v63 = vld [vmem:[%s0 + $0x12c] sm:$0xff]
  %v64 = vld [vmem:[%s0 + $0x134] sm:$0xff]
  %v65 = vld [vmem:[%s0 + $0x13c] sm:$0xf]
  %v66 = vld [vmem:[%s1] sm:$0xf]
  %v67 = vld [vmem:[%s1 + $0x4] sm:$0xf]
  %v68 = vld [vmem:[%s1 + $0x8] sm:$0xf]
  %v69 = vld [vmem:[%s1 + $0xc] sm:$0xf]
  %v70 = vld [vmem:[%s1 + $0x10] sm:$0xf]
  %v71 = vld [vmem:[%s1 + $0x14] sm:$0xf]
  %v72 = vld [vmem:[%s1 + $0x18] sm:$0xf]
  %v73 = vld [vmem:[%s1 + $0x1c] sm:$0xf]
  %v74 = vld [vmem:[%s1 + $0x20] sm:$0xf]
  %v75 = vld [vmem:[%s1 + $0x24] sm:$0xf]
  %v76 = vld [vmem:[%s1 + $0x28] sm:$0xf]
  %v77 = vld [vmem:[%s1 + $0x2c] sm:$0xf]
  %v78 = vld [vmem:[%s1 + $0x30] sm:$0xf]
  %v79 = vld [vmem:[%s1 + $0x34] sm:$0xf]
  %v80 = vld [vmem:[%s1 + $0x38] sm:$0xf]
  %v81 = vld [vmem:[%s1 + $0x3c] sm:$0xf]
  %v82 = vld [vmem:[%s1 + $0x40] sm:$0xf]
  %v83 = vld [vmem:[%s1 + $0x44] sm:$0xf]
  %v84 = vld [vmem:[%s1 + $0x48] sm:$0xf]
  %v85 = vld [vmem:[%s1 + $0x4c] sm:$0xf]
  %v86 = vld [vmem:[%s1 + $0x50] sm:$0xf]
  %v87 = vld [vmem:[%s1 + $0x54] sm:$0xf]
  %v88 = vld [vmem:[%s1 + $0x58] sm:$0xf]
  %v89 = vld [vmem:[%s1 + $0x5c] sm:$0xf]
  %v90 = vld [vmem:[%s1 + $0x60] sm:$0xf]
  %v91 = vld [vmem:[%s1 + $0x64] sm:$0xf]
  %v92 = vld [vmem:[%s1 + $0x68] sm:$0xf]
  %v93 = vld [vmem:[%s1 + $0x6c] sm:$0xf]
  %v94 = vld [vmem:[%s1 + $0x70] sm:$0xf]
  %v95 = vld [vmem:[%s1 + $0x74] sm:$0xf]
  %v96 = vld [vmem:[%s1 + $0x78] sm:$0xf]
  %v97 = vld [vmem:[%s1 + $0x7c] sm:$0xf]
  %v98 = vld [vmem:[%s1 + $0x80] sm:$0xf]
  %v99 = vld [vmem:[%s1 + $0x84] sm:$0xf]
  %v100 = vld [vmem:[%s1 + $0x88] sm:$0xf]
  %v101 = vld [vmem:[%s1 + $0x8c] sm:$0xf]
  %v102 = vld [vmem:[%s1 + $0x90] sm:$0xf]
  %v103 = vld [vmem:[%s1 + $0x94] sm:$0xf]
  %v104 = vld [vmem:[%s1 + $0x98] sm:$0xf]
  %v105 = vld [vmem:[%s1 + $0x9c] sm:$0xf]
  %v106 = vld [vmem:[%s1 + $0xa0] sm:$0xf]
  %v107 = vld [vmem:[%s1 + $0xa4] sm:$0xf]
  %v108 = vld [vmem:[%s1 + $0xa8] sm:$0xf]
  %v109 = vld [vmem:[%s1 + $0xac] sm:$0xf]
  %v110 = vld [vmem:[%s1 + $0xb0] sm:$0xf]
  %v111 = vld [vmem:[%s1 + $0xb4] sm:$0xf]
  %v112 = vld [vmem:[%s1 + $0xb8] sm:$0xf]
  %v113 = vld [vmem:[%s1 + $0xbc] sm:$0xf]
  %v114 = vld [vmem:[%s1 + $0xc0] sm:$0xf]
  %v115 = vld [vmem:[%s1 + $0xc4] sm:$0xf]
  %v116 = vld [vmem:[%s1 + $0xc8] sm:$0xf]
  %v117 = vld [vmem:[%s1 + $0xcc] sm:$0xf]
  %v118 = vld [vmem:[%s1 + $0xd0] sm:$0xf]
  %v119 = vld [vmem:[%s1 + $0xd4] sm:$0xf]
  %v120 = vld [vmem:[%s1 + $0xd8] sm:$0xf]
  %v121 = vld [vmem:[%s1 + $0xdc] sm:$0xf]
  %v122 = vld [vmem:[%s1 + $0xe0] sm:$0xf]
  %v123 = vld [vmem:[%s1 + $0xe4] sm:$0xf]
  %v124 = vld [vmem:[%s1 + $0xe8] sm:$0xf]
  %v125 = vld [vmem:[%s1 + $0xec] sm:$0xf]
  %v126 = vld [vmem:[%s1 + $0xf0] sm:$0xf]
  %v127 = vld [vmem:[%s1 + $0xf4] sm:$0xf]
  %v128 = vld [vmem:[%s1 + $0xf8] sm:$0xf]
  %v129 = vld [vmem:[%s1 + $0xfc] sm:$0xf]
  %v130 = vld [vmem:[%s1 + $0x100] sm:$0xf]
  %v131 = vld [vmem:[%s1 + $0x104] sm:$0xf]
  %v132 = vld [vmem:[%s1 + $0x108] sm:$0xf]
  %v133 = vld [vmem:[%s1 + $0x10c] sm:$0xf]
  %v134 = vld [vmem:[%s1 + $0x110] sm:$0xf]
  %v135 = vld [vmem:[%s1 + $0x114] sm:$0xf]
  %v136 = vld [vmem:[%s1 + $0x118] sm:$0xf]
  %v137 = vld [vmem:[%s1 + $0x11c] sm:$0xf]
  %v186 = vunpack.c.l.b16 %v18
  %v187 = vunpack.c.h.b16 %v18
  %v188 = vunpack.c.l.b16 %v19
  %v189 = vunpack.c.h.b16 %v19
  %v190 = vunpack.c.l.b16 %v20
  %v191 = vunpack.c.l.b16 %v21
  %v192 = vunpack.c.h.b16 %v21
  %v193 = vunpack.c.l.b16 %v22
  %v194 = vunpack.c.h.b16 %v22
  %v195 = vunpack.c.l.b16 %v23
  %v196 = vunpack.c.l.b16 %v24
  %v197 = vunpack.c.h.b16 %v24
  %v198 = vunpack.c.l.b16 %v25
  %v199 = vunpack.c.h.b16 %v25
  %v200 = vunpack.c.l.b16 %v26
  %v201 = vunpack.c.l.b16 %v27
  %v202 = vunpack.c.h.b16 %v27
  %v203 = vunpack.c.l.b16 %v28
  %v204 = vunpack.c.h.b16 %v28
  %v205 = vunpack.c.l.b16 %v29
  %v206 = vunpack.c.l.b16 %v30
  %v207 = vunpack.c.h.b16 %v30
  %v208 = vunpack.c.l.b16 %v31
  %v209 = vunpack.c.h.b16 %v31
  %v210 = vunpack.c.l.b16 %v32
  %v211 = vunpack.c.l.b16 %v33
  %v212 = vunpack.c.h.b16 %v33
  %v213 = vunpack.c.l.b16 %v34
  %v214 = vunpack.c.h.b16 %v34
  %v215 = vunpack.c.l.b16 %v35
  %v216 = vunpack.c.l.b16 %v36
  %v217 = vunpack.c.h.b16 %v36
  %v218 = vunpack.c.l.b16 %v37
  %v219 = vunpack.c.h.b16 %v37
  %v220 = vunpack.c.l.b16 %v38
  %v221 = vunpack.c.l.b16 %v39
  %v222 = vunpack.c.h.b16 %v39
  %v223 = vunpack.c.l.b16 %v40
  %v224 = vunpack.c.h.b16 %v40
  %v225 = vunpack.c.l.b16 %v41
  %v226 = vunpack.c.l.b16 %v42
  %v227 = vunpack.c.h.b16 %v42
  %v228 = vunpack.c.l.b16 %v43
  %v229 = vunpack.c.h.b16 %v43
  %v230 = vunpack.c.l.b16 %v44
  %v231 = vunpack.c.l.b16 %v45
  %v232 = vunpack.c.h.b16 %v45
  %v233 = vunpack.c.l.b16 %v46
  %v234 = vunpack.c.h.b16 %v46
  %v235 = vunpack.c.l.b16 %v47
  %v236 = vunpack.c.l.b16 %v48
  %v237 = vunpack.c.h.b16 %v48
  %v238 = vunpack.c.l.b16 %v49
  %v239 = vunpack.c.h.b16 %v49
  %v240 = vunpack.c.l.b16 %v50
  %v241 = vunpack.c.l.b16 %v51
  %v242 = vunpack.c.h.b16 %v51
  %v243 = vunpack.c.l.b16 %v52
  %v244 = vunpack.c.h.b16 %v52
  %v245 = vunpack.c.l.b16 %v53
  %v246 = vunpack.c.l.b16 %v54
  %v247 = vunpack.c.h.b16 %v54
  %v248 = vunpack.c.l.b16 %v55
  %v249 = vunpack.c.h.b16 %v55
  %v250 = vunpack.c.l.b16 %v56
  %v251 = vunpack.c.l.b16 %v57
  %v252 = vunpack.c.h.b16 %v57
  %v253 = vunpack.c.l.b16 %v58
  %v254 = vunpack.c.h.b16 %v58
  %v255 = vunpack.c.l.b16 %v59
  %v256 = vunpack.c.l.b16 %v60
  %v257 = vunpack.c.h.b16 %v60
  %v258 = vunpack.c.l.b16 %v61
  %v259 = vunpack.c.h.b16 %v61
  %v260 = vunpack.c.l.b16 %v62
  %v261 = vunpack.c.l.b16 %v63
  %v262 = vunpack.c.h.b16 %v63
  %v263 = vunpack.c.l.b16 %v64
  %v264 = vunpack.c.h.b16 %v64
  %v265 = vunpack.c.l.b16 %v65
  %v266 = vpack.c.b16 %v191, %v186
  %v267 = vpack.c.b16 %v192, %v187
  %v268 = vpack.c.b16 %v193, %v188
  %v269 = vpack.c.b16 %v194, %v189
  %v270 = vpack.c.b16 %v195, %v190
  %v271 = vpack.c.b16 %v201, %v196
  %v272 = vpack.c.b16 %v202, %v197
  %v273 = vpack.c.b16 %v203, %v198
  %v274 = vpack.c.b16 %v204, %v199
  %v275 = vpack.c.b16 %v205, %v200
  %v276 = vpack.c.b16 %v211, %v206
  %v277 = vpack.c.b16 %v212, %v207
  %v278 = vpack.c.b16 %v213, %v208
  %v279 = vpack.c.b16 %v214, %v209
  %v280 = vpack.c.b16 %v215, %v210
  %v281 = vpack.c.b16 %v221, %v216
  %v282 = vpack.c.b16 %v222, %v217
  %v283 = vpack.c.b16 %v223, %v218
  %v284 = vpack.c.b16 %v224, %v219
  %v285 = vpack.c.b16 %v225, %v220
  %v286 = vpack.c.b16 %v231, %v226
  %v287 = vpack.c.b16 %v232, %v227
  %v288 = vpack.c.b16 %v233, %v228
  %v289 = vpack.c.b16 %v234, %v229
  %v290 = vpack.c.b16 %v235, %v230
  %v291 = vpack.c.b16 %v241, %v236
  %v292 = vpack.c.b16 %v242, %v237
  %v293 = vpack.c.b16 %v243, %v238
  %v294 = vpack.c.b16 %v244, %v239
  %v295 = vpack.c.b16 %v245, %v240
  %v296 = vpack.c.b16 %v251, %v246
  %v297 = vpack.c.b16 %v252, %v247
  %v298 = vpack.c.b16 %v253, %v248
  %v299 = vpack.c.b16 %v254, %v249
  %v300 = vpack.c.b16 %v255, %v250
  %v301 = vpack.c.b16 %v261, %v256
  %v302 = vpack.c.b16 %v262, %v257
  %v303 = vpack.c.b16 %v263, %v258
  %v304 = vpack.c.b16 %v264, %v259
  %v305 = vpack.c.b16 %v265, %v260
  %v410 = vunpack.c.l.b16 %v66
  %v411 = vunpack.c.l.b16 %v67
  %v412 = vunpack.c.l.b16 %v68
  %v413 = vunpack.c.l.b16 %v69
  %v414 = vunpack.c.l.b16 %v70
  %v415 = vunpack.c.l.b16 %v71
  %v416 = vunpack.c.l.b16 %v72
  %v417 = vunpack.c.l.b16 %v73
  %v418 = vunpack.c.l.b16 %v74
  %v419 = vunpack.c.l.b16 %v75
  %v420 = vunpack.c.l.b16 %v76
  %v421 = vunpack.c.l.b16 %v77
  %v422 = vunpack.c.l.b16 %v78
  %v423 = vunpack.c.l.b16 %v79
  %v424 = vunpack.c.l.b16 %v80
  %v425 = vunpack.c.l.b16 %v81
  %v426 = vunpack.c.l.b16 %v82
  %v427 = vunpack.c.l.b16 %v83
  %v428 = vunpack.c.l.b16 %v84
  %v429 = vunpack.c.l.b16 %v85
  %v430 = vunpack.c.l.b16 %v86
  %v431 = vunpack.c.l.b16 %v87
  %v432 = vunpack.c.l.b16 %v88
  %v433 = vunpack.c.l.b16 %v89
  %v434 = vunpack.c.l.b16 %v90
  %v435 = vunpack.c.l.b16 %v91
  %v436 = vunpack.c.l.b16 %v92
  %v437 = vunpack.c.l.b16 %v93
  %v438 = vunpack.c.l.b16 %v94
  %v439 = vunpack.c.l.b16 %v95
  %v440 = vunpack.c.l.b16 %v96
  %v441 = vunpack.c.l.b16 %v97
  %v442 = vunpack.c.l.b16 %v98
  %v443 = vunpack.c.l.b16 %v99
  %v444 = vunpack.c.l.b16 %v100
  %v445 = vunpack.c.l.b16 %v101
  %v446 = vunpack.c.l.b16 %v102
  %v447 = vunpack.c.l.b16 %v103
  %v448 = vunpack.c.l.b16 %v104
  %v449 = vunpack.c.l.b16 %v105
  %v450 = vunpack.c.l.b16 %v106
  %v451 = vunpack.c.l.b16 %v107
  %v452 = vunpack.c.l.b16 %v108
  %v453 = vunpack.c.l.b16 %v109
  %v454 = vunpack.c.l.b16 %v110
  %v455 = vunpack.c.l.b16 %v111
  %v456 = vunpack.c.l.b16 %v112
  %v457 = vunpack.c.l.b16 %v113
  %v458 = vunpack.c.l.b16 %v114
  %v459 = vunpack.c.l.b16 %v115
  %v460 = vunpack.c.l.b16 %v116
  %v461 = vunpack.c.l.b16 %v117
  %v462 = vunpack.c.l.b16 %v118
  %v463 = vunpack.c.l.b16 %v119
  %v464 = vunpack.c.l.b16 %v120
  %v465 = vunpack.c.l.b16 %v121
  %v466 = vunpack.c.l.b16 %v122
  %v467 = vunpack.c.l.b16 %v123
  %v468 = vunpack.c.l.b16 %v124
  %v469 = vunpack.c.l.b16 %v125
  %v470 = vunpack.c.l.b16 %v126
  %v471 = vunpack.c.l.b16 %v127
  %v472 = vunpack.c.l.b16 %v128
  %v473 = vunpack.c.l.b16 %v129
  %v474 = vunpack.c.l.b16 %v130
  %v475 = vunpack.c.l.b16 %v131
  %v476 = vunpack.c.l.b16 %v132
  %v477 = vunpack.c.l.b16 %v133
  %v478 = vunpack.c.l.b16 %v134
  %v479 = vunpack.c.l.b16 %v135
  %v480 = vunpack.c.l.b16 %v136
  %v481 = vunpack.c.l.b16 %v137
  %v482 = vpack.c.b16 %v411, %v410
  %v483 = vpack.c.b16 %v413, %v412
  %v484 = vpack.c.b16 %v415, %v414
  %v485 = vpack.c.b16 %v417, %v416
  %v486 = vpack.c.b16 %v419, %v418
  %v487 = vpack.c.b16 %v421, %v420
  %v488 = vpack.c.b16 %v423, %v422
  %v489 = vpack.c.b16 %v425, %v424
  %v490 = vpack.c.b16 %v427, %v426
  %v491 = vpack.c.b16 %v429, %v428
  %v492 = vpack.c.b16 %v431, %v430
  %v493 = vpack.c.b16 %v433, %v432
  %v494 = vpack.c.b16 %v435, %v434
  %v495 = vpack.c.b16 %v437, %v436
  %v496 = vpack.c.b16 %v439, %v438
  %v497 = vpack.c.b16 %v441, %v440
  %v498 = vpack.c.b16 %v443, %v442
  %v499 = vpack.c.b16 %v445, %v444
  %v500 = vpack.c.b16 %v447, %v446
  %v501 = vpack.c.b16 %v449, %v448
  %v502 = vpack.c.b16 %v451, %v450
  %v503 = vpack.c.b16 %v453, %v452
  %v504 = vpack.c.b16 %v455, %v454
  %v505 = vpack.c.b16 %v457, %v456
  %v506 = vpack.c.b16 %v459, %v458
  %v507 = vpack.c.b16 %v461, %v460
  %v508 = vpack.c.b16 %v463, %v462
  %v509 = vpack.c.b16 %v465, %v464
  %v510 = vpack.c.b16 %v467, %v466
  %v511 = vpack.c.b16 %v469, %v468
  %v512 = vpack.c.b16 %v471, %v470
  %v513 = vpack.c.b16 %v473, %v472
  %v514 = vpack.c.b16 %v475, %v474
  %v515 = vpack.c.b16 %v477, %v476
  %v516 = vpack.c.b16 %v479, %v478
  %v517 = vpack.c.b16 %v481, %v480
  %vm554 = vcmask 523264
  %v556 = vsel %vm554, %v270, 0
  %v559 = vsel %vm554, %v275, 0
  %v562 = vsel %vm554, %v280, 0
  %v565 = vsel %vm554, %v285, 0
  %v568 = vsel %vm554, %v290, 0
  %v571 = vsel %vm554, %v295, 0
  %v574 = vsel %vm554, %v300, 0
  %v577 = vsel %vm554, %v305, 0
  %579 = vmatpush.bf16.msra.mxu0 %v489
  %580 = vmatpush.bf16.msra.mxu0 %v488
  %581 = vmatpush.bf16.msra.mxu0 %v487
  %582 = vmatpush.bf16.msra.mxu0 %v486
  %583 = vmatpush.bf16.msra.mxu0 %v485
  %584 = vmatpush.bf16.msra.mxu0 %v484
  %585 = vmatpush.bf16.msra.mxu0 %v483
  %586 = vmatpush.bf16.msra.mxu0 %v482
  %587 = vmatmul.bf16.gmra.mxu0 %v266
  %v588 = vpop.f32.mrf.mxu0
  %v589 = vadd.f32 0.0, %v588
  %v590 = vpop.f32.mrf.mxu0
  %v591 = vadd.f32 0.0, %v590
  %592 = vmatmul.bf16.gmra.mxu0 %v271
  %v593 = vpop.f32.mrf.mxu0
  %v594 = vadd.f32 0.0, %v593
  %v595 = vpop.f32.mrf.mxu0
  %v596 = vadd.f32 0.0, %v595
  %597 = vmatmul.bf16.gmra.mxu0 %v276
  %v598 = vpop.f32.mrf.mxu0
  %v599 = vadd.f32 0.0, %v598
  %v600 = vpop.f32.mrf.mxu0
  %v601 = vadd.f32 0.0, %v600
  %602 = vmatmul.bf16.gmra.mxu0 %v281
  %v603 = vpop.f32.mrf.mxu0
  %v604 = vadd.f32 0.0, %v603
  %v605 = vpop.f32.mrf.mxu0
  %v606 = vadd.f32 0.0, %v605
  %607 = vmatmul.bf16.gmra.mxu0 %v286
  %v608 = vpop.f32.mrf.mxu0
  %v609 = vadd.f32 0.0, %v608
  %v610 = vpop.f32.mrf.mxu0
  %v611 = vadd.f32 0.0, %v610
  %612 = vmatmul.bf16.gmra.mxu0 %v291
  %v613 = vpop.f32.mrf.mxu0
  %v614 = vadd.f32 0.0, %v613
  %v615 = vpop.f32.mrf.mxu0
  %v616 = vadd.f32 0.0, %v615
  %617 = vmatmul.bf16.gmra.mxu0 %v296
  %v618 = vpop.f32.mrf.mxu0
  %v619 = vadd.f32 0.0, %v618
  %v620 = vpop.f32.mrf.mxu0
  %v621 = vadd.f32 0.0, %v620
  %622 = vmatmul.bf16.gmra.mxu0 %v301
  %v623 = vpop.f32.mrf.mxu0
  %v624 = vadd.f32 0.0, %v623
  %v625 = vpop.f32.mrf.mxu0
  %v626 = vadd.f32 0.0, %v625
  %627 = vdwg.mxu0
  %628 = vmatpush.bf16.msra.mxu0 %v497
  %629 = vmatpush.bf16.msra.mxu0 %v496
  %630 = vmatpush.bf16.msra.mxu0 %v495
  %631 = vmatpush.bf16.msra.mxu0 %v494
  %632 = vmatpush.bf16.msra.mxu0 %v493
  %633 = vmatpush.bf16.msra.mxu0 %v492
  %634 = vmatpush.bf16.msra.mxu0 %v491
  %635 = vmatpush.bf16.msra.mxu0 %v490
  %636 = vmatmul.bf16.gmra.mxu0 %v267
  %v637 = vpop.f32.mrf.mxu0
  %v638 = vadd.f32 %v589, %v637
  %v639 = vpop.f32.mrf.mxu0
  %v640 = vadd.f32 %v591, %v639
  %641 = vmatmul.bf16.gmra.mxu0 %v272
  %v642 = vpop.f32.mrf.mxu0
  %v643 = vadd.f32 %v594, %v642
  %v644 = vpop.f32.mrf.mxu0
  %v645 = vadd.f32 %v596, %v644
  %646 = vmatmul.bf16.gmra.mxu0 %v277
  %v647 = vpop.f32.mrf.mxu0
  %v648 = vadd.f32 %v599, %v647
  %v649 = vpop.f32.mrf.mxu0
  %v650 = vadd.f32 %v601, %v649
  %651 = vmatmul.bf16.gmra.mxu0 %v282
  %v652 = vpop.f32.mrf.mxu0
  %v653 = vadd.f32 %v604, %v652
  %v654 = vpop.f32.mrf.mxu0
  %v655 = vadd.f32 %v606, %v654
  %656 = vmatmul.bf16.gmra.mxu0 %v287
  %v657 = vpop.f32.mrf.mxu0
  %v658 = vadd.f32 %v609, %v657
  %v659 = vpop.f32.mrf.mxu0
  %v660 = vadd.f32 %v611, %v659
  %661 = vmatmul.bf16.gmra.mxu0 %v292
  %v662 = vpop.f32.mrf.mxu0
  %v663 = vadd.f32 %v614, %v662
  %v664 = vpop.f32.mrf.mxu0
  %v665 = vadd.f32 %v616, %v664
  %666 = vmatmul.bf16.gmra.mxu0 %v297
  %v667 = vpop.f32.mrf.mxu0
  %v668 = vadd.f32 %v619, %v667
  %v669 = vpop.f32.mrf.mxu0
  %v670 = vadd.f32 %v621, %v669
  %671 = vmatmul.bf16.gmra.mxu0 %v302
  %v672 = vpop.f32.mrf.mxu0
  %v673 = vadd.f32 %v624, %v672
  %v674 = vpop.f32.mrf.mxu0
  %v675 = vadd.f32 %v626, %v674
  %676 = vdwg.mxu0
  %677 = vmatpush.bf16.msra.mxu0 %v505
  %678 = vmatpush.bf16.msra.mxu0 %v504
  %679 = vmatpush.bf16.msra.mxu0 %v503
  %680 = vmatpush.bf16.msra.mxu0 %v502
  %681 = vmatpush.bf16.msra.mxu0 %v501
  %682 = vmatpush.bf16.msra.mxu0 %v500
  %683 = vmatpush.bf16.msra.mxu0 %v499
  %684 = vmatpush.bf16.msra.mxu0 %v498
  %685 = vmatmul.bf16.gmra.mxu0 %v268
  %v686 = vpop.f32.mrf.mxu0
  %v687 = vadd.f32 %v638, %v686
  %v688 = vpop.f32.mrf.mxu0
  %v689 = vadd.f32 %v640, %v688
  %690 = vmatmul.bf16.gmra.mxu0 %v273
  %v691 = vpop.f32.mrf.mxu0
  %v692 = vadd.f32 %v643, %v691
  %v693 = vpop.f32.mrf.mxu0
  %v694 = vadd.f32 %v645, %v693
  %695 = vmatmul.bf16.gmra.mxu0 %v278
  %v696 = vpop.f32.mrf.mxu0
  %v697 = vadd.f32 %v648, %v696
  %v698 = vpop.f32.mrf.mxu0
  %v699 = vadd.f32 %v650, %v698
  %700 = vmatmul.bf16.gmra.mxu0 %v283
  %v701 = vpop.f32.mrf.mxu0
  %v702 = vadd.f32 %v653, %v701
  %v703 = vpop.f32.mrf.mxu0
  %v704 = vadd.f32 %v655, %v703
  %705 = vmatmul.bf16.gmra.mxu0 %v288
  %v706 = vpop.f32.mrf.mxu0
  %v707 = vadd.f32 %v658, %v706
  %v708 = vpop.f32.mrf.mxu0
  %v709 = vadd.f32 %v660, %v708
  %710 = vmatmul.bf16.gmra.mxu0 %v293
  %v711 = vpop.f32.mrf.mxu0
  %v712 = vadd.f32 %v663, %v711
  %v713 = vpop.f32.mrf.mxu0
  %v714 = vadd.f32 %v665, %v713
  %715 = vmatmul.bf16.gmra.mxu0 %v298
  %v716 = vpop.f32.mrf.mxu0
  %v717 = vadd.f32 %v668, %v716
  %v718 = vpop.f32.mrf.mxu0
  %v719 = vadd.f32 %v670, %v718
  %720 = vmatmul.bf16.gmra.mxu0 %v303
  %v721 = vpop.f32.mrf.mxu0
  %v722 = vadd.f32 %v673, %v721
  %v723 = vpop.f32.mrf.mxu0
  %v724 = vadd.f32 %v675, %v723
  %725 = vdwg.mxu0
  %726 = vmatpush.bf16.msra.mxu0 %v513
  %727 = vmatpush.bf16.msra.mxu0 %v512
  %728 = vmatpush.bf16.msra.mxu0 %v511
  %729 = vmatpush.bf16.msra.mxu0 %v510
  %730 = vmatpush.bf16.msra.mxu0 %v509
  %731 = vmatpush.bf16.msra.mxu0 %v508
  %732 = vmatpush.bf16.msra.mxu0 %v507
  %733 = vmatpush.bf16.msra.mxu0 %v506
  %734 = vmatmul.bf16.gmra.mxu0 %v269
  %v735 = vpop.f32.mrf.mxu0
  %v736 = vadd.f32 %v687, %v735
  %v737 = vpop.f32.mrf.mxu0
  %v738 = vadd.f32 %v689, %v737
  %739 = vmatmul.bf16.gmra.mxu0 %v274
  %v740 = vpop.f32.mrf.mxu0
  %v741 = vadd.f32 %v692, %v740
  %v742 = vpop.f32.mrf.mxu0
  %v743 = vadd.f32 %v694, %v742
  %744 = vmatmul.bf16.gmra.mxu0 %v279
  %v745 = vpop.f32.mrf.mxu0
  %v746 = vadd.f32 %v697, %v745
  %v747 = vpop.f32.mrf.mxu0
  %v748 = vadd.f32 %v699, %v747
  %749 = vmatmul.bf16.gmra.mxu0 %v284
  %v750 = vpop.f32.mrf.mxu0
  %v751 = vadd.f32 %v702, %v750
  %v752 = vpop.f32.mrf.mxu0
  %v753 = vadd.f32 %v704, %v752
  %754 = vmatmul.bf16.gmra.mxu0 %v289
  %v755 = vpop.f32.mrf.mxu0
  %v756 = vadd.f32 %v707, %v755
  %v757 = vpop.f32.mrf.mxu0
  %v758 = vadd.f32 %v709, %v757
  %759 = vmatmul.bf16.gmra.mxu0 %v294
  %v760 = vpop.f32.mrf.mxu0
  %v761 = vadd.f32 %v712, %v760
  %v762 = vpop.f32.mrf.mxu0
  %v763 = vadd.f32 %v714, %v762
  %764 = vmatmul.bf16.gmra.mxu0 %v299
  %v765 = vpop.f32.mrf.mxu0
  %v766 = vadd.f32 %v717, %v765
  %v767 = vpop.f32.mrf.mxu0
  %v768 = vadd.f32 %v719, %v767
  %769 = vmatmul.bf16.gmra.mxu0 %v304
  %v770 = vpop.f32.mrf.mxu0
  %v771 = vadd.f32 %v722, %v770
  %v772 = vpop.f32.mrf.mxu0
  %v773 = vadd.f32 %v724, %v772
  %774 = vdwg.mxu0
  %775 = vmatpush.bf16.msra.mxu0 0
  %776 = vmatpush.bf16.msra.mxu0 0
  %777 = vmatpush.bf16.msra.mxu0 0
  %778 = vmatpush.bf16.msra.mxu0 0
  %779 = vmatpush.bf16.msra.mxu0 %v517
  %780 = vmatpush.bf16.msra.mxu0 %v516
  %781 = vmatpush.bf16.msra.mxu0 %v515
  %782 = vmatpush.bf16.msra.mxu0 %v514
  %783 = vmatmul.bf16.gmra.mxu0 %v556
  %v784 = vpop.f32.mrf.mxu0
  %v785 = vadd.f32 %v736, %v784
  %v786 = vpop.f32.mrf.mxu0
  %v787 = vadd.f32 %v738, %v786
  %788 = vmatmul.bf16.gmra.mxu0 %v559
  %v789 = vpop.f32.mrf.mxu0
  %v790 = vadd.f32 %v741, %v789
  %v791 = vpop.f32.mrf.mxu0
  %v792 = vadd.f32 %v743, %v791
  %793 = vmatmul.bf16.gmra.mxu0 %v562
  %v794 = vpop.f32.mrf.mxu0
  %v795 = vadd.f32 %v746, %v794
  %v796 = vpop.f32.mrf.mxu0
  %v797 = vadd.f32 %v748, %v796
  %798 = vmatmul.bf16.gmra.mxu0 %v565
  %v799 = vpop.f32.mrf.mxu0
  %v800 = vadd.f32 %v751, %v799
  %v801 = vpop.f32.mrf.mxu0
  %v802 = vadd.f32 %v753, %v801
  %803 = vmatmul.bf16.gmra.mxu0 %v568
  %v804 = vpop.f32.mrf.mxu0
  %v805 = vadd.f32 %v756, %v804
  %v806 = vpop.f32.mrf.mxu0
  %v807 = vadd.f32 %v758, %v806
  %808 = vmatmul.bf16.gmra.mxu0 %v571
  %v809 = vpop.f32.mrf.mxu0
  %v810 = vadd.f32 %v761, %v809
  %v811 = vpop.f32.mrf.mxu0
  %v812 = vadd.f32 %v763, %v811
  %813 = vmatmul.bf16.gmra.mxu0 %v574
  %v814 = vpop.f32.mrf.mxu0
  %v815 = vadd.f32 %v766, %v814
  %v816 = vpop.f32.mrf.mxu0
  %v817 = vadd.f32 %v768, %v816
  %818 = vmatmul.bf16.gmra.mxu0 %v577
  %v819 = vpop.f32.mrf.mxu0
  %v820 = vadd.f32 %v771, %v819
  %v821 = vpop.f32.mrf.mxu0
  %v822 = vadd.f32 %v773, %v821
  %823 = vdwg.mxu0
  %v824 = vld [vmem:[%s2] sm:$0x1]
  %v826 = vperm.slane %v824, 0
  %v828 = vmul.f32 %v785, %v826
  %v829 = vmul.f32 %v787, %v826
  %v830 = vmul.f32 %v790, %v826
  %v831 = vmul.f32 %v792, %v826
  %v832 = vmul.f32 %v795, %v826
  %v833 = vmul.f32 %v797, %v826
  %v834 = vmul.f32 %v800, %v826
  %v835 = vmul.f32 %v802, %v826
  %v836 = vmul.f32 %v805, %v826
  %v837 = vmul.f32 %v807, %v826
  %v838 = vmul.f32 %v810, %v826
  %v839 = vmul.f32 %v812, %v826
  %v840 = vmul.f32 %v815, %v826
  %v841 = vmul.f32 %v817, %v826
  %v842 = vmul.f32 %v820, %v826
  %v843 = vmul.f32 %v822, %v826
  %v844 = vld [vmem:[%s3] sm:$0x1]
  %v846 = vperm.slane %v844, 0
  %v848 = vadd.f32 %v828, %v846
  %v849 = vadd.f32 %v829, %v846
  %v850 = vadd.f32 %v830, %v846
  %v851 = vadd.f32 %v831, %v846
  %v852 = vadd.f32 %v832, %v846
  %v853 = vadd.f32 %v833, %v846
  %v854 = vadd.f32 %v834, %v846
  %v855 = vadd.f32 %v835, %v846
  %v856 = vadd.f32 %v836, %v846
  %v857 = vadd.f32 %v837, %v846
  %v858 = vadd.f32 %v838, %v846
  %v859 = vadd.f32 %v839, %v846
  %v860 = vadd.f32 %v840, %v846
  %v861 = vadd.f32 %v841, %v846
  %v862 = vadd.f32 %v842, %v846
  %v863 = vadd.f32 %v843, %v846
  %v864 = vmax.f32 %v848, 0.0
  %v865 = vmax.f32 %v849, 0.0
  %v866 = vmax.f32 %v850, 0.0
  %v867 = vmax.f32 %v851, 0.0
  %v868 = vmax.f32 %v852, 0.0
  %v869 = vmax.f32 %v853, 0.0
  %v870 = vmax.f32 %v854, 0.0
  %v871 = vmax.f32 %v855, 0.0
  %v872 = vmax.f32 %v856, 0.0
  %v873 = vmax.f32 %v857, 0.0
  %v874 = vmax.f32 %v858, 0.0
  %v875 = vmax.f32 %v859, 0.0
  %v876 = vmax.f32 %v860, 0.0
  %v877 = vmax.f32 %v861, 0.0
  %v878 = vmax.f32 %v862, 0.0
  %v879 = vmax.f32 %v863, 0.0
  %v880 = vpack.c.bf16 %v864, %v864
  %v881 = vpack.c.bf16 %v865, %v865
  %v882 = vpack.c.bf16 %v866, %v866
  %v883 = vpack.c.bf16 %v867, %v867
  %v884 = vpack.c.bf16 %v868, %v868
  %v885 = vpack.c.bf16 %v869, %v869
  %v886 = vpack.c.bf16 %v870, %v870
  %v887 = vpack.c.bf16 %v871, %v871
  %v888 = vpack.c.bf16 %v872, %v872
  %v889 = vpack.c.bf16 %v873, %v873
  %v890 = vpack.c.bf16 %v874, %v874
  %v891 = vpack.c.bf16 %v875, %v875
  %v892 = vpack.c.bf16 %v876, %v876
  %v893 = vpack.c.bf16 %v877, %v877
  %v894 = vpack.c.bf16 %v878, %v878
  %v895 = vpack.c.bf16 %v879, %v879
  %vm896 = vcmask 519168
  %897 = vst.msk [vmem:[%s4] sm:$0xf] %vm896, %v880
  %898 = vst.msk [vmem:[%s4 + $0x4] sm:$0xf] %vm896, %v881
  %899 = vst.msk [vmem:[%s4 + $0x8] sm:$0xf] %vm896, %v882
  %900 = vst.msk [vmem:[%s4 + $0xc] sm:$0xf] %vm896, %v883
  %901 = vst.msk [vmem:[%s4 + $0x10] sm:$0xf] %vm896, %v884
  %902 = vst.msk [vmem:[%s4 + $0x14] sm:$0xf] %vm896, %v885
  %903 = vst.msk [vmem:[%s4 + $0x18] sm:$0xf] %vm896, %v886
  %904 = vst.msk [vmem:[%s4 + $0x1c] sm:$0xf] %vm896, %v887
  %905 = vst.msk [vmem:[%s4 + $0x20] sm:$0xf] %vm896, %v888
  %906 = vst.msk [vmem:[%s4 + $0x24] sm:$0xf] %vm896, %v889
  %907 = vst.msk [vmem:[%s4 + $0x28] sm:$0xf] %vm896, %v890
  %908 = vst.msk [vmem:[%s4 + $0x2c] sm:$0xf] %vm896, %v891
  %909 = vst.msk [vmem:[%s4 + $0x30] sm:$0xf] %vm896, %v892
  %910 = vst.msk [vmem:[%s4 + $0x34] sm:$0xf] %vm896, %v893
  %911 = vst.msk [vmem:[%s4 + $0x38] sm:$0xf] %vm896, %v894
  %912 = vst.msk [vmem:[%s4 + $0x3c] sm:$0xf] %vm896, %v895
  // Predicated region
  $region18: #{feature_extractor_with_attention.19} parent=0 // pred_check
    _
  $region19: #{feature_extractor_with_attention.19} parent=0 // pred_check_branch
    %914 = sbr.rel (0) target = $region21
  $region20: #{feature_extractor_with_attention.19} parent=0 // pred_region
    _
  $region21: #{feature_extractor_with_attention.19} parent=0 // pred_fallthru
    _
  // Predicated region
  $region22: #{feature_extractor_with_attention.19} parent=0 // pred_check
    _
  $region23: #{feature_extractor_with_attention.19} parent=0 // pred_check_branch
    %916 = sbr.rel (0) target = $region25
  $region24: #{feature_extractor_with_attention.19} parent=0 // pred_region
    _
  $region25: #{feature_extractor_with_attention.19} parent=0 // pred_fallthru
    _

// kernel: feature_extractor_with_attention.20
$region0: #{feature_extractor_with_attention.20}
  #allocation0 [shape = 'u32[]', space=smem, size = 0x4, offset = 0x4, fixed_abs, tag = 'smem constant byte address 0x4 - core index']
  #allocation1 [shape = 'u32[72,128]{1,0:T(1,128)}', space=vmem, size = 0x9000, scoped, tag = 'internal scratch']
  %s0 = inlined_call_operand.vmem [shape: bf16[128,576], index: 0, kind: input, shape index: {}]
  %s1 = inlined_call_operand.vmem [shape: bf16[576,64], index: 1, kind: input, shape index: {}]
  %s2 = inlined_call_operand.vmem [shape: f32[1,64], index: 2, kind: input, shape index: {}]
  %s3 = inlined_call_operand.vmem [shape: f32[1,64], index: 3, kind: input, shape index: {}]
  %s4 = inlined_call_operand.vmem [shape: bf16[128,64], index: 4, kind: input, shape index: {}]
  %s5 = inlined_call_operand.vmem [shape: bf16[128,64], index: 5, kind: output, shape index: {}]
  %s6 = sld [smem:[#allocation0]]
  $region30: #{feature_extractor_with_attention.20} parent=0
    _
  %s8 = ssub.s32 1, %s6
  %s9 = scalar_select 0, %s8, %s6
  // Predicated region
  $region2: #{feature_extractor_with_attention.20} parent=0 // pred_check
    _
  $region3: #{feature_extractor_with_attention.20} parent=0 // pred_check_branch
    %11 = sbr.rel (0) target = $region5
  $region4: #{feature_extractor_with_attention.20} parent=0 // pred_region
    _
  $region5: #{feature_extractor_with_attention.20} parent=0 // pred_fallthru
    _
  // Predicated region
  $region6: #{feature_extractor_with_attention.20} parent=0 // pred_check
    _
  $region7: #{feature_extractor_with_attention.20} parent=0 // pred_check_branch
    %13 = sbr.rel (0) target = $region9
  $region8: #{feature_extractor_with_attention.20} parent=0 // pred_region
    _
  $region9: #{feature_extractor_with_attention.20} parent=0 // pred_fallthru
    _
  // Predicated region
  $region10: #{feature_extractor_with_attention.20} parent=0 // pred_check
    _
  $region11: #{feature_extractor_with_attention.20} parent=0 // pred_check_branch
    %15 = sbr.rel (0) target = $region13
  $region12: #{feature_extractor_with_attention.20} parent=0 // pred_region
    _
  $region13: #{feature_extractor_with_attention.20} parent=0 // pred_fallthru
    _
  // Predicated region
  $region14: #{feature_extractor_with_attention.20} parent=0 // pred_check
    _
  $region15: #{feature_extractor_with_attention.20} parent=0 // pred_check_branch
    %17 = sbr.rel (0) target = $region17
  $region16: #{feature_extractor_with_attention.20} parent=0 // pred_region
    _
  $region17: #{feature_extractor_with_attention.20} parent=0 // pred_fallthru
    _
  // Predicated region
  $region18: #{feature_extractor_with_attention.20} parent=0 // pred_check
    _
  $region19: #{feature_extractor_with_attention.20} parent=0 // pred_check_branch
    %19 = sbr.rel (0) target = $region21
  $region20: #{feature_extractor_with_attention.20} parent=0 // pred_region
    _
  $region21: #{feature_extractor_with_attention.20} parent=0 // pred_fallthru
    _
  %v21 = vld [vmem:[%s0] sm:$0xff]
  %v22 = vld [vmem:[%s0 + $0x8] sm:$0xff]
  %v23 = vld [vmem:[%s0 + $0x10] sm:$0xf]
  %v24 = vld [vmem:[%s0 + $0x14] sm:$0xff]
  %v25 = vld [vmem:[%s0 + $0x1c] sm:$0xff]
  %v26 = vld [vmem:[%s0 + $0x24] sm:$0xf]
  %v27 = vld [vmem:[%s0 + $0x28] sm:$0xff]
  %v28 = vld [vmem:[%s0 + $0x30] sm:$0xff]
  %v29 = vld [vmem:[%s0 + $0x38] sm:$0xf]
  %v30 = vld [vmem:[%s0 + $0x3c] sm:$0xff]
  %v31 = vld [vmem:[%s0 + $0x44] sm:$0xff]
  %v32 = vld [vmem:[%s0 + $0x4c] sm:$0xf]
  %v33 = vld [vmem:[%s0 + $0x50] sm:$0xff]
  %v34 = vld [vmem:[%s0 + $0x58] sm:$0xff]
  %v35 = vld [vmem:[%s0 + $0x60] sm:$0xf]
  %v36 = vld [vmem:[%s0 + $0x64] sm:$0xff]
  %v37 = vld [vmem:[%s0 + $0x6c] sm:$0xff]
  %v38 = vld [vmem:[%s0 + $0x74] sm:$0xf]
  %v39 = vld [vmem:[%s0 + $0x78] sm:$0xff]
  %v40 = vld [vmem:[%s0 + $0x80] sm:$0xff]
  %v41 = vld [vmem:[%s0 + $0x88] sm:$0xf]
  %v42 = vld [vmem:[%s0 + $0x8c] sm:$0xff]
  %v43 = vld [vmem:[%s0 + $0x94] sm:$0xff]
  %v44 = vld [vmem:[%s0 + $0x9c] sm:$0xf]
  %v45 = vld [vmem:[%s0 + $0xa0] sm:$0xff]
  %v46 = vld [vmem:[%s0 + $0xa8] sm:$0xff]
  %v47 = vld [vmem:[%s0 + $0xb0] sm:$0xf]
  %v48 = vld [vmem:[%s0 + $0xb4] sm:$0xff]
  %v49 = vld [vmem:[%s0 + $0xbc] sm:$0xff]
  %v50 = vld [vmem:[%s0 + $0xc4] sm:$0xf]
  %v51 = vld [vmem:[%s0 + $0xc8] sm:$0xff]
  %v52 = vld [vmem:[%s0 + $0xd0] sm:$0xff]
  %v53 = vld [vmem:[%s0 + $0xd8] sm:$0xf]
  %v54 = vld [vmem:[%s0 + $0xdc] sm:$0xff]
  %v55 = vld [vmem:[%s0 + $0xe4] sm:$0xff]
  %v56 = vld [vmem:[%s0 + $0xec] sm:$0xf]
  %v57 = vld [vmem:[%s0 + $0xf0] sm:$0xff]
  %v58 = vld [vmem:[%s0 + $0xf8] sm:$0xff]
  %v59 = vld [vmem:[%s0 + $0x100] sm:$0xf]
  %v60 = vld [vmem:[%s0 + $0x104] sm:$0xff]
  %v61 = vld [vmem:[%s0 + $0x10c] sm:$0xff]
  %v62 = vld [vmem:[%s0 + $0x114] sm:$0xf]
  %v63 = vld [vmem:[%s0 + $0x118] sm:$0xff]
  %v64 = vld [vmem:[%s0 + $0x120] sm:$0xff]
  %v65 = vld [vmem:[%s0 + $0x128] sm:$0xf]
  %v66 = vld [vmem:[%s0 + $0x12c] sm:$0xff]
  %v67 = vld [vmem:[%s0 + $0x134] sm:$0xff]
  %v68 = vld [vmem:[%s0 + $0x13c] sm:$0xf]
  %v69 = vld [vmem:[%s1] sm:$0xf]
  %v70 = vld [vmem:[%s1 + $0x4] sm:$0xf]
  %v71 = vld [vmem:[%s1 + $0x8] sm:$0xf]
  %v72 = vld [vmem:[%s1 + $0xc] sm:$0xf]
  %v73 = vld [vmem:[%s1 + $0x10] sm:$0xf]
  %v74 = vld [vmem:[%s1 + $0x14] sm:$0xf]
  %v75 = vld [vmem:[%s1 + $0x18] sm:$0xf]
  %v76 = vld [vmem:[%s1 + $0x1c] sm:$0xf]
  %v77 = vld [vmem:[%s1 + $0x20] sm:$0xf]
  %v78 = vld [vmem:[%s1 + $0x24] sm:$0xf]
  %v79 = vld [vmem:[%s1 + $0x28] sm:$0xf]
  %v80 = vld [vmem:[%s1 + $0x2c] sm:$0xf]
  %v81 = vld [vmem:[%s1 + $0x30] sm:$0xf]
  %v82 = vld [vmem:[%s1 + $0x34] sm:$0xf]
  %v83 = vld [vmem:[%s1 + $0x38] sm:$0xf]
  %v84 = vld [vmem:[%s1 + $0x3c] sm:$0xf]
  %v85 = vld [vmem:[%s1 + $0x40] sm:$0xf]
  %v86 = vld [vmem:[%s1 + $0x44] sm:$0xf]
  %v87 = vld [vmem:[%s1 + $0x48] sm:$0xf]
  %v88 = vld [vmem:[%s1 + $0x4c] sm:$0xf]
  %v89 = vld [vmem:[%s1 + $0x50] sm:$0xf]
  %v90 = vld [vmem:[%s1 + $0x54] sm:$0xf]
  %v91 = vld [vmem:[%s1 + $0x58] sm:$0xf]
  %v92 = vld [vmem:[%s1 + $0x5c] sm:$0xf]
  %v93 = vld [vmem:[%s1 + $0x60] sm:$0xf]
  %v94 = vld [vmem:[%s1 + $0x64] sm:$0xf]
  %v95 = vld [vmem:[%s1 + $0x68] sm:$0xf]
  %v96 = vld [vmem:[%s1 + $0x6c] sm:$0xf]
  %v97 = vld [vmem:[%s1 + $0x70] sm:$0xf]
  %v98 = vld [vmem:[%s1 + $0x74] sm:$0xf]
  %v99 = vld [vmem:[%s1 + $0x78] sm:$0xf]
  %v100 = vld [vmem:[%s1 + $0x7c] sm:$0xf]
  %v101 = vld [vmem:[%s1 + $0x80] sm:$0xf]
  %v102 = vld [vmem:[%s1 + $0x84] sm:$0xf]
  %v103 = vld [vmem:[%s1 + $0x88] sm:$0xf]
  %v104 = vld [vmem:[%s1 + $0x8c] sm:$0xf]
  %v105 = vld [vmem:[%s1 + $0x90] sm:$0xf]
  %v106 = vld [vmem:[%s1 + $0x94] sm:$0xf]
  %v107 = vld [vmem:[%s1 + $0x98] sm:$0xf]
  %v108 = vld [vmem:[%s1 + $0x9c] sm:$0xf]
  %v109 = vld [vmem:[%s1 + $0xa0] sm:$0xf]
  %v110 = vld [vmem:[%s1 + $0xa4] sm:$0xf]
  %v111 = vld [vmem:[%s1 + $0xa8] sm:$0xf]
  %v112 = vld [vmem:[%s1 + $0xac] sm:$0xf]
  %v113 = vld [vmem:[%s1 + $0xb0] sm:$0xf]
  %v114 = vld [vmem:[%s1 + $0xb4] sm:$0xf]
  %v115 = vld [vmem:[%s1 + $0xb8] sm:$0xf]
  %v116 = vld [vmem:[%s1 + $0xbc] sm:$0xf]
  %v117 = vld [vmem:[%s1 + $0xc0] sm:$0xf]
  %v118 = vld [vmem:[%s1 + $0xc4] sm:$0xf]
  %v119 = vld [vmem:[%s1 + $0xc8] sm:$0xf]
  %v120 = vld [vmem:[%s1 + $0xcc] sm:$0xf]
  %v121 = vld [vmem:[%s1 + $0xd0] sm:$0xf]
  %v122 = vld [vmem:[%s1 + $0xd4] sm:$0xf]
  %v123 = vld [vmem:[%s1 + $0xd8] sm:$0xf]
  %v124 = vld [vmem:[%s1 + $0xdc] sm:$0xf]
  %v125 = vld [vmem:[%s1 + $0xe0] sm:$0xf]
  %v126 = vld [vmem:[%s1 + $0xe4] sm:$0xf]
  %v127 = vld [vmem:[%s1 + $0xe8] sm:$0xf]
  %v128 = vld [vmem:[%s1 + $0xec] sm:$0xf]
  %v129 = vld [vmem:[%s1 + $0xf0] sm:$0xf]
  %v130 = vld [vmem:[%s1 + $0xf4] sm:$0xf]
  %v131 = vld [vmem:[%s1 + $0xf8] sm:$0xf]
  %v132 = vld [vmem:[%s1 + $0xfc] sm:$0xf]
  %v133 = vld [vmem:[%s1 + $0x100] sm:$0xf]
  %v134 = vld [vmem:[%s1 + $0x104] sm:$0xf]
  %v135 = vld [vmem:[%s1 + $0x108] sm:$0xf]
  %v136 = vld [vmem:[%s1 + $0x10c] sm:$0xf]
  %v137 = vld [vmem:[%s1 + $0x110] sm:$0xf]
  %v138 = vld [vmem:[%s1 + $0x114] sm:$0xf]
  %v139 = vld [vmem:[%s1 + $0x118] sm:$0xf]
  %v140 = vld [vmem:[%s1 + $0x11c] sm:$0xf]
  %v189 = vunpack.c.l.b16 %v21
  %v190 = vunpack.c.h.b16 %v21
  %v191 = vunpack.c.l.b16 %v22
  %v192 = vunpack.c.h.b16 %v22
  %v193 = vunpack.c.l.b16 %v23
  %v194 = vunpack.c.l.b16 %v24
  %v195 = vunpack.c.h.b16 %v24
  %v196 = vunpack.c.l.b16 %v25
  %v197 = vunpack.c.h.b16 %v25
  %v198 = vunpack.c.l.b16 %v26
  %v199 = vunpack.c.l.b16 %v27
  %v200 = vunpack.c.h.b16 %v27
  %v201 = vunpack.c.l.b16 %v28
  %v202 = vunpack.c.h.b16 %v28
  %v203 = vunpack.c.l.b16 %v29
  %v204 = vunpack.c.l.b16 %v30
  %v205 = vunpack.c.h.b16 %v30
  %v206 = vunpack.c.l.b16 %v31
  %v207 = vunpack.c.h.b16 %v31
  %v208 = vunpack.c.l.b16 %v32
  %v209 = vunpack.c.l.b16 %v33
  %v210 = vunpack.c.h.b16 %v33
  %v211 = vunpack.c.l.b16 %v34
  %v212 = vunpack.c.h.b16 %v34
  %v213 = vunpack.c.l.b16 %v35
  %v214 = vunpack.c.l.b16 %v36
  %v215 = vunpack.c.h.b16 %v36
  %v216 = vunpack.c.l.b16 %v37
  %v217 = vunpack.c.h.b16 %v37
  %v218 = vunpack.c.l.b16 %v38
  %v219 = vunpack.c.l.b16 %v39
  %v220 = vunpack.c.h.b16 %v39
  %v221 = vunpack.c.l.b16 %v40
  %v222 = vunpack.c.h.b16 %v40
  %v223 = vunpack.c.l.b16 %v41
  %v224 = vunpack.c.l.b16 %v42
  %v225 = vunpack.c.h.b16 %v42
  %v226 = vunpack.c.l.b16 %v43
  %v227 = vunpack.c.h.b16 %v43
  %v228 = vunpack.c.l.b16 %v44
  %v229 = vunpack.c.l.b16 %v45
  %v230 = vunpack.c.h.b16 %v45
  %v231 = vunpack.c.l.b16 %v46
  %v232 = vunpack.c.h.b16 %v46
  %v233 = vunpack.c.l.b16 %v47
  %v234 = vunpack.c.l.b16 %v48
  %v235 = vunpack.c.h.b16 %v48
  %v236 = vunpack.c.l.b16 %v49
  %v237 = vunpack.c.h.b16 %v49
  %v238 = vunpack.c.l.b16 %v50
  %v239 = vunpack.c.l.b16 %v51
  %v240 = vunpack.c.h.b16 %v51
  %v241 = vunpack.c.l.b16 %v52
  %v242 = vunpack.c.h.b16 %v52
  %v243 = vunpack.c.l.b16 %v53
  %v244 = vunpack.c.l.b16 %v54
  %v245 = vunpack.c.h.b16 %v54
  %v246 = vunpack.c.l.b16 %v55
  %v247 = vunpack.c.h.b16 %v55
  %v248 = vunpack.c.l.b16 %v56
  %v249 = vunpack.c.l.b16 %v57
  %v250 = vunpack.c.h.b16 %v57
  %v251 = vunpack.c.l.b16 %v58
  %v252 = vunpack.c.h.b16 %v58
  %v253 = vunpack.c.l.b16 %v59
  %v254 = vunpack.c.l.b16 %v60
  %v255 = vunpack.c.h.b16 %v60
  %v256 = vunpack.c.l.b16 %v61
  %v257 = vunpack.c.h.b16 %v61
  %v258 = vunpack.c.l.b16 %v62
  %v259 = vunpack.c.l.b16 %v63
  %v260 = vunpack.c.h.b16 %v63
  %v261 = vunpack.c.l.b16 %v64
  %v262 = vunpack.c.h.b16 %v64
  %v263 = vunpack.c.l.b16 %v65
  %v264 = vunpack.c.l.b16 %v66
  %v265 = vunpack.c.h.b16 %v66
  %v266 = vunpack.c.l.b16 %v67
  %v267 = vunpack.c.h.b16 %v67
  %v268 = vunpack.c.l.b16 %v68
  %v269 = vpack.c.b16 %v194, %v189
  %v270 = vpack.c.b16 %v195, %v190
  %v271 = vpack.c.b16 %v196, %v191
  %v272 = vpack.c.b16 %v197, %v192
  %v273 = vpack.c.b16 %v198, %v193
  %v274 = vpack.c.b16 %v204, %v199
  %v275 = vpack.c.b16 %v205, %v200
  %v276 = vpack.c.b16 %v206, %v201
  %v277 = vpack.c.b16 %v207, %v202
  %v278 = vpack.c.b16 %v208, %v203
  %v279 = vpack.c.b16 %v214, %v209
  %v280 = vpack.c.b16 %v215, %v210
  %v281 = vpack.c.b16 %v216, %v211
  %v282 = vpack.c.b16 %v217, %v212
  %v283 = vpack.c.b16 %v218, %v213
  %v284 = vpack.c.b16 %v224, %v219
  %v285 = vpack.c.b16 %v225, %v220
  %v286 = vpack.c.b16 %v226, %v221
  %v287 = vpack.c.b16 %v227, %v222
  %v288 = vpack.c.b16 %v228, %v223
  %v289 = vpack.c.b16 %v234, %v229
  %v290 = vpack.c.b16 %v235, %v230
  %v291 = vpack.c.b16 %v236, %v231
  %v292 = vpack.c.b16 %v237, %v232
  %v293 = vpack.c.b16 %v238, %v233
  %v294 = vpack.c.b16 %v244, %v239
  %v295 = vpack.c.b16 %v245, %v240
  %v296 = vpack.c.b16 %v246, %v241
  %v297 = vpack.c.b16 %v247, %v242
  %v298 = vpack.c.b16 %v248, %v243
  %v299 = vpack.c.b16 %v254, %v249
  %v300 = vpack.c.b16 %v255, %v250
  %v301 = vpack.c.b16 %v256, %v251
  %v302 = vpack.c.b16 %v257, %v252
  %v303 = vpack.c.b16 %v258, %v253
  %v304 = vpack.c.b16 %v264, %v259
  %v305 = vpack.c.b16 %v265, %v260
  %v306 = vpack.c.b16 %v266, %v261
  %v307 = vpack.c.b16 %v267, %v262
  %v308 = vpack.c.b16 %v268, %v263
  %v413 = vunpack.c.l.b16 %v69
  %v414 = vunpack.c.l.b16 %v70
  %v415 = vunpack.c.l.b16 %v71
  %v416 = vunpack.c.l.b16 %v72
  %v417 = vunpack.c.l.b16 %v73
  %v418 = vunpack.c.l.b16 %v74
  %v419 = vunpack.c.l.b16 %v75
  %v420 = vunpack.c.l.b16 %v76
  %v421 = vunpack.c.l.b16 %v77
  %v422 = vunpack.c.l.b16 %v78
  %v423 = vunpack.c.l.b16 %v79
  %v424 = vunpack.c.l.b16 %v80
  %v425 = vunpack.c.l.b16 %v81
  %v426 = vunpack.c.l.b16 %v82
  %v427 = vunpack.c.l.b16 %v83
  %v428 = vunpack.c.l.b16 %v84
  %v429 = vunpack.c.l.b16 %v85
  %v430 = vunpack.c.l.b16 %v86
  %v431 = vunpack.c.l.b16 %v87
  %v432 = vunpack.c.l.b16 %v88
  %v433 = vunpack.c.l.b16 %v89
  %v434 = vunpack.c.l.b16 %v90
  %v435 = vunpack.c.l.b16 %v91
  %v436 = vunpack.c.l.b16 %v92
  %v437 = vunpack.c.l.b16 %v93
  %v438 = vunpack.c.l.b16 %v94
  %v439 = vunpack.c.l.b16 %v95
  %v440 = vunpack.c.l.b16 %v96
  %v441 = vunpack.c.l.b16 %v97
  %v442 = vunpack.c.l.b16 %v98
  %v443 = vunpack.c.l.b16 %v99
  %v444 = vunpack.c.l.b16 %v100
  %v445 = vunpack.c.l.b16 %v101
  %v446 = vunpack.c.l.b16 %v102
  %v447 = vunpack.c.l.b16 %v103
  %v448 = vunpack.c.l.b16 %v104
  %v449 = vunpack.c.l.b16 %v105
  %v450 = vunpack.c.l.b16 %v106
  %v451 = vunpack.c.l.b16 %v107
  %v452 = vunpack.c.l.b16 %v108
  %v453 = vunpack.c.l.b16 %v109
  %v454 = vunpack.c.l.b16 %v110
  %v455 = vunpack.c.l.b16 %v111
  %v456 = vunpack.c.l.b16 %v112
  %v457 = vunpack.c.l.b16 %v113
  %v458 = vunpack.c.l.b16 %v114
  %v459 = vunpack.c.l.b16 %v115
  %v460 = vunpack.c.l.b16 %v116
  %v461 = vunpack.c.l.b16 %v117
  %v462 = vunpack.c.l.b16 %v118
  %v463 = vunpack.c.l.b16 %v119
  %v464 = vunpack.c.l.b16 %v120
  %v465 = vunpack.c.l.b16 %v121
  %v466 = vunpack.c.l.b16 %v122
  %v467 = vunpack.c.l.b16 %v123
  %v468 = vunpack.c.l.b16 %v124
  %v469 = vunpack.c.l.b16 %v125
  %v470 = vunpack.c.l.b16 %v126
  %v471 = vunpack.c.l.b16 %v127
  %v472 = vunpack.c.l.b16 %v128
  %v473 = vunpack.c.l.b16 %v129
  %v474 = vunpack.c.l.b16 %v130
  %v475 = vunpack.c.l.b16 %v131
  %v476 = vunpack.c.l.b16 %v132
  %v477 = vunpack.c.l.b16 %v133
  %v478 = vunpack.c.l.b16 %v134
  %v479 = vunpack.c.l.b16 %v135
  %v480 = vunpack.c.l.b16 %v136
  %v481 = vunpack.c.l.b16 %v137
  %v482 = vunpack.c.l.b16 %v138
  %v483 = vunpack.c.l.b16 %v139
  %v484 = vunpack.c.l.b16 %v140
  %v485 = vpack.c.b16 %v414, %v413
  %v486 = vpack.c.b16 %v416, %v415
  %v487 = vpack.c.b16 %v418, %v417
  %v488 = vpack.c.b16 %v420, %v419
  %v489 = vpack.c.b16 %v422, %v421
  %v490 = vpack.c.b16 %v424, %v423
  %v491 = vpack.c.b16 %v426, %v425
  %v492 = vpack.c.b16 %v428, %v427
  %v493 = vpack.c.b16 %v430, %v429
  %v494 = vpack.c.b16 %v432, %v431
  %v495 = vpack.c.b16 %v434, %v433
  %v496 = vpack.c.b16 %v436, %v435
  %v497 = vpack.c.b16 %v438, %v437
  %v498 = vpack.c.b16 %v440, %v439
  %v499 = vpack.c.b16 %v442, %v441
  %v500 = vpack.c.b16 %v444, %v443
  %v501 = vpack.c.b16 %v446, %v445
  %v502 = vpack.c.b16 %v448, %v447
  %v503 = vpack.c.b16 %v450, %v449
  %v504 = vpack.c.b16 %v452, %v451
  %v505 = vpack.c.b16 %v454, %v453
  %v506 = vpack.c.b16 %v456, %v455
  %v507 = vpack.c.b16 %v458, %v457
  %v508 = vpack.c.b16 %v460, %v459
  %v509 = vpack.c.b16 %v462, %v461
  %v510 = vpack.c.b16 %v464, %v463
  %v511 = vpack.c.b16 %v466, %v465
  %v512 = vpack.c.b16 %v468, %v467
  %v513 = vpack.c.b16 %v470, %v469
  %v514 = vpack.c.b16 %v472, %v471
  %v515 = vpack.c.b16 %v474, %v473
  %v516 = vpack.c.b16 %v476, %v475
  %v517 = vpack.c.b16 %v478, %v477
  %v518 = vpack.c.b16 %v480, %v479
  %v519 = vpack.c.b16 %v482, %v481
  %v520 = vpack.c.b16 %v484, %v483
  %vm557 = vcmask 523264
  %v559 = vsel %vm557, %v273, 0
  %v562 = vsel %vm557, %v278, 0
  %v565 = vsel %vm557, %v283, 0
  %v568 = vsel %vm557, %v288, 0
  %v571 = vsel %vm557, %v293, 0
  %v574 = vsel %vm557, %v298, 0
  %v577 = vsel %vm557, %v303, 0
  %v580 = vsel %vm557, %v308, 0
  %582 = vmatpush.bf16.msra.mxu0 %v492
  %583 = vmatpush.bf16.msra.mxu0 %v491
  %584 = vmatpush.bf16.msra.mxu0 %v490
  %585 = vmatpush.bf16.msra.mxu0 %v489
  %586 = vmatpush.bf16.msra.mxu0 %v488
  %587 = vmatpush.bf16.msra.mxu0 %v487
  %588 = vmatpush.bf16.msra.mxu0 %v486
  %589 = vmatpush.bf16.msra.mxu0 %v485
  %590 = vmatmul.bf16.gmra.mxu0 %v269
  %v591 = vpop.f32.mrf.mxu0
  %v592 = vadd.f32 0.0, %v591
  %v593 = vpop.f32.mrf.mxu0
  %v594 = vadd.f32 0.0, %v593
  %595 = vmatmul.bf16.gmra.mxu0 %v274
  %v596 = vpop.f32.mrf.mxu0
  %v597 = vadd.f32 0.0, %v596
  %v598 = vpop.f32.mrf.mxu0
  %v599 = vadd.f32 0.0, %v598
  %600 = vmatmul.bf16.gmra.mxu0 %v279
  %v601 = vpop.f32.mrf.mxu0
  %v602 = vadd.f32 0.0, %v601
  %v603 = vpop.f32.mrf.mxu0
  %v604 = vadd.f32 0.0, %v603
  %605 = vmatmul.bf16.gmra.mxu0 %v284
  %v606 = vpop.f32.mrf.mxu0
  %v607 = vadd.f32 0.0, %v606
  %v608 = vpop.f32.mrf.mxu0
  %v609 = vadd.f32 0.0, %v608
  %610 = vmatmul.bf16.gmra.mxu0 %v289
  %v611 = vpop.f32.mrf.mxu0
  %v612 = vadd.f32 0.0, %v611
  %v613 = vpop.f32.mrf.mxu0
  %v614 = vadd.f32 0.0, %v613
  %615 = vmatmul.bf16.gmra.mxu0 %v294
  %v616 = vpop.f32.mrf.mxu0
  %v617 = vadd.f32 0.0, %v616
  %v618 = vpop.f32.mrf.mxu0
  %v619 = vadd.f32 0.0, %v618
  %620 = vmatmul.bf16.gmra.mxu0 %v299
  %v621 = vpop.f32.mrf.mxu0
  %v622 = vadd.f32 0.0, %v621
  %v623 = vpop.f32.mrf.mxu0
  %v624 = vadd.f32 0.0, %v623
  %625 = vmatmul.bf16.gmra.mxu0 %v304
  %v626 = vpop.f32.mrf.mxu0
  %v627 = vadd.f32 0.0, %v626
  %v628 = vpop.f32.mrf.mxu0
  %v629 = vadd.f32 0.0, %v628
  %630 = vdwg.mxu0
  %631 = vmatpush.bf16.msra.mxu0 %v500
  %632 = vmatpush.bf16.msra.mxu0 %v499
  %633 = vmatpush.bf16.msra.mxu0 %v498
  %634 = vmatpush.bf16.msra.mxu0 %v497
  %635 = vmatpush.bf16.msra.mxu0 %v496
  %636 = vmatpush.bf16.msra.mxu0 %v495
  %637 = vmatpush.bf16.msra.mxu0 %v494
  %638 = vmatpush.bf16.msra.mxu0 %v493
  %639 = vmatmul.bf16.gmra.mxu0 %v270
  %v640 = vpop.f32.mrf.mxu0
  %v641 = vadd.f32 %v592, %v640
  %v642 = vpop.f32.mrf.mxu0
  %v643 = vadd.f32 %v594, %v642
  %644 = vmatmul.bf16.gmra.mxu0 %v275
  %v645 = vpop.f32.mrf.mxu0
  %v646 = vadd.f32 %v597, %v645
  %v647 = vpop.f32.mrf.mxu0
  %v648 = vadd.f32 %v599, %v647
  %649 = vmatmul.bf16.gmra.mxu0 %v280
  %v650 = vpop.f32.mrf.mxu0
  %v651 = vadd.f32 %v602, %v650
  %v652 = vpop.f32.mrf.mxu0
  %v653 = vadd.f32 %v604, %v652
  %654 = vmatmul.bf16.gmra.mxu0 %v285
  %v655 = vpop.f32.mrf.mxu0
  %v656 = vadd.f32 %v607, %v655
  %v657 = vpop.f32.mrf.mxu0
  %v658 = vadd.f32 %v609, %v657
  %659 = vmatmul.bf16.gmra.mxu0 %v290
  %v660 = vpop.f32.mrf.mxu0
  %v661 = vadd.f32 %v612, %v660
  %v662 = vpop.f32.mrf.mxu0
  %v663 = vadd.f32 %v614, %v662
  %664 = vmatmul.bf16.gmra.mxu0 %v295
  %v665 = vpop.f32.mrf.mxu0
  %v666 = vadd.f32 %v617, %v665
  %v667 = vpop.f32.mrf.mxu0
  %v668 = vadd.f32 %v619, %v667
  %669 = vmatmul.bf16.gmra.mxu0 %v300
  %v670 = vpop.f32.mrf.mxu0
  %v671 = vadd.f32 %v622, %v670
  %v672 = vpop.f32.mrf.mxu0
  %v673 = vadd.f32 %v624, %v672
  %674 = vmatmul.bf16.gmra.mxu0 %v305
  %v675 = vpop.f32.mrf.mxu0
  %v676 = vadd.f32 %v627, %v675
  %v677 = vpop.f32.mrf.mxu0
  %v678 = vadd.f32 %v629, %v677
  %679 = vdwg.mxu0
  %680 = vmatpush.bf16.msra.mxu0 %v508
  %681 = vmatpush.bf16.msra.mxu0 %v507
  %682 = vmatpush.bf16.msra.mxu0 %v506
  %683 = vmatpush.bf16.msra.mxu0 %v505
  %684 = vmatpush.bf16.msra.mxu0 %v504
  %685 = vmatpush.bf16.msra.mxu0 %v503
  %686 = vmatpush.bf16.msra.mxu0 %v502
  %687 = vmatpush.bf16.msra.mxu0 %v501
  %688 = vmatmul.bf16.gmra.mxu0 %v271
  %v689 = vpop.f32.mrf.mxu0
  %v690 = vadd.f32 %v641, %v689
  %v691 = vpop.f32.mrf.mxu0
  %v692 = vadd.f32 %v643, %v691
  %693 = vmatmul.bf16.gmra.mxu0 %v276
  %v694 = vpop.f32.mrf.mxu0
  %v695 = vadd.f32 %v646, %v694
  %v696 = vpop.f32.mrf.mxu0
  %v697 = vadd.f32 %v648, %v696
  %698 = vmatmul.bf16.gmra.mxu0 %v281
  %v699 = vpop.f32.mrf.mxu0
  %v700 = vadd.f32 %v651, %v699
  %v701 = vpop.f32.mrf.mxu0
  %v702 = vadd.f32 %v653, %v701
  %703 = vmatmul.bf16.gmra.mxu0 %v286
  %v704 = vpop.f32.mrf.mxu0
  %v705 = vadd.f32 %v656, %v704
  %v706 = vpop.f32.mrf.mxu0
  %v707 = vadd.f32 %v658, %v706
  %708 = vmatmul.bf16.gmra.mxu0 %v291
  %v709 = vpop.f32.mrf.mxu0
  %v710 = vadd.f32 %v661, %v709
  %v711 = vpop.f32.mrf.mxu0
  %v712 = vadd.f32 %v663, %v711
  %713 = vmatmul.bf16.gmra.mxu0 %v296
  %v714 = vpop.f32.mrf.mxu0
  %v715 = vadd.f32 %v666, %v714
  %v716 = vpop.f32.mrf.mxu0
  %v717 = vadd.f32 %v668, %v716
  %718 = vmatmul.bf16.gmra.mxu0 %v301
  %v719 = vpop.f32.mrf.mxu0
  %v720 = vadd.f32 %v671, %v719
  %v721 = vpop.f32.mrf.mxu0
  %v722 = vadd.f32 %v673, %v721
  %723 = vmatmul.bf16.gmra.mxu0 %v306
  %v724 = vpop.f32.mrf.mxu0
  %v725 = vadd.f32 %v676, %v724
  %v726 = vpop.f32.mrf.mxu0
  %v727 = vadd.f32 %v678, %v726
  %728 = vdwg.mxu0
  %729 = vmatpush.bf16.msra.mxu0 %v516
  %730 = vmatpush.bf16.msra.mxu0 %v515
  %731 = vmatpush.bf16.msra.mxu0 %v514
  %732 = vmatpush.bf16.msra.mxu0 %v513
  %733 = vmatpush.bf16.msra.mxu0 %v512
  %734 = vmatpush.bf16.msra.mxu0 %v511
  %735 = vmatpush.bf16.msra.mxu0 %v510
  %736 = vmatpush.bf16.msra.mxu0 %v509
  %737 = vmatmul.bf16.gmra.mxu0 %v272
  %v738 = vpop.f32.mrf.mxu0
  %v739 = vadd.f32 %v690, %v738
  %v740 = vpop.f32.mrf.mxu0
  %v741 = vadd.f32 %v692, %v740
  %742 = vmatmul.bf16.gmra.mxu0 %v277
  %v743 = vpop.f32.mrf.mxu0
  %v744 = vadd.f32 %v695, %v743
  %v745 = vpop.f32.mrf.mxu0
  %v746 = vadd.f32 %v697, %v745
  %747 = vmatmul.bf16.gmra.mxu0 %v282
  %v748 = vpop.f32.mrf.mxu0
  %v749 = vadd.f32 %v700, %v748
  %v750 = vpop.f32.mrf.mxu0
  %v751 = vadd.f32 %v702, %v750
  %752 = vmatmul.bf16.gmra.mxu0 %v287
  %v753 = vpop.f32.mrf.mxu0
  %v754 = vadd.f32 %v705, %v753
  %v755 = vpop.f32.mrf.mxu0
  %v756 = vadd.f32 %v707, %v755
  %757 = vmatmul.bf16.gmra.mxu0 %v292
  %v758 = vpop.f32.mrf.mxu0
  %v759 = vadd.f32 %v710, %v758
  %v760 = vpop.f32.mrf.mxu0
  %v761 = vadd.f32 %v712, %v760
  %762 = vmatmul.bf16.gmra.mxu0 %v297
  %v763 = vpop.f32.mrf.mxu0
  %v764 = vadd.f32 %v715, %v763
  %v765 = vpop.f32.mrf.mxu0
  %v766 = vadd.f32 %v717, %v765
  %767 = vmatmul.bf16.gmra.mxu0 %v302
  %v768 = vpop.f32.mrf.mxu0
  %v769 = vadd.f32 %v720, %v768
  %v770 = vpop.f32.mrf.mxu0
  %v771 = vadd.f32 %v722, %v770
  %772 = vmatmul.bf16.gmra.mxu0 %v307
  %v773 = vpop.f32.mrf.mxu0
  %v774 = vadd.f32 %v725, %v773
  %v775 = vpop.f32.mrf.mxu0
  %v776 = vadd.f32 %v727, %v775
  %777 = vdwg.mxu0
  %778 = vmatpush.bf16.msra.mxu0 0
  %779 = vmatpush.bf16.msra.mxu0 0
  %780 = vmatpush.bf16.msra.mxu0 0
  %781 = vmatpush.bf16.msra.mxu0 0
  %782 = vmatpush.bf16.msra.mxu0 %v520
  %783 = vmatpush.bf16.msra.mxu0 %v519
  %784 = vmatpush.bf16.msra.mxu0 %v518
  %785 = vmatpush.bf16.msra.mxu0 %v517
  %786 = vmatmul.bf16.gmra.mxu0 %v559
  %v787 = vpop.f32.mrf.mxu0
  %v788 = vadd.f32 %v739, %v787
  %v789 = vpop.f32.mrf.mxu0
  %v790 = vadd.f32 %v741, %v789
  %791 = vmatmul.bf16.gmra.mxu0 %v562
  %v792 = vpop.f32.mrf.mxu0
  %v793 = vadd.f32 %v744, %v792
  %v794 = vpop.f32.mrf.mxu0
  %v795 = vadd.f32 %v746, %v794
  %796 = vmatmul.bf16.gmra.mxu0 %v565
  %v797 = vpop.f32.mrf.mxu0
  %v798 = vadd.f32 %v749, %v797
  %v799 = vpop.f32.mrf.mxu0
  %v800 = vadd.f32 %v751, %v799
  %801 = vmatmul.bf16.gmra.mxu0 %v568
  %v802 = vpop.f32.mrf.mxu0
  %v803 = vadd.f32 %v754, %v802
  %v804 = vpop.f32.mrf.mxu0
  %v805 = vadd.f32 %v756, %v804
  %806 = vmatmul.bf16.gmra.mxu0 %v571
  %v807 = vpop.f32.mrf.mxu0
  %v808 = vadd.f32 %v759, %v807
  %v809 = vpop.f32.mrf.mxu0
  %v810 = vadd.f32 %v761, %v809
  %811 = vmatmul.bf16.gmra.mxu0 %v574
  %v812 = vpop.f32.mrf.mxu0
  %v813 = vadd.f32 %v764, %v812
  %v814 = vpop.f32.mrf.mxu0
  %v815 = vadd.f32 %v766, %v814
  %816 = vmatmul.bf16.gmra.mxu0 %v577
  %v817 = vpop.f32.mrf.mxu0
  %v818 = vadd.f32 %v769, %v817
  %v819 = vpop.f32.mrf.mxu0
  %v820 = vadd.f32 %v771, %v819
  %821 = vmatmul.bf16.gmra.mxu0 %v580
  %v822 = vpop.f32.mrf.mxu0
  %v823 = vadd.f32 %v774, %v822
  %v824 = vpop.f32.mrf.mxu0
  %v825 = vadd.f32 %v776, %v824
  %826 = vdwg.mxu0
  %v827 = vld [vmem:[%s2] sm:$0x1]
  %v829 = vperm.slane %v827, 0
  %v831 = vmul.f32 %v788, %v829
  %v832 = vmul.f32 %v790, %v829
  %v833 = vmul.f32 %v793, %v829
  %v834 = vmul.f32 %v795, %v829
  %v835 = vmul.f32 %v798, %v829
  %v836 = vmul.f32 %v800, %v829
  %v837 = vmul.f32 %v803, %v829
  %v838 = vmul.f32 %v805, %v829
  %v839 = vmul.f32 %v808, %v829
  %v840 = vmul.f32 %v810, %v829
  %v841 = vmul.f32 %v813, %v829
  %v842 = vmul.f32 %v815, %v829
  %v843 = vmul.f32 %v818, %v829
  %v844 = vmul.f32 %v820, %v829
  %v845 = vmul.f32 %v823, %v829
  %v846 = vmul.f32 %v825, %v829
  %v847 = vld [vmem:[%s3] sm:$0x1]
  %v849 = vperm.slane %v847, 0
  %v851 = vadd.f32 %v831, %v849
  %v852 = vadd.f32 %v832, %v849
  %v853 = vadd.f32 %v833, %v849
  %v854 = vadd.f32 %v834, %v849
  %v855 = vadd.f32 %v835, %v849
  %v856 = vadd.f32 %v836, %v849
  %v857 = vadd.f32 %v837, %v849
  %v858 = vadd.f32 %v838, %v849
  %v859 = vadd.f32 %v839, %v849
  %v860 = vadd.f32 %v840, %v849
  %v861 = vadd.f32 %v841, %v849
  %v862 = vadd.f32 %v842, %v849
  %v863 = vadd.f32 %v843, %v849
  %v864 = vadd.f32 %v844, %v849
  %v865 = vadd.f32 %v845, %v849
  %v866 = vadd.f32 %v846, %v849
  %v867 = vld [vmem:[%s4] sm:$0xf]
  %v868 = vld [vmem:[%s4 + $0x4] sm:$0xf]
  %v869 = vld [vmem:[%s4 + $0x8] sm:$0xf]
  %v870 = vld [vmem:[%s4 + $0xc] sm:$0xf]
  %v871 = vld [vmem:[%s4 + $0x10] sm:$0xf]
  %v872 = vld [vmem:[%s4 + $0x14] sm:$0xf]
  %v873 = vld [vmem:[%s4 + $0x18] sm:$0xf]
  %v874 = vld [vmem:[%s4 + $0x1c] sm:$0xf]
  %v875 = vld [vmem:[%s4 + $0x20] sm:$0xf]
  %v876 = vld [vmem:[%s4 + $0x24] sm:$0xf]
  %v877 = vld [vmem:[%s4 + $0x28] sm:$0xf]
  %v878 = vld [vmem:[%s4 + $0x2c] sm:$0xf]
  %v879 = vld [vmem:[%s4 + $0x30] sm:$0xf]
  %v880 = vld [vmem:[%s4 + $0x34] sm:$0xf]
  %v881 = vld [vmem:[%s4 + $0x38] sm:$0xf]
  %v882 = vld [vmem:[%s4 + $0x3c] sm:$0xf]
  %v883 = vunpack.c.l.bf16 %v867
  %v884 = vunpack.c.l.bf16 %v868
  %v885 = vunpack.c.l.bf16 %v869
  %v886 = vunpack.c.l.bf16 %v870
  %v887 = vunpack.c.l.bf16 %v871
  %v888 = vunpack.c.l.bf16 %v872
  %v889 = vunpack.c.l.bf16 %v873
  %v890 = vunpack.c.l.bf16 %v874
  %v891 = vunpack.c.l.bf16 %v875
  %v892 = vunpack.c.l.bf16 %v876
  %v893 = vunpack.c.l.bf16 %v877
  %v894 = vunpack.c.l.bf16 %v878
  %v895 = vunpack.c.l.bf16 %v879
  %v896 = vunpack.c.l.bf16 %v880
  %v897 = vunpack.c.l.bf16 %v881
  %v898 = vunpack.c.l.bf16 %v882
  %v899 = vadd.f32 %v851, %v883
  %v900 = vadd.f32 %v852, %v884
  %v901 = vadd.f32 %v853, %v885
  %v902 = vadd.f32 %v854, %v886
  %v903 = vadd.f32 %v855, %v887
  %v904 = vadd.f32 %v856, %v888
  %v905 = vadd.f32 %v857, %v889
  %v906 = vadd.f32 %v858, %v890
  %v907 = vadd.f32 %v859, %v891
  %v908 = vadd.f32 %v860, %v892
  %v909 = vadd.f32 %v861, %v893
  %v910 = vadd.f32 %v862, %v894
  %v911 = vadd.f32 %v863, %v895
  %v912 = vadd.f32 %v864, %v896
  %v913 = vadd.f32 %v865, %v897
  %v914 = vadd.f32 %v866, %v898
  %v915 = vmax.f32 %v899, 0.0
  %v916 = vmax.f32 %v900, 0.0
  %v917 = vmax.f32 %v901, 0.0
  %v918 = vmax.f32 %v902, 0.0
  %v919 = vmax.f32 %v903, 0.0
  %v920 = vmax.f32 %v904, 0.0
  %v921 = vmax.f32 %v905, 0.0
  %v922 = vmax.f32 %v906, 0.0
  %v923 = vmax.f32 %v907, 0.0
  %v924 = vmax.f32 %v908, 0.0
  %v925 = vmax.f32 %v909, 0.0
  %v926 = vmax.f32 %v910, 0.0
  %v927 = vmax.f32 %v911, 0.0
  %v928 = vmax.f32 %v912, 0.0
  %v929 = vmax.f32 %v913, 0.0
  %v930 = vmax.f32 %v914, 0.0
  %v931 = vpack.c.bf16 %v915, %v915
  %v932 = vpack.c.bf16 %v916, %v916
  %v933 = vpack.c.bf16 %v917, %v917
  %v934 = vpack.c.bf16 %v918, %v918
  %v935 = vpack.c.bf16 %v919, %v919
  %v936 = vpack.c.bf16 %v920, %v920
  %v937 = vpack.c.bf16 %v921, %v921
  %v938 = vpack.c.bf16 %v922, %v922
  %v939 = vpack.c.bf16 %v923, %v923
  %v940 = vpack.c.bf16 %v924, %v924
  %v941 = vpack.c.bf16 %v925, %v925
  %v942 = vpack.c.bf16 %v926, %v926
  %v943 = vpack.c.bf16 %v927, %v927
  %v944 = vpack.c.bf16 %v928, %v928
  %v945 = vpack.c.bf16 %v929, %v929
  %v946 = vpack.c.bf16 %v930, %v930
  %vm947 = vcmask 519168
  %948 = vst.msk [vmem:[%s5] sm:$0xf] %vm947, %v931
  %949 = vst.msk [vmem:[%s5 + $0x4] sm:$0xf] %vm947, %v932
  %950 = vst.msk [vmem:[%s5 + $0x8] sm:$0xf] %vm947, %v933
  %951 = vst.msk [vmem:[%s5 + $0xc] sm:$0xf] %vm947, %v934
  %952 = vst.msk [vmem:[%s5 + $0x10] sm:$0xf] %vm947, %v935
  %953 = vst.msk [vmem:[%s5 + $0x14] sm:$0xf] %vm947, %v936
  %954 = vst.msk [vmem:[%s5 + $0x18] sm:$0xf] %vm947, %v937
  %955 = vst.msk [vmem:[%s5 + $0x1c] sm:$0xf] %vm947, %v938
  %956 = vst.msk [vmem:[%s5 + $0x20] sm:$0xf] %vm947, %v939
  %957 = vst.msk [vmem:[%s5 + $0x24] sm:$0xf] %vm947, %v940
  %958 = vst.msk [vmem:[%s5 + $0x28] sm:$0xf] %vm947, %v941
  %959 = vst.msk [vmem:[%s5 + $0x2c] sm:$0xf] %vm947, %v942
  %960 = vst.msk [vmem:[%s5 + $0x30] sm:$0xf] %vm947, %v943
  %961 = vst.msk [vmem:[%s5 + $0x34] sm:$0xf] %vm947, %v944
  %962 = vst.msk [vmem:[%s5 + $0x38] sm:$0xf] %vm947, %v945
  %963 = vst.msk [vmem:[%s5 + $0x3c] sm:$0xf] %vm947, %v946
  // Predicated region
  $region22: #{feature_extractor_with_attention.20} parent=0 // pred_check
    _
  $region23: #{feature_extractor_with_attention.20} parent=0 // pred_check_branch
    %965 = sbr.rel (0) target = $region25
  $region24: #{feature_extractor_with_attention.20} parent=0 // pred_region
    _
  $region25: #{feature_extractor_with_attention.20} parent=0 // pred_fallthru
    _
  // Predicated region
  $region26: #{feature_extractor_with_attention.20} parent=0 // pred_check
    _
  $region27: #{feature_extractor_with_attention.20} parent=0 // pred_check_branch
    %967 = sbr.rel (0) target = $region29
  $region28: #{feature_extractor_with_attention.20} parent=0 // pred_region
    _
  $region29: #{feature_extractor_with_attention.20} parent=0 // pred_fallthru
    _

// kernel: feature_extractor_with_attention.24
$region0: #{feature_extractor_with_attention.24}
  #allocation0 [shape = 'u32[]', space=smem, size = 0x4, offset = 0x4, fixed_abs, tag = 'smem constant byte address 0x4 - core index']
  #allocation1 [shape = 'u32[72,128]{1,0:T(1,128)}', space=vmem, size = 0x9000, scoped, tag = 'internal scratch']
  %s0 = inlined_call_operand.vmem [shape: bf16[32,64], index: 0, kind: input, shape index: {}]
  %s1 = inlined_call_operand.vmem [shape: bf16[64,128], index: 1, kind: input, shape index: {}]
  %s2 = inlined_call_operand.vmem [shape: f32[1,128], index: 2, kind: input, shape index: {}]
  %s3 = inlined_call_operand.vmem [shape: f32[1,128], index: 3, kind: input, shape index: {}]
  %s4 = inlined_call_operand.vmem [shape: bf16[32,128], index: 4, kind: output, shape index: {}]
  %s5 = sld [smem:[#allocation0]]
  $region26: #{feature_extractor_with_attention.24} parent=0
    _
  %s7 = ssub.s32 1, %s5
  %s8 = scalar_select 0, %s7, %s5
  // Predicated region
  $region2: #{feature_extractor_with_attention.24} parent=0 // pred_check
    _
  $region3: #{feature_extractor_with_attention.24} parent=0 // pred_check_branch
    %10 = sbr.rel (0) target = $region5
  $region4: #{feature_extractor_with_attention.24} parent=0 // pred_region
    _
  $region5: #{feature_extractor_with_attention.24} parent=0 // pred_fallthru
    _
  // Predicated region
  $region6: #{feature_extractor_with_attention.24} parent=0 // pred_check
    _
  $region7: #{feature_extractor_with_attention.24} parent=0 // pred_check_branch
    %12 = sbr.rel (0) target = $region9
  $region8: #{feature_extractor_with_attention.24} parent=0 // pred_region
    _
  $region9: #{feature_extractor_with_attention.24} parent=0 // pred_fallthru
    _
  // Predicated region
  $region10: #{feature_extractor_with_attention.24} parent=0 // pred_check
    _
  $region11: #{feature_extractor_with_attention.24} parent=0 // pred_check_branch
    %14 = sbr.rel (0) target = $region13
  $region12: #{feature_extractor_with_attention.24} parent=0 // pred_region
    _
  $region13: #{feature_extractor_with_attention.24} parent=0 // pred_fallthru
    _
  // Predicated region
  $region14: #{feature_extractor_with_attention.24} parent=0 // pred_check
    _
  $region15: #{feature_extractor_with_attention.24} parent=0 // pred_check_branch
    %16 = sbr.rel (0) target = $region17
  $region16: #{feature_extractor_with_attention.24} parent=0 // pred_region
    _
  $region17: #{feature_extractor_with_attention.24} parent=0 // pred_fallthru
    _
  %v18 = vld [vmem:[%s0] sm:$0xf]
  %v19 = vld [vmem:[%s0 + $0x4] sm:$0xf]
  %v20 = vld [vmem:[%s0 + $0x8] sm:$0xf]
  %v21 = vld [vmem:[%s0 + $0xc] sm:$0xf]
  %v22 = vld [vmem:[%s1] sm:$0xf]
  %v23 = vld [vmem:[%s1 + $0x4] sm:$0xf]
  %v24 = vld [vmem:[%s1 + $0x8] sm:$0xf]
  %v25 = vld [vmem:[%s1 + $0xc] sm:$0xf]
  %v26 = vld [vmem:[%s1 + $0x10] sm:$0xf]
  %v27 = vld [vmem:[%s1 + $0x14] sm:$0xf]
  %v28 = vld [vmem:[%s1 + $0x18] sm:$0xf]
  %v29 = vld [vmem:[%s1 + $0x1c] sm:$0xf]
  %v34 = vunpack.c.l.b16 %v18
  %v35 = vunpack.c.l.b16 %v19
  %v36 = vunpack.c.l.b16 %v20
  %v37 = vunpack.c.l.b16 %v21
  %v38 = vpack.c.b16 %v35, %v34
  %v39 = vpack.c.b16 %v37, %v36
  %v48 = vunpack.c.l.b16 %v22
  %v49 = vunpack.c.l.b16 %v23
  %v50 = vunpack.c.l.b16 %v24
  %v51 = vunpack.c.l.b16 %v25
  %v52 = vunpack.c.l.b16 %v26
  %v53 = vunpack.c.l.b16 %v27
  %v54 = vunpack.c.l.b16 %v28
  %v55 = vunpack.c.l.b16 %v29
  %v56 = vpack.c.b16 %v49, %v48
  %v57 = vpack.c.b16 %v51, %v50
  %v58 = vpack.c.b16 %v53, %v52
  %v59 = vpack.c.b16 %v55, %v54
  %vm64 = vcmask 523264
  %v66 = vsel %vm64, %v38, 0
  %v69 = vsel %vm64, %v39, 0
  %71 = vmatpush.bf16.msra.mxu0 0
  %72 = vmatpush.bf16.msra.mxu0 0
  %73 = vmatpush.bf16.msra.mxu0 0
  %74 = vmatpush.bf16.msra.mxu0 0
  %75 = vmatpush.bf16.msra.mxu0 %v59
  %76 = vmatpush.bf16.msra.mxu0 %v58
  %77 = vmatpush.bf16.msra.mxu0 %v57
  %78 = vmatpush.bf16.msra.mxu0 %v56
  %79 = vmatmul.bf16.gmra.mxu0 %v66
  %v80 = vpop.f32.mrf.mxu0
  %v81 = vadd.f32 0.0, %v80
  %v82 = vpop.f32.mrf.mxu0
  %v83 = vadd.f32 0.0, %v82
  %84 = vmatmul.bf16.gmra.mxu0 %v69
  %v85 = vpop.f32.mrf.mxu0
  %v86 = vadd.f32 0.0, %v85
  %v87 = vpop.f32.mrf.mxu0
  %v88 = vadd.f32 0.0, %v87
  %89 = vdwg.mxu0
  %v90 = vld [vmem:[%s2] sm:$0x1]
  %v92 = vperm.slane %v90, 0
  %v94 = vmul.f32 %v81, %v92
  %v95 = vmul.f32 %v83, %v92
  %v96 = vmul.f32 %v86, %v92
  %v97 = vmul.f32 %v88, %v92
  %v98 = vld [vmem:[%s3] sm:$0x1]
  %v100 = vperm.slane %v98, 0
  %v102 = vadd.f32 %v94, %v100
  %v103 = vadd.f32 %v95, %v100
  %v104 = vadd.f32 %v96, %v100
  %v105 = vadd.f32 %v97, %v100
  %v106 = vpack.c.bf16 %v102, %v102
  %v107 = vpack.c.bf16 %v103, %v103
  %v108 = vpack.c.bf16 %v104, %v104
  %v109 = vpack.c.bf16 %v105, %v105
  %110 = vst [vmem:[%s4] sm:$0xf] %v106
  %111 = vst [vmem:[%s4 + $0x4] sm:$0xf] %v107
  %112 = vst [vmem:[%s4 + $0x8] sm:$0xf] %v108
  %113 = vst [vmem:[%s4 + $0xc] sm:$0xf] %v109
  // Predicated region
  $region18: #{feature_extractor_with_attention.24} parent=0 // pred_check
    _
  $region19: #{feature_extractor_with_attention.24} parent=0 // pred_check_branch
    %115 = sbr.rel (0) target = $region21
  $region20: #{feature_extractor_with_attention.24} parent=0 // pred_region
    _
  $region21: #{feature_extractor_with_attention.24} parent=0 // pred_fallthru
    _
  // Predicated region
  $region22: #{feature_extractor_with_attention.24} parent=0 // pred_check
    _
  $region23: #{feature_extractor_with_attention.24} parent=0 // pred_check_branch
    %117 = sbr.rel (0) target = $region25
  $region24: #{feature_extractor_with_attention.24} parent=0 // pred_region
    _
  $region25: #{feature_extractor_with_attention.24} parent=0 // pred_fallthru
    _

// kernel: feature_extractor_with_attention.23
$region0: #{feature_extractor_with_attention.23}
  #allocation0 [shape = 'u32[]', space=smem, size = 0x4, offset = 0x4, fixed_abs, tag = 'smem constant byte address 0x4 - core index']
  #allocation1 [shape = 'u32[72,128]{1,0:T(1,128)}', space=vmem, size = 0x9000, scoped, tag = 'internal scratch']
  %s0 = inlined_call_operand.vmem [shape: bf16[32,576], index: 0, kind: input, shape index: {}]
  %s1 = inlined_call_operand.vmem [shape: bf16[576,128], index: 1, kind: input, shape index: {}]
  %s2 = inlined_call_operand.vmem [shape: f32[1,128], index: 2, kind: input, shape index: {}]
  %s3 = inlined_call_operand.vmem [shape: f32[1,128], index: 3, kind: input, shape index: {}]
  %s4 = inlined_call_operand.vmem [shape: bf16[32,128], index: 4, kind: output, shape index: {}]
  %s5 = sld [smem:[#allocation0]]
  $region26: #{feature_extractor_with_attention.23} parent=0
    _
  %s7 = ssub.s32 1, %s5
  %s8 = scalar_select 0, %s7, %s5
  // Predicated region
  $region2: #{feature_extractor_with_attention.23} parent=0 // pred_check
    _
  $region3: #{feature_extractor_with_attention.23} parent=0 // pred_check_branch
    %10 = sbr.rel (0) target = $region5
  $region4: #{feature_extractor_with_attention.23} parent=0 // pred_region
    _
  $region5: #{feature_extractor_with_attention.23} parent=0 // pred_fallthru
    _
  // Predicated region
  $region6: #{feature_extractor_with_attention.23} parent=0 // pred_check
    _
  $region7: #{feature_extractor_with_attention.23} parent=0 // pred_check_branch
    %12 = sbr.rel (0) target = $region9
  $region8: #{feature_extractor_with_attention.23} parent=0 // pred_region
    _
  $region9: #{feature_extractor_with_attention.23} parent=0 // pred_fallthru
    _
  // Predicated region
  $region10: #{feature_extractor_with_attention.23} parent=0 // pred_check
    _
  $region11: #{feature_extractor_with_attention.23} parent=0 // pred_check_branch
    %14 = sbr.rel (0) target = $region13
  $region12: #{feature_extractor_with_attention.23} parent=0 // pred_region
    _
  $region13: #{feature_extractor_with_attention.23} parent=0 // pred_fallthru
    _
  // Predicated region
  $region14: #{feature_extractor_with_attention.23} parent=0 // pred_check
    _
  $region15: #{feature_extractor_with_attention.23} parent=0 // pred_check_branch
    %16 = sbr.rel (0) target = $region17
  $region16: #{feature_extractor_with_attention.23} parent=0 // pred_region
    _
  $region17: #{feature_extractor_with_attention.23} parent=0 // pred_fallthru
    _
  %v18 = vld [vmem:[%s0] sm:$0xff]
  %v19 = vld [vmem:[%s0 + $0x8] sm:$0xff]
  %v20 = vld [vmem:[%s0 + $0x10] sm:$0xf]
  %v21 = vld [vmem:[%s0 + $0x14] sm:$0xff]
  %v22 = vld [vmem:[%s0 + $0x1c] sm:$0xff]
  %v23 = vld [vmem:[%s0 + $0x24] sm:$0xf]
  %v24 = vld [vmem:[%s0 + $0x28] sm:$0xff]
  %v25 = vld [vmem:[%s0 + $0x30] sm:$0xff]
  %v26 = vld [vmem:[%s0 + $0x38] sm:$0xf]
  %v27 = vld [vmem:[%s0 + $0x3c] sm:$0xff]
  %v28 = vld [vmem:[%s0 + $0x44] sm:$0xff]
  %v29 = vld [vmem:[%s0 + $0x4c] sm:$0xf]
  %v30 = vld [vmem:[%s1] sm:$0xf]
  %v31 = vld [vmem:[%s1 + $0x4] sm:$0xf]
  %v32 = vld [vmem:[%s1 + $0x8] sm:$0xf]
  %v33 = vld [vmem:[%s1 + $0xc] sm:$0xf]
  %v34 = vld [vmem:[%s1 + $0x10] sm:$0xf]
  %v35 = vld [vmem:[%s1 + $0x14] sm:$0xf]
  %v36 = vld [vmem:[%s1 + $0x18] sm:$0xf]
  %v37 = vld [vmem:[%s1 + $0x1c] sm:$0xf]
  %v38 = vld [vmem:[%s1 + $0x20] sm:$0xf]
  %v39 = vld [vmem:[%s1 + $0x24] sm:$0xf]
  %v40 = vld [vmem:[%s1 + $0x28] sm:$0xf]
  %v41 = vld [vmem:[%s1 + $0x2c] sm:$0xf]
  %v42 = vld [vmem:[%s1 + $0x30] sm:$0xf]
  %v43 = vld [vmem:[%s1 + $0x34] sm:$0xf]
  %v44 = vld [vmem:[%s1 + $0x38] sm:$0xf]
  %v45 = vld [vmem:[%s1 + $0x3c] sm:$0xf]
  %v46 = vld [vmem:[%s1 + $0x40] sm:$0xf]
  %v47 = vld [vmem:[%s1 + $0x44] sm:$0xf]
  %v48 = vld [vmem:[%s1 + $0x48] sm:$0xf]
  %v49 = vld [vmem:[%s1 + $0x4c] sm:$0xf]
  %v50 = vld [vmem:[%s1 + $0x50] sm:$0xf]
  %v51 = vld [vmem:[%s1 + $0x54] sm:$0xf]
  %v52 = vld [vmem:[%s1 + $0x58] sm:$0xf]
  %v53 = vld [vmem:[%s1 + $0x5c] sm:$0xf]
  %v54 = vld [vmem:[%s1 + $0x60] sm:$0xf]
  %v55 = vld [vmem:[%s1 + $0x64] sm:$0xf]
  %v56 = vld [vmem:[%s1 + $0x68] sm:$0xf]
  %v57 = vld [vmem:[%s1 + $0x6c] sm:$0xf]
  %v58 = vld [vmem:[%s1 + $0x70] sm:$0xf]
  %v59 = vld [vmem:[%s1 + $0x74] sm:$0xf]
  %v60 = vld [vmem:[%s1 + $0x78] sm:$0xf]
  %v61 = vld [vmem:[%s1 + $0x7c] sm:$0xf]
  %v62 = vld [vmem:[%s1 + $0x80] sm:$0xf]
  %v63 = vld [vmem:[%s1 + $0x84] sm:$0xf]
  %v64 = vld [vmem:[%s1 + $0x88] sm:$0xf]
  %v65 = vld [vmem:[%s1 + $0x8c] sm:$0xf]
  %v66 = vld [vmem:[%s1 + $0x90] sm:$0xf]
  %v67 = vld [vmem:[%s1 + $0x94] sm:$0xf]
  %v68 = vld [vmem:[%s1 + $0x98] sm:$0xf]
  %v69 = vld [vmem:[%s1 + $0x9c] sm:$0xf]
  %v70 = vld [vmem:[%s1 + $0xa0] sm:$0xf]
  %v71 = vld [vmem:[%s1 + $0xa4] sm:$0xf]
  %v72 = vld [vmem:[%s1 + $0xa8] sm:$0xf]
  %v73 = vld [vmem:[%s1 + $0xac] sm:$0xf]
  %v74 = vld [vmem:[%s1 + $0xb0] sm:$0xf]
  %v75 = vld [vmem:[%s1 + $0xb4] sm:$0xf]
  %v76 = vld [vmem:[%s1 + $0xb8] sm:$0xf]
  %v77 = vld [vmem:[%s1 + $0xbc] sm:$0xf]
  %v78 = vld [vmem:[%s1 + $0xc0] sm:$0xf]
  %v79 = vld [vmem:[%s1 + $0xc4] sm:$0xf]
  %v80 = vld [vmem:[%s1 + $0xc8] sm:$0xf]
  %v81 = vld [vmem:[%s1 + $0xcc] sm:$0xf]
  %v82 = vld [vmem:[%s1 + $0xd0] sm:$0xf]
  %v83 = vld [vmem:[%s1 + $0xd4] sm:$0xf]
  %v84 = vld [vmem:[%s1 + $0xd8] sm:$0xf]
  %v85 = vld [vmem:[%s1 + $0xdc] sm:$0xf]
  %v86 = vld [vmem:[%s1 + $0xe0] sm:$0xf]
  %v87 = vld [vmem:[%s1 + $0xe4] sm:$0xf]
  %v88 = vld [vmem:[%s1 + $0xe8] sm:$0xf]
  %v89 = vld [vmem:[%s1 + $0xec] sm:$0xf]
  %v90 = vld [vmem:[%s1 + $0xf0] sm:$0xf]
  %v91 = vld [vmem:[%s1 + $0xf4] sm:$0xf]
  %v92 = vld [vmem:[%s1 + $0xf8] sm:$0xf]
  %v93 = vld [vmem:[%s1 + $0xfc] sm:$0xf]
  %v94 = vld [vmem:[%s1 + $0x100] sm:$0xf]
  %v95 = vld [vmem:[%s1 + $0x104] sm:$0xf]
  %v96 = vld [vmem:[%s1 + $0x108] sm:$0xf]
  %v97 = vld [vmem:[%s1 + $0x10c] sm:$0xf]
  %v98 = vld [vmem:[%s1 + $0x110] sm:$0xf]
  %v99 = vld [vmem:[%s1 + $0x114] sm:$0xf]
  %v100 = vld [vmem:[%s1 + $0x118] sm:$0xf]
  %v101 = vld [vmem:[%s1 + $0x11c] sm:$0xf]
  %v114 = vunpack.c.l.b16 %v18
  %v115 = vunpack.c.h.b16 %v18
  %v116 = vunpack.c.l.b16 %v19
  %v117 = vunpack.c.h.b16 %v19
  %v118 = vunpack.c.l.b16 %v20
  %v119 = vunpack.c.l.b16 %v21
  %v120 = vunpack.c.h.b16 %v21
  %v121 = vunpack.c.l.b16 %v22
  %v122 = vunpack.c.h.b16 %v22
  %v123 = vunpack.c.l.b16 %v23
  %v124 = vunpack.c.l.b16 %v24
  %v125 = vunpack.c.h.b16 %v24
  %v126 = vunpack.c.l.b16 %v25
  %v127 = vunpack.c.h.b16 %v25
  %v128 = vunpack.c.l.b16 %v26
  %v129 = vunpack.c.l.b16 %v27
  %v130 = vunpack.c.h.b16 %v27
  %v131 = vunpack.c.l.b16 %v28
  %v132 = vunpack.c.h.b16 %v28
  %v133 = vunpack.c.l.b16 %v29
  %v134 = vpack.c.b16 %v119, %v114
  %v135 = vpack.c.b16 %v120, %v115
  %v136 = vpack.c.b16 %v121, %v116
  %v137 = vpack.c.b16 %v122, %v117
  %v138 = vpack.c.b16 %v123, %v118
  %v139 = vpack.c.b16 %v129, %v124
  %v140 = vpack.c.b16 %v130, %v125
  %v141 = vpack.c.b16 %v131, %v126
  %v142 = vpack.c.b16 %v132, %v127
  %v143 = vpack.c.b16 %v133, %v128
  %v224 = vunpack.c.l.b16 %v30
  %v225 = vunpack.c.l.b16 %v31
  %v226 = vunpack.c.l.b16 %v32
  %v227 = vunpack.c.l.b16 %v33
  %v228 = vunpack.c.l.b16 %v34
  %v229 = vunpack.c.l.b16 %v35
  %v230 = vunpack.c.l.b16 %v36
  %v231 = vunpack.c.l.b16 %v37
  %v232 = vunpack.c.l.b16 %v38
  %v233 = vunpack.c.l.b16 %v39
  %v234 = vunpack.c.l.b16 %v40
  %v235 = vunpack.c.l.b16 %v41
  %v236 = vunpack.c.l.b16 %v42
  %v237 = vunpack.c.l.b16 %v43
  %v238 = vunpack.c.l.b16 %v44
  %v239 = vunpack.c.l.b16 %v45
  %v240 = vunpack.c.l.b16 %v46
  %v241 = vunpack.c.l.b16 %v47
  %v242 = vunpack.c.l.b16 %v48
  %v243 = vunpack.c.l.b16 %v49
  %v244 = vunpack.c.l.b16 %v50
  %v245 = vunpack.c.l.b16 %v51
  %v246 = vunpack.c.l.b16 %v52
  %v247 = vunpack.c.l.b16 %v53
  %v248 = vunpack.c.l.b16 %v54
  %v249 = vunpack.c.l.b16 %v55
  %v250 = vunpack.c.l.b16 %v56
  %v251 = vunpack.c.l.b16 %v57
  %v252 = vunpack.c.l.b16 %v58
  %v253 = vunpack.c.l.b16 %v59
  %v254 = vunpack.c.l.b16 %v60
  %v255 = vunpack.c.l.b16 %v61
  %v256 = vunpack.c.l.b16 %v62
  %v257 = vunpack.c.l.b16 %v63
  %v258 = vunpack.c.l.b16 %v64
  %v259 = vunpack.c.l.b16 %v65
  %v260 = vunpack.c.l.b16 %v66
  %v261 = vunpack.c.l.b16 %v67
  %v262 = vunpack.c.l.b16 %v68
  %v263 = vunpack.c.l.b16 %v69
  %v264 = vunpack.c.l.b16 %v70
  %v265 = vunpack.c.l.b16 %v71
  %v266 = vunpack.c.l.b16 %v72
  %v267 = vunpack.c.l.b16 %v73
  %v268 = vunpack.c.l.b16 %v74
  %v269 = vunpack.c.l.b16 %v75
  %v270 = vunpack.c.l.b16 %v76
  %v271 = vunpack.c.l.b16 %v77
  %v272 = vunpack.c.l.b16 %v78
  %v273 = vunpack.c.l.b16 %v79
  %v274 = vunpack.c.l.b16 %v80
  %v275 = vunpack.c.l.b16 %v81
  %v276 = vunpack.c.l.b16 %v82
  %v277 = vunpack.c.l.b16 %v83
  %v278 = vunpack.c.l.b16 %v84
  %v279 = vunpack.c.l.b16 %v85
  %v280 = vunpack.c.l.b16 %v86
  %v281 = vunpack.c.l.b16 %v87
  %v282 = vunpack.c.l.b16 %v88
  %v283 = vunpack.c.l.b16 %v89
  %v284 = vunpack.c.l.b16 %v90
  %v285 = vunpack.c.l.b16 %v91
  %v286 = vunpack.c.l.b16 %v92
  %v287 = vunpack.c.l.b16 %v93
  %v288 = vunpack.c.l.b16 %v94
  %v289 = vunpack.c.l.b16 %v95
  %v290 = vunpack.c.l.b16 %v96
  %v291 = vunpack.c.l.b16 %v97
  %v292 = vunpack.c.l.b16 %v98
  %v293 = vunpack.c.l.b16 %v99
  %v294 = vunpack.c.l.b16 %v100
  %v295 = vunpack.c.l.b16 %v101
  %v296 = vpack.c.b16 %v225, %v224
  %v297 = vpack.c.b16 %v227, %v226
  %v298 = vpack.c.b16 %v229, %v228
  %v299 = vpack.c.b16 %v231, %v230
  %v300 = vpack.c.b16 %v233, %v232
  %v301 = vpack.c.b16 %v235, %v234
  %v302 = vpack.c.b16 %v237, %v236
  %v303 = vpack.c.b16 %v239, %v238
  %v304 = vpack.c.b16 %v241, %v240
  %v305 = vpack.c.b16 %v243, %v242
  %v306 = vpack.c.b16 %v245, %v244
  %v307 = vpack.c.b16 %v247, %v246
  %v308 = vpack.c.b16 %v249, %v248
  %v309 = vpack.c.b16 %v251, %v250
  %v310 = vpack.c.b16 %v253, %v252
  %v311 = vpack.c.b16 %v255, %v254
  %v312 = vpack.c.b16 %v257, %v256
  %v313 = vpack.c.b16 %v259, %v258
  %v314 = vpack.c.b16 %v261, %v260
  %v315 = vpack.c.b16 %v263, %v262
  %v316 = vpack.c.b16 %v265, %v264
  %v317 = vpack.c.b16 %v267, %v266
  %v318 = vpack.c.b16 %v269, %v268
  %v319 = vpack.c.b16 %v271, %v270
  %v320 = vpack.c.b16 %v273, %v272
  %v321 = vpack.c.b16 %v275, %v274
  %v322 = vpack.c.b16 %v277, %v276
  %v323 = vpack.c.b16 %v279, %v278
  %v324 = vpack.c.b16 %v281, %v280
  %v325 = vpack.c.b16 %v283, %v282
  %v326 = vpack.c.b16 %v285, %v284
  %v327 = vpack.c.b16 %v287, %v286
  %v328 = vpack.c.b16 %v289, %v288
  %v329 = vpack.c.b16 %v291, %v290
  %v330 = vpack.c.b16 %v293, %v292
  %v331 = vpack.c.b16 %v295, %v294
  %vm368 = vcmask 523264
  %v370 = vsel %vm368, %v138, 0
  %v373 = vsel %vm368, %v143, 0
  %375 = vmatpush.bf16.msra.mxu0 %v303
  %376 = vmatpush.bf16.msra.mxu0 %v302
  %377 = vmatpush.bf16.msra.mxu0 %v301
  %378 = vmatpush.bf16.msra.mxu0 %v300
  %379 = vmatpush.bf16.msra.mxu0 %v299
  %380 = vmatpush.bf16.msra.mxu0 %v298
  %381 = vmatpush.bf16.msra.mxu0 %v297
  %382 = vmatpush.bf16.msra.mxu0 %v296
  %383 = vmatmul.bf16.gmra.mxu0 %v134
  %v384 = vpop.f32.mrf.mxu0
  %v385 = vadd.f32 0.0, %v384
  %v386 = vpop.f32.mrf.mxu0
  %v387 = vadd.f32 0.0, %v386
  %388 = vmatmul.bf16.gmra.mxu0 %v139
  %v389 = vpop.f32.mrf.mxu0
  %v390 = vadd.f32 0.0, %v389
  %v391 = vpop.f32.mrf.mxu0
  %v392 = vadd.f32 0.0, %v391
  %393 = vdwg.mxu0
  %394 = vmatpush.bf16.msra.mxu0 %v311
  %395 = vmatpush.bf16.msra.mxu0 %v310
  %396 = vmatpush.bf16.msra.mxu0 %v309
  %397 = vmatpush.bf16.msra.mxu0 %v308
  %398 = vmatpush.bf16.msra.mxu0 %v307
  %399 = vmatpush.bf16.msra.mxu0 %v306
  %400 = vmatpush.bf16.msra.mxu0 %v305
  %401 = vmatpush.bf16.msra.mxu0 %v304
  %402 = vmatmul.bf16.gmra.mxu0 %v135
  %v403 = vpop.f32.mrf.mxu0
  %v404 = vadd.f32 %v385, %v403
  %v405 = vpop.f32.mrf.mxu0
  %v406 = vadd.f32 %v387, %v405
  %407 = vmatmul.bf16.gmra.mxu0 %v140
  %v408 = vpop.f32.mrf.mxu0
  %v409 = vadd.f32 %v390, %v408
  %v410 = vpop.f32.mrf.mxu0
  %v411 = vadd.f32 %v392, %v410
  %412 = vdwg.mxu0
  %413 = vmatpush.bf16.msra.mxu0 %v319
  %414 = vmatpush.bf16.msra.mxu0 %v318
  %415 = vmatpush.bf16.msra.mxu0 %v317
  %416 = vmatpush.bf16.msra.mxu0 %v316
  %417 = vmatpush.bf16.msra.mxu0 %v315
  %418 = vmatpush.bf16.msra.mxu0 %v314
  %419 = vmatpush.bf16.msra.mxu0 %v313
  %420 = vmatpush.bf16.msra.mxu0 %v312
  %421 = vmatmul.bf16.gmra.mxu0 %v136
  %v422 = vpop.f32.mrf.mxu0
  %v423 = vadd.f32 %v404, %v422
  %v424 = vpop.f32.mrf.mxu0
  %v425 = vadd.f32 %v406, %v424
  %426 = vmatmul.bf16.gmra.mxu0 %v141
  %v427 = vpop.f32.mrf.mxu0
  %v428 = vadd.f32 %v409, %v427
  %v429 = vpop.f32.mrf.mxu0
  %v430 = vadd.f32 %v411, %v429
  %431 = vdwg.mxu0
  %432 = vmatpush.bf16.msra.mxu0 %v327
  %433 = vmatpush.bf16.msra.mxu0 %v326
  %434 = vmatpush.bf16.msra.mxu0 %v325
  %435 = vmatpush.bf16.msra.mxu0 %v324
  %436 = vmatpush.bf16.msra.mxu0 %v323
  %437 = vmatpush.bf16.msra.mxu0 %v322
  %438 = vmatpush.bf16.msra.mxu0 %v321
  %439 = vmatpush.bf16.msra.mxu0 %v320
  %440 = vmatmul.bf16.gmra.mxu0 %v137
  %v441 = vpop.f32.mrf.mxu0
  %v442 = vadd.f32 %v423, %v441
  %v443 = vpop.f32.mrf.mxu0
  %v444 = vadd.f32 %v425, %v443
  %445 = vmatmul.bf16.gmra.mxu0 %v142
  %v446 = vpop.f32.mrf.mxu0
  %v447 = vadd.f32 %v428, %v446
  %v448 = vpop.f32.mrf.mxu0
  %v449 = vadd.f32 %v430, %v448
  %450 = vdwg.mxu0
  %451 = vmatpush.bf16.msra.mxu0 0
  %452 = vmatpush.bf16.msra.mxu0 0
  %453 = vmatpush.bf16.msra.mxu0 0
  %454 = vmatpush.bf16.msra.mxu0 0
  %455 = vmatpush.bf16.msra.mxu0 %v331
  %456 = vmatpush.bf16.msra.mxu0 %v330
  %457 = vmatpush.bf16.msra.mxu0 %v329
  %458 = vmatpush.bf16.msra.mxu0 %v328
  %459 = vmatmul.bf16.gmra.mxu0 %v370
  %v460 = vpop.f32.mrf.mxu0
  %v461 = vadd.f32 %v442, %v460
  %v462 = vpop.f32.mrf.mxu0
  %v463 = vadd.f32 %v444, %v462
  %464 = vmatmul.bf16.gmra.mxu0 %v373
  %v465 = vpop.f32.mrf.mxu0
  %v466 = vadd.f32 %v447, %v465
  %v467 = vpop.f32.mrf.mxu0
  %v468 = vadd.f32 %v449, %v467
  %469 = vdwg.mxu0
  %v470 = vld [vmem:[%s2] sm:$0x1]
  %v472 = vperm.slane %v470, 0
  %v474 = vmul.f32 %v461, %v472
  %v475 = vmul.f32 %v463, %v472
  %v476 = vmul.f32 %v466, %v472
  %v477 = vmul.f32 %v468, %v472
  %v478 = vld [vmem:[%s3] sm:$0x1]
  %v480 = vperm.slane %v478, 0
  %v482 = vadd.f32 %v474, %v480
  %v483 = vadd.f32 %v475, %v480
  %v484 = vadd.f32 %v476, %v480
  %v485 = vadd.f32 %v477, %v480
  %v486 = vmax.f32 %v482, 0.0
  %v487 = vmax.f32 %v483, 0.0
  %v488 = vmax.f32 %v484, 0.0
  %v489 = vmax.f32 %v485, 0.0
  %v490 = vpack.c.bf16 %v486, %v486
  %v491 = vpack.c.bf16 %v487, %v487
  %v492 = vpack.c.bf16 %v488, %v488
  %v493 = vpack.c.bf16 %v489, %v489
  %494 = vst [vmem:[%s4] sm:$0xf] %v490
  %495 = vst [vmem:[%s4 + $0x4] sm:$0xf] %v491
  %496 = vst [vmem:[%s4 + $0x8] sm:$0xf] %v492
  %497 = vst [vmem:[%s4 + $0xc] sm:$0xf] %v493
  // Predicated region
  $region18: #{feature_extractor_with_attention.23} parent=0 // pred_check
    _
  $region19: #{feature_extractor_with_attention.23} parent=0 // pred_check_branch
    %499 = sbr.rel (0) target = $region21
  $region20: #{feature_extractor_with_attention.23} parent=0 // pred_region
    _
  $region21: #{feature_extractor_with_attention.23} parent=0 // pred_fallthru
    _
  // Predicated region
  $region22: #{feature_extractor_with_attention.23} parent=0 // pred_check
    _
  $region23: #{feature_extractor_with_attention.23} parent=0 // pred_check_branch
    %501 = sbr.rel (0) target = $region25
  $region24: #{feature_extractor_with_attention.23} parent=0 // pred_region
    _
  $region25: #{feature_extractor_with_attention.23} parent=0 // pred_fallthru
    _

// kernel: feature_extractor_with_attention.26
$region0: #{feature_extractor_with_attention.26}
  #allocation0 [shape = 'u32[]', space=smem, size = 0x4, offset = 0x4, fixed_abs, tag = 'smem constant byte address 0x4 - core index']
  #allocation1 [shape = 'u32[72,128]{1,0:T(1,128)}', space=vmem, size = 0x9000, scoped, tag = 'internal scratch']
  %s0 = inlined_call_operand.vmem [shape: bf16[32,1152], index: 0, kind: input, shape index: {}]
  %s1 = inlined_call_operand.vmem [shape: bf16[1152,128], index: 1, kind: input, shape index: {}]
  %s2 = inlined_call_operand.vmem [shape: f32[1,128], index: 2, kind: input, shape index: {}]
  %s3 = inlined_call_operand.vmem [shape: f32[1,128], index: 3, kind: input, shape index: {}]
  %s4 = inlined_call_operand.vmem [shape: bf16[32,128], index: 4, kind: output, shape index: {}]
  %s5 = sld [smem:[#allocation0]]
  $region26: #{feature_extractor_with_attention.26} parent=0
    _
  %s7 = ssub.s32 1, %s5
  %s8 = scalar_select 0, %s7, %s5
  // Predicated region
  $region2: #{feature_extractor_with_attention.26} parent=0 // pred_check
    _
  $region3: #{feature_extractor_with_attention.26} parent=0 // pred_check_branch
    %10 = sbr.rel (0) target = $region5
  $region4: #{feature_extractor_with_attention.26} parent=0 // pred_region
    _
  $region5: #{feature_extractor_with_attention.26} parent=0 // pred_fallthru
    _
  // Predicated region
  $region6: #{feature_extractor_with_attention.26} parent=0 // pred_check
    _
  $region7: #{feature_extractor_with_attention.26} parent=0 // pred_check_branch
    %12 = sbr.rel (0) target = $region9
  $region8: #{feature_extractor_with_attention.26} parent=0 // pred_region
    _
  $region9: #{feature_extractor_with_attention.26} parent=0 // pred_fallthru
    _
  // Predicated region
  $region10: #{feature_extractor_with_attention.26} parent=0 // pred_check
    _
  $region11: #{feature_extractor_with_attention.26} parent=0 // pred_check_branch
    %14 = sbr.rel (0) target = $region13
  $region12: #{feature_extractor_with_attention.26} parent=0 // pred_region
    _
  $region13: #{feature_extractor_with_attention.26} parent=0 // pred_fallthru
    _
  // Predicated region
  $region14: #{feature_extractor_with_attention.26} parent=0 // pred_check
    _
  $region15: #{feature_extractor_with_attention.26} parent=0 // pred_check_branch
    %16 = sbr.rel (0) target = $region17
  $region16: #{feature_extractor_with_attention.26} parent=0 // pred_region
    _
  $region17: #{feature_extractor_with_attention.26} parent=0 // pred_fallthru
    _
  %v17 = vld [vmem:[%s0] sm:$0xff]
  %v18 = vld [vmem:[%s0 + $0x8] sm:$0xff]
  %v19 = vld [vmem:[%s0 + $0x10] sm:$0xff]
  %v20 = vld [vmem:[%s0 + $0x18] sm:$0xff]
  %v21 = vld [vmem:[%s0 + $0x20] sm:$0xf]
  %v22 = vld [vmem:[%s0 + $0x24] sm:$0xff]
  %v23 = vld [vmem:[%s0 + $0x2c] sm:$0xff]
  %v24 = vld [vmem:[%s0 + $0x34] sm:$0xff]
  %v25 = vld [vmem:[%s0 + $0x3c] sm:$0xff]
  %v26 = vld [vmem:[%s0 + $0x44] sm:$0xf]
  %v27 = vld [vmem:[%s0 + $0x48] sm:$0xff]
  %v28 = vld [vmem:[%s0 + $0x50] sm:$0xff]
  %v29 = vld [vmem:[%s0 + $0x58] sm:$0xff]
  %v30 = vld [vmem:[%s0 + $0x60] sm:$0xff]
  %v31 = vld [vmem:[%s0 + $0x68] sm:$0xf]
  %v32 = vld [vmem:[%s0 + $0x6c] sm:$0xff]
  %v33 = vld [vmem:[%s0 + $0x74] sm:$0xff]
  %v34 = vld [vmem:[%s0 + $0x7c] sm:$0xff]
  %v35 = vld [vmem:[%s0 + $0x84] sm:$0xff]
  %v36 = vld [vmem:[%s0 + $0x8c] sm:$0xf]
  %v37 = vld [vmem:[%s1] sm:$0xf]
  %v38 = vld [vmem:[%s1 + $0x4] sm:$0xf]
  %v39 = vld [vmem:[%s1 + $0x8] sm:$0xf]
  %v40 = vld [vmem:[%s1 + $0xc] sm:$0xf]
  %v41 = vld [vmem:[%s1 + $0x10] sm:$0xf]
  %v42 = vld [vmem:[%s1 + $0x14] sm:$0xf]
  %v43 = vld [vmem:[%s1 + $0x18] sm:$0xf]
  %v44 = vld [vmem:[%s1 + $0x1c] sm:$0xf]
  %v45 = vld [vmem:[%s1 + $0x20] sm:$0xf]
  %v46 = vld [vmem:[%s1 + $0x24] sm:$0xf]
  %v47 = vld [vmem:[%s1 + $0x28] sm:$0xf]
  %v48 = vld [vmem:[%s1 + $0x2c] sm:$0xf]
  %v49 = vld [vmem:[%s1 + $0x30] sm:$0xf]
  %v50 = vld [vmem:[%s1 + $0x34] sm:$0xf]
  %v51 = vld [vmem:[%s1 + $0x38] sm:$0xf]
  %v52 = vld [vmem:[%s1 + $0x3c] sm:$0xf]
  %v53 = vld [vmem:[%s1 + $0x40] sm:$0xf]
  %v54 = vld [vmem:[%s1 + $0x44] sm:$0xf]
  %v55 = vld [vmem:[%s1 + $0x48] sm:$0xf]
  %v56 = vld [vmem:[%s1 + $0x4c] sm:$0xf]
  %v57 = vld [vmem:[%s1 + $0x50] sm:$0xf]
  %v58 = vld [vmem:[%s1 + $0x54] sm:$0xf]
  %v59 = vld [vmem:[%s1 + $0x58] sm:$0xf]
  %v60 = vld [vmem:[%s1 + $0x5c] sm:$0xf]
  %v61 = vld [vmem:[%s1 + $0x60] sm:$0xf]
  %v62 = vld [vmem:[%s1 + $0x64] sm:$0xf]
  %v63 = vld [vmem:[%s1 + $0x68] sm:$0xf]
  %v64 = vld [vmem:[%s1 + $0x6c] sm:$0xf]
  %v65 = vld [vmem:[%s1 + $0x70] sm:$0xf]
  %v66 = vld [vmem:[%s1 + $0x74] sm:$0xf]
  %v67 = vld [vmem:[%s1 + $0x78] sm:$0xf]
  %v68 = vld [vmem:[%s1 + $0x7c] sm:$0xf]
  %v69 = vld [vmem:[%s1 + $0x80] sm:$0xf]
  %v70 = vld [vmem:[%s1 + $0x84] sm:$0xf]
  %v71 = vld [vmem:[%s1 + $0x88] sm:$0xf]
  %v72 = vld [vmem:[%s1 + $0x8c] sm:$0xf]
  %v73 = vld [vmem:[%s1 + $0x90] sm:$0xf]
  %v74 = vld [vmem:[%s1 + $0x94] sm:$0xf]
  %v75 = vld [vmem:[%s1 + $0x98] sm:$0xf]
  %v76 = vld [vmem:[%s1 + $0x9c] sm:$0xf]
  %v77 = vld [vmem:[%s1 + $0xa0] sm:$0xf]
  %v78 = vld [vmem:[%s1 + $0xa4] sm:$0xf]
  %v79 = vld [vmem:[%s1 + $0xa8] sm:$0xf]
  %v80 = vld [vmem:[%s1 + $0xac] sm:$0xf]
  %v81 = vld [vmem:[%s1 + $0xb0] sm:$0xf]
  %v82 = vld [vmem:[%s1 + $0xb4] sm:$0xf]
  %v83 = vld [vmem:[%s1 + $0xb8] sm:$0xf]
  %v84 = vld [vmem:[%s1 + $0xbc] sm:$0xf]
  %v85 = vld [vmem:[%s1 + $0xc0] sm:$0xf]
  %v86 = vld [vmem:[%s1 + $0xc4] sm:$0xf]
  %v87 = vld [vmem:[%s1 + $0xc8] sm:$0xf]
  %v88 = vld [vmem:[%s1 + $0xcc] sm:$0xf]
  %v89 = vld [vmem:[%s1 + $0xd0] sm:$0xf]
  %v90 = vld [vmem:[%s1 + $0xd4] sm:$0xf]
  %v91 = vld [vmem:[%s1 + $0xd8] sm:$0xf]
  %v92 = vld [vmem:[%s1 + $0xdc] sm:$0xf]
  %v93 = vld [vmem:[%s1 + $0xe0] sm:$0xf]
  %v94 = vld [vmem:[%s1 + $0xe4] sm:$0xf]
  %v95 = vld [vmem:[%s1 + $0xe8] sm:$0xf]
  %v96 = vld [vmem:[%s1 + $0xec] sm:$0xf]
  %v97 = vld [vmem:[%s1 + $0xf0] sm:$0xf]
  %v98 = vld [vmem:[%s1 + $0xf4] sm:$0xf]
  %v99 = vld [vmem:[%s1 + $0xf8] sm:$0xf]
  %v100 = vld [vmem:[%s1 + $0xfc] sm:$0xf]
  %v101 = vld [vmem:[%s1 + $0x100] sm:$0xf]
  %v102 = vld [vmem:[%s1 + $0x104] sm:$0xf]
  %v103 = vld [vmem:[%s1 + $0x108] sm:$0xf]
  %v104 = vld [vmem:[%s1 + $0x10c] sm:$0xf]
  %v105 = vld [vmem:[%s1 + $0x110] sm:$0xf]
  %v106 = vld [vmem:[%s1 + $0x114] sm:$0xf]
  %v107 = vld [vmem:[%s1 + $0x118] sm:$0xf]
  %v108 = vld [vmem:[%s1 + $0x11c] sm:$0xf]
  %v109 = vld [vmem:[%s1 + $0x120] sm:$0xf]
  %v110 = vld [vmem:[%s1 + $0x124] sm:$0xf]
  %v111 = vld [vmem:[%s1 + $0x128] sm:$0xf]
  %v112 = vld [vmem:[%s1 + $0x12c] sm:$0xf]
  %v113 = vld [vmem:[%s1 + $0x130] sm:$0xf]
  %v114 = vld [vmem:[%s1 + $0x134] sm:$0xf]
  %v115 = vld [vmem:[%s1 + $0x138] sm:$0xf]
  %v116 = vld [vmem:[%s1 + $0x13c] sm:$0xf]
  %v117 = vld [vmem:[%s1 + $0x140] sm:$0xf]
  %v118 = vld [vmem:[%s1 + $0x144] sm:$0xf]
  %v119 = vld [vmem:[%s1 + $0x148] sm:$0xf]
  %v120 = vld [vmem:[%s1 + $0x14c] sm:$0xf]
  %v121 = vld [vmem:[%s1 + $0x150] sm:$0xf]
  %v122 = vld [vmem:[%s1 + $0x154] sm:$0xf]
  %v123 = vld [vmem:[%s1 + $0x158] sm:$0xf]
  %v124 = vld [vmem:[%s1 + $0x15c] sm:$0xf]
  %v125 = vld [vmem:[%s1 + $0x160] sm:$0xf]
  %v126 = vld [vmem:[%s1 + $0x164] sm:$0xf]
  %v127 = vld [vmem:[%s1 + $0x168] sm:$0xf]
  %v128 = vld [vmem:[%s1 + $0x16c] sm:$0xf]
  %v129 = vld [vmem:[%s1 + $0x170] sm:$0xf]
  %v130 = vld [vmem:[%s1 + $0x174] sm:$0xf]
  %v131 = vld [vmem:[%s1 + $0x178] sm:$0xf]
  %v132 = vld [vmem:[%s1 + $0x17c] sm:$0xf]
  %v133 = vld [vmem:[%s1 + $0x180] sm:$0xf]
  %v134 = vld [vmem:[%s1 + $0x184] sm:$0xf]
  %v135 = vld [vmem:[%s1 + $0x188] sm:$0xf]
  %v136 = vld [vmem:[%s1 + $0x18c] sm:$0xf]
  %v137 = vld [vmem:[%s1 + $0x190] sm:$0xf]
  %v138 = vld [vmem:[%s1 + $0x194] sm:$0xf]
  %v139 = vld [vmem:[%s1 + $0x198] sm:$0xf]
  %v140 = vld [vmem:[%s1 + $0x19c] sm:$0xf]
  %v141 = vld [vmem:[%s1 + $0x1a0] sm:$0xf]
  %v142 = vld [vmem:[%s1 + $0x1a4] sm:$0xf]
  %v143 = vld [vmem:[%s1 + $0x1a8] sm:$0xf]
  %v144 = vld [vmem:[%s1 + $0x1ac] sm:$0xf]
  %v145 = vld [vmem:[%s1 + $0x1b0] sm:$0xf]
  %v146 = vld [vmem:[%s1 + $0x1b4] sm:$0xf]
  %v147 = vld [vmem:[%s1 + $0x1b8] sm:$0xf]
  %v148 = vld [vmem:[%s1 + $0x1bc] sm:$0xf]
  %v149 = vld [vmem:[%s1 + $0x1c0] sm:$0xf]
  %v150 = vld [vmem:[%s1 + $0x1c4] sm:$0xf]
  %v151 = vld [vmem:[%s1 + $0x1c8] sm:$0xf]
  %v152 = vld [vmem:[%s1 + $0x1cc] sm:$0xf]
  %v153 = vld [vmem:[%s1 + $0x1d0] sm:$0xf]
  %v154 = vld [vmem:[%s1 + $0x1d4] sm:$0xf]
  %v155 = vld [vmem:[%s1 + $0x1d8] sm:$0xf]
  %v156 = vld [vmem:[%s1 + $0x1dc] sm:$0xf]
  %v157 = vld [vmem:[%s1 + $0x1e0] sm:$0xf]
  %v158 = vld [vmem:[%s1 + $0x1e4] sm:$0xf]
  %v159 = vld [vmem:[%s1 + $0x1e8] sm:$0xf]
  %v160 = vld [vmem:[%s1 + $0x1ec] sm:$0xf]
  %v161 = vld [vmem:[%s1 + $0x1f0] sm:$0xf]
  %v162 = vld [vmem:[%s1 + $0x1f4] sm:$0xf]
  %v163 = vld [vmem:[%s1 + $0x1f8] sm:$0xf]
  %v164 = vld [vmem:[%s1 + $0x1fc] sm:$0xf]
  %v165 = vld [vmem:[%s1 + $0x200] sm:$0xf]
  %v166 = vld [vmem:[%s1 + $0x204] sm:$0xf]
  %v167 = vld [vmem:[%s1 + $0x208] sm:$0xf]
  %v168 = vld [vmem:[%s1 + $0x20c] sm:$0xf]
  %v169 = vld [vmem:[%s1 + $0x210] sm:$0xf]
  %v170 = vld [vmem:[%s1 + $0x214] sm:$0xf]
  %v171 = vld [vmem:[%s1 + $0x218] sm:$0xf]
  %v172 = vld [vmem:[%s1 + $0x21c] sm:$0xf]
  %v173 = vld [vmem:[%s1 + $0x220] sm:$0xf]
  %v174 = vld [vmem:[%s1 + $0x224] sm:$0xf]
  %v175 = vld [vmem:[%s1 + $0x228] sm:$0xf]
  %v176 = vld [vmem:[%s1 + $0x22c] sm:$0xf]
  %v177 = vld [vmem:[%s1 + $0x230] sm:$0xf]
  %v178 = vld [vmem:[%s1 + $0x234] sm:$0xf]
  %v179 = vld [vmem:[%s1 + $0x238] sm:$0xf]
  %v180 = vld [vmem:[%s1 + $0x23c] sm:$0xf]
  %v201 = vunpack.c.l.b16 %v17
  %v202 = vunpack.c.h.b16 %v17
  %v203 = vunpack.c.l.b16 %v18
  %v204 = vunpack.c.h.b16 %v18
  %v205 = vunpack.c.l.b16 %v19
  %v206 = vunpack.c.h.b16 %v19
  %v207 = vunpack.c.l.b16 %v20
  %v208 = vunpack.c.h.b16 %v20
  %v209 = vunpack.c.l.b16 %v21
  %v210 = vunpack.c.l.b16 %v22
  %v211 = vunpack.c.h.b16 %v22
  %v212 = vunpack.c.l.b16 %v23
  %v213 = vunpack.c.h.b16 %v23
  %v214 = vunpack.c.l.b16 %v24
  %v215 = vunpack.c.h.b16 %v24
  %v216 = vunpack.c.l.b16 %v25
  %v217 = vunpack.c.h.b16 %v25
  %v218 = vunpack.c.l.b16 %v26
  %v219 = vunpack.c.l.b16 %v27
  %v220 = vunpack.c.h.b16 %v27
  %v221 = vunpack.c.l.b16 %v28
  %v222 = vunpack.c.h.b16 %v28
  %v223 = vunpack.c.l.b16 %v29
  %v224 = vunpack.c.h.b16 %v29
  %v225 = vunpack.c.l.b16 %v30
  %v226 = vunpack.c.h.b16 %v30
  %v227 = vunpack.c.l.b16 %v31
  %v228 = vunpack.c.l.b16 %v32
  %v229 = vunpack.c.h.b16 %v32
  %v230 = vunpack.c.l.b16 %v33
  %v231 = vunpack.c.h.b16 %v33
  %v232 = vunpack.c.l.b16 %v34
  %v233 = vunpack.c.h.b16 %v34
  %v234 = vunpack.c.l.b16 %v35
  %v235 = vunpack.c.h.b16 %v35
  %v236 = vunpack.c.l.b16 %v36
  %v237 = vpack.c.b16 %v210, %v201
  %v238 = vpack.c.b16 %v211, %v202
  %v239 = vpack.c.b16 %v212, %v203
  %v240 = vpack.c.b16 %v213, %v204
  %v241 = vpack.c.b16 %v214, %v205
  %v242 = vpack.c.b16 %v215, %v206
  %v243 = vpack.c.b16 %v216, %v207
  %v244 = vpack.c.b16 %v217, %v208
  %v245 = vpack.c.b16 %v218, %v209
  %v246 = vpack.c.b16 %v228, %v219
  %v247 = vpack.c.b16 %v229, %v220
  %v248 = vpack.c.b16 %v230, %v221
  %v249 = vpack.c.b16 %v231, %v222
  %v250 = vpack.c.b16 %v232, %v223
  %v251 = vpack.c.b16 %v233, %v224
  %v252 = vpack.c.b16 %v234, %v225
  %v253 = vpack.c.b16 %v235, %v226
  %v254 = vpack.c.b16 %v236, %v227
  %v417 = vunpack.c.l.b16 %v37
  %v418 = vunpack.c.l.b16 %v38
  %v419 = vunpack.c.l.b16 %v39
  %v420 = vunpack.c.l.b16 %v40
  %v421 = vunpack.c.l.b16 %v41
  %v422 = vunpack.c.l.b16 %v42
  %v423 = vunpack.c.l.b16 %v43
  %v424 = vunpack.c.l.b16 %v44
  %v425 = vunpack.c.l.b16 %v45
  %v426 = vunpack.c.l.b16 %v46
  %v427 = vunpack.c.l.b16 %v47
  %v428 = vunpack.c.l.b16 %v48
  %v429 = vunpack.c.l.b16 %v49
  %v430 = vunpack.c.l.b16 %v50
  %v431 = vunpack.c.l.b16 %v51
  %v432 = vunpack.c.l.b16 %v52
  %v433 = vunpack.c.l.b16 %v53
  %v434 = vunpack.c.l.b16 %v54
  %v435 = vunpack.c.l.b16 %v55
  %v436 = vunpack.c.l.b16 %v56
  %v437 = vunpack.c.l.b16 %v57
  %v438 = vunpack.c.l.b16 %v58
  %v439 = vunpack.c.l.b16 %v59
  %v440 = vunpack.c.l.b16 %v60
  %v441 = vunpack.c.l.b16 %v61
  %v442 = vunpack.c.l.b16 %v62
  %v443 = vunpack.c.l.b16 %v63
  %v444 = vunpack.c.l.b16 %v64
  %v445 = vunpack.c.l.b16 %v65
  %v446 = vunpack.c.l.b16 %v66
  %v447 = vunpack.c.l.b16 %v67
  %v448 = vunpack.c.l.b16 %v68
  %v449 = vunpack.c.l.b16 %v69
  %v450 = vunpack.c.l.b16 %v70
  %v451 = vunpack.c.l.b16 %v71
  %v452 = vunpack.c.l.b16 %v72
  %v453 = vunpack.c.l.b16 %v73
  %v454 = vunpack.c.l.b16 %v74
  %v455 = vunpack.c.l.b16 %v75
  %v456 = vunpack.c.l.b16 %v76
  %v457 = vunpack.c.l.b16 %v77
  %v458 = vunpack.c.l.b16 %v78
  %v459 = vunpack.c.l.b16 %v79
  %v460 = vunpack.c.l.b16 %v80
  %v461 = vunpack.c.l.b16 %v81
  %v462 = vunpack.c.l.b16 %v82
  %v463 = vunpack.c.l.b16 %v83
  %v464 = vunpack.c.l.b16 %v84
  %v465 = vunpack.c.l.b16 %v85
  %v466 = vunpack.c.l.b16 %v86
  %v467 = vunpack.c.l.b16 %v87
  %v468 = vunpack.c.l.b16 %v88
  %v469 = vunpack.c.l.b16 %v89
  %v470 = vunpack.c.l.b16 %v90
  %v471 = vunpack.c.l.b16 %v91
  %v472 = vunpack.c.l.b16 %v92
  %v473 = vunpack.c.l.b16 %v93
  %v474 = vunpack.c.l.b16 %v94
  %v475 = vunpack.c.l.b16 %v95
  %v476 = vunpack.c.l.b16 %v96
  %v477 = vunpack.c.l.b16 %v97
  %v478 = vunpack.c.l.b16 %v98
  %v479 = vunpack.c.l.b16 %v99
  %v480 = vunpack.c.l.b16 %v100
  %v481 = vunpack.c.l.b16 %v101
  %v482 = vunpack.c.l.b16 %v102
  %v483 = vunpack.c.l.b16 %v103
  %v484 = vunpack.c.l.b16 %v104
  %v485 = vunpack.c.l.b16 %v105
  %v486 = vunpack.c.l.b16 %v106
  %v487 = vunpack.c.l.b16 %v107
  %v488 = vunpack.c.l.b16 %v108
  %v489 = vunpack.c.l.b16 %v109
  %v490 = vunpack.c.l.b16 %v110
  %v491 = vunpack.c.l.b16 %v111
  %v492 = vunpack.c.l.b16 %v112
  %v493 = vunpack.c.l.b16 %v113
  %v494 = vunpack.c.l.b16 %v114
  %v495 = vunpack.c.l.b16 %v115
  %v496 = vunpack.c.l.b16 %v116
  %v497 = vunpack.c.l.b16 %v117
  %v498 = vunpack.c.l.b16 %v118
  %v499 = vunpack.c.l.b16 %v119
  %v500 = vunpack.c.l.b16 %v120
  %v501 = vunpack.c.l.b16 %v121
  %v502 = vunpack.c.l.b16 %v122
  %v503 = vunpack.c.l.b16 %v123
  %v504 = vunpack.c.l.b16 %v124
  %v505 = vunpack.c.l.b16 %v125
  %v506 = vunpack.c.l.b16 %v126
  %v507 = vunpack.c.l.b16 %v127
  %v508 = vunpack.c.l.b16 %v128
  %v509 = vunpack.c.l.b16 %v129
  %v510 = vunpack.c.l.b16 %v130
  %v511 = vunpack.c.l.b16 %v131
  %v512 = vunpack.c.l.b16 %v132
  %v513 = vunpack.c.l.b16 %v133
  %v514 = vunpack.c.l.b16 %v134
  %v515 = vunpack.c.l.b16 %v135
  %v516 = vunpack.c.l.b16 %v136
  %v517 = vunpack.c.l.b16 %v137
  %v518 = vunpack.c.l.b16 %v138
  %v519 = vunpack.c.l.b16 %v139
  %v520 = vunpack.c.l.b16 %v140
  %v521 = vunpack.c.l.b16 %v141
  %v522 = vunpack.c.l.b16 %v142
  %v523 = vunpack.c.l.b16 %v143
  %v524 = vunpack.c.l.b16 %v144
  %v525 = vunpack.c.l.b16 %v145
  %v526 = vunpack.c.l.b16 %v146
  %v527 = vunpack.c.l.b16 %v147
  %v528 = vunpack.c.l.b16 %v148
  %v529 = vunpack.c.l.b16 %v149
  %v530 = vunpack.c.l.b16 %v150
  %v531 = vunpack.c.l.b16 %v151
  %v532 = vunpack.c.l.b16 %v152
  %v533 = vunpack.c.l.b16 %v153
  %v534 = vunpack.c.l.b16 %v154
  %v535 = vunpack.c.l.b16 %v155
  %v536 = vunpack.c.l.b16 %v156
  %v537 = vunpack.c.l.b16 %v157
  %v538 = vunpack.c.l.b16 %v158
  %v539 = vunpack.c.l.b16 %v159
  %v540 = vunpack.c.l.b16 %v160
  %v541 = vunpack.c.l.b16 %v161
  %v542 = vunpack.c.l.b16 %v162
  %v543 = vunpack.c.l.b16 %v163
  %v544 = vunpack.c.l.b16 %v164
  %v545 = vunpack.c.l.b16 %v165
  %v546 = vunpack.c.l.b16 %v166
  %v547 = vunpack.c.l.b16 %v167
  %v548 = vunpack.c.l.b16 %v168
  %v549 = vunpack.c.l.b16 %v169
  %v550 = vunpack.c.l.b16 %v170
  %v551 = vunpack.c.l.b16 %v171
  %v552 = vunpack.c.l.b16 %v172
  %v553 = vunpack.c.l.b16 %v173
  %v554 = vunpack.c.l.b16 %v174
  %v555 = vunpack.c.l.b16 %v175
  %v556 = vunpack.c.l.b16 %v176
  %v557 = vunpack.c.l.b16 %v177
  %v558 = vunpack.c.l.b16 %v178
  %v559 = vunpack.c.l.b16 %v179
  %v560 = vunpack.c.l.b16 %v180
  %v561 = vpack.c.b16 %v418, %v417
  %v562 = vpack.c.b16 %v420, %v419
  %v563 = vpack.c.b16 %v422, %v421
  %v564 = vpack.c.b16 %v424, %v423
  %v565 = vpack.c.b16 %v426, %v425
  %v566 = vpack.c.b16 %v428, %v427
  %v567 = vpack.c.b16 %v430, %v429
  %v568 = vpack.c.b16 %v432, %v431
  %v569 = vpack.c.b16 %v434, %v433
  %v570 = vpack.c.b16 %v436, %v435
  %v571 = vpack.c.b16 %v438, %v437
  %v572 = vpack.c.b16 %v440, %v439
  %v573 = vpack.c.b16 %v442, %v441
  %v574 = vpack.c.b16 %v444, %v443
  %v575 = vpack.c.b16 %v446, %v445
  %v576 = vpack.c.b16 %v448, %v447
  %v577 = vpack.c.b16 %v450, %v449
  %v578 = vpack.c.b16 %v452, %v451
  %v579 = vpack.c.b16 %v454, %v453
  %v580 = vpack.c.b16 %v456, %v455
  %v581 = vpack.c.b16 %v458, %v457
  %v582 = vpack.c.b16 %v460, %v459
  %v583 = vpack.c.b16 %v462, %v461
  %v584 = vpack.c.b16 %v464, %v463
  %v585 = vpack.c.b16 %v466, %v465
  %v586 = vpack.c.b16 %v468, %v467
  %v587 = vpack.c.b16 %v470, %v469
  %v588 = vpack.c.b16 %v472, %v471
  %v589 = vpack.c.b16 %v474, %v473
  %v590 = vpack.c.b16 %v476, %v475
  %v591 = vpack.c.b16 %v478, %v477
  %v592 = vpack.c.b16 %v480, %v479
  %v593 = vpack.c.b16 %v482, %v481
  %v594 = vpack.c.b16 %v484, %v483
  %v595 = vpack.c.b16 %v486, %v485
  %v596 = vpack.c.b16 %v488, %v487
  %v597 = vpack.c.b16 %v490, %v489
  %v598 = vpack.c.b16 %v492, %v491
  %v599 = vpack.c.b16 %v494, %v493
  %v600 = vpack.c.b16 %v496, %v495
  %v601 = vpack.c.b16 %v498, %v497
  %v602 = vpack.c.b16 %v500, %v499
  %v603 = vpack.c.b16 %v502, %v501
  %v604 = vpack.c.b16 %v504, %v503
  %v605 = vpack.c.b16 %v506, %v505
  %v606 = vpack.c.b16 %v508, %v507
  %v607 = vpack.c.b16 %v510, %v509
  %v608 = vpack.c.b16 %v512, %v511
  %v609 = vpack.c.b16 %v514, %v513
  %v610 = vpack.c.b16 %v516, %v515
  %v611 = vpack.c.b16 %v518, %v517
  %v612 = vpack.c.b16 %v520, %v519
  %v613 = vpack.c.b16 %v522, %v521
  %v614 = vpack.c.b16 %v524, %v523
  %v615 = vpack.c.b16 %v526, %v525
  %v616 = vpack.c.b16 %v528, %v527
  %v617 = vpack.c.b16 %v530, %v529
  %v618 = vpack.c.b16 %v532, %v531
  %v619 = vpack.c.b16 %v534, %v533
  %v620 = vpack.c.b16 %v536, %v535
  %v621 = vpack.c.b16 %v538, %v537
  %v622 = vpack.c.b16 %v540, %v539
  %v623 = vpack.c.b16 %v542, %v541
  %v624 = vpack.c.b16 %v544, %v543
  %v625 = vpack.c.b16 %v546, %v545
  %v626 = vpack.c.b16 %v548, %v547
  %v627 = vpack.c.b16 %v550, %v549
  %v628 = vpack.c.b16 %v552, %v551
  %v629 = vpack.c.b16 %v554, %v553
  %v630 = vpack.c.b16 %v556, %v555
  %v631 = vpack.c.b16 %v558, %v557
  %v632 = vpack.c.b16 %v560, %v559
  %705 = vmatpush.bf16.msra.mxu0 %v568
  %706 = vmatpush.bf16.msra.mxu0 %v567
  %707 = vmatpush.bf16.msra.mxu0 %v566
  %708 = vmatpush.bf16.msra.mxu0 %v565
  %709 = vmatpush.bf16.msra.mxu0 %v564
  %710 = vmatpush.bf16.msra.mxu0 %v563
  %711 = vmatpush.bf16.msra.mxu0 %v562
  %712 = vmatpush.bf16.msra.mxu0 %v561
  %713 = vmatmul.bf16.gmra.mxu0 %v237
  %v714 = vpop.f32.mrf.mxu0
  %v715 = vadd.f32 0.0, %v714
  %v716 = vpop.f32.mrf.mxu0
  %v717 = vadd.f32 0.0, %v716
  %718 = vmatmul.bf16.gmra.mxu0 %v246
  %v719 = vpop.f32.mrf.mxu0
  %v720 = vadd.f32 0.0, %v719
  %v721 = vpop.f32.mrf.mxu0
  %v722 = vadd.f32 0.0, %v721
  %723 = vdwg.mxu0
  %724 = vmatpush.bf16.msra.mxu0 %v576
  %725 = vmatpush.bf16.msra.mxu0 %v575
  %726 = vmatpush.bf16.msra.mxu0 %v574
  %727 = vmatpush.bf16.msra.mxu0 %v573
  %728 = vmatpush.bf16.msra.mxu0 %v572
  %729 = vmatpush.bf16.msra.mxu0 %v571
  %730 = vmatpush.bf16.msra.mxu0 %v570
  %731 = vmatpush.bf16.msra.mxu0 %v569
  %732 = vmatmul.bf16.gmra.mxu0 %v238
  %v733 = vpop.f32.mrf.mxu0
  %v734 = vadd.f32 %v715, %v733
  %v735 = vpop.f32.mrf.mxu0
  %v736 = vadd.f32 %v717, %v735
  %737 = vmatmul.bf16.gmra.mxu0 %v247
  %v738 = vpop.f32.mrf.mxu0
  %v739 = vadd.f32 %v720, %v738
  %v740 = vpop.f32.mrf.mxu0
  %v741 = vadd.f32 %v722, %v740
  %742 = vdwg.mxu0
  %743 = vmatpush.bf16.msra.mxu0 %v584
  %744 = vmatpush.bf16.msra.mxu0 %v583
  %745 = vmatpush.bf16.msra.mxu0 %v582
  %746 = vmatpush.bf16.msra.mxu0 %v581
  %747 = vmatpush.bf16.msra.mxu0 %v580
  %748 = vmatpush.bf16.msra.mxu0 %v579
  %749 = vmatpush.bf16.msra.mxu0 %v578
  %750 = vmatpush.bf16.msra.mxu0 %v577
  %751 = vmatmul.bf16.gmra.mxu0 %v239
  %v752 = vpop.f32.mrf.mxu0
  %v753 = vadd.f32 %v734, %v752
  %v754 = vpop.f32.mrf.mxu0
  %v755 = vadd.f32 %v736, %v754
  %756 = vmatmul.bf16.gmra.mxu0 %v248
  %v757 = vpop.f32.mrf.mxu0
  %v758 = vadd.f32 %v739, %v757
  %v759 = vpop.f32.mrf.mxu0
  %v760 = vadd.f32 %v741, %v759
  %761 = vdwg.mxu0
  %762 = vmatpush.bf16.msra.mxu0 %v592
  %763 = vmatpush.bf16.msra.mxu0 %v591
  %764 = vmatpush.bf16.msra.mxu0 %v590
  %765 = vmatpush.bf16.msra.mxu0 %v589
  %766 = vmatpush.bf16.msra.mxu0 %v588
  %767 = vmatpush.bf16.msra.mxu0 %v587
  %768 = vmatpush.bf16.msra.mxu0 %v586
  %769 = vmatpush.bf16.msra.mxu0 %v585
  %770 = vmatmul.bf16.gmra.mxu0 %v240
  %v771 = vpop.f32.mrf.mxu0
  %v772 = vadd.f32 %v753, %v771
  %v773 = vpop.f32.mrf.mxu0
  %v774 = vadd.f32 %v755, %v773
  %775 = vmatmul.bf16.gmra.mxu0 %v249
  %v776 = vpop.f32.mrf.mxu0
  %v777 = vadd.f32 %v758, %v776
  %v778 = vpop.f32.mrf.mxu0
  %v779 = vadd.f32 %v760, %v778
  %780 = vdwg.mxu0
  %781 = vmatpush.bf16.msra.mxu0 %v600
  %782 = vmatpush.bf16.msra.mxu0 %v599
  %783 = vmatpush.bf16.msra.mxu0 %v598
  %784 = vmatpush.bf16.msra.mxu0 %v597
  %785 = vmatpush.bf16.msra.mxu0 %v596
  %786 = vmatpush.bf16.msra.mxu0 %v595
  %787 = vmatpush.bf16.msra.mxu0 %v594
  %788 = vmatpush.bf16.msra.mxu0 %v593
  %789 = vmatmul.bf16.gmra.mxu0 %v241
  %v790 = vpop.f32.mrf.mxu0
  %v791 = vadd.f32 %v772, %v790
  %v792 = vpop.f32.mrf.mxu0
  %v793 = vadd.f32 %v774, %v792
  %794 = vmatmul.bf16.gmra.mxu0 %v250
  %v795 = vpop.f32.mrf.mxu0
  %v796 = vadd.f32 %v777, %v795
  %v797 = vpop.f32.mrf.mxu0
  %v798 = vadd.f32 %v779, %v797
  %799 = vdwg.mxu0
  %800 = vmatpush.bf16.msra.mxu0 %v608
  %801 = vmatpush.bf16.msra.mxu0 %v607
  %802 = vmatpush.bf16.msra.mxu0 %v606
  %803 = vmatpush.bf16.msra.mxu0 %v605
  %804 = vmatpush.bf16.msra.mxu0 %v604
  %805 = vmatpush.bf16.msra.mxu0 %v603
  %806 = vmatpush.bf16.msra.mxu0 %v602
  %807 = vmatpush.bf16.msra.mxu0 %v601
  %808 = vmatmul.bf16.gmra.mxu0 %v242
  %v809 = vpop.f32.mrf.mxu0
  %v810 = vadd.f32 %v791, %v809
  %v811 = vpop.f32.mrf.mxu0
  %v812 = vadd.f32 %v793, %v811
  %813 = vmatmul.bf16.gmra.mxu0 %v251
  %v814 = vpop.f32.mrf.mxu0
  %v815 = vadd.f32 %v796, %v814
  %v816 = vpop.f32.mrf.mxu0
  %v817 = vadd.f32 %v798, %v816
  %818 = vdwg.mxu0
  %819 = vmatpush.bf16.msra.mxu0 %v616
  %820 = vmatpush.bf16.msra.mxu0 %v615
  %821 = vmatpush.bf16.msra.mxu0 %v614
  %822 = vmatpush.bf16.msra.mxu0 %v613
  %823 = vmatpush.bf16.msra.mxu0 %v612
  %824 = vmatpush.bf16.msra.mxu0 %v611
  %825 = vmatpush.bf16.msra.mxu0 %v610
  %826 = vmatpush.bf16.msra.mxu0 %v609
  %827 = vmatmul.bf16.gmra.mxu0 %v243
  %v828 = vpop.f32.mrf.mxu0
  %v829 = vadd.f32 %v810, %v828
  %v830 = vpop.f32.mrf.mxu0
  %v831 = vadd.f32 %v812, %v830
  %832 = vmatmul.bf16.gmra.mxu0 %v252
  %v833 = vpop.f32.mrf.mxu0
  %v834 = vadd.f32 %v815, %v833
  %v835 = vpop.f32.mrf.mxu0
  %v836 = vadd.f32 %v817, %v835
  %837 = vdwg.mxu0
  %838 = vmatpush.bf16.msra.mxu0 %v624
  %839 = vmatpush.bf16.msra.mxu0 %v623
  %840 = vmatpush.bf16.msra.mxu0 %v622
  %841 = vmatpush.bf16.msra.mxu0 %v621
  %842 = vmatpush.bf16.msra.mxu0 %v620
  %843 = vmatpush.bf16.msra.mxu0 %v619
  %844 = vmatpush.bf16.msra.mxu0 %v618
  %845 = vmatpush.bf16.msra.mxu0 %v617
  %846 = vmatmul.bf16.gmra.mxu0 %v244
  %v847 = vpop.f32.mrf.mxu0
  %v848 = vadd.f32 %v829, %v847
  %v849 = vpop.f32.mrf.mxu0
  %v850 = vadd.f32 %v831, %v849
  %851 = vmatmul.bf16.gmra.mxu0 %v253
  %v852 = vpop.f32.mrf.mxu0
  %v853 = vadd.f32 %v834, %v852
  %v854 = vpop.f32.mrf.mxu0
  %v855 = vadd.f32 %v836, %v854
  %856 = vdwg.mxu0
  %857 = vmatpush.bf16.msra.mxu0 %v632
  %858 = vmatpush.bf16.msra.mxu0 %v631
  %859 = vmatpush.bf16.msra.mxu0 %v630
  %860 = vmatpush.bf16.msra.mxu0 %v629
  %861 = vmatpush.bf16.msra.mxu0 %v628
  %862 = vmatpush.bf16.msra.mxu0 %v627
  %863 = vmatpush.bf16.msra.mxu0 %v626
  %864 = vmatpush.bf16.msra.mxu0 %v625
  %865 = vmatmul.bf16.gmra.mxu0 %v245
  %v866 = vpop.f32.mrf.mxu0
  %v867 = vadd.f32 %v848, %v866
  %v868 = vpop.f32.mrf.mxu0
  %v869 = vadd.f32 %v850, %v868
  %870 = vmatmul.bf16.gmra.mxu0 %v254
  %v871 = vpop.f32.mrf.mxu0
  %v872 = vadd.f32 %v853, %v871
  %v873 = vpop.f32.mrf.mxu0
  %v874 = vadd.f32 %v855, %v873
  %875 = vdwg.mxu0
  %v876 = vld [vmem:[%s2] sm:$0x1]
  %v878 = vperm.slane %v876, 0
  %v880 = vmul.f32 %v867, %v878
  %v881 = vmul.f32 %v869, %v878
  %v882 = vmul.f32 %v872, %v878
  %v883 = vmul.f32 %v874, %v878
  %v884 = vld [vmem:[%s3] sm:$0x1]
  %v886 = vperm.slane %v884, 0
  %v888 = vadd.f32 %v880, %v886
  %v889 = vadd.f32 %v881, %v886
  %v890 = vadd.f32 %v882, %v886
  %v891 = vadd.f32 %v883, %v886
  %v892 = vmax.f32 %v888, 0.0
  %v893 = vmax.f32 %v889, 0.0
  %v894 = vmax.f32 %v890, 0.0
  %v895 = vmax.f32 %v891, 0.0
  %v896 = vpack.c.bf16 %v892, %v892
  %v897 = vpack.c.bf16 %v893, %v893
  %v898 = vpack.c.bf16 %v894, %v894
  %v899 = vpack.c.bf16 %v895, %v895
  %900 = vst [vmem:[%s4] sm:$0xf] %v896
  %901 = vst [vmem:[%s4 + $0x4] sm:$0xf] %v897
  %902 = vst [vmem:[%s4 + $0x8] sm:$0xf] %v898
  %903 = vst [vmem:[%s4 + $0xc] sm:$0xf] %v899
  // Predicated region
  $region18: #{feature_extractor_with_attention.26} parent=0 // pred_check
    _
  $region19: #{feature_extractor_with_attention.26} parent=0 // pred_check_branch
    %905 = sbr.rel (0) target = $region21
  $region20: #{feature_extractor_with_attention.26} parent=0 // pred_region
    _
  $region21: #{feature_extractor_with_attention.26} parent=0 // pred_fallthru
    _
  // Predicated region
  $region22: #{feature_extractor_with_attention.26} parent=0 // pred_check
    _
  $region23: #{feature_extractor_with_attention.26} parent=0 // pred_check_branch
    %907 = sbr.rel (0) target = $region25
  $region24: #{feature_extractor_with_attention.26} parent=0 // pred_region
    _
  $region25: #{feature_extractor_with_attention.26} parent=0 // pred_fallthru
    _

// kernel: feature_extractor_with_attention.25
$region0: #{feature_extractor_with_attention.25}
  #allocation0 [shape = 'u32[]', space=smem, size = 0x4, offset = 0x4, fixed_abs, tag = 'smem constant byte address 0x4 - core index']
  #allocation1 [shape = 'u32[72,128]{1,0:T(1,128)}', space=vmem, size = 0x9000, scoped, tag = 'internal scratch']
  %s0 = inlined_call_operand.vmem [shape: bf16[32,1152], index: 0, kind: input, shape index: {}]
  %s1 = inlined_call_operand.vmem [shape: bf16[1152,128], index: 1, kind: input, shape index: {}]
  %s2 = inlined_call_operand.vmem [shape: f32[1,128], index: 2, kind: input, shape index: {}]
  %s3 = inlined_call_operand.vmem [shape: f32[1,128], index: 3, kind: input, shape index: {}]
  %s4 = inlined_call_operand.vmem [shape: bf16[32,128], index: 4, kind: input, shape index: {}]
  %s5 = inlined_call_operand.vmem [shape: bf16[32,128], index: 5, kind: output, shape index: {}]
  %s6 = sld [smem:[#allocation0]]
  $region30: #{feature_extractor_with_attention.25} parent=0
    _
  %s8 = ssub.s32 1, %s6
  %s9 = scalar_select 0, %s8, %s6
  // Predicated region
  $region2: #{feature_extractor_with_attention.25} parent=0 // pred_check
    _
  $region3: #{feature_extractor_with_attention.25} parent=0 // pred_check_branch
    %11 = sbr.rel (0) target = $region5
  $region4: #{feature_extractor_with_attention.25} parent=0 // pred_region
    _
  $region5: #{feature_extractor_with_attention.25} parent=0 // pred_fallthru
    _
  // Predicated region
  $region6: #{feature_extractor_with_attention.25} parent=0 // pred_check
    _
  $region7: #{feature_extractor_with_attention.25} parent=0 // pred_check_branch
    %13 = sbr.rel (0) target = $region9
  $region8: #{feature_extractor_with_attention.25} parent=0 // pred_region
    _
  $region9: #{feature_extractor_with_attention.25} parent=0 // pred_fallthru
    _
  // Predicated region
  $region10: #{feature_extractor_with_attention.25} parent=0 // pred_check
    _
  $region11: #{feature_extractor_with_attention.25} parent=0 // pred_check_branch
    %15 = sbr.rel (0) target = $region13
  $region12: #{feature_extractor_with_attention.25} parent=0 // pred_region
    _
  $region13: #{feature_extractor_with_attention.25} parent=0 // pred_fallthru
    _
  // Predicated region
  $region14: #{feature_extractor_with_attention.25} parent=0 // pred_check
    _
  $region15: #{feature_extractor_with_attention.25} parent=0 // pred_check_branch
    %17 = sbr.rel (0) target = $region17
  $region16: #{feature_extractor_with_attention.25} parent=0 // pred_region
    _
  $region17: #{feature_extractor_with_attention.25} parent=0 // pred_fallthru
    _
  // Predicated region
  $region18: #{feature_extractor_with_attention.25} parent=0 // pred_check
    _
  $region19: #{feature_extractor_with_attention.25} parent=0 // pred_check_branch
    %19 = sbr.rel (0) target = $region21
  $region20: #{feature_extractor_with_attention.25} parent=0 // pred_region
    _
  $region21: #{feature_extractor_with_attention.25} parent=0 // pred_fallthru
    _
  %v20 = vld [vmem:[%s0] sm:$0xff]
  %v21 = vld [vmem:[%s0 + $0x8] sm:$0xff]
  %v22 = vld [vmem:[%s0 + $0x10] sm:$0xff]
  %v23 = vld [vmem:[%s0 + $0x18] sm:$0xff]
  %v24 = vld [vmem:[%s0 + $0x20] sm:$0xf]
  %v25 = vld [vmem:[%s0 + $0x24] sm:$0xff]
  %v26 = vld [vmem:[%s0 + $0x2c] sm:$0xff]
  %v27 = vld [vmem:[%s0 + $0x34] sm:$0xff]
  %v28 = vld [vmem:[%s0 + $0x3c] sm:$0xff]
  %v29 = vld [vmem:[%s0 + $0x44] sm:$0xf]
  %v30 = vld [vmem:[%s0 + $0x48] sm:$0xff]
  %v31 = vld [vmem:[%s0 + $0x50] sm:$0xff]
  %v32 = vld [vmem:[%s0 + $0x58] sm:$0xff]
  %v33 = vld [vmem:[%s0 + $0x60] sm:$0xff]
  %v34 = vld [vmem:[%s0 + $0x68] sm:$0xf]
  %v35 = vld [vmem:[%s0 + $0x6c] sm:$0xff]
  %v36 = vld [vmem:[%s0 + $0x74] sm:$0xff]
  %v37 = vld [vmem:[%s0 + $0x7c] sm:$0xff]
  %v38 = vld [vmem:[%s0 + $0x84] sm:$0xff]
  %v39 = vld [vmem:[%s0 + $0x8c] sm:$0xf]
  %v40 = vld [vmem:[%s1] sm:$0xf]
  %v41 = vld [vmem:[%s1 + $0x4] sm:$0xf]
  %v42 = vld [vmem:[%s1 + $0x8] sm:$0xf]
  %v43 = vld [vmem:[%s1 + $0xc] sm:$0xf]
  %v44 = vld [vmem:[%s1 + $0x10] sm:$0xf]
  %v45 = vld [vmem:[%s1 + $0x14] sm:$0xf]
  %v46 = vld [vmem:[%s1 + $0x18] sm:$0xf]
  %v47 = vld [vmem:[%s1 + $0x1c] sm:$0xf]
  %v48 = vld [vmem:[%s1 + $0x20] sm:$0xf]
  %v49 = vld [vmem:[%s1 + $0x24] sm:$0xf]
  %v50 = vld [vmem:[%s1 + $0x28] sm:$0xf]
  %v51 = vld [vmem:[%s1 + $0x2c] sm:$0xf]
  %v52 = vld [vmem:[%s1 + $0x30] sm:$0xf]
  %v53 = vld [vmem:[%s1 + $0x34] sm:$0xf]
  %v54 = vld [vmem:[%s1 + $0x38] sm:$0xf]
  %v55 = vld [vmem:[%s1 + $0x3c] sm:$0xf]
  %v56 = vld [vmem:[%s1 + $0x40] sm:$0xf]
  %v57 = vld [vmem:[%s1 + $0x44] sm:$0xf]
  %v58 = vld [vmem:[%s1 + $0x48] sm:$0xf]
  %v59 = vld [vmem:[%s1 + $0x4c] sm:$0xf]
  %v60 = vld [vmem:[%s1 + $0x50] sm:$0xf]
  %v61 = vld [vmem:[%s1 + $0x54] sm:$0xf]
  %v62 = vld [vmem:[%s1 + $0x58] sm:$0xf]
  %v63 = vld [vmem:[%s1 + $0x5c] sm:$0xf]
  %v64 = vld [vmem:[%s1 + $0x60] sm:$0xf]
  %v65 = vld [vmem:[%s1 + $0x64] sm:$0xf]
  %v66 = vld [vmem:[%s1 + $0x68] sm:$0xf]
  %v67 = vld [vmem:[%s1 + $0x6c] sm:$0xf]
  %v68 = vld [vmem:[%s1 + $0x70] sm:$0xf]
  %v69 = vld [vmem:[%s1 + $0x74] sm:$0xf]
  %v70 = vld [vmem:[%s1 + $0x78] sm:$0xf]
  %v71 = vld [vmem:[%s1 + $0x7c] sm:$0xf]
  %v72 = vld [vmem:[%s1 + $0x80] sm:$0xf]
  %v73 = vld [vmem:[%s1 + $0x84] sm:$0xf]
  %v74 = vld [vmem:[%s1 + $0x88] sm:$0xf]
  %v75 = vld [vmem:[%s1 + $0x8c] sm:$0xf]
  %v76 = vld [vmem:[%s1 + $0x90] sm:$0xf]
  %v77 = vld [vmem:[%s1 + $0x94] sm:$0xf]
  %v78 = vld [vmem:[%s1 + $0x98] sm:$0xf]
  %v79 = vld [vmem:[%s1 + $0x9c] sm:$0xf]
  %v80 = vld [vmem:[%s1 + $0xa0] sm:$0xf]
  %v81 = vld [vmem:[%s1 + $0xa4] sm:$0xf]
  %v82 = vld [vmem:[%s1 + $0xa8] sm:$0xf]
  %v83 = vld [vmem:[%s1 + $0xac] sm:$0xf]
  %v84 = vld [vmem:[%s1 + $0xb0] sm:$0xf]
  %v85 = vld [vmem:[%s1 + $0xb4] sm:$0xf]
  %v86 = vld [vmem:[%s1 + $0xb8] sm:$0xf]
  %v87 = vld [vmem:[%s1 + $0xbc] sm:$0xf]
  %v88 = vld [vmem:[%s1 + $0xc0] sm:$0xf]
  %v89 = vld [vmem:[%s1 + $0xc4] sm:$0xf]
  %v90 = vld [vmem:[%s1 + $0xc8] sm:$0xf]
  %v91 = vld [vmem:[%s1 + $0xcc] sm:$0xf]
  %v92 = vld [vmem:[%s1 + $0xd0] sm:$0xf]
  %v93 = vld [vmem:[%s1 + $0xd4] sm:$0xf]
  %v94 = vld [vmem:[%s1 + $0xd8] sm:$0xf]
  %v95 = vld [vmem:[%s1 + $0xdc] sm:$0xf]
  %v96 = vld [vmem:[%s1 + $0xe0] sm:$0xf]
  %v97 = vld [vmem:[%s1 + $0xe4] sm:$0xf]
  %v98 = vld [vmem:[%s1 + $0xe8] sm:$0xf]
  %v99 = vld [vmem:[%s1 + $0xec] sm:$0xf]
  %v100 = vld [vmem:[%s1 + $0xf0] sm:$0xf]
  %v101 = vld [vmem:[%s1 + $0xf4] sm:$0xf]
  %v102 = vld [vmem:[%s1 + $0xf8] sm:$0xf]
  %v103 = vld [vmem:[%s1 + $0xfc] sm:$0xf]
  %v104 = vld [vmem:[%s1 + $0x100] sm:$0xf]
  %v105 = vld [vmem:[%s1 + $0x104] sm:$0xf]
  %v106 = vld [vmem:[%s1 + $0x108] sm:$0xf]
  %v107 = vld [vmem:[%s1 + $0x10c] sm:$0xf]
  %v108 = vld [vmem:[%s1 + $0x110] sm:$0xf]
  %v109 = vld [vmem:[%s1 + $0x114] sm:$0xf]
  %v110 = vld [vmem:[%s1 + $0x118] sm:$0xf]
  %v111 = vld [vmem:[%s1 + $0x11c] sm:$0xf]
  %v112 = vld [vmem:[%s1 + $0x120] sm:$0xf]
  %v113 = vld [vmem:[%s1 + $0x124] sm:$0xf]
  %v114 = vld [vmem:[%s1 + $0x128] sm:$0xf]
  %v115 = vld [vmem:[%s1 + $0x12c] sm:$0xf]
  %v116 = vld [vmem:[%s1 + $0x130] sm:$0xf]
  %v117 = vld [vmem:[%s1 + $0x134] sm:$0xf]
  %v118 = vld [vmem:[%s1 + $0x138] sm:$0xf]
  %v119 = vld [vmem:[%s1 + $0x13c] sm:$0xf]
  %v120 = vld [vmem:[%s1 + $0x140] sm:$0xf]
  %v121 = vld [vmem:[%s1 + $0x144] sm:$0xf]
  %v122 = vld [vmem:[%s1 + $0x148] sm:$0xf]
  %v123 = vld [vmem:[%s1 + $0x14c] sm:$0xf]
  %v124 = vld [vmem:[%s1 + $0x150] sm:$0xf]
  %v125 = vld [vmem:[%s1 + $0x154] sm:$0xf]
  %v126 = vld [vmem:[%s1 + $0x158] sm:$0xf]
  %v127 = vld [vmem:[%s1 + $0x15c] sm:$0xf]
  %v128 = vld [vmem:[%s1 + $0x160] sm:$0xf]
  %v129 = vld [vmem:[%s1 + $0x164] sm:$0xf]
  %v130 = vld [vmem:[%s1 + $0x168] sm:$0xf]
  %v131 = vld [vmem:[%s1 + $0x16c] sm:$0xf]
  %v132 = vld [vmem:[%s1 + $0x170] sm:$0xf]
  %v133 = vld [vmem:[%s1 + $0x174] sm:$0xf]
  %v134 = vld [vmem:[%s1 + $0x178] sm:$0xf]
  %v135 = vld [vmem:[%s1 + $0x17c] sm:$0xf]
  %v136 = vld [vmem:[%s1 + $0x180] sm:$0xf]
  %v137 = vld [vmem:[%s1 + $0x184] sm:$0xf]
  %v138 = vld [vmem:[%s1 + $0x188] sm:$0xf]
  %v139 = vld [vmem:[%s1 + $0x18c] sm:$0xf]
  %v140 = vld [vmem:[%s1 + $0x190] sm:$0xf]
  %v141 = vld [vmem:[%s1 + $0x194] sm:$0xf]
  %v142 = vld [vmem:[%s1 + $0x198] sm:$0xf]
  %v143 = vld [vmem:[%s1 + $0x19c] sm:$0xf]
  %v144 = vld [vmem:[%s1 + $0x1a0] sm:$0xf]
  %v145 = vld [vmem:[%s1 + $0x1a4] sm:$0xf]
  %v146 = vld [vmem:[%s1 + $0x1a8] sm:$0xf]
  %v147 = vld [vmem:[%s1 + $0x1ac] sm:$0xf]
  %v148 = vld [vmem:[%s1 + $0x1b0] sm:$0xf]
  %v149 = vld [vmem:[%s1 + $0x1b4] sm:$0xf]
  %v150 = vld [vmem:[%s1 + $0x1b8] sm:$0xf]
  %v151 = vld [vmem:[%s1 + $0x1bc] sm:$0xf]
  %v152 = vld [vmem:[%s1 + $0x1c0] sm:$0xf]
  %v153 = vld [vmem:[%s1 + $0x1c4] sm:$0xf]
  %v154 = vld [vmem:[%s1 + $0x1c8] sm:$0xf]
  %v155 = vld [vmem:[%s1 + $0x1cc] sm:$0xf]
  %v156 = vld [vmem:[%s1 + $0x1d0] sm:$0xf]
  %v157 = vld [vmem:[%s1 + $0x1d4] sm:$0xf]
  %v158 = vld [vmem:[%s1 + $0x1d8] sm:$0xf]
  %v159 = vld [vmem:[%s1 + $0x1dc] sm:$0xf]
  %v160 = vld [vmem:[%s1 + $0x1e0] sm:$0xf]
  %v161 = vld [vmem:[%s1 + $0x1e4] sm:$0xf]
  %v162 = vld [vmem:[%s1 + $0x1e8] sm:$0xf]
  %v163 = vld [vmem:[%s1 + $0x1ec] sm:$0xf]
  %v164 = vld [vmem:[%s1 + $0x1f0] sm:$0xf]
  %v165 = vld [vmem:[%s1 + $0x1f4] sm:$0xf]
  %v166 = vld [vmem:[%s1 + $0x1f8] sm:$0xf]
  %v167 = vld [vmem:[%s1 + $0x1fc] sm:$0xf]
  %v168 = vld [vmem:[%s1 + $0x200] sm:$0xf]
  %v169 = vld [vmem:[%s1 + $0x204] sm:$0xf]
  %v170 = vld [vmem:[%s1 + $0x208] sm:$0xf]
  %v171 = vld [vmem:[%s1 + $0x20c] sm:$0xf]
  %v172 = vld [vmem:[%s1 + $0x210] sm:$0xf]
  %v173 = vld [vmem:[%s1 + $0x214] sm:$0xf]
  %v174 = vld [vmem:[%s1 + $0x218] sm:$0xf]
  %v175 = vld [vmem:[%s1 + $0x21c] sm:$0xf]
  %v176 = vld [vmem:[%s1 + $0x220] sm:$0xf]
  %v177 = vld [vmem:[%s1 + $0x224] sm:$0xf]
  %v178 = vld [vmem:[%s1 + $0x228] sm:$0xf]
  %v179 = vld [vmem:[%s1 + $0x22c] sm:$0xf]
  %v180 = vld [vmem:[%s1 + $0x230] sm:$0xf]
  %v181 = vld [vmem:[%s1 + $0x234] sm:$0xf]
  %v182 = vld [vmem:[%s1 + $0x238] sm:$0xf]
  %v183 = vld [vmem:[%s1 + $0x23c] sm:$0xf]
  %v204 = vunpack.c.l.b16 %v20
  %v205 = vunpack.c.h.b16 %v20
  %v206 = vunpack.c.l.b16 %v21
  %v207 = vunpack.c.h.b16 %v21
  %v208 = vunpack.c.l.b16 %v22
  %v209 = vunpack.c.h.b16 %v22
  %v210 = vunpack.c.l.b16 %v23
  %v211 = vunpack.c.h.b16 %v23
  %v212 = vunpack.c.l.b16 %v24
  %v213 = vunpack.c.l.b16 %v25
  %v214 = vunpack.c.h.b16 %v25
  %v215 = vunpack.c.l.b16 %v26
  %v216 = vunpack.c.h.b16 %v26
  %v217 = vunpack.c.l.b16 %v27
  %v218 = vunpack.c.h.b16 %v27
  %v219 = vunpack.c.l.b16 %v28
  %v220 = vunpack.c.h.b16 %v28
  %v221 = vunpack.c.l.b16 %v29
  %v222 = vunpack.c.l.b16 %v30
  %v223 = vunpack.c.h.b16 %v30
  %v224 = vunpack.c.l.b16 %v31
  %v225 = vunpack.c.h.b16 %v31
  %v226 = vunpack.c.l.b16 %v32
  %v227 = vunpack.c.h.b16 %v32
  %v228 = vunpack.c.l.b16 %v33
  %v229 = vunpack.c.h.b16 %v33
  %v230 = vunpack.c.l.b16 %v34
  %v231 = vunpack.c.l.b16 %v35
  %v232 = vunpack.c.h.b16 %v35
  %v233 = vunpack.c.l.b16 %v36
  %v234 = vunpack.c.h.b16 %v36
  %v235 = vunpack.c.l.b16 %v37
  %v236 = vunpack.c.h.b16 %v37
  %v237 = vunpack.c.l.b16 %v38
  %v238 = vunpack.c.h.b16 %v38
  %v239 = vunpack.c.l.b16 %v39
  %v240 = vpack.c.b16 %v213, %v204
  %v241 = vpack.c.b16 %v214, %v205
  %v242 = vpack.c.b16 %v215, %v206
  %v243 = vpack.c.b16 %v216, %v207
  %v244 = vpack.c.b16 %v217, %v208
  %v245 = vpack.c.b16 %v218, %v209
  %v246 = vpack.c.b16 %v219, %v210
  %v247 = vpack.c.b16 %v220, %v211
  %v248 = vpack.c.b16 %v221, %v212
  %v249 = vpack.c.b16 %v231, %v222
  %v250 = vpack.c.b16 %v232, %v223
  %v251 = vpack.c.b16 %v233, %v224
  %v252 = vpack.c.b16 %v234, %v225
  %v253 = vpack.c.b16 %v235, %v226
  %v254 = vpack.c.b16 %v236, %v227
  %v255 = vpack.c.b16 %v237, %v228
  %v256 = vpack.c.b16 %v238, %v229
  %v257 = vpack.c.b16 %v239, %v230
  %v420 = vunpack.c.l.b16 %v40
  %v421 = vunpack.c.l.b16 %v41
  %v422 = vunpack.c.l.b16 %v42
  %v423 = vunpack.c.l.b16 %v43
  %v424 = vunpack.c.l.b16 %v44
  %v425 = vunpack.c.l.b16 %v45
  %v426 = vunpack.c.l.b16 %v46
  %v427 = vunpack.c.l.b16 %v47
  %v428 = vunpack.c.l.b16 %v48
  %v429 = vunpack.c.l.b16 %v49
  %v430 = vunpack.c.l.b16 %v50
  %v431 = vunpack.c.l.b16 %v51
  %v432 = vunpack.c.l.b16 %v52
  %v433 = vunpack.c.l.b16 %v53
  %v434 = vunpack.c.l.b16 %v54
  %v435 = vunpack.c.l.b16 %v55
  %v436 = vunpack.c.l.b16 %v56
  %v437 = vunpack.c.l.b16 %v57
  %v438 = vunpack.c.l.b16 %v58
  %v439 = vunpack.c.l.b16 %v59
  %v440 = vunpack.c.l.b16 %v60
  %v441 = vunpack.c.l.b16 %v61
  %v442 = vunpack.c.l.b16 %v62
  %v443 = vunpack.c.l.b16 %v63
  %v444 = vunpack.c.l.b16 %v64
  %v445 = vunpack.c.l.b16 %v65
  %v446 = vunpack.c.l.b16 %v66
  %v447 = vunpack.c.l.b16 %v67
  %v448 = vunpack.c.l.b16 %v68
  %v449 = vunpack.c.l.b16 %v69
  %v450 = vunpack.c.l.b16 %v70
  %v451 = vunpack.c.l.b16 %v71
  %v452 = vunpack.c.l.b16 %v72
  %v453 = vunpack.c.l.b16 %v73
  %v454 = vunpack.c.l.b16 %v74
  %v455 = vunpack.c.l.b16 %v75
  %v456 = vunpack.c.l.b16 %v76
  %v457 = vunpack.c.l.b16 %v77
  %v458 = vunpack.c.l.b16 %v78
  %v459 = vunpack.c.l.b16 %v79
  %v460 = vunpack.c.l.b16 %v80
  %v461 = vunpack.c.l.b16 %v81
  %v462 = vunpack.c.l.b16 %v82
  %v463 = vunpack.c.l.b16 %v83
  %v464 = vunpack.c.l.b16 %v84
  %v465 = vunpack.c.l.b16 %v85
  %v466 = vunpack.c.l.b16 %v86
  %v467 = vunpack.c.l.b16 %v87
  %v468 = vunpack.c.l.b16 %v88
  %v469 = vunpack.c.l.b16 %v89
  %v470 = vunpack.c.l.b16 %v90
  %v471 = vunpack.c.l.b16 %v91
  %v472 = vunpack.c.l.b16 %v92
  %v473 = vunpack.c.l.b16 %v93
  %v474 = vunpack.c.l.b16 %v94
  %v475 = vunpack.c.l.b16 %v95
  %v476 = vunpack.c.l.b16 %v96
  %v477 = vunpack.c.l.b16 %v97
  %v478 = vunpack.c.l.b16 %v98
  %v479 = vunpack.c.l.b16 %v99
  %v480 = vunpack.c.l.b16 %v100
  %v481 = vunpack.c.l.b16 %v101
  %v482 = vunpack.c.l.b16 %v102
  %v483 = vunpack.c.l.b16 %v103
  %v484 = vunpack.c.l.b16 %v104
  %v485 = vunpack.c.l.b16 %v105
  %v486 = vunpack.c.l.b16 %v106
  %v487 = vunpack.c.l.b16 %v107
  %v488 = vunpack.c.l.b16 %v108
  %v489 = vunpack.c.l.b16 %v109
  %v490 = vunpack.c.l.b16 %v110
  %v491 = vunpack.c.l.b16 %v111
  %v492 = vunpack.c.l.b16 %v112
  %v493 = vunpack.c.l.b16 %v113
  %v494 = vunpack.c.l.b16 %v114
  %v495 = vunpack.c.l.b16 %v115
  %v496 = vunpack.c.l.b16 %v116
  %v497 = vunpack.c.l.b16 %v117
  %v498 = vunpack.c.l.b16 %v118
  %v499 = vunpack.c.l.b16 %v119
  %v500 = vunpack.c.l.b16 %v120
  %v501 = vunpack.c.l.b16 %v121
  %v502 = vunpack.c.l.b16 %v122
  %v503 = vunpack.c.l.b16 %v123
  %v504 = vunpack.c.l.b16 %v124
  %v505 = vunpack.c.l.b16 %v125
  %v506 = vunpack.c.l.b16 %v126
  %v507 = vunpack.c.l.b16 %v127
  %v508 = vunpack.c.l.b16 %v128
  %v509 = vunpack.c.l.b16 %v129
  %v510 = vunpack.c.l.b16 %v130
  %v511 = vunpack.c.l.b16 %v131
  %v512 = vunpack.c.l.b16 %v132
  %v513 = vunpack.c.l.b16 %v133
  %v514 = vunpack.c.l.b16 %v134
  %v515 = vunpack.c.l.b16 %v135
  %v516 = vunpack.c.l.b16 %v136
  %v517 = vunpack.c.l.b16 %v137
  %v518 = vunpack.c.l.b16 %v138
  %v519 = vunpack.c.l.b16 %v139
  %v520 = vunpack.c.l.b16 %v140
  %v521 = vunpack.c.l.b16 %v141
  %v522 = vunpack.c.l.b16 %v142
  %v523 = vunpack.c.l.b16 %v143
  %v524 = vunpack.c.l.b16 %v144
  %v525 = vunpack.c.l.b16 %v145
  %v526 = vunpack.c.l.b16 %v146
  %v527 = vunpack.c.l.b16 %v147
  %v528 = vunpack.c.l.b16 %v148
  %v529 = vunpack.c.l.b16 %v149
  %v530 = vunpack.c.l.b16 %v150
  %v531 = vunpack.c.l.b16 %v151
  %v532 = vunpack.c.l.b16 %v152
  %v533 = vunpack.c.l.b16 %v153
  %v534 = vunpack.c.l.b16 %v154
  %v535 = vunpack.c.l.b16 %v155
  %v536 = vunpack.c.l.b16 %v156
  %v537 = vunpack.c.l.b16 %v157
  %v538 = vunpack.c.l.b16 %v158
  %v539 = vunpack.c.l.b16 %v159
  %v540 = vunpack.c.l.b16 %v160
  %v541 = vunpack.c.l.b16 %v161
  %v542 = vunpack.c.l.b16 %v162
  %v543 = vunpack.c.l.b16 %v163
  %v544 = vunpack.c.l.b16 %v164
  %v545 = vunpack.c.l.b16 %v165
  %v546 = vunpack.c.l.b16 %v166
  %v547 = vunpack.c.l.b16 %v167
  %v548 = vunpack.c.l.b16 %v168
  %v549 = vunpack.c.l.b16 %v169
  %v550 = vunpack.c.l.b16 %v170
  %v551 = vunpack.c.l.b16 %v171
  %v552 = vunpack.c.l.b16 %v172
  %v553 = vunpack.c.l.b16 %v173
  %v554 = vunpack.c.l.b16 %v174
  %v555 = vunpack.c.l.b16 %v175
  %v556 = vunpack.c.l.b16 %v176
  %v557 = vunpack.c.l.b16 %v177
  %v558 = vunpack.c.l.b16 %v178
  %v559 = vunpack.c.l.b16 %v179
  %v560 = vunpack.c.l.b16 %v180
  %v561 = vunpack.c.l.b16 %v181
  %v562 = vunpack.c.l.b16 %v182
  %v563 = vunpack.c.l.b16 %v183
  %v564 = vpack.c.b16 %v421, %v420
  %v565 = vpack.c.b16 %v423, %v422
  %v566 = vpack.c.b16 %v425, %v424
  %v567 = vpack.c.b16 %v427, %v426
  %v568 = vpack.c.b16 %v429, %v428
  %v569 = vpack.c.b16 %v431, %v430
  %v570 = vpack.c.b16 %v433, %v432
  %v571 = vpack.c.b16 %v435, %v434
  %v572 = vpack.c.b16 %v437, %v436
  %v573 = vpack.c.b16 %v439, %v438
  %v574 = vpack.c.b16 %v441, %v440
  %v575 = vpack.c.b16 %v443, %v442
  %v576 = vpack.c.b16 %v445, %v444
  %v577 = vpack.c.b16 %v447, %v446
  %v578 = vpack.c.b16 %v449, %v448
  %v579 = vpack.c.b16 %v451, %v450
  %v580 = vpack.c.b16 %v453, %v452
  %v581 = vpack.c.b16 %v455, %v454
  %v582 = vpack.c.b16 %v457, %v456
  %v583 = vpack.c.b16 %v459, %v458
  %v584 = vpack.c.b16 %v461, %v460
  %v585 = vpack.c.b16 %v463, %v462
  %v586 = vpack.c.b16 %v465, %v464
  %v587 = vpack.c.b16 %v467, %v466
  %v588 = vpack.c.b16 %v469, %v468
  %v589 = vpack.c.b16 %v471, %v470
  %v590 = vpack.c.b16 %v473, %v472
  %v591 = vpack.c.b16 %v475, %v474
  %v592 = vpack.c.b16 %v477, %v476
  %v593 = vpack.c.b16 %v479, %v478
  %v594 = vpack.c.b16 %v481, %v480
  %v595 = vpack.c.b16 %v483, %v482
  %v596 = vpack.c.b16 %v485, %v484
  %v597 = vpack.c.b16 %v487, %v486
  %v598 = vpack.c.b16 %v489, %v488
  %v599 = vpack.c.b16 %v491, %v490
  %v600 = vpack.c.b16 %v493, %v492
  %v601 = vpack.c.b16 %v495, %v494
  %v602 = vpack.c.b16 %v497, %v496
  %v603 = vpack.c.b16 %v499, %v498
  %v604 = vpack.c.b16 %v501, %v500
  %v605 = vpack.c.b16 %v503, %v502
  %v606 = vpack.c.b16 %v505, %v504
  %v607 = vpack.c.b16 %v507, %v506
  %v608 = vpack.c.b16 %v509, %v508
  %v609 = vpack.c.b16 %v511, %v510
  %v610 = vpack.c.b16 %v513, %v512
  %v611 = vpack.c.b16 %v515, %v514
  %v612 = vpack.c.b16 %v517, %v516
  %v613 = vpack.c.b16 %v519, %v518
  %v614 = vpack.c.b16 %v521, %v520
  %v615 = vpack.c.b16 %v523, %v522
  %v616 = vpack.c.b16 %v525, %v524
  %v617 = vpack.c.b16 %v527, %v526
  %v618 = vpack.c.b16 %v529, %v528
  %v619 = vpack.c.b16 %v531, %v530
  %v620 = vpack.c.b16 %v533, %v532
  %v621 = vpack.c.b16 %v535, %v534
  %v622 = vpack.c.b16 %v537, %v536
  %v623 = vpack.c.b16 %v539, %v538
  %v624 = vpack.c.b16 %v541, %v540
  %v625 = vpack.c.b16 %v543, %v542
  %v626 = vpack.c.b16 %v545, %v544
  %v627 = vpack.c.b16 %v547, %v546
  %v628 = vpack.c.b16 %v549, %v548
  %v629 = vpack.c.b16 %v551, %v550
  %v630 = vpack.c.b16 %v553, %v552
  %v631 = vpack.c.b16 %v555, %v554
  %v632 = vpack.c.b16 %v557, %v556
  %v633 = vpack.c.b16 %v559, %v558
  %v634 = vpack.c.b16 %v561, %v560
  %v635 = vpack.c.b16 %v563, %v562
  %708 = vmatpush.bf16.msra.mxu0 %v571
  %709 = vmatpush.bf16.msra.mxu0 %v570
  %710 = vmatpush.bf16.msra.mxu0 %v569
  %711 = vmatpush.bf16.msra.mxu0 %v568
  %712 = vmatpush.bf16.msra.mxu0 %v567
  %713 = vmatpush.bf16.msra.mxu0 %v566
  %714 = vmatpush.bf16.msra.mxu0 %v565
  %715 = vmatpush.bf16.msra.mxu0 %v564
  %716 = vmatmul.bf16.gmra.mxu0 %v240
  %v717 = vpop.f32.mrf.mxu0
  %v718 = vadd.f32 0.0, %v717
  %v719 = vpop.f32.mrf.mxu0
  %v720 = vadd.f32 0.0, %v719
  %721 = vmatmul.bf16.gmra.mxu0 %v249
  %v722 = vpop.f32.mrf.mxu0
  %v723 = vadd.f32 0.0, %v722
  %v724 = vpop.f32.mrf.mxu0
  %v725 = vadd.f32 0.0, %v724
  %726 = vdwg.mxu0
  %727 = vmatpush.bf16.msra.mxu0 %v579
  %728 = vmatpush.bf16.msra.mxu0 %v578
  %729 = vmatpush.bf16.msra.mxu0 %v577
  %730 = vmatpush.bf16.msra.mxu0 %v576
  %731 = vmatpush.bf16.msra.mxu0 %v575
  %732 = vmatpush.bf16.msra.mxu0 %v574
  %733 = vmatpush.bf16.msra.mxu0 %v573
  %734 = vmatpush.bf16.msra.mxu0 %v572
  %735 = vmatmul.bf16.gmra.mxu0 %v241
  %v736 = vpop.f32.mrf.mxu0
  %v737 = vadd.f32 %v718, %v736
  %v738 = vpop.f32.mrf.mxu0
  %v739 = vadd.f32 %v720, %v738
  %740 = vmatmul.bf16.gmra.mxu0 %v250
  %v741 = vpop.f32.mrf.mxu0
  %v742 = vadd.f32 %v723, %v741
  %v743 = vpop.f32.mrf.mxu0
  %v744 = vadd.f32 %v725, %v743
  %745 = vdwg.mxu0
  %746 = vmatpush.bf16.msra.mxu0 %v587
  %747 = vmatpush.bf16.msra.mxu0 %v586
  %748 = vmatpush.bf16.msra.mxu0 %v585
  %749 = vmatpush.bf16.msra.mxu0 %v584
  %750 = vmatpush.bf16.msra.mxu0 %v583
  %751 = vmatpush.bf16.msra.mxu0 %v582
  %752 = vmatpush.bf16.msra.mxu0 %v581
  %753 = vmatpush.bf16.msra.mxu0 %v580
  %754 = vmatmul.bf16.gmra.mxu0 %v242
  %v755 = vpop.f32.mrf.mxu0
  %v756 = vadd.f32 %v737, %v755
  %v757 = vpop.f32.mrf.mxu0
  %v758 = vadd.f32 %v739, %v757
  %759 = vmatmul.bf16.gmra.mxu0 %v251
  %v760 = vpop.f32.mrf.mxu0
  %v761 = vadd.f32 %v742, %v760
  %v762 = vpop.f32.mrf.mxu0
  %v763 = vadd.f32 %v744, %v762
  %764 = vdwg.mxu0
  %765 = vmatpush.bf16.msra.mxu0 %v595
  %766 = vmatpush.bf16.msra.mxu0 %v594
  %767 = vmatpush.bf16.msra.mxu0 %v593
  %768 = vmatpush.bf16.msra.mxu0 %v592
  %769 = vmatpush.bf16.msra.mxu0 %v591
  %770 = vmatpush.bf16.msra.mxu0 %v590
  %771 = vmatpush.bf16.msra.mxu0 %v589
  %772 = vmatpush.bf16.msra.mxu0 %v588
  %773 = vmatmul.bf16.gmra.mxu0 %v243
  %v774 = vpop.f32.mrf.mxu0
  %v775 = vadd.f32 %v756, %v774
  %v776 = vpop.f32.mrf.mxu0
  %v777 = vadd.f32 %v758, %v776
  %778 = vmatmul.bf16.gmra.mxu0 %v252
  %v779 = vpop.f32.mrf.mxu0
  %v780 = vadd.f32 %v761, %v779
  %v781 = vpop.f32.mrf.mxu0
  %v782 = vadd.f32 %v763, %v781
  %783 = vdwg.mxu0
  %784 = vmatpush.bf16.msra.mxu0 %v603
  %785 = vmatpush.bf16.msra.mxu0 %v602
  %786 = vmatpush.bf16.msra.mxu0 %v601
  %787 = vmatpush.bf16.msra.mxu0 %v600
  %788 = vmatpush.bf16.msra.mxu0 %v599
  %789 = vmatpush.bf16.msra.mxu0 %v598
  %790 = vmatpush.bf16.msra.mxu0 %v597
  %791 = vmatpush.bf16.msra.mxu0 %v596
  %792 = vmatmul.bf16.gmra.mxu0 %v244
  %v793 = vpop.f32.mrf.mxu0
  %v794 = vadd.f32 %v775, %v793
  %v795 = vpop.f32.mrf.mxu0
  %v796 = vadd.f32 %v777, %v795
  %797 = vmatmul.bf16.gmra.mxu0 %v253
  %v798 = vpop.f32.mrf.mxu0
  %v799 = vadd.f32 %v780, %v798
  %v800 = vpop.f32.mrf.mxu0
  %v801 = vadd.f32 %v782, %v800
  %802 = vdwg.mxu0
  %803 = vmatpush.bf16.msra.mxu0 %v611
  %804 = vmatpush.bf16.msra.mxu0 %v610
  %805 = vmatpush.bf16.msra.mxu0 %v609
  %806 = vmatpush.bf16.msra.mxu0 %v608
  %807 = vmatpush.bf16.msra.mxu0 %v607
  %808 = vmatpush.bf16.msra.mxu0 %v606
  %809 = vmatpush.bf16.msra.mxu0 %v605
  %810 = vmatpush.bf16.msra.mxu0 %v604
  %811 = vmatmul.bf16.gmra.mxu0 %v245
  %v812 = vpop.f32.mrf.mxu0
  %v813 = vadd.f32 %v794, %v812
  %v814 = vpop.f32.mrf.mxu0
  %v815 = vadd.f32 %v796, %v814
  %816 = vmatmul.bf16.gmra.mxu0 %v254
  %v817 = vpop.f32.mrf.mxu0
  %v818 = vadd.f32 %v799, %v817
  %v819 = vpop.f32.mrf.mxu0
  %v820 = vadd.f32 %v801, %v819
  %821 = vdwg.mxu0
  %822 = vmatpush.bf16.msra.mxu0 %v619
  %823 = vmatpush.bf16.msra.mxu0 %v618
  %824 = vmatpush.bf16.msra.mxu0 %v617
  %825 = vmatpush.bf16.msra.mxu0 %v616
  %826 = vmatpush.bf16.msra.mxu0 %v615
  %827 = vmatpush.bf16.msra.mxu0 %v614
  %828 = vmatpush.bf16.msra.mxu0 %v613
  %829 = vmatpush.bf16.msra.mxu0 %v612
  %830 = vmatmul.bf16.gmra.mxu0 %v246
  %v831 = vpop.f32.mrf.mxu0
  %v832 = vadd.f32 %v813, %v831
  %v833 = vpop.f32.mrf.mxu0
  %v834 = vadd.f32 %v815, %v833
  %835 = vmatmul.bf16.gmra.mxu0 %v255
  %v836 = vpop.f32.mrf.mxu0
  %v837 = vadd.f32 %v818, %v836
  %v838 = vpop.f32.mrf.mxu0
  %v839 = vadd.f32 %v820, %v838
  %840 = vdwg.mxu0
  %841 = vmatpush.bf16.msra.mxu0 %v627
  %842 = vmatpush.bf16.msra.mxu0 %v626
  %843 = vmatpush.bf16.msra.mxu0 %v625
  %844 = vmatpush.bf16.msra.mxu0 %v624
  %845 = vmatpush.bf16.msra.mxu0 %v623
  %846 = vmatpush.bf16.msra.mxu0 %v622
  %847 = vmatpush.bf16.msra.mxu0 %v621
  %848 = vmatpush.bf16.msra.mxu0 %v620
  %849 = vmatmul.bf16.gmra.mxu0 %v247
  %v850 = vpop.f32.mrf.mxu0
  %v851 = vadd.f32 %v832, %v850
  %v852 = vpop.f32.mrf.mxu0
  %v853 = vadd.f32 %v834, %v852
  %854 = vmatmul.bf16.gmra.mxu0 %v256
  %v855 = vpop.f32.mrf.mxu0
  %v856 = vadd.f32 %v837, %v855
  %v857 = vpop.f32.mrf.mxu0
  %v858 = vadd.f32 %v839, %v857
  %859 = vdwg.mxu0
  %860 = vmatpush.bf16.msra.mxu0 %v635
  %861 = vmatpush.bf16.msra.mxu0 %v634
  %862 = vmatpush.bf16.msra.mxu0 %v633
  %863 = vmatpush.bf16.msra.mxu0 %v632
  %864 = vmatpush.bf16.msra.mxu0 %v631
  %865 = vmatpush.bf16.msra.mxu0 %v630
  %866 = vmatpush.bf16.msra.mxu0 %v629
  %867 = vmatpush.bf16.msra.mxu0 %v628
  %868 = vmatmul.bf16.gmra.mxu0 %v248
  %v869 = vpop.f32.mrf.mxu0
  %v870 = vadd.f32 %v851, %v869
  %v871 = vpop.f32.mrf.mxu0
  %v872 = vadd.f32 %v853, %v871
  %873 = vmatmul.bf16.gmra.mxu0 %v257
  %v874 = vpop.f32.mrf.mxu0
  %v875 = vadd.f32 %v856, %v874
  %v876 = vpop.f32.mrf.mxu0
  %v877 = vadd.f32 %v858, %v876
  %878 = vdwg.mxu0
  %v879 = vld [vmem:[%s2] sm:$0x1]
  %v881 = vperm.slane %v879, 0
  %v883 = vmul.f32 %v870, %v881
  %v884 = vmul.f32 %v872, %v881
  %v885 = vmul.f32 %v875, %v881
  %v886 = vmul.f32 %v877, %v881
  %v887 = vld [vmem:[%s3] sm:$0x1]
  %v889 = vperm.slane %v887, 0
  %v891 = vadd.f32 %v883, %v889
  %v892 = vadd.f32 %v884, %v889
  %v893 = vadd.f32 %v885, %v889
  %v894 = vadd.f32 %v886, %v889
  %v895 = vld [vmem:[%s4] sm:$0xf]
  %v896 = vld [vmem:[%s4 + $0x4] sm:$0xf]
  %v897 = vld [vmem:[%s4 + $0x8] sm:$0xf]
  %v898 = vld [vmem:[%s4 + $0xc] sm:$0xf]
  %v899 = vunpack.c.l.bf16 %v895
  %v900 = vunpack.c.l.bf16 %v896
  %v901 = vunpack.c.l.bf16 %v897
  %v902 = vunpack.c.l.bf16 %v898
  %v903 = vadd.f32 %v891, %v899
  %v904 = vadd.f32 %v892, %v900
  %v905 = vadd.f32 %v893, %v901
  %v906 = vadd.f32 %v894, %v902
  %v907 = vmax.f32 %v903, 0.0
  %v908 = vmax.f32 %v904, 0.0
  %v909 = vmax.f32 %v905, 0.0
  %v910 = vmax.f32 %v906, 0.0
  %v911 = vpack.c.bf16 %v907, %v907
  %v912 = vpack.c.bf16 %v908, %v908
  %v913 = vpack.c.bf16 %v909, %v909
  %v914 = vpack.c.bf16 %v910, %v910
  %915 = vst [vmem:[%s5] sm:$0xf] %v911
  %916 = vst [vmem:[%s5 + $0x4] sm:$0xf] %v912
  %917 = vst [vmem:[%s5 + $0x8] sm:$0xf] %v913
  %918 = vst [vmem:[%s5 + $0xc] sm:$0xf] %v914
  // Predicated region
  $region22: #{feature_extractor_with_attention.25} parent=0 // pred_check
    _
  $region23: #{feature_extractor_with_attention.25} parent=0 // pred_check_branch
    %920 = sbr.rel (0) target = $region25
  $region24: #{feature_extractor_with_attention.25} parent=0 // pred_region
    _
  $region25: #{feature_extractor_with_attention.25} parent=0 // pred_fallthru
    _
  // Predicated region
  $region26: #{feature_extractor_with_attention.25} parent=0 // pred_check
    _
  $region27: #{feature_extractor_with_attention.25} parent=0 // pred_check_branch
    %922 = sbr.rel (0) target = $region29
  $region28: #{feature_extractor_with_attention.25} parent=0 // pred_region
    _
  $region29: #{feature_extractor_with_attention.25} parent=0 // pred_fallthru
    _

// kernel: feature_extractor_with_attention.29
$region0: #{feature_extractor_with_attention.29}
  #allocation0 [shape = 'u32[]', space=smem, size = 0x4, offset = 0x4, fixed_abs, tag = 'smem constant byte address 0x4 - core index']
  #allocation1 [shape = 'u32[72,128]{1,0:T(1,128)}', space=vmem, size = 0x9000, scoped, tag = 'internal scratch']
  %s0 = inlined_call_operand.vmem [shape: bf16[8,128], index: 0, kind: input, shape index: {}]
  %s1 = inlined_call_operand.vmem [shape: bf16[128,256], index: 1, kind: input, shape index: {}]
  %s2 = inlined_call_operand.vmem [shape: f32[1,256], index: 2, kind: input, shape index: {}]
  %s3 = inlined_call_operand.vmem [shape: f32[1,256], index: 3, kind: input, shape index: {}]
  %s4 = inlined_call_operand.vmem [shape: bf16[8,256], index: 4, kind: output, shape index: {}]
  %s5 = sld [smem:[#allocation0]]
  $region26: #{feature_extractor_with_attention.29} parent=0
    _
  %s7 = ssub.s32 1, %s5
  %s8 = scalar_select 0, %s7, %s5
  // Predicated region
  $region2: #{feature_extractor_with_attention.29} parent=0 // pred_check
    _
  $region3: #{feature_extractor_with_attention.29} parent=0 // pred_check_branch
    %10 = sbr.rel (0) target = $region5
  $region4: #{feature_extractor_with_attention.29} parent=0 // pred_region
    _
  $region5: #{feature_extractor_with_attention.29} parent=0 // pred_fallthru
    _
  // Predicated region
  $region6: #{feature_extractor_with_attention.29} parent=0 // pred_check
    _
  $region7: #{feature_extractor_with_attention.29} parent=0 // pred_check_branch
    %12 = sbr.rel (0) target = $region9
  $region8: #{feature_extractor_with_attention.29} parent=0 // pred_region
    _
  $region9: #{feature_extractor_with_attention.29} parent=0 // pred_fallthru
    _
  // Predicated region
  $region10: #{feature_extractor_with_attention.29} parent=0 // pred_check
    _
  $region11: #{feature_extractor_with_attention.29} parent=0 // pred_check_branch
    %14 = sbr.rel (0) target = $region13
  $region12: #{feature_extractor_with_attention.29} parent=0 // pred_region
    _
  $region13: #{feature_extractor_with_attention.29} parent=0 // pred_fallthru
    _
  // Predicated region
  $region14: #{feature_extractor_with_attention.29} parent=0 // pred_check
    _
  $region15: #{feature_extractor_with_attention.29} parent=0 // pred_check_branch
    %16 = sbr.rel (0) target = $region17
  $region16: #{feature_extractor_with_attention.29} parent=0 // pred_region
    _
  $region17: #{feature_extractor_with_attention.29} parent=0 // pred_fallthru
    _
  %v17 = vld [vmem:[%s0] sm:$0xf]
  %v18 = vld [vmem:[%s1] sm:$0xff]
  %v19 = vld [vmem:[%s1 + $0x8] sm:$0xff]
  %v20 = vld [vmem:[%s1 + $0x10] sm:$0xff]
  %v21 = vld [vmem:[%s1 + $0x18] sm:$0xff]
  %v22 = vld [vmem:[%s1 + $0x20] sm:$0xff]
  %v23 = vld [vmem:[%s1 + $0x28] sm:$0xff]
  %v24 = vld [vmem:[%s1 + $0x30] sm:$0xff]
  %v25 = vld [vmem:[%s1 + $0x38] sm:$0xff]
  %v26 = vld [vmem:[%s1 + $0x40] sm:$0xff]
  %v27 = vld [vmem:[%s1 + $0x48] sm:$0xff]
  %v28 = vld [vmem:[%s1 + $0x50] sm:$0xff]
  %v29 = vld [vmem:[%s1 + $0x58] sm:$0xff]
  %v30 = vld [vmem:[%s1 + $0x60] sm:$0xff]
  %v31 = vld [vmem:[%s1 + $0x68] sm:$0xff]
  %v32 = vld [vmem:[%s1 + $0x70] sm:$0xff]
  %v33 = vld [vmem:[%s1 + $0x78] sm:$0xff]
  %v50 = vunpack.c.l.b16 %v18
  %v51 = vunpack.c.h.b16 %v18
  %v52 = vunpack.c.l.b16 %v19
  %v53 = vunpack.c.h.b16 %v19
  %v54 = vunpack.c.l.b16 %v20
  %v55 = vunpack.c.h.b16 %v20
  %v56 = vunpack.c.l.b16 %v21
  %v57 = vunpack.c.h.b16 %v21
  %v58 = vunpack.c.l.b16 %v22
  %v59 = vunpack.c.h.b16 %v22
  %v60 = vunpack.c.l.b16 %v23
  %v61 = vunpack.c.h.b16 %v23
  %v62 = vunpack.c.l.b16 %v24
  %v63 = vunpack.c.h.b16 %v24
  %v64 = vunpack.c.l.b16 %v25
  %v65 = vunpack.c.h.b16 %v25
  %v66 = vunpack.c.l.b16 %v26
  %v67 = vunpack.c.h.b16 %v26
  %v68 = vunpack.c.l.b16 %v27
  %v69 = vunpack.c.h.b16 %v27
  %v70 = vunpack.c.l.b16 %v28
  %v71 = vunpack.c.h.b16 %v28
  %v72 = vunpack.c.l.b16 %v29
  %v73 = vunpack.c.h.b16 %v29
  %v74 = vunpack.c.l.b16 %v30
  %v75 = vunpack.c.h.b16 %v30
  %v76 = vunpack.c.l.b16 %v31
  %v77 = vunpack.c.h.b16 %v31
  %v78 = vunpack.c.l.b16 %v32
  %v79 = vunpack.c.h.b16 %v32
  %v80 = vunpack.c.l.b16 %v33
  %v81 = vunpack.c.h.b16 %v33
  %v82 = vpack.c.b16 %v52, %v50
  %v83 = vpack.c.b16 %v53, %v51
  %v84 = vpack.c.b16 %v56, %v54
  %v85 = vpack.c.b16 %v57, %v55
  %v86 = vpack.c.b16 %v60, %v58
  %v87 = vpack.c.b16 %v61, %v59
  %v88 = vpack.c.b16 %v64, %v62
  %v89 = vpack.c.b16 %v65, %v63
  %v90 = vpack.c.b16 %v68, %v66
  %v91 = vpack.c.b16 %v69, %v67
  %v92 = vpack.c.b16 %v72, %v70
  %v93 = vpack.c.b16 %v73, %v71
  %v94 = vpack.c.b16 %v76, %v74
  %v95 = vpack.c.b16 %v77, %v75
  %v96 = vpack.c.b16 %v80, %v78
  %v97 = vpack.c.b16 %v81, %v79
  %114 = vmatpush.bf16.msra.mxu0 %v96
  %115 = vmatpush.bf16.msra.mxu0 %v94
  %116 = vmatpush.bf16.msra.mxu0 %v92
  %117 = vmatpush.bf16.msra.mxu0 %v90
  %118 = vmatpush.bf16.msra.mxu0 %v88
  %119 = vmatpush.bf16.msra.mxu0 %v86
  %120 = vmatpush.bf16.msra.mxu0 %v84
  %121 = vmatpush.bf16.msra.mxu0 %v82
  %122 = vmatmul.bf16.gmra.mxu0 %v17
  %v123 = vpop.f32.mrf.mxu0
  %v124 = vadd.f32 0.0, %v123
  %v125 = vpop.f32.mrf.mxu0
  %126 = vdwg.mxu0
  %127 = vmatpush.bf16.msra.mxu0 %v97
  %128 = vmatpush.bf16.msra.mxu0 %v95
  %129 = vmatpush.bf16.msra.mxu0 %v93
  %130 = vmatpush.bf16.msra.mxu0 %v91
  %131 = vmatpush.bf16.msra.mxu0 %v89
  %132 = vmatpush.bf16.msra.mxu0 %v87
  %133 = vmatpush.bf16.msra.mxu0 %v85
  %134 = vmatpush.bf16.msra.mxu0 %v83
  %135 = vmatmul.bf16.gmra.mxu0 %v17
  %v136 = vpop.f32.mrf.mxu0
  %v137 = vadd.f32 0.0, %v136
  %v138 = vpop.f32.mrf.mxu0
  %139 = vdwg.mxu0
  %v140 = vld [vmem:[%s2] sm:$0x3]
  %v142 = vperm.slane %v140, 0
  %v143 = vperm.slane %v140, 1
  %v146 = vmul.f32 %v124, %v142
  %v147 = vmul.f32 %v137, %v143
  %v148 = vld [vmem:[%s3] sm:$0x3]
  %v150 = vperm.slane %v148, 0
  %v151 = vperm.slane %v148, 1
  %v154 = vadd.f32 %v146, %v150
  %v155 = vadd.f32 %v147, %v151
  %v156 = vpack.c.bf16 %v155, %v154
  %157 = vst [vmem:[%s4] sm:$0xff] %v156
  // Predicated region
  $region18: #{feature_extractor_with_attention.29} parent=0 // pred_check
    _
  $region19: #{feature_extractor_with_attention.29} parent=0 // pred_check_branch
    %159 = sbr.rel (0) target = $region21
  $region20: #{feature_extractor_with_attention.29} parent=0 // pred_region
    _
  $region21: #{feature_extractor_with_attention.29} parent=0 // pred_fallthru
    _
  // Predicated region
  $region22: #{feature_extractor_with_attention.29} parent=0 // pred_check
    _
  $region23: #{feature_extractor_with_attention.29} parent=0 // pred_check_branch
    %161 = sbr.rel (0) target = $region25
  $region24: #{feature_extractor_with_attention.29} parent=0 // pred_region
    _
  $region25: #{feature_extractor_with_attention.29} parent=0 // pred_fallthru
    _

// kernel: feature_extractor_with_attention.28
$region0: #{feature_extractor_with_attention.28}
  #allocation0 [shape = 'u32[]', space=smem, size = 0x4, offset = 0x4, fixed_abs, tag = 'smem constant byte address 0x4 - core index']
  #allocation1 [shape = 'u32[72,128]{1,0:T(1,128)}', space=vmem, size = 0x9000, scoped, tag = 'internal scratch']
  %s0 = inlined_call_operand.vmem [shape: bf16[8,1152], index: 0, kind: input, shape index: {}]
  %s1 = inlined_call_operand.vmem [shape: bf16[1152,256], index: 1, kind: input, shape index: {}]
  %s2 = inlined_call_operand.vmem [shape: f32[1,256], index: 2, kind: input, shape index: {}]
  %s3 = inlined_call_operand.vmem [shape: f32[1,256], index: 3, kind: input, shape index: {}]
  %s4 = inlined_call_operand.vmem [shape: bf16[8,256], index: 4, kind: output, shape index: {}]
  %s5 = sld [smem:[#allocation0]]
  $region26: #{feature_extractor_with_attention.28} parent=0
    _
  %s7 = ssub.s32 1, %s5
  %s8 = scalar_select 0, %s7, %s5
  // Predicated region
  $region2: #{feature_extractor_with_attention.28} parent=0 // pred_check
    _
  $region3: #{feature_extractor_with_attention.28} parent=0 // pred_check_branch
    %10 = sbr.rel (0) target = $region5
  $region4: #{feature_extractor_with_attention.28} parent=0 // pred_region
    _
  $region5: #{feature_extractor_with_attention.28} parent=0 // pred_fallthru
    _
  // Predicated region
  $region6: #{feature_extractor_with_attention.28} parent=0 // pred_check
    _
  $region7: #{feature_extractor_with_attention.28} parent=0 // pred_check_branch
    %12 = sbr.rel (0) target = $region9
  $region8: #{feature_extractor_with_attention.28} parent=0 // pred_region
    _
  $region9: #{feature_extractor_with_attention.28} parent=0 // pred_fallthru
    _
  // Predicated region
  $region10: #{feature_extractor_with_attention.28} parent=0 // pred_check
    _
  $region11: #{feature_extractor_with_attention.28} parent=0 // pred_check_branch
    %14 = sbr.rel (0) target = $region13
  $region12: #{feature_extractor_with_attention.28} parent=0 // pred_region
    _
  $region13: #{feature_extractor_with_attention.28} parent=0 // pred_fallthru
    _
  // Predicated region
  $region14: #{feature_extractor_with_attention.28} parent=0 // pred_check
    _
  $region15: #{feature_extractor_with_attention.28} parent=0 // pred_check_branch
    %16 = sbr.rel (0) target = $region17
  $region16: #{feature_extractor_with_attention.28} parent=0 // pred_region
    _
  $region17: #{feature_extractor_with_attention.28} parent=0 // pred_fallthru
    _
  %v17 = vld [vmem:[%s0] sm:$0xff]
  %v18 = vld [vmem:[%s0 + $0x8] sm:$0xff]
  %v19 = vld [vmem:[%s0 + $0x10] sm:$0xff]
  %v20 = vld [vmem:[%s0 + $0x18] sm:$0xff]
  %v21 = vld [vmem:[%s0 + $0x20] sm:$0xf]
  %v22 = vld [vmem:[%s1] sm:$0xff]
  %v23 = vld [vmem:[%s1 + $0x8] sm:$0xff]
  %v24 = vld [vmem:[%s1 + $0x10] sm:$0xff]
  %v25 = vld [vmem:[%s1 + $0x18] sm:$0xff]
  %v26 = vld [vmem:[%s1 + $0x20] sm:$0xff]
  %v27 = vld [vmem:[%s1 + $0x28] sm:$0xff]
  %v28 = vld [vmem:[%s1 + $0x30] sm:$0xff]
  %v29 = vld [vmem:[%s1 + $0x38] sm:$0xff]
  %v30 = vld [vmem:[%s1 + $0x40] sm:$0xff]
  %v31 = vld [vmem:[%s1 + $0x48] sm:$0xff]
  %v32 = vld [vmem:[%s1 + $0x50] sm:$0xff]
  %v33 = vld [vmem:[%s1 + $0x58] sm:$0xff]
  %v34 = vld [vmem:[%s1 + $0x60] sm:$0xff]
  %v35 = vld [vmem:[%s1 + $0x68] sm:$0xff]
  %v36 = vld [vmem:[%s1 + $0x70] sm:$0xff]
  %v37 = vld [vmem:[%s1 + $0x78] sm:$0xff]
  %v38 = vld [vmem:[%s1 + $0x80] sm:$0xff]
  %v39 = vld [vmem:[%s1 + $0x88] sm:$0xff]
  %v40 = vld [vmem:[%s1 + $0x90] sm:$0xff]
  %v41 = vld [vmem:[%s1 + $0x98] sm:$0xff]
  %v42 = vld [vmem:[%s1 + $0xa0] sm:$0xff]
  %v43 = vld [vmem:[%s1 + $0xa8] sm:$0xff]
  %v44 = vld [vmem:[%s1 + $0xb0] sm:$0xff]
  %v45 = vld [vmem:[%s1 + $0xb8] sm:$0xff]
  %v46 = vld [vmem:[%s1 + $0xc0] sm:$0xff]
  %v47 = vld [vmem:[%s1 + $0xc8] sm:$0xff]
  %v48 = vld [vmem:[%s1 + $0xd0] sm:$0xff]
  %v49 = vld [vmem:[%s1 + $0xd8] sm:$0xff]
  %v50 = vld [vmem:[%s1 + $0xe0] sm:$0xff]
  %v51 = vld [vmem:[%s1 + $0xe8] sm:$0xff]
  %v52 = vld [vmem:[%s1 + $0xf0] sm:$0xff]
  %v53 = vld [vmem:[%s1 + $0xf8] sm:$0xff]
  %v54 = vld [vmem:[%s1 + $0x100] sm:$0xff]
  %v55 = vld [vmem:[%s1 + $0x108] sm:$0xff]
  %v56 = vld [vmem:[%s1 + $0x110] sm:$0xff]
  %v57 = vld [vmem:[%s1 + $0x118] sm:$0xff]
  %v58 = vld [vmem:[%s1 + $0x120] sm:$0xff]
  %v59 = vld [vmem:[%s1 + $0x128] sm:$0xff]
  %v60 = vld [vmem:[%s1 + $0x130] sm:$0xff]
  %v61 = vld [vmem:[%s1 + $0x138] sm:$0xff]
  %v62 = vld [vmem:[%s1 + $0x140] sm:$0xff]
  %v63 = vld [vmem:[%s1 + $0x148] sm:$0xff]
  %v64 = vld [vmem:[%s1 + $0x150] sm:$0xff]
  %v65 = vld [vmem:[%s1 + $0x158] sm:$0xff]
  %v66 = vld [vmem:[%s1 + $0x160] sm:$0xff]
  %v67 = vld [vmem:[%s1 + $0x168] sm:$0xff]
  %v68 = vld [vmem:[%s1 + $0x170] sm:$0xff]
  %v69 = vld [vmem:[%s1 + $0x178] sm:$0xff]
  %v70 = vld [vmem:[%s1 + $0x180] sm:$0xff]
  %v71 = vld [vmem:[%s1 + $0x188] sm:$0xff]
  %v72 = vld [vmem:[%s1 + $0x190] sm:$0xff]
  %v73 = vld [vmem:[%s1 + $0x198] sm:$0xff]
  %v74 = vld [vmem:[%s1 + $0x1a0] sm:$0xff]
  %v75 = vld [vmem:[%s1 + $0x1a8] sm:$0xff]
  %v76 = vld [vmem:[%s1 + $0x1b0] sm:$0xff]
  %v77 = vld [vmem:[%s1 + $0x1b8] sm:$0xff]
  %v78 = vld [vmem:[%s1 + $0x1c0] sm:$0xff]
  %v79 = vld [vmem:[%s1 + $0x1c8] sm:$0xff]
  %v80 = vld [vmem:[%s1 + $0x1d0] sm:$0xff]
  %v81 = vld [vmem:[%s1 + $0x1d8] sm:$0xff]
  %v82 = vld [vmem:[%s1 + $0x1e0] sm:$0xff]
  %v83 = vld [vmem:[%s1 + $0x1e8] sm:$0xff]
  %v84 = vld [vmem:[%s1 + $0x1f0] sm:$0xff]
  %v85 = vld [vmem:[%s1 + $0x1f8] sm:$0xff]
  %v86 = vld [vmem:[%s1 + $0x200] sm:$0xff]
  %v87 = vld [vmem:[%s1 + $0x208] sm:$0xff]
  %v88 = vld [vmem:[%s1 + $0x210] sm:$0xff]
  %v89 = vld [vmem:[%s1 + $0x218] sm:$0xff]
  %v90 = vld [vmem:[%s1 + $0x220] sm:$0xff]
  %v91 = vld [vmem:[%s1 + $0x228] sm:$0xff]
  %v92 = vld [vmem:[%s1 + $0x230] sm:$0xff]
  %v93 = vld [vmem:[%s1 + $0x238] sm:$0xff]
  %v94 = vld [vmem:[%s1 + $0x240] sm:$0xff]
  %v95 = vld [vmem:[%s1 + $0x248] sm:$0xff]
  %v96 = vld [vmem:[%s1 + $0x250] sm:$0xff]
  %v97 = vld [vmem:[%s1 + $0x258] sm:$0xff]
  %v98 = vld [vmem:[%s1 + $0x260] sm:$0xff]
  %v99 = vld [vmem:[%s1 + $0x268] sm:$0xff]
  %v100 = vld [vmem:[%s1 + $0x270] sm:$0xff]
  %v101 = vld [vmem:[%s1 + $0x278] sm:$0xff]
  %v102 = vld [vmem:[%s1 + $0x280] sm:$0xff]
  %v103 = vld [vmem:[%s1 + $0x288] sm:$0xff]
  %v104 = vld [vmem:[%s1 + $0x290] sm:$0xff]
  %v105 = vld [vmem:[%s1 + $0x298] sm:$0xff]
  %v106 = vld [vmem:[%s1 + $0x2a0] sm:$0xff]
  %v107 = vld [vmem:[%s1 + $0x2a8] sm:$0xff]
  %v108 = vld [vmem:[%s1 + $0x2b0] sm:$0xff]
  %v109 = vld [vmem:[%s1 + $0x2b8] sm:$0xff]
  %v110 = vld [vmem:[%s1 + $0x2c0] sm:$0xff]
  %v111 = vld [vmem:[%s1 + $0x2c8] sm:$0xff]
  %v112 = vld [vmem:[%s1 + $0x2d0] sm:$0xff]
  %v113 = vld [vmem:[%s1 + $0x2d8] sm:$0xff]
  %v114 = vld [vmem:[%s1 + $0x2e0] sm:$0xff]
  %v115 = vld [vmem:[%s1 + $0x2e8] sm:$0xff]
  %v116 = vld [vmem:[%s1 + $0x2f0] sm:$0xff]
  %v117 = vld [vmem:[%s1 + $0x2f8] sm:$0xff]
  %v118 = vld [vmem:[%s1 + $0x300] sm:$0xff]
  %v119 = vld [vmem:[%s1 + $0x308] sm:$0xff]
  %v120 = vld [vmem:[%s1 + $0x310] sm:$0xff]
  %v121 = vld [vmem:[%s1 + $0x318] sm:$0xff]
  %v122 = vld [vmem:[%s1 + $0x320] sm:$0xff]
  %v123 = vld [vmem:[%s1 + $0x328] sm:$0xff]
  %v124 = vld [vmem:[%s1 + $0x330] sm:$0xff]
  %v125 = vld [vmem:[%s1 + $0x338] sm:$0xff]
  %v126 = vld [vmem:[%s1 + $0x340] sm:$0xff]
  %v127 = vld [vmem:[%s1 + $0x348] sm:$0xff]
  %v128 = vld [vmem:[%s1 + $0x350] sm:$0xff]
  %v129 = vld [vmem:[%s1 + $0x358] sm:$0xff]
  %v130 = vld [vmem:[%s1 + $0x360] sm:$0xff]
  %v131 = vld [vmem:[%s1 + $0x368] sm:$0xff]
  %v132 = vld [vmem:[%s1 + $0x370] sm:$0xff]
  %v133 = vld [vmem:[%s1 + $0x378] sm:$0xff]
  %v134 = vld [vmem:[%s1 + $0x380] sm:$0xff]
  %v135 = vld [vmem:[%s1 + $0x388] sm:$0xff]
  %v136 = vld [vmem:[%s1 + $0x390] sm:$0xff]
  %v137 = vld [vmem:[%s1 + $0x398] sm:$0xff]
  %v138 = vld [vmem:[%s1 + $0x3a0] sm:$0xff]
  %v139 = vld [vmem:[%s1 + $0x3a8] sm:$0xff]
  %v140 = vld [vmem:[%s1 + $0x3b0] sm:$0xff]
  %v141 = vld [vmem:[%s1 + $0x3b8] sm:$0xff]
  %v142 = vld [vmem:[%s1 + $0x3c0] sm:$0xff]
  %v143 = vld [vmem:[%s1 + $0x3c8] sm:$0xff]
  %v144 = vld [vmem:[%s1 + $0x3d0] sm:$0xff]
  %v145 = vld [vmem:[%s1 + $0x3d8] sm:$0xff]
  %v146 = vld [vmem:[%s1 + $0x3e0] sm:$0xff]
  %v147 = vld [vmem:[%s1 + $0x3e8] sm:$0xff]
  %v148 = vld [vmem:[%s1 + $0x3f0] sm:$0xff]
  %v149 = vld [vmem:[%s1 + $0x3f8] sm:$0xff]
  %v150 = vld [vmem:[%s1 + $0x400] sm:$0xff]
  %v151 = vld [vmem:[%s1 + $0x408] sm:$0xff]
  %v152 = vld [vmem:[%s1 + $0x410] sm:$0xff]
  %v153 = vld [vmem:[%s1 + $0x418] sm:$0xff]
  %v154 = vld [vmem:[%s1 + $0x420] sm:$0xff]
  %v155 = vld [vmem:[%s1 + $0x428] sm:$0xff]
  %v156 = vld [vmem:[%s1 + $0x430] sm:$0xff]
  %v157 = vld [vmem:[%s1 + $0x438] sm:$0xff]
  %v158 = vld [vmem:[%s1 + $0x440] sm:$0xff]
  %v159 = vld [vmem:[%s1 + $0x448] sm:$0xff]
  %v160 = vld [vmem:[%s1 + $0x450] sm:$0xff]
  %v161 = vld [vmem:[%s1 + $0x458] sm:$0xff]
  %v162 = vld [vmem:[%s1 + $0x460] sm:$0xff]
  %v163 = vld [vmem:[%s1 + $0x468] sm:$0xff]
  %v164 = vld [vmem:[%s1 + $0x470] sm:$0xff]
  %v165 = vld [vmem:[%s1 + $0x478] sm:$0xff]
  %v171 = vunpack.c.l.b16 %v17
  %v172 = vunpack.c.h.b16 %v17
  %v173 = vunpack.c.l.b16 %v18
  %v174 = vunpack.c.h.b16 %v18
  %v175 = vunpack.c.l.b16 %v19
  %v176 = vunpack.c.h.b16 %v19
  %v177 = vunpack.c.l.b16 %v20
  %v178 = vunpack.c.h.b16 %v20
  %v179 = vunpack.c.l.b16 %v21
  %v180 = vpack.c.b16 %v171, %v171
  %v181 = vpack.c.b16 %v172, %v172
  %v182 = vpack.c.b16 %v173, %v173
  %v183 = vpack.c.b16 %v174, %v174
  %v184 = vpack.c.b16 %v175, %v175
  %v185 = vpack.c.b16 %v176, %v176
  %v186 = vpack.c.b16 %v177, %v177
  %v187 = vpack.c.b16 %v178, %v178
  %v188 = vpack.c.b16 %v179, %v179
  %v342 = vunpack.c.l.b16 %v22
  %v343 = vunpack.c.h.b16 %v22
  %v344 = vunpack.c.l.b16 %v23
  %v345 = vunpack.c.h.b16 %v23
  %v346 = vunpack.c.l.b16 %v24
  %v347 = vunpack.c.h.b16 %v24
  %v348 = vunpack.c.l.b16 %v25
  %v349 = vunpack.c.h.b16 %v25
  %v350 = vunpack.c.l.b16 %v26
  %v351 = vunpack.c.h.b16 %v26
  %v352 = vunpack.c.l.b16 %v27
  %v353 = vunpack.c.h.b16 %v27
  %v354 = vunpack.c.l.b16 %v28
  %v355 = vunpack.c.h.b16 %v28
  %v356 = vunpack.c.l.b16 %v29
  %v357 = vunpack.c.h.b16 %v29
  %v358 = vunpack.c.l.b16 %v30
  %v359 = vunpack.c.h.b16 %v30
  %v360 = vunpack.c.l.b16 %v31
  %v361 = vunpack.c.h.b16 %v31
  %v362 = vunpack.c.l.b16 %v32
  %v363 = vunpack.c.h.b16 %v32
  %v364 = vunpack.c.l.b16 %v33
  %v365 = vunpack.c.h.b16 %v33
  %v366 = vunpack.c.l.b16 %v34
  %v367 = vunpack.c.h.b16 %v34
  %v368 = vunpack.c.l.b16 %v35
  %v369 = vunpack.c.h.b16 %v35
  %v370 = vunpack.c.l.b16 %v36
  %v371 = vunpack.c.h.b16 %v36
  %v372 = vunpack.c.l.b16 %v37
  %v373 = vunpack.c.h.b16 %v37
  %v374 = vunpack.c.l.b16 %v38
  %v375 = vunpack.c.h.b16 %v38
  %v376 = vunpack.c.l.b16 %v39
  %v377 = vunpack.c.h.b16 %v39
  %v378 = vunpack.c.l.b16 %v40
  %v379 = vunpack.c.h.b16 %v40
  %v380 = vunpack.c.l.b16 %v41
  %v381 = vunpack.c.h.b16 %v41
  %v382 = vunpack.c.l.b16 %v42
  %v383 = vunpack.c.h.b16 %v42
  %v384 = vunpack.c.l.b16 %v43
  %v385 = vunpack.c.h.b16 %v43
  %v386 = vunpack.c.l.b16 %v44
  %v387 = vunpack.c.h.b16 %v44
  %v388 = vunpack.c.l.b16 %v45
  %v389 = vunpack.c.h.b16 %v45
  %v390 = vunpack.c.l.b16 %v46
  %v391 = vunpack.c.h.b16 %v46
  %v392 = vunpack.c.l.b16 %v47
  %v393 = vunpack.c.h.b16 %v47
  %v394 = vunpack.c.l.b16 %v48
  %v395 = vunpack.c.h.b16 %v48
  %v396 = vunpack.c.l.b16 %v49
  %v397 = vunpack.c.h.b16 %v49
  %v398 = vunpack.c.l.b16 %v50
  %v399 = vunpack.c.h.b16 %v50
  %v400 = vunpack.c.l.b16 %v51
  %v401 = vunpack.c.h.b16 %v51
  %v402 = vunpack.c.l.b16 %v52
  %v403 = vunpack.c.h.b16 %v52
  %v404 = vunpack.c.l.b16 %v53
  %v405 = vunpack.c.h.b16 %v53
  %v406 = vunpack.c.l.b16 %v54
  %v407 = vunpack.c.h.b16 %v54
  %v408 = vunpack.c.l.b16 %v55
  %v409 = vunpack.c.h.b16 %v55
  %v410 = vunpack.c.l.b16 %v56
  %v411 = vunpack.c.h.b16 %v56
  %v412 = vunpack.c.l.b16 %v57
  %v413 = vunpack.c.h.b16 %v57
  %v414 = vunpack.c.l.b16 %v58
  %v415 = vunpack.c.h.b16 %v58
  %v416 = vunpack.c.l.b16 %v59
  %v417 = vunpack.c.h.b16 %v59
  %v418 = vunpack.c.l.b16 %v60
  %v419 = vunpack.c.h.b16 %v60
  %v420 = vunpack.c.l.b16 %v61
  %v421 = vunpack.c.h.b16 %v61
  %v422 = vunpack.c.l.b16 %v62
  %v423 = vunpack.c.h.b16 %v62
  %v424 = vunpack.c.l.b16 %v63
  %v425 = vunpack.c.h.b16 %v63
  %v426 = vunpack.c.l.b16 %v64
  %v427 = vunpack.c.h.b16 %v64
  %v428 = vunpack.c.l.b16 %v65
  %v429 = vunpack.c.h.b16 %v65
  %v430 = vunpack.c.l.b16 %v66
  %v431 = vunpack.c.h.b16 %v66
  %v432 = vunpack.c.l.b16 %v67
  %v433 = vunpack.c.h.b16 %v67
  %v434 = vunpack.c.l.b16 %v68
  %v435 = vunpack.c.h.b16 %v68
  %v436 = vunpack.c.l.b16 %v69
  %v437 = vunpack.c.h.b16 %v69
  %v438 = vunpack.c.l.b16 %v70
  %v439 = vunpack.c.h.b16 %v70
  %v440 = vunpack.c.l.b16 %v71
  %v441 = vunpack.c.h.b16 %v71
  %v442 = vunpack.c.l.b16 %v72
  %v443 = vunpack.c.h.b16 %v72
  %v444 = vunpack.c.l.b16 %v73
  %v445 = vunpack.c.h.b16 %v73
  %v446 = vunpack.c.l.b16 %v74
  %v447 = vunpack.c.h.b16 %v74
  %v448 = vunpack.c.l.b16 %v75
  %v449 = vunpack.c.h.b16 %v75
  %v450 = vunpack.c.l.b16 %v76
  %v451 = vunpack.c.h.b16 %v76
  %v452 = vunpack.c.l.b16 %v77
  %v453 = vunpack.c.h.b16 %v77
  %v454 = vunpack.c.l.b16 %v78
  %v455 = vunpack.c.h.b16 %v78
  %v456 = vunpack.c.l.b16 %v79
  %v457 = vunpack.c.h.b16 %v79
  %v458 = vunpack.c.l.b16 %v80
  %v459 = vunpack.c.h.b16 %v80
  %v460 = vunpack.c.l.b16 %v81
  %v461 = vunpack.c.h.b16 %v81
  %v462 = vunpack.c.l.b16 %v82
  %v463 = vunpack.c.h.b16 %v82
  %v464 = vunpack.c.l.b16 %v83
  %v465 = vunpack.c.h.b16 %v83
  %v466 = vunpack.c.l.b16 %v84
  %v467 = vunpack.c.h.b16 %v84
  %v468 = vunpack.c.l.b16 %v85
  %v469 = vunpack.c.h.b16 %v85
  %v470 = vunpack.c.l.b16 %v86
  %v471 = vunpack.c.h.b16 %v86
  %v472 = vunpack.c.l.b16 %v87
  %v473 = vunpack.c.h.b16 %v87
  %v474 = vunpack.c.l.b16 %v88
  %v475 = vunpack.c.h.b16 %v88
  %v476 = vunpack.c.l.b16 %v89
  %v477 = vunpack.c.h.b16 %v89
  %v478 = vunpack.c.l.b16 %v90
  %v479 = vunpack.c.h.b16 %v90
  %v480 = vunpack.c.l.b16 %v91
  %v481 = vunpack.c.h.b16 %v91
  %v482 = vunpack.c.l.b16 %v92
  %v483 = vunpack.c.h.b16 %v92
  %v484 = vunpack.c.l.b16 %v93
  %v485 = vunpack.c.h.b16 %v93
  %v486 = vunpack.c.l.b16 %v94
  %v487 = vunpack.c.h.b16 %v94
  %v488 = vunpack.c.l.b16 %v95
  %v489 = vunpack.c.h.b16 %v95
  %v490 = vunpack.c.l.b16 %v96
  %v491 = vunpack.c.h.b16 %v96
  %v492 = vunpack.c.l.b16 %v97
  %v493 = vunpack.c.h.b16 %v97
  %v494 = vunpack.c.l.b16 %v98
  %v495 = vunpack.c.h.b16 %v98
  %v496 = vunpack.c.l.b16 %v99
  %v497 = vunpack.c.h.b16 %v99
  %v498 = vunpack.c.l.b16 %v100
  %v499 = vunpack.c.h.b16 %v100
  %v500 = vunpack.c.l.b16 %v101
  %v501 = vunpack.c.h.b16 %v101
  %v502 = vunpack.c.l.b16 %v102
  %v503 = vunpack.c.h.b16 %v102
  %v504 = vunpack.c.l.b16 %v103
  %v505 = vunpack.c.h.b16 %v103
  %v506 = vunpack.c.l.b16 %v104
  %v507 = vunpack.c.h.b16 %v104
  %v508 = vunpack.c.l.b16 %v105
  %v509 = vunpack.c.h.b16 %v105
  %v510 = vunpack.c.l.b16 %v106
  %v511 = vunpack.c.h.b16 %v106
  %v512 = vunpack.c.l.b16 %v107
  %v513 = vunpack.c.h.b16 %v107
  %v514 = vunpack.c.l.b16 %v108
  %v515 = vunpack.c.h.b16 %v108
  %v516 = vunpack.c.l.b16 %v109
  %v517 = vunpack.c.h.b16 %v109
  %v518 = vunpack.c.l.b16 %v110
  %v519 = vunpack.c.h.b16 %v110
  %v520 = vunpack.c.l.b16 %v111
  %v521 = vunpack.c.h.b16 %v111
  %v522 = vunpack.c.l.b16 %v112
  %v523 = vunpack.c.h.b16 %v112
  %v524 = vunpack.c.l.b16 %v113
  %v525 = vunpack.c.h.b16 %v113
  %v526 = vunpack.c.l.b16 %v114
  %v527 = vunpack.c.h.b16 %v114
  %v528 = vunpack.c.l.b16 %v115
  %v529 = vunpack.c.h.b16 %v115
  %v530 = vunpack.c.l.b16 %v116
  %v531 = vunpack.c.h.b16 %v116
  %v532 = vunpack.c.l.b16 %v117
  %v533 = vunpack.c.h.b16 %v117
  %v534 = vunpack.c.l.b16 %v118
  %v535 = vunpack.c.h.b16 %v118
  %v536 = vunpack.c.l.b16 %v119
  %v537 = vunpack.c.h.b16 %v119
  %v538 = vunpack.c.l.b16 %v120
  %v539 = vunpack.c.h.b16 %v120
  %v540 = vunpack.c.l.b16 %v121
  %v541 = vunpack.c.h.b16 %v121
  %v542 = vunpack.c.l.b16 %v122
  %v543 = vunpack.c.h.b16 %v122
  %v544 = vunpack.c.l.b16 %v123
  %v545 = vunpack.c.h.b16 %v123
  %v546 = vunpack.c.l.b16 %v124
  %v547 = vunpack.c.h.b16 %v124
  %v548 = vunpack.c.l.b16 %v125
  %v549 = vunpack.c.h.b16 %v125
  %v550 = vunpack.c.l.b16 %v126
  %v551 = vunpack.c.h.b16 %v126
  %v552 = vunpack.c.l.b16 %v127
  %v553 = vunpack.c.h.b16 %v127
  %v554 = vunpack.c.l.b16 %v128
  %v555 = vunpack.c.h.b16 %v128
  %v556 = vunpack.c.l.b16 %v129
  %v557 = vunpack.c.h.b16 %v129
  %v558 = vunpack.c.l.b16 %v130
  %v559 = vunpack.c.h.b16 %v130
  %v560 = vunpack.c.l.b16 %v131
  %v561 = vunpack.c.h.b16 %v131
  %v562 = vunpack.c.l.b16 %v132
  %v563 = vunpack.c.h.b16 %v132
  %v564 = vunpack.c.l.b16 %v133
  %v565 = vunpack.c.h.b16 %v133
  %v566 = vunpack.c.l.b16 %v134
  %v567 = vunpack.c.h.b16 %v134
  %v568 = vunpack.c.l.b16 %v135
  %v569 = vunpack.c.h.b16 %v135
  %v570 = vunpack.c.l.b16 %v136
  %v571 = vunpack.c.h.b16 %v136
  %v572 = vunpack.c.l.b16 %v137
  %v573 = vunpack.c.h.b16 %v137
  %v574 = vunpack.c.l.b16 %v138
  %v575 = vunpack.c.h.b16 %v138
  %v576 = vunpack.c.l.b16 %v139
  %v577 = vunpack.c.h.b16 %v139
  %v578 = vunpack.c.l.b16 %v140
  %v579 = vunpack.c.h.b16 %v140
  %v580 = vunpack.c.l.b16 %v141
  %v581 = vunpack.c.h.b16 %v141
  %v582 = vunpack.c.l.b16 %v142
  %v583 = vunpack.c.h.b16 %v142
  %v584 = vunpack.c.l.b16 %v143
  %v585 = vunpack.c.h.b16 %v143
  %v586 = vunpack.c.l.b16 %v144
  %v587 = vunpack.c.h.b16 %v144
  %v588 = vunpack.c.l.b16 %v145
  %v589 = vunpack.c.h.b16 %v145
  %v590 = vunpack.c.l.b16 %v146
  %v591 = vunpack.c.h.b16 %v146
  %v592 = vunpack.c.l.b16 %v147
  %v593 = vunpack.c.h.b16 %v147
  %v594 = vunpack.c.l.b16 %v148
  %v595 = vunpack.c.h.b16 %v148
  %v596 = vunpack.c.l.b16 %v149
  %v597 = vunpack.c.h.b16 %v149
  %v598 = vunpack.c.l.b16 %v150
  %v599 = vunpack.c.h.b16 %v150
  %v600 = vunpack.c.l.b16 %v151
  %v601 = vunpack.c.h.b16 %v151
  %v602 = vunpack.c.l.b16 %v152
  %v603 = vunpack.c.h.b16 %v152
  %v604 = vunpack.c.l.b16 %v153
  %v605 = vunpack.c.h.b16 %v153
  %v606 = vunpack.c.l.b16 %v154
  %v607 = vunpack.c.h.b16 %v154
  %v608 = vunpack.c.l.b16 %v155
  %v609 = vunpack.c.h.b16 %v155
  %v610 = vunpack.c.l.b16 %v156
  %v611 = vunpack.c.h.b16 %v156
  %v612 = vunpack.c.l.b16 %v157
  %v613 = vunpack.c.h.b16 %v157
  %v614 = vunpack.c.l.b16 %v158
  %v615 = vunpack.c.h.b16 %v158
  %v616 = vunpack.c.l.b16 %v159
  %v617 = vunpack.c.h.b16 %v159
  %v618 = vunpack.c.l.b16 %v160
  %v619 = vunpack.c.h.b16 %v160
  %v620 = vunpack.c.l.b16 %v161
  %v621 = vunpack.c.h.b16 %v161
  %v622 = vunpack.c.l.b16 %v162
  %v623 = vunpack.c.h.b16 %v162
  %v624 = vunpack.c.l.b16 %v163
  %v625 = vunpack.c.h.b16 %v163
  %v626 = vunpack.c.l.b16 %v164
  %v627 = vunpack.c.h.b16 %v164
  %v628 = vunpack.c.l.b16 %v165
  %v629 = vunpack.c.h.b16 %v165
  %v630 = vpack.c.b16 %v344, %v342
  %v631 = vpack.c.b16 %v345, %v343
  %v632 = vpack.c.b16 %v348, %v346
  %v633 = vpack.c.b16 %v349, %v347
  %v634 = vpack.c.b16 %v352, %v350
  %v635 = vpack.c.b16 %v353, %v351
  %v636 = vpack.c.b16 %v356, %v354
  %v637 = vpack.c.b16 %v357, %v355
  %v638 = vpack.c.b16 %v360, %v358
  %v639 = vpack.c.b16 %v361, %v359
  %v640 = vpack.c.b16 %v364, %v362
  %v641 = vpack.c.b16 %v365, %v363
  %v642 = vpack.c.b16 %v368, %v366
  %v643 = vpack.c.b16 %v369, %v367
  %v644 = vpack.c.b16 %v372, %v370
  %v645 = vpack.c.b16 %v373, %v371
  %v646 = vpack.c.b16 %v376, %v374
  %v647 = vpack.c.b16 %v377, %v375
  %v648 = vpack.c.b16 %v380, %v378
  %v649 = vpack.c.b16 %v381, %v379
  %v650 = vpack.c.b16 %v384, %v382
  %v651 = vpack.c.b16 %v385, %v383
  %v652 = vpack.c.b16 %v388, %v386
  %v653 = vpack.c.b16 %v389, %v387
  %v654 = vpack.c.b16 %v392, %v390
  %v655 = vpack.c.b16 %v393, %v391
  %v656 = vpack.c.b16 %v396, %v394
  %v657 = vpack.c.b16 %v397, %v395
  %v658 = vpack.c.b16 %v400, %v398
  %v659 = vpack.c.b16 %v401, %v399
  %v660 = vpack.c.b16 %v404, %v402
  %v661 = vpack.c.b16 %v405, %v403
  %v662 = vpack.c.b16 %v408, %v406
  %v663 = vpack.c.b16 %v409, %v407
  %v664 = vpack.c.b16 %v412, %v410
  %v665 = vpack.c.b16 %v413, %v411
  %v666 = vpack.c.b16 %v416, %v414
  %v667 = vpack.c.b16 %v417, %v415
  %v668 = vpack.c.b16 %v420, %v418
  %v669 = vpack.c.b16 %v421, %v419
  %v670 = vpack.c.b16 %v424, %v422
  %v671 = vpack.c.b16 %v425, %v423
  %v672 = vpack.c.b16 %v428, %v426
  %v673 = vpack.c.b16 %v429, %v427
  %v674 = vpack.c.b16 %v432, %v430
  %v675 = vpack.c.b16 %v433, %v431
  %v676 = vpack.c.b16 %v436, %v434
  %v677 = vpack.c.b16 %v437, %v435
  %v678 = vpack.c.b16 %v440, %v438
  %v679 = vpack.c.b16 %v441, %v439
  %v680 = vpack.c.b16 %v444, %v442
  %v681 = vpack.c.b16 %v445, %v443
  %v682 = vpack.c.b16 %v448, %v446
  %v683 = vpack.c.b16 %v449, %v447
  %v684 = vpack.c.b16 %v452, %v450
  %v685 = vpack.c.b16 %v453, %v451
  %v686 = vpack.c.b16 %v456, %v454
  %v687 = vpack.c.b16 %v457, %v455
  %v688 = vpack.c.b16 %v460, %v458
  %v689 = vpack.c.b16 %v461, %v459
  %v690 = vpack.c.b16 %v464, %v462
  %v691 = vpack.c.b16 %v465, %v463
  %v692 = vpack.c.b16 %v468, %v466
  %v693 = vpack.c.b16 %v469, %v467
  %v694 = vpack.c.b16 %v472, %v470
  %v695 = vpack.c.b16 %v473, %v471
  %v696 = vpack.c.b16 %v476, %v474
  %v697 = vpack.c.b16 %v477, %v475
  %v698 = vpack.c.b16 %v480, %v478
  %v699 = vpack.c.b16 %v481, %v479
  %v700 = vpack.c.b16 %v484, %v482
  %v701 = vpack.c.b16 %v485, %v483
  %v702 = vpack.c.b16 %v488, %v486
  %v703 = vpack.c.b16 %v489, %v487
  %v704 = vpack.c.b16 %v492, %v490
  %v705 = vpack.c.b16 %v493, %v491
  %v706 = vpack.c.b16 %v496, %v494
  %v707 = vpack.c.b16 %v497, %v495
  %v708 = vpack.c.b16 %v500, %v498
  %v709 = vpack.c.b16 %v501, %v499
  %v710 = vpack.c.b16 %v504, %v502
  %v711 = vpack.c.b16 %v505, %v503
  %v712 = vpack.c.b16 %v508, %v506
  %v713 = vpack.c.b16 %v509, %v507
  %v714 = vpack.c.b16 %v512, %v510
  %v715 = vpack.c.b16 %v513, %v511
  %v716 = vpack.c.b16 %v516, %v514
  %v717 = vpack.c.b16 %v517, %v515
  %v718 = vpack.c.b16 %v520, %v518
  %v719 = vpack.c.b16 %v521, %v519
  %v720 = vpack.c.b16 %v524, %v522
  %v721 = vpack.c.b16 %v525, %v523
  %v722 = vpack.c.b16 %v528, %v526
  %v723 = vpack.c.b16 %v529, %v527
  %v724 = vpack.c.b16 %v532, %v530
  %v725 = vpack.c.b16 %v533, %v531
  %v726 = vpack.c.b16 %v536, %v534
  %v727 = vpack.c.b16 %v537, %v535
  %v728 = vpack.c.b16 %v540, %v538
  %v729 = vpack.c.b16 %v541, %v539
  %v730 = vpack.c.b16 %v544, %v542
  %v731 = vpack.c.b16 %v545, %v543
  %v732 = vpack.c.b16 %v548, %v546
  %v733 = vpack.c.b16 %v549, %v547
  %v734 = vpack.c.b16 %v552, %v550
  %v735 = vpack.c.b16 %v553, %v551
  %v736 = vpack.c.b16 %v556, %v554
  %v737 = vpack.c.b16 %v557, %v555
  %v738 = vpack.c.b16 %v560, %v558
  %v739 = vpack.c.b16 %v561, %v559
  %v740 = vpack.c.b16 %v564, %v562
  %v741 = vpack.c.b16 %v565, %v563
  %v742 = vpack.c.b16 %v568, %v566
  %v743 = vpack.c.b16 %v569, %v567
  %v744 = vpack.c.b16 %v572, %v570
  %v745 = vpack.c.b16 %v573, %v571
  %v746 = vpack.c.b16 %v576, %v574
  %v747 = vpack.c.b16 %v577, %v575
  %v748 = vpack.c.b16 %v580, %v578
  %v749 = vpack.c.b16 %v581, %v579
  %v750 = vpack.c.b16 %v584, %v582
  %v751 = vpack.c.b16 %v585, %v583
  %v752 = vpack.c.b16 %v588, %v586
  %v753 = vpack.c.b16 %v589, %v587
  %v754 = vpack.c.b16 %v592, %v590
  %v755 = vpack.c.b16 %v593, %v591
  %v756 = vpack.c.b16 %v596, %v594
  %v757 = vpack.c.b16 %v597, %v595
  %v758 = vpack.c.b16 %v600, %v598
  %v759 = vpack.c.b16 %v601, %v599
  %v760 = vpack.c.b16 %v604, %v602
  %v761 = vpack.c.b16 %v605, %v603
  %v762 = vpack.c.b16 %v608, %v606
  %v763 = vpack.c.b16 %v609, %v607
  %v764 = vpack.c.b16 %v612, %v610
  %v765 = vpack.c.b16 %v613, %v611
  %v766 = vpack.c.b16 %v616, %v614
  %v767 = vpack.c.b16 %v617, %v615
  %v768 = vpack.c.b16 %v620, %v618
  %v769 = vpack.c.b16 %v621, %v619
  %v770 = vpack.c.b16 %v624, %v622
  %v771 = vpack.c.b16 %v625, %v623
  %v772 = vpack.c.b16 %v628, %v626
  %v773 = vpack.c.b16 %v629, %v627
  %918 = vmatpush.bf16.msra.mxu0 %v644
  %919 = vmatpush.bf16.msra.mxu0 %v642
  %920 = vmatpush.bf16.msra.mxu0 %v640
  %921 = vmatpush.bf16.msra.mxu0 %v638
  %922 = vmatpush.bf16.msra.mxu0 %v636
  %923 = vmatpush.bf16.msra.mxu0 %v634
  %924 = vmatpush.bf16.msra.mxu0 %v632
  %925 = vmatpush.bf16.msra.mxu0 %v630
  %926 = vmatmul.bf16.gmra.mxu0 %v180
  %v927 = vpop.f32.mrf.mxu0
  %v928 = vadd.f32 0.0, %v927
  %v929 = vpop.f32.mrf.mxu0
  %930 = vdwg.mxu0
  %931 = vmatpush.bf16.msra.mxu0 %v660
  %932 = vmatpush.bf16.msra.mxu0 %v658
  %933 = vmatpush.bf16.msra.mxu0 %v656
  %934 = vmatpush.bf16.msra.mxu0 %v654
  %935 = vmatpush.bf16.msra.mxu0 %v652
  %936 = vmatpush.bf16.msra.mxu0 %v650
  %937 = vmatpush.bf16.msra.mxu0 %v648
  %938 = vmatpush.bf16.msra.mxu0 %v646
  %939 = vmatmul.bf16.gmra.mxu0 %v181
  %v940 = vpop.f32.mrf.mxu0
  %v941 = vadd.f32 %v928, %v940
  %v942 = vpop.f32.mrf.mxu0
  %943 = vdwg.mxu0
  %944 = vmatpush.bf16.msra.mxu0 %v676
  %945 = vmatpush.bf16.msra.mxu0 %v674
  %946 = vmatpush.bf16.msra.mxu0 %v672
  %947 = vmatpush.bf16.msra.mxu0 %v670
  %948 = vmatpush.bf16.msra.mxu0 %v668
  %949 = vmatpush.bf16.msra.mxu0 %v666
  %950 = vmatpush.bf16.msra.mxu0 %v664
  %951 = vmatpush.bf16.msra.mxu0 %v662
  %952 = vmatmul.bf16.gmra.mxu0 %v182
  %v953 = vpop.f32.mrf.mxu0
  %v954 = vadd.f32 %v941, %v953
  %v955 = vpop.f32.mrf.mxu0
  %956 = vdwg.mxu0
  %957 = vmatpush.bf16.msra.mxu0 %v692
  %958 = vmatpush.bf16.msra.mxu0 %v690
  %959 = vmatpush.bf16.msra.mxu0 %v688
  %960 = vmatpush.bf16.msra.mxu0 %v686
  %961 = vmatpush.bf16.msra.mxu0 %v684
  %962 = vmatpush.bf16.msra.mxu0 %v682
  %963 = vmatpush.bf16.msra.mxu0 %v680
  %964 = vmatpush.bf16.msra.mxu0 %v678
  %965 = vmatmul.bf16.gmra.mxu0 %v183
  %v966 = vpop.f32.mrf.mxu0
  %v967 = vadd.f32 %v954, %v966
  %v968 = vpop.f32.mrf.mxu0
  %969 = vdwg.mxu0
  %970 = vmatpush.bf16.msra.mxu0 %v708
  %971 = vmatpush.bf16.msra.mxu0 %v706
  %972 = vmatpush.bf16.msra.mxu0 %v704
  %973 = vmatpush.bf16.msra.mxu0 %v702
  %974 = vmatpush.bf16.msra.mxu0 %v700
  %975 = vmatpush.bf16.msra.mxu0 %v698
  %976 = vmatpush.bf16.msra.mxu0 %v696
  %977 = vmatpush.bf16.msra.mxu0 %v694
  %978 = vmatmul.bf16.gmra.mxu0 %v184
  %v979 = vpop.f32.mrf.mxu0
  %v980 = vadd.f32 %v967, %v979
  %v981 = vpop.f32.mrf.mxu0
  %982 = vdwg.mxu0
  %983 = vmatpush.bf16.msra.mxu0 %v724
  %984 = vmatpush.bf16.msra.mxu0 %v722
  %985 = vmatpush.bf16.msra.mxu0 %v720
  %986 = vmatpush.bf16.msra.mxu0 %v718
  %987 = vmatpush.bf16.msra.mxu0 %v716
  %988 = vmatpush.bf16.msra.mxu0 %v714
  %989 = vmatpush.bf16.msra.mxu0 %v712
  %990 = vmatpush.bf16.msra.mxu0 %v710
  %991 = vmatmul.bf16.gmra.mxu0 %v185
  %v992 = vpop.f32.mrf.mxu0
  %v993 = vadd.f32 %v980, %v992
  %v994 = vpop.f32.mrf.mxu0
  %995 = vdwg.mxu0
  %996 = vmatpush.bf16.msra.mxu0 %v740
  %997 = vmatpush.bf16.msra.mxu0 %v738
  %998 = vmatpush.bf16.msra.mxu0 %v736
  %999 = vmatpush.bf16.msra.mxu0 %v734
  %1000 = vmatpush.bf16.msra.mxu0 %v732
  %1001 = vmatpush.bf16.msra.mxu0 %v730
  %1002 = vmatpush.bf16.msra.mxu0 %v728
  %1003 = vmatpush.bf16.msra.mxu0 %v726
  %1004 = vmatmul.bf16.gmra.mxu0 %v186
  %v1005 = vpop.f32.mrf.mxu0
  %v1006 = vadd.f32 %v993, %v1005
  %v1007 = vpop.f32.mrf.mxu0
  %1008 = vdwg.mxu0
  %1009 = vmatpush.bf16.msra.mxu0 %v756
  %1010 = vmatpush.bf16.msra.mxu0 %v754
  %1011 = vmatpush.bf16.msra.mxu0 %v752
  %1012 = vmatpush.bf16.msra.mxu0 %v750
  %1013 = vmatpush.bf16.msra.mxu0 %v748
  %1014 = vmatpush.bf16.msra.mxu0 %v746
  %1015 = vmatpush.bf16.msra.mxu0 %v744
  %1016 = vmatpush.bf16.msra.mxu0 %v742
  %1017 = vmatmul.bf16.gmra.mxu0 %v187
  %v1018 = vpop.f32.mrf.mxu0
  %v1019 = vadd.f32 %v1006, %v1018
  %v1020 = vpop.f32.mrf.mxu0
  %1021 = vdwg.mxu0
  %1022 = vmatpush.bf16.msra.mxu0 %v772
  %1023 = vmatpush.bf16.msra.mxu0 %v770
  %1024 = vmatpush.bf16.msra.mxu0 %v768
  %1025 = vmatpush.bf16.msra.mxu0 %v766
  %1026 = vmatpush.bf16.msra.mxu0 %v764
  %1027 = vmatpush.bf16.msra.mxu0 %v762
  %1028 = vmatpush.bf16.msra.mxu0 %v760
  %1029 = vmatpush.bf16.msra.mxu0 %v758
  %1030 = vmatmul.bf16.gmra.mxu0 %v188
  %v1031 = vpop.f32.mrf.mxu0
  %v1032 = vadd.f32 %v1019, %v1031
  %v1033 = vpop.f32.mrf.mxu0
  %1034 = vdwg.mxu0
  %1035 = vmatpush.bf16.msra.mxu0 %v645
  %1036 = vmatpush.bf16.msra.mxu0 %v643
  %1037 = vmatpush.bf16.msra.mxu0 %v641
  %1038 = vmatpush.bf16.msra.mxu0 %v639
  %1039 = vmatpush.bf16.msra.mxu0 %v637
  %1040 = vmatpush.bf16.msra.mxu0 %v635
  %1041 = vmatpush.bf16.msra.mxu0 %v633
  %1042 = vmatpush.bf16.msra.mxu0 %v631
  %1043 = vmatmul.bf16.gmra.mxu0 %v180
  %v1044 = vpop.f32.mrf.mxu0
  %v1045 = vadd.f32 0.0, %v1044
  %v1046 = vpop.f32.mrf.mxu0
  %1047 = vdwg.mxu0
  %1048 = vmatpush.bf16.msra.mxu0 %v661
  %1049 = vmatpush.bf16.msra.mxu0 %v659
  %1050 = vmatpush.bf16.msra.mxu0 %v657
  %1051 = vmatpush.bf16.msra.mxu0 %v655
  %1052 = vmatpush.bf16.msra.mxu0 %v653
  %1053 = vmatpush.bf16.msra.mxu0 %v651
  %1054 = vmatpush.bf16.msra.mxu0 %v649
  %1055 = vmatpush.bf16.msra.mxu0 %v647
  %1056 = vmatmul.bf16.gmra.mxu0 %v181
  %v1057 = vpop.f32.mrf.mxu0
  %v1058 = vadd.f32 %v1045, %v1057
  %v1059 = vpop.f32.mrf.mxu0
  %1060 = vdwg.mxu0
  %1061 = vmatpush.bf16.msra.mxu0 %v677
  %1062 = vmatpush.bf16.msra.mxu0 %v675
  %1063 = vmatpush.bf16.msra.mxu0 %v673
  %1064 = vmatpush.bf16.msra.mxu0 %v671
  %1065 = vmatpush.bf16.msra.mxu0 %v669
  %1066 = vmatpush.bf16.msra.mxu0 %v667
  %1067 = vmatpush.bf16.msra.mxu0 %v665
  %1068 = vmatpush.bf16.msra.mxu0 %v663
  %1069 = vmatmul.bf16.gmra.mxu0 %v182
  %v1070 = vpop.f32.mrf.mxu0
  %v1071 = vadd.f32 %v1058, %v1070
  %v1072 = vpop.f32.mrf.mxu0
  %1073 = vdwg.mxu0
  %1074 = vmatpush.bf16.msra.mxu0 %v693
  %1075 = vmatpush.bf16.msra.mxu0 %v691
  %1076 = vmatpush.bf16.msra.mxu0 %v689
  %1077 = vmatpush.bf16.msra.mxu0 %v687
  %1078 = vmatpush.bf16.msra.mxu0 %v685
  %1079 = vmatpush.bf16.msra.mxu0 %v683
  %1080 = vmatpush.bf16.msra.mxu0 %v681
  %1081 = vmatpush.bf16.msra.mxu0 %v679
  %1082 = vmatmul.bf16.gmra.mxu0 %v183
  %v1083 = vpop.f32.mrf.mxu0
  %v1084 = vadd.f32 %v1071, %v1083
  %v1085 = vpop.f32.mrf.mxu0
  %1086 = vdwg.mxu0
  %1087 = vmatpush.bf16.msra.mxu0 %v709
  %1088 = vmatpush.bf16.msra.mxu0 %v707
  %1089 = vmatpush.bf16.msra.mxu0 %v705
  %1090 = vmatpush.bf16.msra.mxu0 %v703
  %1091 = vmatpush.bf16.msra.mxu0 %v701
  %1092 = vmatpush.bf16.msra.mxu0 %v699
  %1093 = vmatpush.bf16.msra.mxu0 %v697
  %1094 = vmatpush.bf16.msra.mxu0 %v695
  %1095 = vmatmul.bf16.gmra.mxu0 %v184
  %v1096 = vpop.f32.mrf.mxu0
  %v1097 = vadd.f32 %v1084, %v1096
  %v1098 = vpop.f32.mrf.mxu0
  %1099 = vdwg.mxu0
  %1100 = vmatpush.bf16.msra.mxu0 %v725
  %1101 = vmatpush.bf16.msra.mxu0 %v723
  %1102 = vmatpush.bf16.msra.mxu0 %v721
  %1103 = vmatpush.bf16.msra.mxu0 %v719
  %1104 = vmatpush.bf16.msra.mxu0 %v717
  %1105 = vmatpush.bf16.msra.mxu0 %v715
  %1106 = vmatpush.bf16.msra.mxu0 %v713
  %1107 = vmatpush.bf16.msra.mxu0 %v711
  %1108 = vmatmul.bf16.gmra.mxu0 %v185
  %v1109 = vpop.f32.mrf.mxu0
  %v1110 = vadd.f32 %v1097, %v1109
  %v1111 = vpop.f32.mrf.mxu0
  %1112 = vdwg.mxu0
  %1113 = vmatpush.bf16.msra.mxu0 %v741
  %1114 = vmatpush.bf16.msra.mxu0 %v739
  %1115 = vmatpush.bf16.msra.mxu0 %v737
  %1116 = vmatpush.bf16.msra.mxu0 %v735
  %1117 = vmatpush.bf16.msra.mxu0 %v733
  %1118 = vmatpush.bf16.msra.mxu0 %v731
  %1119 = vmatpush.bf16.msra.mxu0 %v729
  %1120 = vmatpush.bf16.msra.mxu0 %v727
  %1121 = vmatmul.bf16.gmra.mxu0 %v186
  %v1122 = vpop.f32.mrf.mxu0
  %v1123 = vadd.f32 %v1110, %v1122
  %v1124 = vpop.f32.mrf.mxu0
  %1125 = vdwg.mxu0
  %1126 = vmatpush.bf16.msra.mxu0 %v757
  %1127 = vmatpush.bf16.msra.mxu0 %v755
  %1128 = vmatpush.bf16.msra.mxu0 %v753
  %1129 = vmatpush.bf16.msra.mxu0 %v751
  %1130 = vmatpush.bf16.msra.mxu0 %v749
  %1131 = vmatpush.bf16.msra.mxu0 %v747
  %1132 = vmatpush.bf16.msra.mxu0 %v745
  %1133 = vmatpush.bf16.msra.mxu0 %v743
  %1134 = vmatmul.bf16.gmra.mxu0 %v187
  %v1135 = vpop.f32.mrf.mxu0
  %v1136 = vadd.f32 %v1123, %v1135
  %v1137 = vpop.f32.mrf.mxu0
  %1138 = vdwg.mxu0
  %1139 = vmatpush.bf16.msra.mxu0 %v773
  %1140 = vmatpush.bf16.msra.mxu0 %v771
  %1141 = vmatpush.bf16.msra.mxu0 %v769
  %1142 = vmatpush.bf16.msra.mxu0 %v767
  %1143 = vmatpush.bf16.msra.mxu0 %v765
  %1144 = vmatpush.bf16.msra.mxu0 %v763
  %1145 = vmatpush.bf16.msra.mxu0 %v761
  %1146 = vmatpush.bf16.msra.mxu0 %v759
  %1147 = vmatmul.bf16.gmra.mxu0 %v188
  %v1148 = vpop.f32.mrf.mxu0
  %v1149 = vadd.f32 %v1136, %v1148
  %v1150 = vpop.f32.mrf.mxu0
  %1151 = vdwg.mxu0
  %v1152 = vld [vmem:[%s2] sm:$0x3]
  %v1154 = vperm.slane %v1152, 0
  %v1155 = vperm.slane %v1152, 1
  %v1158 = vmul.f32 %v1032, %v1154
  %v1159 = vmul.f32 %v1149, %v1155
  %v1160 = vld [vmem:[%s3] sm:$0x3]
  %v1162 = vperm.slane %v1160, 0
  %v1163 = vperm.slane %v1160, 1
  %v1166 = vadd.f32 %v1158, %v1162
  %v1167 = vadd.f32 %v1159, %v1163
  %v1168 = vmax.f32 %v1166, 0.0
  %v1169 = vmax.f32 %v1167, 0.0
  %v1170 = vpack.c.bf16 %v1169, %v1168
  %1171 = vst [vmem:[%s4] sm:$0xff] %v1170
  // Predicated region
  $region18: #{feature_extractor_with_attention.28} parent=0 // pred_check
    _
  $region19: #{feature_extractor_with_attention.28} parent=0 // pred_check_branch
    %1173 = sbr.rel (0) target = $region21
  $region20: #{feature_extractor_with_attention.28} parent=0 // pred_region
    _
  $region21: #{feature_extractor_with_attention.28} parent=0 // pred_fallthru
    _
  // Predicated region
  $region22: #{feature_extractor_with_attention.28} parent=0 // pred_check
    _
  $region23: #{feature_extractor_with_attention.28} parent=0 // pred_check_branch
    %1175 = sbr.rel (0) target = $region25
  $region24: #{feature_extractor_with_attention.28} parent=0 // pred_region
    _
  $region25: #{feature_extractor_with_attention.28} parent=0 // pred_fallthru
    _

// kernel: feature_extractor_with_attention.33
$region0: #{feature_extractor_with_attention.33}
  #allocation0 [shape = 'u32[]', space=smem, size = 0x4, offset = 0x4, fixed_abs, tag = 'smem constant byte address 0x4 - core index']
  #allocation1 [shape = 'u32[72,128]{1,0:T(1,128)}', space=vmem, size = 0x9000, scoped, tag = 'internal scratch']
  #allocation2 [shape = 'f32[2,256]{1,0:T(2,128)}', space=vmem, size = 0x800, scoped, tag = 'scratch operand']
  %s0 = inlined_call_operand.vmem [shape: bf16[2,128,256], index: 0, kind: input, shape index: {}]
  %s1 = inlined_call_operand.vmem [shape: f32[2,128], index: 1, kind: output, shape index: {0}]
  %s2 = inlined_call_operand.hbm [shape: f32[2,256], index: 2, kind: output, shape index: {1}]
  %3 = xla_tuple %s1, %s2
  %s4 = sld [smem:[#allocation0]]
  $region30: #{feature_extractor_with_attention.33} parent=0
    _
  %s6 = ssub.s32 1, %s4
  %s7 = scalar_select 0, %s6, %s4
  $region1: #{feature_extractor_with_attention.33} parent=0
    #allocation3 [shape = 'u8[2048]{0}', space=vmem, size = 0x800, scoped, tag = 'output window, operand 1, single buffered']
    #allocation4 [shape = 's32[1]{0}', space=sflag, size = 0x4, scoped, tag = 'scoped memory for feature_extractor_with_attention.33']
    %8 = vsyncpa [#allocation4], 0
    // Predicated region
    $region2: #{feature_extractor_with_attention.33} parent=1 // pred_check
      _
    $region3: #{feature_extractor_with_attention.33} parent=1 // pred_check_branch
      %10 = sbr.rel (0) target = $region5
    $region4: #{feature_extractor_with_attention.33} parent=1 // pred_region
      _
    $region5: #{feature_extractor_with_attention.33} parent=1 // pred_fallthru
      _
    %p11 = scmp.eq.s32.totalorder 0, 0
    // Predicated region
    $region6: #{feature_extractor_with_attention.33} parent=1 // pred_check
      %p12 = pneg %p11
    $region7: #{feature_extractor_with_attention.33} parent=1 // pred_check_branch
      %14 = sbr.rel (%p12) target = $region9
    $region8: #{feature_extractor_with_attention.33} parent=1 // pred_region
      %15 = vst [vmem:[#allocation2] sm:$0xf] 0.0
    $region9: #{feature_extractor_with_attention.33} parent=1 // pred_fallthru
      _
    %v16 = vld [vmem:[%s0] sm:$0xff]
    %v17 = vld [vmem:[%s0 + $0x8] sm:$0xff]
    %v18 = vld [vmem:[%s0 + $0x10] sm:$0xff]
    %v19 = vld [vmem:[%s0 + $0x18] sm:$0xff]
    %v20 = vld [vmem:[%s0 + $0x20] sm:$0xff]
    %v21 = vld [vmem:[%s0 + $0x28] sm:$0xff]
    %v22 = vld [vmem:[%s0 + $0x30] sm:$0xff]
    %v23 = vld [vmem:[%s0 + $0x38] sm:$0xff]
    %v24 = vld [vmem:[%s0 + $0x40] sm:$0xff]
    %v25 = vld [vmem:[%s0 + $0x48] sm:$0xff]
    %v26 = vld [vmem:[%s0 + $0x50] sm:$0xff]
    %v27 = vld [vmem:[%s0 + $0x58] sm:$0xff]
    %v28 = vld [vmem:[%s0 + $0x60] sm:$0xff]
    %v29 = vld [vmem:[%s0 + $0x68] sm:$0xff]
    %v30 = vld [vmem:[%s0 + $0x70] sm:$0xff]
    %v31 = vld [vmem:[%s0 + $0x78] sm:$0xff]
    %v32 = vld [vmem:[%s0 + $0x80] sm:$0xff]
    %v33 = vld [vmem:[%s0 + $0x88] sm:$0xff]
    %v34 = vld [vmem:[%s0 + $0x90] sm:$0xff]
    %v35 = vld [vmem:[%s0 + $0x98] sm:$0xff]
    %v36 = vld [vmem:[%s0 + $0xa0] sm:$0xff]
    %v37 = vld [vmem:[%s0 + $0xa8] sm:$0xff]
    %v38 = vld [vmem:[%s0 + $0xb0] sm:$0xff]
    %v39 = vld [vmem:[%s0 + $0xb8] sm:$0xff]
    %v40 = vld [vmem:[%s0 + $0xc0] sm:$0xff]
    %v41 = vld [vmem:[%s0 + $0xc8] sm:$0xff]
    %v42 = vld [vmem:[%s0 + $0xd0] sm:$0xff]
    %v43 = vld [vmem:[%s0 + $0xd8] sm:$0xff]
    %v44 = vld [vmem:[%s0 + $0xe0] sm:$0xff]
    %v45 = vld [vmem:[%s0 + $0xe8] sm:$0xff]
    %v46 = vld [vmem:[%s0 + $0xf0] sm:$0xff]
    %v47 = vld [vmem:[%s0 + $0xf8] sm:$0xff]
    %v48 = vunpack.c.l.bf16 %v16
    %v49 = vunpack.c.h.bf16 %v16
    %v50 = vunpack.c.l.bf16 %v17
    %v51 = vunpack.c.h.bf16 %v17
    %v52 = vunpack.c.l.bf16 %v18
    %v53 = vunpack.c.h.bf16 %v18
    %v54 = vunpack.c.l.bf16 %v19
    %v55 = vunpack.c.h.bf16 %v19
    %v56 = vunpack.c.l.bf16 %v20
    %v57 = vunpack.c.h.bf16 %v20
    %v58 = vunpack.c.l.bf16 %v21
    %v59 = vunpack.c.h.bf16 %v21
    %v60 = vunpack.c.l.bf16 %v22
    %v61 = vunpack.c.h.bf16 %v22
    %v62 = vunpack.c.l.bf16 %v23
    %v63 = vunpack.c.h.bf16 %v23
    %v64 = vunpack.c.l.bf16 %v24
    %v65 = vunpack.c.h.bf16 %v24
    %v66 = vunpack.c.l.bf16 %v25
    %v67 = vunpack.c.h.bf16 %v25
    %v68 = vunpack.c.l.bf16 %v26
    %v69 = vunpack.c.h.bf16 %v26
    %v70 = vunpack.c.l.bf16 %v27
    %v71 = vunpack.c.h.bf16 %v27
    %v72 = vunpack.c.l.bf16 %v28
    %v73 = vunpack.c.h.bf16 %v28
    %v74 = vunpack.c.l.bf16 %v29
    %v75 = vunpack.c.h.bf16 %v29
    %v76 = vunpack.c.l.bf16 %v30
    %v77 = vunpack.c.h.bf16 %v30
    %v78 = vunpack.c.l.bf16 %v31
    %v79 = vunpack.c.h.bf16 %v31
    %v80 = vunpack.c.l.bf16 %v32
    %v81 = vunpack.c.h.bf16 %v32
    %v82 = vunpack.c.l.bf16 %v33
    %v83 = vunpack.c.h.bf16 %v33
    %v84 = vunpack.c.l.bf16 %v34
    %v85 = vunpack.c.h.bf16 %v34
    %v86 = vunpack.c.l.bf16 %v35
    %v87 = vunpack.c.h.bf16 %v35
    %v88 = vunpack.c.l.bf16 %v36
    %v89 = vunpack.c.h.bf16 %v36
    %v90 = vunpack.c.l.bf16 %v37
    %v91 = vunpack.c.h.bf16 %v37
    %v92 = vunpack.c.l.bf16 %v38
    %v93 = vunpack.c.h.bf16 %v38
    %v94 = vunpack.c.l.bf16 %v39
    %v95 = vunpack.c.h.bf16 %v39
    %v96 = vunpack.c.l.bf16 %v40
    %v97 = vunpack.c.h.bf16 %v40
    %v98 = vunpack.c.l.bf16 %v41
    %v99 = vunpack.c.h.bf16 %v41
    %v100 = vunpack.c.l.bf16 %v42
    %v101 = vunpack.c.h.bf16 %v42
    %v102 = vunpack.c.l.bf16 %v43
    %v103 = vunpack.c.h.bf16 %v43
    %v104 = vunpack.c.l.bf16 %v44
    %v105 = vunpack.c.h.bf16 %v44
    %v106 = vunpack.c.l.bf16 %v45
    %v107 = vunpack.c.h.bf16 %v45
    %v108 = vunpack.c.l.bf16 %v46
    %v109 = vunpack.c.h.bf16 %v46
    %v110 = vunpack.c.l.bf16 %v47
    %v111 = vunpack.c.h.bf16 %v47
    %v112 = vadd.f32 %v48, %v49
    %113 = vadd.xlane.f32.xlu0 %v112
    %v114 = vpop.xlane.xlu0 %113
    %v115 = vadd.f32 %v50, %v51
    %116 = vadd.xlane.f32.xlu0 %v115
    %v117 = vpop.xlane.xlu0 %116
    %v118 = vadd.f32 %v52, %v53
    %119 = vadd.xlane.f32.xlu0 %v118
    %v120 = vpop.xlane.xlu0 %119
    %v121 = vadd.f32 %v54, %v55
    %122 = vadd.xlane.f32.xlu0 %v121
    %v123 = vpop.xlane.xlu0 %122
    %v124 = vadd.f32 %v56, %v57
    %125 = vadd.xlane.f32.xlu0 %v124
    %v126 = vpop.xlane.xlu0 %125
    %v127 = vadd.f32 %v58, %v59
    %128 = vadd.xlane.f32.xlu0 %v127
    %v129 = vpop.xlane.xlu0 %128
    %v130 = vadd.f32 %v60, %v61
    %131 = vadd.xlane.f32.xlu0 %v130
    %v132 = vpop.xlane.xlu0 %131
    %v133 = vadd.f32 %v62, %v63
    %134 = vadd.xlane.f32.xlu0 %v133
    %v135 = vpop.xlane.xlu0 %134
    %v136 = vadd.f32 %v64, %v65
    %137 = vadd.xlane.f32.xlu0 %v136
    %v138 = vpop.xlane.xlu0 %137
    %v139 = vadd.f32 %v66, %v67
    %140 = vadd.xlane.f32.xlu0 %v139
    %v141 = vpop.xlane.xlu0 %140
    %v142 = vadd.f32 %v68, %v69
    %143 = vadd.xlane.f32.xlu0 %v142
    %v144 = vpop.xlane.xlu0 %143
    %v145 = vadd.f32 %v70, %v71
    %146 = vadd.xlane.f32.xlu0 %v145
    %v147 = vpop.xlane.xlu0 %146
    %v148 = vadd.f32 %v72, %v73
    %149 = vadd.xlane.f32.xlu0 %v148
    %v150 = vpop.xlane.xlu0 %149
    %v151 = vadd.f32 %v74, %v75
    %152 = vadd.xlane.f32.xlu0 %v151
    %v153 = vpop.xlane.xlu0 %152
    %v154 = vadd.f32 %v76, %v77
    %155 = vadd.xlane.f32.xlu0 %v154
    %v156 = vpop.xlane.xlu0 %155
    %v157 = vadd.f32 %v78, %v79
    %158 = vadd.xlane.f32.xlu0 %v157
    %v159 = vpop.xlane.xlu0 %158
    %v160 = vadd.f32 %v80, %v81
    %161 = vadd.xlane.f32.xlu0 %v160
    %v162 = vpop.xlane.xlu0 %161
    %v163 = vadd.f32 %v82, %v83
    %164 = vadd.xlane.f32.xlu0 %v163
    %v165 = vpop.xlane.xlu0 %164
    %v166 = vadd.f32 %v84, %v85
    %167 = vadd.xlane.f32.xlu0 %v166
    %v168 = vpop.xlane.xlu0 %167
    %v169 = vadd.f32 %v86, %v87
    %170 = vadd.xlane.f32.xlu0 %v169
    %v171 = vpop.xlane.xlu0 %170
    %v172 = vadd.f32 %v88, %v89
    %173 = vadd.xlane.f32.xlu0 %v172
    %v174 = vpop.xlane.xlu0 %173
    %v175 = vadd.f32 %v90, %v91
    %176 = vadd.xlane.f32.xlu0 %v175
    %v177 = vpop.xlane.xlu0 %176
    %v178 = vadd.f32 %v92, %v93
    %179 = vadd.xlane.f32.xlu0 %v178
    %v180 = vpop.xlane.xlu0 %179
    %v181 = vadd.f32 %v94, %v95
    %182 = vadd.xlane.f32.xlu0 %v181
    %v183 = vpop.xlane.xlu0 %182
    %v184 = vadd.f32 %v96, %v97
    %185 = vadd.xlane.f32.xlu0 %v184
    %v186 = vpop.xlane.xlu0 %185
    %v187 = vadd.f32 %v98, %v99
    %188 = vadd.xlane.f32.xlu0 %v187
    %v189 = vpop.xlane.xlu0 %188
    %v190 = vadd.f32 %v100, %v101
    %191 = vadd.xlane.f32.xlu0 %v190
    %v192 = vpop.xlane.xlu0 %191
    %v193 = vadd.f32 %v102, %v103
    %194 = vadd.xlane.f32.xlu0 %v193
    %v195 = vpop.xlane.xlu0 %194
    %v196 = vadd.f32 %v104, %v105
    %197 = vadd.xlane.f32.xlu0 %v196
    %v198 = vpop.xlane.xlu0 %197
    %v199 = vadd.f32 %v106, %v107
    %200 = vadd.xlane.f32.xlu0 %v199
    %v201 = vpop.xlane.xlu0 %200
    %v202 = vadd.f32 %v108, %v109
    %203 = vadd.xlane.f32.xlu0 %v202
    %v204 = vpop.xlane.xlu0 %203
    %v205 = vadd.f32 %v110, %v111
    %206 = vadd.xlane.f32.xlu0 %v205
    %v207 = vpop.xlane.xlu0 %206
    %v208 = vmul.f32 %v114, 0.00390625
    %v209 = vmul.f32 %v117, 0.00390625
    %v210 = vmul.f32 %v120, 0.00390625
    %v211 = vmul.f32 %v123, 0.00390625
    %v212 = vmul.f32 %v126, 0.00390625
    %v213 = vmul.f32 %v129, 0.00390625
    %v214 = vmul.f32 %v132, 0.00390625
    %v215 = vmul.f32 %v135, 0.00390625
    %v216 = vmul.f32 %v138, 0.00390625
    %v217 = vmul.f32 %v141, 0.00390625
    %v218 = vmul.f32 %v144, 0.00390625
    %v219 = vmul.f32 %v147, 0.00390625
    %v220 = vmul.f32 %v150, 0.00390625
    %v221 = vmul.f32 %v153, 0.00390625
    %v222 = vmul.f32 %v156, 0.00390625
    %v223 = vmul.f32 %v159, 0.00390625
    %v224 = vmul.f32 %v162, 0.00390625
    %v225 = vmul.f32 %v165, 0.00390625
    %v226 = vmul.f32 %v168, 0.00390625
    %v227 = vmul.f32 %v171, 0.00390625
    %v228 = vmul.f32 %v174, 0.00390625
    %v229 = vmul.f32 %v177, 0.00390625
    %v230 = vmul.f32 %v180, 0.00390625
    %v231 = vmul.f32 %v183, 0.00390625
    %v232 = vmul.f32 %v186, 0.00390625
    %v233 = vmul.f32 %v189, 0.00390625
    %v234 = vmul.f32 %v192, 0.00390625
    %v235 = vmul.f32 %v195, 0.00390625
    %v236 = vmul.f32 %v198, 0.00390625
    %v237 = vmul.f32 %v201, 0.00390625
    %v238 = vmul.f32 %v204, 0.00390625
    %v239 = vmul.f32 %v207, 0.00390625
    %v272 = vlaneseq
    %v273 = vand.u32 %v272, 127
    %v274 = vperm.slane %v208, %v273
    %v275 = vadd.s32 %v273, 4294967288
    %v276 = vperm.slane %v209, %v275
    %vm277 = vcmask 130112
    %v278 = vsel %vm277, %v276, %v274
    %v279 = vadd.s32 %v273, 4294967280
    %v280 = vperm.slane %v210, %v279
    %vm281 = vcmask 195712
    %v282 = vsel %vm281, %v280, %v278
    %v283 = vadd.s32 %v273, 4294967272
    %v284 = vperm.slane %v211, %v283
    %vm285 = vcmask 261312
    %v286 = vsel %vm285, %v284, %v282
    %v287 = vadd.s32 %v273, 4294967264
    %v288 = vperm.slane %v212, %v287
    %vm289 = vcmask 326912
    %v290 = vsel %vm289, %v288, %v286
    %v291 = vadd.s32 %v273, 4294967256
    %v292 = vperm.slane %v213, %v291
    %vm293 = vcmask 392512
    %v294 = vsel %vm293, %v292, %v290
    %v295 = vadd.s32 %v273, 4294967248
    %v296 = vperm.slane %v214, %v295
    %vm297 = vcmask 458112
    %v298 = vsel %vm297, %v296, %v294
    %v299 = vadd.s32 %v273, 4294967240
    %v300 = vperm.slane %v215, %v299
    %vm301 = vcmask 523712
    %v302 = vsel %vm301, %v300, %v298
    %v303 = vadd.s32 %v273, 4294967232
    %v304 = vperm.slane %v216, %v303
    %vm305 = vcmask 589312
    %v306 = vsel %vm305, %v304, %v302
    %v307 = vadd.s32 %v273, 4294967224
    %v308 = vperm.slane %v217, %v307
    %vm309 = vcmask 654912
    %v310 = vsel %vm309, %v308, %v306
    %v311 = vadd.s32 %v273, 4294967216
    %v312 = vperm.slane %v218, %v311
    %vm313 = vcmask 720512
    %v314 = vsel %vm313, %v312, %v310
    %v315 = vadd.s32 %v273, 4294967208
    %v316 = vperm.slane %v219, %v315
    %vm317 = vcmask 786112
    %v318 = vsel %vm317, %v316, %v314
    %v319 = vadd.s32 %v273, 4294967200
    %v320 = vperm.slane %v220, %v319
    %vm321 = vcmask 851712
    %v322 = vsel %vm321, %v320, %v318
    %v323 = vadd.s32 %v273, 4294967192
    %v324 = vperm.slane %v221, %v323
    %vm325 = vcmask 917312
    %v326 = vsel %vm325, %v324, %v322
    %v327 = vadd.s32 %v273, 4294967184
    %v328 = vperm.slane %v222, %v327
    %vm329 = vcmask 982912
    %v330 = vsel %vm329, %v328, %v326
    %v331 = vadd.s32 %v273, 4294967176
    %v332 = vperm.slane %v223, %v331
    %vm333 = vcmask 1048512
    %v334 = vsel %vm333, %v332, %v330
    %v335 = vperm.slane %v224, %v273
    %v336 = vperm.slane %v225, %v275
    %v337 = vsel %vm277, %v336, %v335
    %v338 = vperm.slane %v226, %v279
    %v339 = vsel %vm281, %v338, %v337
    %v340 = vperm.slane %v227, %v283
    %v341 = vsel %vm285, %v340, %v339
    %v342 = vperm.slane %v228, %v287
    %v343 = vsel %vm289, %v342, %v341
    %v344 = vperm.slane %v229, %v291
    %v345 = vsel %vm293, %v344, %v343
    %v346 = vperm.slane %v230, %v295
    %v347 = vsel %vm297, %v346, %v345
    %v348 = vperm.slane %v231, %v299
    %v349 = vsel %vm301, %v348, %v347
    %v350 = vperm.slane %v232, %v303
    %v351 = vsel %vm305, %v350, %v349
    %v352 = vperm.slane %v233, %v307
    %v353 = vsel %vm309, %v352, %v351
    %v354 = vperm.slane %v234, %v311
    %v355 = vsel %vm313, %v354, %v353
    %v356 = vperm.slane %v235, %v315
    %v357 = vsel %vm317, %v356, %v355
    %v358 = vperm.slane %v236, %v319
    %v359 = vsel %vm321, %v358, %v357
    %v360 = vperm.slane %v237, %v323
    %v361 = vsel %vm325, %v360, %v359
    %v362 = vperm.slane %v238, %v327
    %v363 = vsel %vm329, %v362, %v361
    %v364 = vperm.slane %v239, %v331
    %v365 = vsel %vm333, %v364, %v363
    %vm366 = vcmask 1041409
    %v367 = vsel %vm366, %v365, %v334
    %369 = vst [vmem:[%s1] sm:$0x3] %v367
    %v370 = vld [vmem:[#allocation2] sm:$0xf]
    %v371 = vadd.f32 %v48, %v50
    %v372 = vadd.f32 %v371, %v52
    %v373 = vadd.f32 %v372, %v54
    %v374 = vadd.f32 %v373, %v56
    %v375 = vadd.f32 %v374, %v58
    %v376 = vadd.f32 %v375, %v60
    %v377 = vadd.f32 %v376, %v62
    %v378 = vadd.f32 %v377, %v64
    %v379 = vadd.f32 %v378, %v66
    %v380 = vadd.f32 %v379, %v68
    %v381 = vadd.f32 %v380, %v70
    %v382 = vadd.f32 %v381, %v72
    %v383 = vadd.f32 %v382, %v74
    %v384 = vadd.f32 %v383, %v76
    %v385 = vadd.f32 %v384, %v78
    %v386 = vrot.slane %v385, 4
    %v387 = vadd.f32 %v385, %v386
    %v388 = vrot.slane %v387, 2
    %v389 = vadd.f32 %v387, %v388
    %v390 = vrot.slane %v389, 1
    %v391 = vadd.f32 %v389, %v390
    %v392 = vadd.f32 %v49, %v51
    %v393 = vadd.f32 %v392, %v53
    %v394 = vadd.f32 %v393, %v55
    %v395 = vadd.f32 %v394, %v57
    %v396 = vadd.f32 %v395, %v59
    %v397 = vadd.f32 %v396, %v61
    %v398 = vadd.f32 %v397, %v63
    %v399 = vadd.f32 %v398, %v65
    %v400 = vadd.f32 %v399, %v67
    %v401 = vadd.f32 %v400, %v69
    %v402 = vadd.f32 %v401, %v71
    %v403 = vadd.f32 %v402, %v73
    %v404 = vadd.f32 %v403, %v75
    %v405 = vadd.f32 %v404, %v77
    %v406 = vadd.f32 %v405, %v79
    %v407 = vrot.slane %v406, 4
    %v408 = vadd.f32 %v406, %v407
    %v409 = vrot.slane %v408, 2
    %v410 = vadd.f32 %v408, %v409
    %v411 = vrot.slane %v410, 1
    %v412 = vadd.f32 %v410, %v411
    %v413 = vadd.f32 %v80, %v82
    %v414 = vadd.f32 %v413, %v84
    %v415 = vadd.f32 %v414, %v86
    %v416 = vadd.f32 %v415, %v88
    %v417 = vadd.f32 %v416, %v90
    %v418 = vadd.f32 %v417, %v92
    %v419 = vadd.f32 %v418, %v94
    %v420 = vadd.f32 %v419, %v96
    %v421 = vadd.f32 %v420, %v98
    %v422 = vadd.f32 %v421, %v100
    %v423 = vadd.f32 %v422, %v102
    %v424 = vadd.f32 %v423, %v104
    %v425 = vadd.f32 %v424, %v106
    %v426 = vadd.f32 %v425, %v108
    %v427 = vadd.f32 %v426, %v110
    %v428 = vrot.slane %v427, 4
    %v429 = vadd.f32 %v427, %v428
    %v430 = vrot.slane %v429, 2
    %v431 = vadd.f32 %v429, %v430
    %v432 = vrot.slane %v431, 1
    %v433 = vadd.f32 %v431, %v432
    %v434 = vadd.f32 %v81, %v83
    %v435 = vadd.f32 %v434, %v85
    %v436 = vadd.f32 %v435, %v87
    %v437 = vadd.f32 %v436, %v89
    %v438 = vadd.f32 %v437, %v91
    %v439 = vadd.f32 %v438, %v93
    %v440 = vadd.f32 %v439, %v95
    %v441 = vadd.f32 %v440, %v97
    %v442 = vadd.f32 %v441, %v99
    %v443 = vadd.f32 %v442, %v101
    %v444 = vadd.f32 %v443, %v103
    %v445 = vadd.f32 %v444, %v105
    %v446 = vadd.f32 %v445, %v107
    %v447 = vadd.f32 %v446, %v109
    %v448 = vadd.f32 %v447, %v111
    %v449 = vrot.slane %v448, 4
    %v450 = vadd.f32 %v448, %v449
    %v451 = vrot.slane %v450, 2
    %v452 = vadd.f32 %v450, %v451
    %v453 = vrot.slane %v452, 1
    %v454 = vadd.f32 %v452, %v453
    %v459 = vrot.slane %v412, 6
    %v460 = vrot.slane %v454, 6
    %vm461 = vcmask 1041408
    %v462 = vsel %vm461, %v391, %v459
    %v463 = vsel %vm461, %v433, %v460
    %vm464 = vcmask 1044484
    %v465 = vsel %vm464, %v462, %v462
    %vm466 = vcmask 1046534
    %v467 = vsel %vm466, %v462, %v465
    %v468 = vrot.slane %v463, 7
    %v469 = vsel %vm366, %v468, %v467
    %vm470 = vcmask 1043459
    %v471 = vsel %vm470, %v468, %v469
    %vm472 = vcmask 1045509
    %v473 = vsel %vm472, %v468, %v471
    %vm474 = vcmask 1047559
    %v475 = vsel %vm474, %v468, %v473
    %v477 = vadd.f32 %v370, %v475
    %478 = vst [vmem:[#allocation2] sm:$0xf] %v477
    // Predicated region
    $region10: #{feature_extractor_with_attention.33} parent=1 // pred_check
      %p479 = pneg %p11
    $region11: #{feature_extractor_with_attention.33} parent=1 // pred_check_branch
      %481 = sbr.rel (%p479) target = $region13
    $region12: #{feature_extractor_with_attention.33} parent=1 // pred_region
      %v482 = vld [vmem:[#allocation2] sm:$0xf]
      %v483 = vmul.f32 %v482, 0.25
      %484 = vst [vmem:[#allocation3] sm:$0xf] %v483
    $region13: #{feature_extractor_with_attention.33} parent=1 // pred_fallthru
      _
    // Predicated region
    $region14: #{feature_extractor_with_attention.33} parent=1 // pred_check
      _
    $region15: #{feature_extractor_with_attention.33} parent=1 // pred_check_branch
      %486 = sbr.rel (0) target = $region17
    $region16: #{feature_extractor_with_attention.33} parent=1 // pred_region
      _
    $region17: #{feature_extractor_with_attention.33} parent=1 // pred_fallthru
      _
    // Predicated region
    $region18: #{feature_extractor_with_attention.33} parent=1 // pred_check
      _
    $region19: #{feature_extractor_with_attention.33} parent=1 // pred_check_branch
      %488 = sbr.rel (0) target = $region21
    $region20: #{feature_extractor_with_attention.33} parent=1 // pred_region
      %490 = vsyncadd [#allocation4], 0
      %s492 = sshll.u32 [#allocation3], 4
      %s493 = int_to_ptr.vmem [resolvable:$true] %s492
      %s494 = sshll.u32 %s2, 4
      %s495 = int_to_ptr.hbm [resolvable:$true] %s494
      %497 = dma.vmem_to_hbm [thread:$0]  %s493, 64, %s495, [#allocation4]
    $region21: #{feature_extractor_with_attention.33} parent=1 // pred_fallthru
      _
    // Predicated region
    $region22: #{feature_extractor_with_attention.33} parent=1 // pred_check
      _
    $region23: #{feature_extractor_with_attention.33} parent=1 // pred_check_branch
      %499 = sbr.rel (0) target = $region25
    $region24: #{feature_extractor_with_attention.33} parent=1 // pred_region
      _
    $region25: #{feature_extractor_with_attention.33} parent=1 // pred_fallthru
      _
    // Predicated region
    $region26: #{feature_extractor_with_attention.33} parent=1 // pred_check
      _
    $region27: #{feature_extractor_with_attention.33} parent=1 // pred_check_branch
      %501 = sbr.rel (0) target = $region29
    $region28: #{feature_extractor_with_attention.33} parent=1 // pred_region
      %503 = dma.done [#allocation4], 64
    $region29: #{feature_extractor_with_attention.33} parent=1 // pred_fallthru
      _
    %504 = vsyncpa [#allocation4], 1

// kernel: feature_extractor_with_attention.30
$region0: #{feature_extractor_with_attention.30}
  #allocation0 [shape = 'u32[]', space=smem, size = 0x4, offset = 0x4, fixed_abs, tag = 'smem constant byte address 0x4 - core index']
  #allocation1 [shape = 'u32[72,128]{1,0:T(1,128)}', space=vmem, size = 0x9000, scoped, tag = 'internal scratch']
  %s0 = inlined_call_operand.vmem [shape: bf16[8,2304], index: 0, kind: input, shape index: {}]
  %s1 = inlined_call_operand.vmem [shape: bf16[2304,256], index: 1, kind: input, shape index: {}]
  %s2 = inlined_call_operand.vmem [shape: f32[1,256], index: 2, kind: input, shape index: {}]
  %s3 = inlined_call_operand.vmem [shape: f32[1,256], index: 3, kind: input, shape index: {}]
  %s4 = inlined_call_operand.vmem [shape: bf16[8,256], index: 4, kind: input, shape index: {}]
  %s5 = inlined_call_operand.vmem [shape: bf16[8,256], index: 5, kind: output, shape index: {}]
  %s6 = sld [smem:[#allocation0]]
  $region30: #{feature_extractor_with_attention.30} parent=0
    _
  %s8 = ssub.s32 1, %s6
  %s9 = scalar_select 0, %s8, %s6
  // Predicated region
  $region2: #{feature_extractor_with_attention.30} parent=0 // pred_check
    _
  $region3: #{feature_extractor_with_attention.30} parent=0 // pred_check_branch
    %11 = sbr.rel (0) target = $region5
  $region4: #{feature_extractor_with_attention.30} parent=0 // pred_region
    _
  $region5: #{feature_extractor_with_attention.30} parent=0 // pred_fallthru
    _
  // Predicated region
  $region6: #{feature_extractor_with_attention.30} parent=0 // pred_check
    _
  $region7: #{feature_extractor_with_attention.30} parent=0 // pred_check_branch
    %13 = sbr.rel (0) target = $region9
  $region8: #{feature_extractor_with_attention.30} parent=0 // pred_region
    _
  $region9: #{feature_extractor_with_attention.30} parent=0 // pred_fallthru
    _
  // Predicated region
  $region10: #{feature_extractor_with_attention.30} parent=0 // pred_check
    _
  $region11: #{feature_extractor_with_attention.30} parent=0 // pred_check_branch
    %15 = sbr.rel (0) target = $region13
  $region12: #{feature_extractor_with_attention.30} parent=0 // pred_region
    _
  $region13: #{feature_extractor_with_attention.30} parent=0 // pred_fallthru
    _
  // Predicated region
  $region14: #{feature_extractor_with_attention.30} parent=0 // pred_check
    _
  $region15: #{feature_extractor_with_attention.30} parent=0 // pred_check_branch
    %17 = sbr.rel (0) target = $region17
  $region16: #{feature_extractor_with_attention.30} parent=0 // pred_region
    _
  $region17: #{feature_extractor_with_attention.30} parent=0 // pred_fallthru
    _
  // Predicated region
  $region18: #{feature_extractor_with_attention.30} parent=0 // pred_check
    _
  $region19: #{feature_extractor_with_attention.30} parent=0 // pred_check_branch
    %19 = sbr.rel (0) target = $region21
  $region20: #{feature_extractor_with_attention.30} parent=0 // pred_region
    _
  $region21: #{feature_extractor_with_attention.30} parent=0 // pred_fallthru
    _
  %v20 = vld [vmem:[%s0] sm:$0xff]
  %v21 = vld [vmem:[%s0 + $0x8] sm:$0xff]
  %v22 = vld [vmem:[%s0 + $0x10] sm:$0xff]
  %v23 = vld [vmem:[%s0 + $0x18] sm:$0xff]
  %v24 = vld [vmem:[%s0 + $0x20] sm:$0xff]
  %v25 = vld [vmem:[%s0 + $0x28] sm:$0xff]
  %v26 = vld [vmem:[%s0 + $0x30] sm:$0xff]
  %v27 = vld [vmem:[%s0 + $0x38] sm:$0xff]
  %v28 = vld [vmem:[%s0 + $0x40] sm:$0xff]
  %v29 = vld [vmem:[%s1] sm:$0xff]
  %v30 = vld [vmem:[%s1 + $0x8] sm:$0xff]
  %v31 = vld [vmem:[%s1 + $0x10] sm:$0xff]
  %v32 = vld [vmem:[%s1 + $0x18] sm:$0xff]
  %v33 = vld [vmem:[%s1 + $0x20] sm:$0xff]
  %v34 = vld [vmem:[%s1 + $0x28] sm:$0xff]
  %v35 = vld [vmem:[%s1 + $0x30] sm:$0xff]
  %v36 = vld [vmem:[%s1 + $0x38] sm:$0xff]
  %v37 = vld [vmem:[%s1 + $0x40] sm:$0xff]
  %v38 = vld [vmem:[%s1 + $0x48] sm:$0xff]
  %v39 = vld [vmem:[%s1 + $0x50] sm:$0xff]
  %v40 = vld [vmem:[%s1 + $0x58] sm:$0xff]
  %v41 = vld [vmem:[%s1 + $0x60] sm:$0xff]
  %v42 = vld [vmem:[%s1 + $0x68] sm:$0xff]
  %v43 = vld [vmem:[%s1 + $0x70] sm:$0xff]
  %v44 = vld [vmem:[%s1 + $0x78] sm:$0xff]
  %v45 = vld [vmem:[%s1 + $0x80] sm:$0xff]
  %v46 = vld [vmem:[%s1 + $0x88] sm:$0xff]
  %v47 = vld [vmem:[%s1 + $0x90] sm:$0xff]
  %v48 = vld [vmem:[%s1 + $0x98] sm:$0xff]
  %v49 = vld [vmem:[%s1 + $0xa0] sm:$0xff]
  %v50 = vld [vmem:[%s1 + $0xa8] sm:$0xff]
  %v51 = vld [vmem:[%s1 + $0xb0] sm:$0xff]
  %v52 = vld [vmem:[%s1 + $0xb8] sm:$0xff]
  %v53 = vld [vmem:[%s1 + $0xc0] sm:$0xff]
  %v54 = vld [vmem:[%s1 + $0xc8] sm:$0xff]
  %v55 = vld [vmem:[%s1 + $0xd0] sm:$0xff]
  %v56 = vld [vmem:[%s1 + $0xd8] sm:$0xff]
  %v57 = vld [vmem:[%s1 + $0xe0] sm:$0xff]
  %v58 = vld [vmem:[%s1 + $0xe8] sm:$0xff]
  %v59 = vld [vmem:[%s1 + $0xf0] sm:$0xff]
  %v60 = vld [vmem:[%s1 + $0xf8] sm:$0xff]
  %v61 = vld [vmem:[%s1 + $0x100] sm:$0xff]
  %v62 = vld [vmem:[%s1 + $0x108] sm:$0xff]
  %v63 = vld [vmem:[%s1 + $0x110] sm:$0xff]
  %v64 = vld [vmem:[%s1 + $0x118] sm:$0xff]
  %v65 = vld [vmem:[%s1 + $0x120] sm:$0xff]
  %v66 = vld [vmem:[%s1 + $0x128] sm:$0xff]
  %v67 = vld [vmem:[%s1 + $0x130] sm:$0xff]
  %v68 = vld [vmem:[%s1 + $0x138] sm:$0xff]
  %v69 = vld [vmem:[%s1 + $0x140] sm:$0xff]
  %v70 = vld [vmem:[%s1 + $0x148] sm:$0xff]
  %v71 = vld [vmem:[%s1 + $0x150] sm:$0xff]
  %v72 = vld [vmem:[%s1 + $0x158] sm:$0xff]
  %v73 = vld [vmem:[%s1 + $0x160] sm:$0xff]
  %v74 = vld [vmem:[%s1 + $0x168] sm:$0xff]
  %v75 = vld [vmem:[%s1 + $0x170] sm:$0xff]
  %v76 = vld [vmem:[%s1 + $0x178] sm:$0xff]
  %v77 = vld [vmem:[%s1 + $0x180] sm:$0xff]
  %v78 = vld [vmem:[%s1 + $0x188] sm:$0xff]
  %v79 = vld [vmem:[%s1 + $0x190] sm:$0xff]
  %v80 = vld [vmem:[%s1 + $0x198] sm:$0xff]
  %v81 = vld [vmem:[%s1 + $0x1a0] sm:$0xff]
  %v82 = vld [vmem:[%s1 + $0x1a8] sm:$0xff]
  %v83 = vld [vmem:[%s1 + $0x1b0] sm:$0xff]
  %v84 = vld [vmem:[%s1 + $0x1b8] sm:$0xff]
  %v85 = vld [vmem:[%s1 + $0x1c0] sm:$0xff]
  %v86 = vld [vmem:[%s1 + $0x1c8] sm:$0xff]
  %v87 = vld [vmem:[%s1 + $0x1d0] sm:$0xff]
  %v88 = vld [vmem:[%s1 + $0x1d8] sm:$0xff]
  %v89 = vld [vmem:[%s1 + $0x1e0] sm:$0xff]
  %v90 = vld [vmem:[%s1 + $0x1e8] sm:$0xff]
  %v91 = vld [vmem:[%s1 + $0x1f0] sm:$0xff]
  %v92 = vld [vmem:[%s1 + $0x1f8] sm:$0xff]
  %v93 = vld [vmem:[%s1 + $0x200] sm:$0xff]
  %v94 = vld [vmem:[%s1 + $0x208] sm:$0xff]
  %v95 = vld [vmem:[%s1 + $0x210] sm:$0xff]
  %v96 = vld [vmem:[%s1 + $0x218] sm:$0xff]
  %v97 = vld [vmem:[%s1 + $0x220] sm:$0xff]
  %v98 = vld [vmem:[%s1 + $0x228] sm:$0xff]
  %v99 = vld [vmem:[%s1 + $0x230] sm:$0xff]
  %v100 = vld [vmem:[%s1 + $0x238] sm:$0xff]
  %v101 = vld [vmem:[%s1 + $0x240] sm:$0xff]
  %v102 = vld [vmem:[%s1 + $0x248] sm:$0xff]
  %v103 = vld [vmem:[%s1 + $0x250] sm:$0xff]
  %v104 = vld [vmem:[%s1 + $0x258] sm:$0xff]
  %v105 = vld [vmem:[%s1 + $0x260] sm:$0xff]
  %v106 = vld [vmem:[%s1 + $0x268] sm:$0xff]
  %v107 = vld [vmem:[%s1 + $0x270] sm:$0xff]
  %v108 = vld [vmem:[%s1 + $0x278] sm:$0xff]
  %v109 = vld [vmem:[%s1 + $0x280] sm:$0xff]
  %v110 = vld [vmem:[%s1 + $0x288] sm:$0xff]
  %v111 = vld [vmem:[%s1 + $0x290] sm:$0xff]
  %v112 = vld [vmem:[%s1 + $0x298] sm:$0xff]
  %v113 = vld [vmem:[%s1 + $0x2a0] sm:$0xff]
  %v114 = vld [vmem:[%s1 + $0x2a8] sm:$0xff]
  %v115 = vld [vmem:[%s1 + $0x2b0] sm:$0xff]
  %v116 = vld [vmem:[%s1 + $0x2b8] sm:$0xff]
  %v117 = vld [vmem:[%s1 + $0x2c0] sm:$0xff]
  %v118 = vld [vmem:[%s1 + $0x2c8] sm:$0xff]
  %v119 = vld [vmem:[%s1 + $0x2d0] sm:$0xff]
  %v120 = vld [vmem:[%s1 + $0x2d8] sm:$0xff]
  %v121 = vld [vmem:[%s1 + $0x2e0] sm:$0xff]
  %v122 = vld [vmem:[%s1 + $0x2e8] sm:$0xff]
  %v123 = vld [vmem:[%s1 + $0x2f0] sm:$0xff]
  %v124 = vld [vmem:[%s1 + $0x2f8] sm:$0xff]
  %v125 = vld [vmem:[%s1 + $0x300] sm:$0xff]
  %v126 = vld [vmem:[%s1 + $0x308] sm:$0xff]
  %v127 = vld [vmem:[%s1 + $0x310] sm:$0xff]
  %v128 = vld [vmem:[%s1 + $0x318] sm:$0xff]
  %v129 = vld [vmem:[%s1 + $0x320] sm:$0xff]
  %v130 = vld [vmem:[%s1 + $0x328] sm:$0xff]
  %v131 = vld [vmem:[%s1 + $0x330] sm:$0xff]
  %v132 = vld [vmem:[%s1 + $0x338] sm:$0xff]
  %v133 = vld [vmem:[%s1 + $0x340] sm:$0xff]
  %v134 = vld [vmem:[%s1 + $0x348] sm:$0xff]
  %v135 = vld [vmem:[%s1 + $0x350] sm:$0xff]
  %v136 = vld [vmem:[%s1 + $0x358] sm:$0xff]
  %v137 = vld [vmem:[%s1 + $0x360] sm:$0xff]
  %v138 = vld [vmem:[%s1 + $0x368] sm:$0xff]
  %v139 = vld [vmem:[%s1 + $0x370] sm:$0xff]
  %v140 = vld [vmem:[%s1 + $0x378] sm:$0xff]
  %v141 = vld [vmem:[%s1 + $0x380] sm:$0xff]
  %v142 = vld [vmem:[%s1 + $0x388] sm:$0xff]
  %v143 = vld [vmem:[%s1 + $0x390] sm:$0xff]
  %v144 = vld [vmem:[%s1 + $0x398] sm:$0xff]
  %v145 = vld [vmem:[%s1 + $0x3a0] sm:$0xff]
  %v146 = vld [vmem:[%s1 + $0x3a8] sm:$0xff]
  %v147 = vld [vmem:[%s1 + $0x3b0] sm:$0xff]
  %v148 = vld [vmem:[%s1 + $0x3b8] sm:$0xff]
  %v149 = vld [vmem:[%s1 + $0x3c0] sm:$0xff]
  %v150 = vld [vmem:[%s1 + $0x3c8] sm:$0xff]
  %v151 = vld [vmem:[%s1 + $0x3d0] sm:$0xff]
  %v152 = vld [vmem:[%s1 + $0x3d8] sm:$0xff]
  %v153 = vld [vmem:[%s1 + $0x3e0] sm:$0xff]
  %v154 = vld [vmem:[%s1 + $0x3e8] sm:$0xff]
  %v155 = vld [vmem:[%s1 + $0x3f0] sm:$0xff]
  %v156 = vld [vmem:[%s1 + $0x3f8] sm:$0xff]
  %v157 = vld [vmem:[%s1 + $0x400] sm:$0xff]
  %v158 = vld [vmem:[%s1 + $0x408] sm:$0xff]
  %v159 = vld [vmem:[%s1 + $0x410] sm:$0xff]
  %v160 = vld [vmem:[%s1 + $0x418] sm:$0xff]
  %v161 = vld [vmem:[%s1 + $0x420] sm:$0xff]
  %v162 = vld [vmem:[%s1 + $0x428] sm:$0xff]
  %v163 = vld [vmem:[%s1 + $0x430] sm:$0xff]
  %v164 = vld [vmem:[%s1 + $0x438] sm:$0xff]
  %v165 = vld [vmem:[%s1 + $0x440] sm:$0xff]
  %v166 = vld [vmem:[%s1 + $0x448] sm:$0xff]
  %v167 = vld [vmem:[%s1 + $0x450] sm:$0xff]
  %v168 = vld [vmem:[%s1 + $0x458] sm:$0xff]
  %v169 = vld [vmem:[%s1 + $0x460] sm:$0xff]
  %v170 = vld [vmem:[%s1 + $0x468] sm:$0xff]
  %v171 = vld [vmem:[%s1 + $0x470] sm:$0xff]
  %v172 = vld [vmem:[%s1 + $0x478] sm:$0xff]
  %v173 = vld [vmem:[%s1 + $0x480] sm:$0xff]
  %v174 = vld [vmem:[%s1 + $0x488] sm:$0xff]
  %v175 = vld [vmem:[%s1 + $0x490] sm:$0xff]
  %v176 = vld [vmem:[%s1 + $0x498] sm:$0xff]
  %v177 = vld [vmem:[%s1 + $0x4a0] sm:$0xff]
  %v178 = vld [vmem:[%s1 + $0x4a8] sm:$0xff]
  %v179 = vld [vmem:[%s1 + $0x4b0] sm:$0xff]
  %v180 = vld [vmem:[%s1 + $0x4b8] sm:$0xff]
  %v181 = vld [vmem:[%s1 + $0x4c0] sm:$0xff]
  %v182 = vld [vmem:[%s1 + $0x4c8] sm:$0xff]
  %v183 = vld [vmem:[%s1 + $0x4d0] sm:$0xff]
  %v184 = vld [vmem:[%s1 + $0x4d8] sm:$0xff]
  %v185 = vld [vmem:[%s1 + $0x4e0] sm:$0xff]
  %v186 = vld [vmem:[%s1 + $0x4e8] sm:$0xff]
  %v187 = vld [vmem:[%s1 + $0x4f0] sm:$0xff]
  %v188 = vld [vmem:[%s1 + $0x4f8] sm:$0xff]
  %v189 = vld [vmem:[%s1 + $0x500] sm:$0xff]
  %v190 = vld [vmem:[%s1 + $0x508] sm:$0xff]
  %v191 = vld [vmem:[%s1 + $0x510] sm:$0xff]
  %v192 = vld [vmem:[%s1 + $0x518] sm:$0xff]
  %v193 = vld [vmem:[%s1 + $0x520] sm:$0xff]
  %v194 = vld [vmem:[%s1 + $0x528] sm:$0xff]
  %v195 = vld [vmem:[%s1 + $0x530] sm:$0xff]
  %v196 = vld [vmem:[%s1 + $0x538] sm:$0xff]
  %v197 = vld [vmem:[%s1 + $0x540] sm:$0xff]
  %v198 = vld [vmem:[%s1 + $0x548] sm:$0xff]
  %v199 = vld [vmem:[%s1 + $0x550] sm:$0xff]
  %v200 = vld [vmem:[%s1 + $0x558] sm:$0xff]
  %v201 = vld [vmem:[%s1 + $0x560] sm:$0xff]
  %v202 = vld [vmem:[%s1 + $0x568] sm:$0xff]
  %v203 = vld [vmem:[%s1 + $0x570] sm:$0xff]
  %v204 = vld [vmem:[%s1 + $0x578] sm:$0xff]
  %v205 = vld [vmem:[%s1 + $0x580] sm:$0xff]
  %v206 = vld [vmem:[%s1 + $0x588] sm:$0xff]
  %v207 = vld [vmem:[%s1 + $0x590] sm:$0xff]
  %v208 = vld [vmem:[%s1 + $0x598] sm:$0xff]
  %v209 = vld [vmem:[%s1 + $0x5a0] sm:$0xff]
  %v210 = vld [vmem:[%s1 + $0x5a8] sm:$0xff]
  %v211 = vld [vmem:[%s1 + $0x5b0] sm:$0xff]
  %v212 = vld [vmem:[%s1 + $0x5b8] sm:$0xff]
  %v213 = vld [vmem:[%s1 + $0x5c0] sm:$0xff]
  %v214 = vld [vmem:[%s1 + $0x5c8] sm:$0xff]
  %v215 = vld [vmem:[%s1 + $0x5d0] sm:$0xff]
  %v216 = vld [vmem:[%s1 + $0x5d8] sm:$0xff]
  %v217 = vld [vmem:[%s1 + $0x5e0] sm:$0xff]
  %v218 = vld [vmem:[%s1 + $0x5e8] sm:$0xff]
  %v219 = vld [vmem:[%s1 + $0x5f0] sm:$0xff]
  %v220 = vld [vmem:[%s1 + $0x5f8] sm:$0xff]
  %v221 = vld [vmem:[%s1 + $0x600] sm:$0xff]
  %v222 = vld [vmem:[%s1 + $0x608] sm:$0xff]
  %v223 = vld [vmem:[%s1 + $0x610] sm:$0xff]
  %v224 = vld [vmem:[%s1 + $0x618] sm:$0xff]
  %v225 = vld [vmem:[%s1 + $0x620] sm:$0xff]
  %v226 = vld [vmem:[%s1 + $0x628] sm:$0xff]
  %v227 = vld [vmem:[%s1 + $0x630] sm:$0xff]
  %v228 = vld [vmem:[%s1 + $0x638] sm:$0xff]
  %v229 = vld [vmem:[%s1 + $0x640] sm:$0xff]
  %v230 = vld [vmem:[%s1 + $0x648] sm:$0xff]
  %v231 = vld [vmem:[%s1 + $0x650] sm:$0xff]
  %v232 = vld [vmem:[%s1 + $0x658] sm:$0xff]
  %v233 = vld [vmem:[%s1 + $0x660] sm:$0xff]
  %v234 = vld [vmem:[%s1 + $0x668] sm:$0xff]
  %v235 = vld [vmem:[%s1 + $0x670] sm:$0xff]
  %v236 = vld [vmem:[%s1 + $0x678] sm:$0xff]
  %v237 = vld [vmem:[%s1 + $0x680] sm:$0xff]
  %v238 = vld [vmem:[%s1 + $0x688] sm:$0xff]
  %v239 = vld [vmem:[%s1 + $0x690] sm:$0xff]
  %v240 = vld [vmem:[%s1 + $0x698] sm:$0xff]
  %v241 = vld [vmem:[%s1 + $0x6a0] sm:$0xff]
  %v242 = vld [vmem:[%s1 + $0x6a8] sm:$0xff]
  %v243 = vld [vmem:[%s1 + $0x6b0] sm:$0xff]
  %v244 = vld [vmem:[%s1 + $0x6b8] sm:$0xff]
  %v245 = vld [vmem:[%s1 + $0x6c0] sm:$0xff]
  %v246 = vld [vmem:[%s1 + $0x6c8] sm:$0xff]
  %v247 = vld [vmem:[%s1 + $0x6d0] sm:$0xff]
  %v248 = vld [vmem:[%s1 + $0x6d8] sm:$0xff]
  %v249 = vld [vmem:[%s1 + $0x6e0] sm:$0xff]
  %v250 = vld [vmem:[%s1 + $0x6e8] sm:$0xff]
  %v251 = vld [vmem:[%s1 + $0x6f0] sm:$0xff]
  %v252 = vld [vmem:[%s1 + $0x6f8] sm:$0xff]
  %v253 = vld [vmem:[%s1 + $0x700] sm:$0xff]
  %v254 = vld [vmem:[%s1 + $0x708] sm:$0xff]
  %v255 = vld [vmem:[%s1 + $0x710] sm:$0xff]
  %v256 = vld [vmem:[%s1 + $0x718] sm:$0xff]
  %v257 = vld [vmem:[%s1 + $0x720] sm:$0xff]
  %v258 = vld [vmem:[%s1 + $0x728] sm:$0xff]
  %v259 = vld [vmem:[%s1 + $0x730] sm:$0xff]
  %v260 = vld [vmem:[%s1 + $0x738] sm:$0xff]
  %v261 = vld [vmem:[%s1 + $0x740] sm:$0xff]
  %v262 = vld [vmem:[%s1 + $0x748] sm:$0xff]
  %v263 = vld [vmem:[%s1 + $0x750] sm:$0xff]
  %v264 = vld [vmem:[%s1 + $0x758] sm:$0xff]
  %v265 = vld [vmem:[%s1 + $0x760] sm:$0xff]
  %v266 = vld [vmem:[%s1 + $0x768] sm:$0xff]
  %v267 = vld [vmem:[%s1 + $0x770] sm:$0xff]
  %v268 = vld [vmem:[%s1 + $0x778] sm:$0xff]
  %v269 = vld [vmem:[%s1 + $0x780] sm:$0xff]
  %v270 = vld [vmem:[%s1 + $0x788] sm:$0xff]
  %v271 = vld [vmem:[%s1 + $0x790] sm:$0xff]
  %v272 = vld [vmem:[%s1 + $0x798] sm:$0xff]
  %v273 = vld [vmem:[%s1 + $0x7a0] sm:$0xff]
  %v274 = vld [vmem:[%s1 + $0x7a8] sm:$0xff]
  %v275 = vld [vmem:[%s1 + $0x7b0] sm:$0xff]
  %v276 = vld [vmem:[%s1 + $0x7b8] sm:$0xff]
  %v277 = vld [vmem:[%s1 + $0x7c0] sm:$0xff]
  %v278 = vld [vmem:[%s1 + $0x7c8] sm:$0xff]
  %v279 = vld [vmem:[%s1 + $0x7d0] sm:$0xff]
  %v280 = vld [vmem:[%s1 + $0x7d8] sm:$0xff]
  %v281 = vld [vmem:[%s1 + $0x7e0] sm:$0xff]
  %v282 = vld [vmem:[%s1 + $0x7e8] sm:$0xff]
  %v283 = vld [vmem:[%s1 + $0x7f0] sm:$0xff]
  %v284 = vld [vmem:[%s1 + $0x7f8] sm:$0xff]
  %v285 = vld [vmem:[%s1 + $0x800] sm:$0xff]
  %v286 = vld [vmem:[%s1 + $0x808] sm:$0xff]
  %v287 = vld [vmem:[%s1 + $0x810] sm:$0xff]
  %v288 = vld [vmem:[%s1 + $0x818] sm:$0xff]
  %v289 = vld [vmem:[%s1 + $0x820] sm:$0xff]
  %v290 = vld [vmem:[%s1 + $0x828] sm:$0xff]
  %v291 = vld [vmem:[%s1 + $0x830] sm:$0xff]
  %v292 = vld [vmem:[%s1 + $0x838] sm:$0xff]
  %v293 = vld [vmem:[%s1 + $0x840] sm:$0xff]
  %v294 = vld [vmem:[%s1 + $0x848] sm:$0xff]
  %v295 = vld [vmem:[%s1 + $0x850] sm:$0xff]
  %v296 = vld [vmem:[%s1 + $0x858] sm:$0xff]
  %v297 = vld [vmem:[%s1 + $0x860] sm:$0xff]
  %v298 = vld [vmem:[%s1 + $0x868] sm:$0xff]
  %v299 = vld [vmem:[%s1 + $0x870] sm:$0xff]
  %v300 = vld [vmem:[%s1 + $0x878] sm:$0xff]
  %v301 = vld [vmem:[%s1 + $0x880] sm:$0xff]
  %v302 = vld [vmem:[%s1 + $0x888] sm:$0xff]
  %v303 = vld [vmem:[%s1 + $0x890] sm:$0xff]
  %v304 = vld [vmem:[%s1 + $0x898] sm:$0xff]
  %v305 = vld [vmem:[%s1 + $0x8a0] sm:$0xff]
  %v306 = vld [vmem:[%s1 + $0x8a8] sm:$0xff]
  %v307 = vld [vmem:[%s1 + $0x8b0] sm:$0xff]
  %v308 = vld [vmem:[%s1 + $0x8b8] sm:$0xff]
  %v309 = vld [vmem:[%s1 + $0x8c0] sm:$0xff]
  %v310 = vld [vmem:[%s1 + $0x8c8] sm:$0xff]
  %v311 = vld [vmem:[%s1 + $0x8d0] sm:$0xff]
  %v312 = vld [vmem:[%s1 + $0x8d8] sm:$0xff]
  %v313 = vld [vmem:[%s1 + $0x8e0] sm:$0xff]
  %v314 = vld [vmem:[%s1 + $0x8e8] sm:$0xff]
  %v315 = vld [vmem:[%s1 + $0x8f0] sm:$0xff]
  %v316 = vld [vmem:[%s1 + $0x8f8] sm:$0xff]
  %v326 = vunpack.c.l.b16 %v20
  %v327 = vunpack.c.h.b16 %v20
  %v328 = vunpack.c.l.b16 %v21
  %v329 = vunpack.c.h.b16 %v21
  %v330 = vunpack.c.l.b16 %v22
  %v331 = vunpack.c.h.b16 %v22
  %v332 = vunpack.c.l.b16 %v23
  %v333 = vunpack.c.h.b16 %v23
  %v334 = vunpack.c.l.b16 %v24
  %v335 = vunpack.c.h.b16 %v24
  %v336 = vunpack.c.l.b16 %v25
  %v337 = vunpack.c.h.b16 %v25
  %v338 = vunpack.c.l.b16 %v26
  %v339 = vunpack.c.h.b16 %v26
  %v340 = vunpack.c.l.b16 %v27
  %v341 = vunpack.c.h.b16 %v27
  %v342 = vunpack.c.l.b16 %v28
  %v343 = vunpack.c.h.b16 %v28
  %v344 = vpack.c.b16 %v326, %v326
  %v345 = vpack.c.b16 %v327, %v327
  %v346 = vpack.c.b16 %v328, %v328
  %v347 = vpack.c.b16 %v329, %v329
  %v348 = vpack.c.b16 %v330, %v330
  %v349 = vpack.c.b16 %v331, %v331
  %v350 = vpack.c.b16 %v332, %v332
  %v351 = vpack.c.b16 %v333, %v333
  %v352 = vpack.c.b16 %v334, %v334
  %v353 = vpack.c.b16 %v335, %v335
  %v354 = vpack.c.b16 %v336, %v336
  %v355 = vpack.c.b16 %v337, %v337
  %v356 = vpack.c.b16 %v338, %v338
  %v357 = vpack.c.b16 %v339, %v339
  %v358 = vpack.c.b16 %v340, %v340
  %v359 = vpack.c.b16 %v341, %v341
  %v360 = vpack.c.b16 %v342, %v342
  %v361 = vpack.c.b16 %v343, %v343
  %v668 = vunpack.c.l.b16 %v29
  %v669 = vunpack.c.h.b16 %v29
  %v670 = vunpack.c.l.b16 %v30
  %v671 = vunpack.c.h.b16 %v30
  %v672 = vunpack.c.l.b16 %v31
  %v673 = vunpack.c.h.b16 %v31
  %v674 = vunpack.c.l.b16 %v32
  %v675 = vunpack.c.h.b16 %v32
  %v676 = vunpack.c.l.b16 %v33
  %v677 = vunpack.c.h.b16 %v33
  %v678 = vunpack.c.l.b16 %v34
  %v679 = vunpack.c.h.b16 %v34
  %v680 = vunpack.c.l.b16 %v35
  %v681 = vunpack.c.h.b16 %v35
  %v682 = vunpack.c.l.b16 %v36
  %v683 = vunpack.c.h.b16 %v36
  %v684 = vunpack.c.l.b16 %v37
  %v685 = vunpack.c.h.b16 %v37
  %v686 = vunpack.c.l.b16 %v38
  %v687 = vunpack.c.h.b16 %v38
  %v688 = vunpack.c.l.b16 %v39
  %v689 = vunpack.c.h.b16 %v39
  %v690 = vunpack.c.l.b16 %v40
  %v691 = vunpack.c.h.b16 %v40
  %v692 = vunpack.c.l.b16 %v41
  %v693 = vunpack.c.h.b16 %v41
  %v694 = vunpack.c.l.b16 %v42
  %v695 = vunpack.c.h.b16 %v42
  %v696 = vunpack.c.l.b16 %v43
  %v697 = vunpack.c.h.b16 %v43
  %v698 = vunpack.c.l.b16 %v44
  %v699 = vunpack.c.h.b16 %v44
  %v700 = vunpack.c.l.b16 %v45
  %v701 = vunpack.c.h.b16 %v45
  %v702 = vunpack.c.l.b16 %v46
  %v703 = vunpack.c.h.b16 %v46
  %v704 = vunpack.c.l.b16 %v47
  %v705 = vunpack.c.h.b16 %v47
  %v706 = vunpack.c.l.b16 %v48
  %v707 = vunpack.c.h.b16 %v48
  %v708 = vunpack.c.l.b16 %v49
  %v709 = vunpack.c.h.b16 %v49
  %v710 = vunpack.c.l.b16 %v50
  %v711 = vunpack.c.h.b16 %v50
  %v712 = vunpack.c.l.b16 %v51
  %v713 = vunpack.c.h.b16 %v51
  %v714 = vunpack.c.l.b16 %v52
  %v715 = vunpack.c.h.b16 %v52
  %v716 = vunpack.c.l.b16 %v53
  %v717 = vunpack.c.h.b16 %v53
  %v718 = vunpack.c.l.b16 %v54
  %v719 = vunpack.c.h.b16 %v54
  %v720 = vunpack.c.l.b16 %v55
  %v721 = vunpack.c.h.b16 %v55
  %v722 = vunpack.c.l.b16 %v56
  %v723 = vunpack.c.h.b16 %v56
  %v724 = vunpack.c.l.b16 %v57
  %v725 = vunpack.c.h.b16 %v57
  %v726 = vunpack.c.l.b16 %v58
  %v727 = vunpack.c.h.b16 %v58
  %v728 = vunpack.c.l.b16 %v59
  %v729 = vunpack.c.h.b16 %v59
  %v730 = vunpack.c.l.b16 %v60
  %v731 = vunpack.c.h.b16 %v60
  %v732 = vunpack.c.l.b16 %v61
  %v733 = vunpack.c.h.b16 %v61
  %v734 = vunpack.c.l.b16 %v62
  %v735 = vunpack.c.h.b16 %v62
  %v736 = vunpack.c.l.b16 %v63
  %v737 = vunpack.c.h.b16 %v63
  %v738 = vunpack.c.l.b16 %v64
  %v739 = vunpack.c.h.b16 %v64
  %v740 = vunpack.c.l.b16 %v65
  %v741 = vunpack.c.h.b16 %v65
  %v742 = vunpack.c.l.b16 %v66
  %v743 = vunpack.c.h.b16 %v66
  %v744 = vunpack.c.l.b16 %v67
  %v745 = vunpack.c.h.b16 %v67
  %v746 = vunpack.c.l.b16 %v68
  %v747 = vunpack.c.h.b16 %v68
  %v748 = vunpack.c.l.b16 %v69
  %v749 = vunpack.c.h.b16 %v69
  %v750 = vunpack.c.l.b16 %v70
  %v751 = vunpack.c.h.b16 %v70
  %v752 = vunpack.c.l.b16 %v71
  %v753 = vunpack.c.h.b16 %v71
  %v754 = vunpack.c.l.b16 %v72
  %v755 = vunpack.c.h.b16 %v72
  %v756 = vunpack.c.l.b16 %v73
  %v757 = vunpack.c.h.b16 %v73
  %v758 = vunpack.c.l.b16 %v74
  %v759 = vunpack.c.h.b16 %v74
  %v760 = vunpack.c.l.b16 %v75
  %v761 = vunpack.c.h.b16 %v75
  %v762 = vunpack.c.l.b16 %v76
  %v763 = vunpack.c.h.b16 %v76
  %v764 = vunpack.c.l.b16 %v77
  %v765 = vunpack.c.h.b16 %v77
  %v766 = vunpack.c.l.b16 %v78
  %v767 = vunpack.c.h.b16 %v78
  %v768 = vunpack.c.l.b16 %v79
  %v769 = vunpack.c.h.b16 %v79
  %v770 = vunpack.c.l.b16 %v80
  %v771 = vunpack.c.h.b16 %v80
  %v772 = vunpack.c.l.b16 %v81
  %v773 = vunpack.c.h.b16 %v81
  %v774 = vunpack.c.l.b16 %v82
  %v775 = vunpack.c.h.b16 %v82
  %v776 = vunpack.c.l.b16 %v83
  %v777 = vunpack.c.h.b16 %v83
  %v778 = vunpack.c.l.b16 %v84
  %v779 = vunpack.c.h.b16 %v84
  %v780 = vunpack.c.l.b16 %v85
  %v781 = vunpack.c.h.b16 %v85
  %v782 = vunpack.c.l.b16 %v86
  %v783 = vunpack.c.h.b16 %v86
  %v784 = vunpack.c.l.b16 %v87
  %v785 = vunpack.c.h.b16 %v87
  %v786 = vunpack.c.l.b16 %v88
  %v787 = vunpack.c.h.b16 %v88
  %v788 = vunpack.c.l.b16 %v89
  %v789 = vunpack.c.h.b16 %v89
  %v790 = vunpack.c.l.b16 %v90
  %v791 = vunpack.c.h.b16 %v90
  %v792 = vunpack.c.l.b16 %v91
  %v793 = vunpack.c.h.b16 %v91
  %v794 = vunpack.c.l.b16 %v92
  %v795 = vunpack.c.h.b16 %v92
  %v796 = vunpack.c.l.b16 %v93
  %v797 = vunpack.c.h.b16 %v93
  %v798 = vunpack.c.l.b16 %v94
  %v799 = vunpack.c.h.b16 %v94
  %v800 = vunpack.c.l.b16 %v95
  %v801 = vunpack.c.h.b16 %v95
  %v802 = vunpack.c.l.b16 %v96
  %v803 = vunpack.c.h.b16 %v96
  %v804 = vunpack.c.l.b16 %v97
  %v805 = vunpack.c.h.b16 %v97
  %v806 = vunpack.c.l.b16 %v98
  %v807 = vunpack.c.h.b16 %v98
  %v808 = vunpack.c.l.b16 %v99
  %v809 = vunpack.c.h.b16 %v99
  %v810 = vunpack.c.l.b16 %v100
  %v811 = vunpack.c.h.b16 %v100
  %v812 = vunpack.c.l.b16 %v101
  %v813 = vunpack.c.h.b16 %v101
  %v814 = vunpack.c.l.b16 %v102
  %v815 = vunpack.c.h.b16 %v102
  %v816 = vunpack.c.l.b16 %v103
  %v817 = vunpack.c.h.b16 %v103
  %v818 = vunpack.c.l.b16 %v104
  %v819 = vunpack.c.h.b16 %v104
  %v820 = vunpack.c.l.b16 %v105
  %v821 = vunpack.c.h.b16 %v105
  %v822 = vunpack.c.l.b16 %v106
  %v823 = vunpack.c.h.b16 %v106
  %v824 = vunpack.c.l.b16 %v107
  %v825 = vunpack.c.h.b16 %v107
  %v826 = vunpack.c.l.b16 %v108
  %v827 = vunpack.c.h.b16 %v108
  %v828 = vunpack.c.l.b16 %v109
  %v829 = vunpack.c.h.b16 %v109
  %v830 = vunpack.c.l.b16 %v110
  %v831 = vunpack.c.h.b16 %v110
  %v832 = vunpack.c.l.b16 %v111
  %v833 = vunpack.c.h.b16 %v111
  %v834 = vunpack.c.l.b16 %v112
  %v835 = vunpack.c.h.b16 %v112
  %v836 = vunpack.c.l.b16 %v113
  %v837 = vunpack.c.h.b16 %v113
  %v838 = vunpack.c.l.b16 %v114
  %v839 = vunpack.c.h.b16 %v114
  %v840 = vunpack.c.l.b16 %v115
  %v841 = vunpack.c.h.b16 %v115
  %v842 = vunpack.c.l.b16 %v116
  %v843 = vunpack.c.h.b16 %v116
  %v844 = vunpack.c.l.b16 %v117
  %v845 = vunpack.c.h.b16 %v117
  %v846 = vunpack.c.l.b16 %v118
  %v847 = vunpack.c.h.b16 %v118
  %v848 = vunpack.c.l.b16 %v119
  %v849 = vunpack.c.h.b16 %v119
  %v850 = vunpack.c.l.b16 %v120
  %v851 = vunpack.c.h.b16 %v120
  %v852 = vunpack.c.l.b16 %v121
  %v853 = vunpack.c.h.b16 %v121
  %v854 = vunpack.c.l.b16 %v122
  %v855 = vunpack.c.h.b16 %v122
  %v856 = vunpack.c.l.b16 %v123
  %v857 = vunpack.c.h.b16 %v123
  %v858 = vunpack.c.l.b16 %v124
  %v859 = vunpack.c.h.b16 %v124
  %v860 = vunpack.c.l.b16 %v125
  %v861 = vunpack.c.h.b16 %v125
  %v862 = vunpack.c.l.b16 %v126
  %v863 = vunpack.c.h.b16 %v126
  %v864 = vunpack.c.l.b16 %v127
  %v865 = vunpack.c.h.b16 %v127
  %v866 = vunpack.c.l.b16 %v128
  %v867 = vunpack.c.h.b16 %v128
  %v868 = vunpack.c.l.b16 %v129
  %v869 = vunpack.c.h.b16 %v129
  %v870 = vunpack.c.l.b16 %v130
  %v871 = vunpack.c.h.b16 %v130
  %v872 = vunpack.c.l.b16 %v131
  %v873 = vunpack.c.h.b16 %v131
  %v874 = vunpack.c.l.b16 %v132
  %v875 = vunpack.c.h.b16 %v132
  %v876 = vunpack.c.l.b16 %v133
  %v877 = vunpack.c.h.b16 %v133
  %v878 = vunpack.c.l.b16 %v134
  %v879 = vunpack.c.h.b16 %v134
  %v880 = vunpack.c.l.b16 %v135
  %v881 = vunpack.c.h.b16 %v135
  %v882 = vunpack.c.l.b16 %v136
  %v883 = vunpack.c.h.b16 %v136
  %v884 = vunpack.c.l.b16 %v137
  %v885 = vunpack.c.h.b16 %v137
  %v886 = vunpack.c.l.b16 %v138
  %v887 = vunpack.c.h.b16 %v138
  %v888 = vunpack.c.l.b16 %v139
  %v889 = vunpack.c.h.b16 %v139
  %v890 = vunpack.c.l.b16 %v140
  %v891 = vunpack.c.h.b16 %v140
  %v892 = vunpack.c.l.b16 %v141
  %v893 = vunpack.c.h.b16 %v141
  %v894 = vunpack.c.l.b16 %v142
  %v895 = vunpack.c.h.b16 %v142
  %v896 = vunpack.c.l.b16 %v143
  %v897 = vunpack.c.h.b16 %v143
  %v898 = vunpack.c.l.b16 %v144
  %v899 = vunpack.c.h.b16 %v144
  %v900 = vunpack.c.l.b16 %v145
  %v901 = vunpack.c.h.b16 %v145
  %v902 = vunpack.c.l.b16 %v146
  %v903 = vunpack.c.h.b16 %v146
  %v904 = vunpack.c.l.b16 %v147
  %v905 = vunpack.c.h.b16 %v147
  %v906 = vunpack.c.l.b16 %v148
  %v907 = vunpack.c.h.b16 %v148
  %v908 = vunpack.c.l.b16 %v149
  %v909 = vunpack.c.h.b16 %v149
  %v910 = vunpack.c.l.b16 %v150
  %v911 = vunpack.c.h.b16 %v150
  %v912 = vunpack.c.l.b16 %v151
  %v913 = vunpack.c.h.b16 %v151
  %v914 = vunpack.c.l.b16 %v152
  %v915 = vunpack.c.h.b16 %v152
  %v916 = vunpack.c.l.b16 %v153
  %v917 = vunpack.c.h.b16 %v153
  %v918 = vunpack.c.l.b16 %v154
  %v919 = vunpack.c.h.b16 %v154
  %v920 = vunpack.c.l.b16 %v155
  %v921 = vunpack.c.h.b16 %v155
  %v922 = vunpack.c.l.b16 %v156
  %v923 = vunpack.c.h.b16 %v156
  %v924 = vunpack.c.l.b16 %v157
  %v925 = vunpack.c.h.b16 %v157
  %v926 = vunpack.c.l.b16 %v158
  %v927 = vunpack.c.h.b16 %v158
  %v928 = vunpack.c.l.b16 %v159
  %v929 = vunpack.c.h.b16 %v159
  %v930 = vunpack.c.l.b16 %v160
  %v931 = vunpack.c.h.b16 %v160
  %v932 = vunpack.c.l.b16 %v161
  %v933 = vunpack.c.h.b16 %v161
  %v934 = vunpack.c.l.b16 %v162
  %v935 = vunpack.c.h.b16 %v162
  %v936 = vunpack.c.l.b16 %v163
  %v937 = vunpack.c.h.b16 %v163
  %v938 = vunpack.c.l.b16 %v164
  %v939 = vunpack.c.h.b16 %v164
  %v940 = vunpack.c.l.b16 %v165
  %v941 = vunpack.c.h.b16 %v165
  %v942 = vunpack.c.l.b16 %v166
  %v943 = vunpack.c.h.b16 %v166
  %v944 = vunpack.c.l.b16 %v167
  %v945 = vunpack.c.h.b16 %v167
  %v946 = vunpack.c.l.b16 %v168
  %v947 = vunpack.c.h.b16 %v168
  %v948 = vunpack.c.l.b16 %v169
  %v949 = vunpack.c.h.b16 %v169
  %v950 = vunpack.c.l.b16 %v170
  %v951 = vunpack.c.h.b16 %v170
  %v952 = vunpack.c.l.b16 %v171
  %v953 = vunpack.c.h.b16 %v171
  %v954 = vunpack.c.l.b16 %v172
  %v955 = vunpack.c.h.b16 %v172
  %v956 = vunpack.c.l.b16 %v173
  %v957 = vunpack.c.h.b16 %v173
  %v958 = vunpack.c.l.b16 %v174
  %v959 = vunpack.c.h.b16 %v174
  %v960 = vunpack.c.l.b16 %v175
  %v961 = vunpack.c.h.b16 %v175
  %v962 = vunpack.c.l.b16 %v176
  %v963 = vunpack.c.h.b16 %v176
  %v964 = vunpack.c.l.b16 %v177
  %v965 = vunpack.c.h.b16 %v177
  %v966 = vunpack.c.l.b16 %v178
  %v967 = vunpack.c.h.b16 %v178
  %v968 = vunpack.c.l.b16 %v179
  %v969 = vunpack.c.h.b16 %v179
  %v970 = vunpack.c.l.b16 %v180
  %v971 = vunpack.c.h.b16 %v180
  %v972 = vunpack.c.l.b16 %v181
  %v973 = vunpack.c.h.b16 %v181
  %v974 = vunpack.c.l.b16 %v182
  %v975 = vunpack.c.h.b16 %v182
  %v976 = vunpack.c.l.b16 %v183
  %v977 = vunpack.c.h.b16 %v183
  %v978 = vunpack.c.l.b16 %v184
  %v979 = vunpack.c.h.b16 %v184
  %v980 = vunpack.c.l.b16 %v185
  %v981 = vunpack.c.h.b16 %v185
  %v982 = vunpack.c.l.b16 %v186
  %v983 = vunpack.c.h.b16 %v186
  %v984 = vunpack.c.l.b16 %v187
  %v985 = vunpack.c.h.b16 %v187
  %v986 = vunpack.c.l.b16 %v188
  %v987 = vunpack.c.h.b16 %v188
  %v988 = vunpack.c.l.b16 %v189
  %v989 = vunpack.c.h.b16 %v189
  %v990 = vunpack.c.l.b16 %v190
  %v991 = vunpack.c.h.b16 %v190
  %v992 = vunpack.c.l.b16 %v191
  %v993 = vunpack.c.h.b16 %v191
  %v994 = vunpack.c.l.b16 %v192
  %v995 = vunpack.c.h.b16 %v192
  %v996 = vunpack.c.l.b16 %v193
  %v997 = vunpack.c.h.b16 %v193
  %v998 = vunpack.c.l.b16 %v194
  %v999 = vunpack.c.h.b16 %v194
  %v1000 = vunpack.c.l.b16 %v195
  %v1001 = vunpack.c.h.b16 %v195
  %v1002 = vunpack.c.l.b16 %v196
  %v1003 = vunpack.c.h.b16 %v196
  %v1004 = vunpack.c.l.b16 %v197
  %v1005 = vunpack.c.h.b16 %v197
  %v1006 = vunpack.c.l.b16 %v198
  %v1007 = vunpack.c.h.b16 %v198
  %v1008 = vunpack.c.l.b16 %v199
  %v1009 = vunpack.c.h.b16 %v199
  %v1010 = vunpack.c.l.b16 %v200
  %v1011 = vunpack.c.h.b16 %v200
  %v1012 = vunpack.c.l.b16 %v201
  %v1013 = vunpack.c.h.b16 %v201
  %v1014 = vunpack.c.l.b16 %v202
  %v1015 = vunpack.c.h.b16 %v202
  %v1016 = vunpack.c.l.b16 %v203
  %v1017 = vunpack.c.h.b16 %v203
  %v1018 = vunpack.c.l.b16 %v204
  %v1019 = vunpack.c.h.b16 %v204
  %v1020 = vunpack.c.l.b16 %v205
  %v1021 = vunpack.c.h.b16 %v205
  %v1022 = vunpack.c.l.b16 %v206
  %v1023 = vunpack.c.h.b16 %v206
  %v1024 = vunpack.c.l.b16 %v207
  %v1025 = vunpack.c.h.b16 %v207
  %v1026 = vunpack.c.l.b16 %v208
  %v1027 = vunpack.c.h.b16 %v208
  %v1028 = vunpack.c.l.b16 %v209
  %v1029 = vunpack.c.h.b16 %v209
  %v1030 = vunpack.c.l.b16 %v210
  %v1031 = vunpack.c.h.b16 %v210
  %v1032 = vunpack.c.l.b16 %v211
  %v1033 = vunpack.c.h.b16 %v211
  %v1034 = vunpack.c.l.b16 %v212
  %v1035 = vunpack.c.h.b16 %v212
  %v1036 = vunpack.c.l.b16 %v213
  %v1037 = vunpack.c.h.b16 %v213
  %v1038 = vunpack.c.l.b16 %v214
  %v1039 = vunpack.c.h.b16 %v214
  %v1040 = vunpack.c.l.b16 %v215
  %v1041 = vunpack.c.h.b16 %v215
  %v1042 = vunpack.c.l.b16 %v216
  %v1043 = vunpack.c.h.b16 %v216
  %v1044 = vunpack.c.l.b16 %v217
  %v1045 = vunpack.c.h.b16 %v217
  %v1046 = vunpack.c.l.b16 %v218
  %v1047 = vunpack.c.h.b16 %v218
  %v1048 = vunpack.c.l.b16 %v219
  %v1049 = vunpack.c.h.b16 %v219
  %v1050 = vunpack.c.l.b16 %v220
  %v1051 = vunpack.c.h.b16 %v220
  %v1052 = vunpack.c.l.b16 %v221
  %v1053 = vunpack.c.h.b16 %v221
  %v1054 = vunpack.c.l.b16 %v222
  %v1055 = vunpack.c.h.b16 %v222
  %v1056 = vunpack.c.l.b16 %v223
  %v1057 = vunpack.c.h.b16 %v223
  %v1058 = vunpack.c.l.b16 %v224
  %v1059 = vunpack.c.h.b16 %v224
  %v1060 = vunpack.c.l.b16 %v225
  %v1061 = vunpack.c.h.b16 %v225
  %v1062 = vunpack.c.l.b16 %v226
  %v1063 = vunpack.c.h.b16 %v226
  %v1064 = vunpack.c.l.b16 %v227
  %v1065 = vunpack.c.h.b16 %v227
  %v1066 = vunpack.c.l.b16 %v228
  %v1067 = vunpack.c.h.b16 %v228
  %v1068 = vunpack.c.l.b16 %v229
  %v1069 = vunpack.c.h.b16 %v229
  %v1070 = vunpack.c.l.b16 %v230
  %v1071 = vunpack.c.h.b16 %v230
  %v1072 = vunpack.c.l.b16 %v231
  %v1073 = vunpack.c.h.b16 %v231
  %v1074 = vunpack.c.l.b16 %v232
  %v1075 = vunpack.c.h.b16 %v232
  %v1076 = vunpack.c.l.b16 %v233
  %v1077 = vunpack.c.h.b16 %v233
  %v1078 = vunpack.c.l.b16 %v234
  %v1079 = vunpack.c.h.b16 %v234
  %v1080 = vunpack.c.l.b16 %v235
  %v1081 = vunpack.c.h.b16 %v235
  %v1082 = vunpack.c.l.b16 %v236
  %v1083 = vunpack.c.h.b16 %v236
  %v1084 = vunpack.c.l.b16 %v237
  %v1085 = vunpack.c.h.b16 %v237
  %v1086 = vunpack.c.l.b16 %v238
  %v1087 = vunpack.c.h.b16 %v238
  %v1088 = vunpack.c.l.b16 %v239
  %v1089 = vunpack.c.h.b16 %v239
  %v1090 = vunpack.c.l.b16 %v240
  %v1091 = vunpack.c.h.b16 %v240
  %v1092 = vunpack.c.l.b16 %v241
  %v1093 = vunpack.c.h.b16 %v241
  %v1094 = vunpack.c.l.b16 %v242
  %v1095 = vunpack.c.h.b16 %v242
  %v1096 = vunpack.c.l.b16 %v243
  %v1097 = vunpack.c.h.b16 %v243
  %v1098 = vunpack.c.l.b16 %v244
  %v1099 = vunpack.c.h.b16 %v244
  %v1100 = vunpack.c.l.b16 %v245
  %v1101 = vunpack.c.h.b16 %v245
  %v1102 = vunpack.c.l.b16 %v246
  %v1103 = vunpack.c.h.b16 %v246
  %v1104 = vunpack.c.l.b16 %v247
  %v1105 = vunpack.c.h.b16 %v247
  %v1106 = vunpack.c.l.b16 %v248
  %v1107 = vunpack.c.h.b16 %v248
  %v1108 = vunpack.c.l.b16 %v249
  %v1109 = vunpack.c.h.b16 %v249
  %v1110 = vunpack.c.l.b16 %v250
  %v1111 = vunpack.c.h.b16 %v250
  %v1112 = vunpack.c.l.b16 %v251
  %v1113 = vunpack.c.h.b16 %v251
  %v1114 = vunpack.c.l.b16 %v252
  %v1115 = vunpack.c.h.b16 %v252
  %v1116 = vunpack.c.l.b16 %v253
  %v1117 = vunpack.c.h.b16 %v253
  %v1118 = vunpack.c.l.b16 %v254
  %v1119 = vunpack.c.h.b16 %v254
  %v1120 = vunpack.c.l.b16 %v255
  %v1121 = vunpack.c.h.b16 %v255
  %v1122 = vunpack.c.l.b16 %v256
  %v1123 = vunpack.c.h.b16 %v256
  %v1124 = vunpack.c.l.b16 %v257
  %v1125 = vunpack.c.h.b16 %v257
  %v1126 = vunpack.c.l.b16 %v258
  %v1127 = vunpack.c.h.b16 %v258
  %v1128 = vunpack.c.l.b16 %v259
  %v1129 = vunpack.c.h.b16 %v259
  %v1130 = vunpack.c.l.b16 %v260
  %v1131 = vunpack.c.h.b16 %v260
  %v1132 = vunpack.c.l.b16 %v261
  %v1133 = vunpack.c.h.b16 %v261
  %v1134 = vunpack.c.l.b16 %v262
  %v1135 = vunpack.c.h.b16 %v262
  %v1136 = vunpack.c.l.b16 %v263
  %v1137 = vunpack.c.h.b16 %v263
  %v1138 = vunpack.c.l.b16 %v264
  %v1139 = vunpack.c.h.b16 %v264
  %v1140 = vunpack.c.l.b16 %v265
  %v1141 = vunpack.c.h.b16 %v265
  %v1142 = vunpack.c.l.b16 %v266
  %v1143 = vunpack.c.h.b16 %v266
  %v1144 = vunpack.c.l.b16 %v267
  %v1145 = vunpack.c.h.b16 %v267
  %v1146 = vunpack.c.l.b16 %v268
  %v1147 = vunpack.c.h.b16 %v268
  %v1148 = vunpack.c.l.b16 %v269
  %v1149 = vunpack.c.h.b16 %v269
  %v1150 = vunpack.c.l.b16 %v270
  %v1151 = vunpack.c.h.b16 %v270
  %v1152 = vunpack.c.l.b16 %v271
  %v1153 = vunpack.c.h.b16 %v271
  %v1154 = vunpack.c.l.b16 %v272
  %v1155 = vunpack.c.h.b16 %v272
  %v1156 = vunpack.c.l.b16 %v273
  %v1157 = vunpack.c.h.b16 %v273
  %v1158 = vunpack.c.l.b16 %v274
  %v1159 = vunpack.c.h.b16 %v274
  %v1160 = vunpack.c.l.b16 %v275
  %v1161 = vunpack.c.h.b16 %v275
  %v1162 = vunpack.c.l.b16 %v276
  %v1163 = vunpack.c.h.b16 %v276
  %v1164 = vunpack.c.l.b16 %v277
  %v1165 = vunpack.c.h.b16 %v277
  %v1166 = vunpack.c.l.b16 %v278
  %v1167 = vunpack.c.h.b16 %v278
  %v1168 = vunpack.c.l.b16 %v279
  %v1169 = vunpack.c.h.b16 %v279
  %v1170 = vunpack.c.l.b16 %v280
  %v1171 = vunpack.c.h.b16 %v280
  %v1172 = vunpack.c.l.b16 %v281
  %v1173 = vunpack.c.h.b16 %v281
  %v1174 = vunpack.c.l.b16 %v282
  %v1175 = vunpack.c.h.b16 %v282
  %v1176 = vunpack.c.l.b16 %v283
  %v1177 = vunpack.c.h.b16 %v283
  %v1178 = vunpack.c.l.b16 %v284
  %v1179 = vunpack.c.h.b16 %v284
  %v1180 = vunpack.c.l.b16 %v285
  %v1181 = vunpack.c.h.b16 %v285
  %v1182 = vunpack.c.l.b16 %v286
  %v1183 = vunpack.c.h.b16 %v286
  %v1184 = vunpack.c.l.b16 %v287
  %v1185 = vunpack.c.h.b16 %v287
  %v1186 = vunpack.c.l.b16 %v288
  %v1187 = vunpack.c.h.b16 %v288
  %v1188 = vunpack.c.l.b16 %v289
  %v1189 = vunpack.c.h.b16 %v289
  %v1190 = vunpack.c.l.b16 %v290
  %v1191 = vunpack.c.h.b16 %v290
  %v1192 = vunpack.c.l.b16 %v291
  %v1193 = vunpack.c.h.b16 %v291
  %v1194 = vunpack.c.l.b16 %v292
  %v1195 = vunpack.c.h.b16 %v292
  %v1196 = vunpack.c.l.b16 %v293
  %v1197 = vunpack.c.h.b16 %v293
  %v1198 = vunpack.c.l.b16 %v294
  %v1199 = vunpack.c.h.b16 %v294
  %v1200 = vunpack.c.l.b16 %v295
  %v1201 = vunpack.c.h.b16 %v295
  %v1202 = vunpack.c.l.b16 %v296
  %v1203 = vunpack.c.h.b16 %v296
  %v1204 = vunpack.c.l.b16 %v297
  %v1205 = vunpack.c.h.b16 %v297
  %v1206 = vunpack.c.l.b16 %v298
  %v1207 = vunpack.c.h.b16 %v298
  %v1208 = vunpack.c.l.b16 %v299
  %v1209 = vunpack.c.h.b16 %v299
  %v1210 = vunpack.c.l.b16 %v300
  %v1211 = vunpack.c.h.b16 %v300
  %v1212 = vunpack.c.l.b16 %v301
  %v1213 = vunpack.c.h.b16 %v301
  %v1214 = vunpack.c.l.b16 %v302
  %v1215 = vunpack.c.h.b16 %v302
  %v1216 = vunpack.c.l.b16 %v303
  %v1217 = vunpack.c.h.b16 %v303
  %v1218 = vunpack.c.l.b16 %v304
  %v1219 = vunpack.c.h.b16 %v304
  %v1220 = vunpack.c.l.b16 %v305
  %v1221 = vunpack.c.h.b16 %v305
  %v1222 = vunpack.c.l.b16 %v306
  %v1223 = vunpack.c.h.b16 %v306
  %v1224 = vunpack.c.l.b16 %v307
  %v1225 = vunpack.c.h.b16 %v307
  %v1226 = vunpack.c.l.b16 %v308
  %v1227 = vunpack.c.h.b16 %v308
  %v1228 = vunpack.c.l.b16 %v309
  %v1229 = vunpack.c.h.b16 %v309
  %v1230 = vunpack.c.l.b16 %v310
  %v1231 = vunpack.c.h.b16 %v310
  %v1232 = vunpack.c.l.b16 %v311
  %v1233 = vunpack.c.h.b16 %v311
  %v1234 = vunpack.c.l.b16 %v312
  %v1235 = vunpack.c.h.b16 %v312
  %v1236 = vunpack.c.l.b16 %v313
  %v1237 = vunpack.c.h.b16 %v313
  %v1238 = vunpack.c.l.b16 %v314
  %v1239 = vunpack.c.h.b16 %v314
  %v1240 = vunpack.c.l.b16 %v315
  %v1241 = vunpack.c.h.b16 %v315
  %v1242 = vunpack.c.l.b16 %v316
  %v1243 = vunpack.c.h.b16 %v316
  %v1244 = vpack.c.b16 %v670, %v668
  %v1245 = vpack.c.b16 %v671, %v669
  %v1246 = vpack.c.b16 %v674, %v672
  %v1247 = vpack.c.b16 %v675, %v673
  %v1248 = vpack.c.b16 %v678, %v676
  %v1249 = vpack.c.b16 %v679, %v677
  %v1250 = vpack.c.b16 %v682, %v680
  %v1251 = vpack.c.b16 %v683, %v681
  %v1252 = vpack.c.b16 %v686, %v684
  %v1253 = vpack.c.b16 %v687, %v685
  %v1254 = vpack.c.b16 %v690, %v688
  %v1255 = vpack.c.b16 %v691, %v689
  %v1256 = vpack.c.b16 %v694, %v692
  %v1257 = vpack.c.b16 %v695, %v693
  %v1258 = vpack.c.b16 %v698, %v696
  %v1259 = vpack.c.b16 %v699, %v697
  %v1260 = vpack.c.b16 %v702, %v700
  %v1261 = vpack.c.b16 %v703, %v701
  %v1262 = vpack.c.b16 %v706, %v704
  %v1263 = vpack.c.b16 %v707, %v705
  %v1264 = vpack.c.b16 %v710, %v708
  %v1265 = vpack.c.b16 %v711, %v709
  %v1266 = vpack.c.b16 %v714, %v712
  %v1267 = vpack.c.b16 %v715, %v713
  %v1268 = vpack.c.b16 %v718, %v716
  %v1269 = vpack.c.b16 %v719, %v717
  %v1270 = vpack.c.b16 %v722, %v720
  %v1271 = vpack.c.b16 %v723, %v721
  %v1272 = vpack.c.b16 %v726, %v724
  %v1273 = vpack.c.b16 %v727, %v725
  %v1274 = vpack.c.b16 %v730, %v728
  %v1275 = vpack.c.b16 %v731, %v729
  %v1276 = vpack.c.b16 %v734, %v732
  %v1277 = vpack.c.b16 %v735, %v733
  %v1278 = vpack.c.b16 %v738, %v736
  %v1279 = vpack.c.b16 %v739, %v737
  %v1280 = vpack.c.b16 %v742, %v740
  %v1281 = vpack.c.b16 %v743, %v741
  %v1282 = vpack.c.b16 %v746, %v744
  %v1283 = vpack.c.b16 %v747, %v745
  %v1284 = vpack.c.b16 %v750, %v748
  %v1285 = vpack.c.b16 %v751, %v749
  %v1286 = vpack.c.b16 %v754, %v752
  %v1287 = vpack.c.b16 %v755, %v753
  %v1288 = vpack.c.b16 %v758, %v756
  %v1289 = vpack.c.b16 %v759, %v757
  %v1290 = vpack.c.b16 %v762, %v760
  %v1291 = vpack.c.b16 %v763, %v761
  %v1292 = vpack.c.b16 %v766, %v764
  %v1293 = vpack.c.b16 %v767, %v765
  %v1294 = vpack.c.b16 %v770, %v768
  %v1295 = vpack.c.b16 %v771, %v769
  %v1296 = vpack.c.b16 %v774, %v772
  %v1297 = vpack.c.b16 %v775, %v773
  %v1298 = vpack.c.b16 %v778, %v776
  %v1299 = vpack.c.b16 %v779, %v777
  %v1300 = vpack.c.b16 %v782, %v780
  %v1301 = vpack.c.b16 %v783, %v781
  %v1302 = vpack.c.b16 %v786, %v784
  %v1303 = vpack.c.b16 %v787, %v785
  %v1304 = vpack.c.b16 %v790, %v788
  %v1305 = vpack.c.b16 %v791, %v789
  %v1306 = vpack.c.b16 %v794, %v792
  %v1307 = vpack.c.b16 %v795, %v793
  %v1308 = vpack.c.b16 %v798, %v796
  %v1309 = vpack.c.b16 %v799, %v797
  %v1310 = vpack.c.b16 %v802, %v800
  %v1311 = vpack.c.b16 %v803, %v801
  %v1312 = vpack.c.b16 %v806, %v804
  %v1313 = vpack.c.b16 %v807, %v805
  %v1314 = vpack.c.b16 %v810, %v808
  %v1315 = vpack.c.b16 %v811, %v809
  %v1316 = vpack.c.b16 %v814, %v812
  %v1317 = vpack.c.b16 %v815, %v813
  %v1318 = vpack.c.b16 %v818, %v816
  %v1319 = vpack.c.b16 %v819, %v817
  %v1320 = vpack.c.b16 %v822, %v820
  %v1321 = vpack.c.b16 %v823, %v821
  %v1322 = vpack.c.b16 %v826, %v824
  %v1323 = vpack.c.b16 %v827, %v825
  %v1324 = vpack.c.b16 %v830, %v828
  %v1325 = vpack.c.b16 %v831, %v829
  %v1326 = vpack.c.b16 %v834, %v832
  %v1327 = vpack.c.b16 %v835, %v833
  %v1328 = vpack.c.b16 %v838, %v836
  %v1329 = vpack.c.b16 %v839, %v837
  %v1330 = vpack.c.b16 %v842, %v840
  %v1331 = vpack.c.b16 %v843, %v841
  %v1332 = vpack.c.b16 %v846, %v844
  %v1333 = vpack.c.b16 %v847, %v845
  %v1334 = vpack.c.b16 %v850, %v848
  %v1335 = vpack.c.b16 %v851, %v849
  %v1336 = vpack.c.b16 %v854, %v852
  %v1337 = vpack.c.b16 %v855, %v853
  %v1338 = vpack.c.b16 %v858, %v856
  %v1339 = vpack.c.b16 %v859, %v857
  %v1340 = vpack.c.b16 %v862, %v860
  %v1341 = vpack.c.b16 %v863, %v861
  %v1342 = vpack.c.b16 %v866, %v864
  %v1343 = vpack.c.b16 %v867, %v865
  %v1344 = vpack.c.b16 %v870, %v868
  %v1345 = vpack.c.b16 %v871, %v869
  %v1346 = vpack.c.b16 %v874, %v872
  %v1347 = vpack.c.b16 %v875, %v873
  %v1348 = vpack.c.b16 %v878, %v876
  %v1349 = vpack.c.b16 %v879, %v877
  %v1350 = vpack.c.b16 %v882, %v880
  %v1351 = vpack.c.b16 %v883, %v881
  %v1352 = vpack.c.b16 %v886, %v884
  %v1353 = vpack.c.b16 %v887, %v885
  %v1354 = vpack.c.b16 %v890, %v888
  %v1355 = vpack.c.b16 %v891, %v889
  %v1356 = vpack.c.b16 %v894, %v892
  %v1357 = vpack.c.b16 %v895, %v893
  %v1358 = vpack.c.b16 %v898, %v896
  %v1359 = vpack.c.b16 %v899, %v897
  %v1360 = vpack.c.b16 %v902, %v900
  %v1361 = vpack.c.b16 %v903, %v901
  %v1362 = vpack.c.b16 %v906, %v904
  %v1363 = vpack.c.b16 %v907, %v905
  %v1364 = vpack.c.b16 %v910, %v908
  %v1365 = vpack.c.b16 %v911, %v909
  %v1366 = vpack.c.b16 %v914, %v912
  %v1367 = vpack.c.b16 %v915, %v913
  %v1368 = vpack.c.b16 %v918, %v916
  %v1369 = vpack.c.b16 %v919, %v917
  %v1370 = vpack.c.b16 %v922, %v920
  %v1371 = vpack.c.b16 %v923, %v921
  %v1372 = vpack.c.b16 %v926, %v924
  %v1373 = vpack.c.b16 %v927, %v925
  %v1374 = vpack.c.b16 %v930, %v928
  %v1375 = vpack.c.b16 %v931, %v929
  %v1376 = vpack.c.b16 %v934, %v932
  %v1377 = vpack.c.b16 %v935, %v933
  %v1378 = vpack.c.b16 %v938, %v936
  %v1379 = vpack.c.b16 %v939, %v937
  %v1380 = vpack.c.b16 %v942, %v940
  %v1381 = vpack.c.b16 %v943, %v941
  %v1382 = vpack.c.b16 %v946, %v944
  %v1383 = vpack.c.b16 %v947, %v945
  %v1384 = vpack.c.b16 %v950, %v948
  %v1385 = vpack.c.b16 %v951, %v949
  %v1386 = vpack.c.b16 %v954, %v952
  %v1387 = vpack.c.b16 %v955, %v953
  %v1388 = vpack.c.b16 %v958, %v956
  %v1389 = vpack.c.b16 %v959, %v957
  %v1390 = vpack.c.b16 %v962, %v960
  %v1391 = vpack.c.b16 %v963, %v961
  %v1392 = vpack.c.b16 %v966, %v964
  %v1393 = vpack.c.b16 %v967, %v965
  %v1394 = vpack.c.b16 %v970, %v968
  %v1395 = vpack.c.b16 %v971, %v969
  %v1396 = vpack.c.b16 %v974, %v972
  %v1397 = vpack.c.b16 %v975, %v973
  %v1398 = vpack.c.b16 %v978, %v976
  %v1399 = vpack.c.b16 %v979, %v977
  %v1400 = vpack.c.b16 %v982, %v980
  %v1401 = vpack.c.b16 %v983, %v981
  %v1402 = vpack.c.b16 %v986, %v984
  %v1403 = vpack.c.b16 %v987, %v985
  %v1404 = vpack.c.b16 %v990, %v988
  %v1405 = vpack.c.b16 %v991, %v989
  %v1406 = vpack.c.b16 %v994, %v992
  %v1407 = vpack.c.b16 %v995, %v993
  %v1408 = vpack.c.b16 %v998, %v996
  %v1409 = vpack.c.b16 %v999, %v997
  %v1410 = vpack.c.b16 %v1002, %v1000
  %v1411 = vpack.c.b16 %v1003, %v1001
  %v1412 = vpack.c.b16 %v1006, %v1004
  %v1413 = vpack.c.b16 %v1007, %v1005
  %v1414 = vpack.c.b16 %v1010, %v1008
  %v1415 = vpack.c.b16 %v1011, %v1009
  %v1416 = vpack.c.b16 %v1014, %v1012
  %v1417 = vpack.c.b16 %v1015, %v1013
  %v1418 = vpack.c.b16 %v1018, %v1016
  %v1419 = vpack.c.b16 %v1019, %v1017
  %v1420 = vpack.c.b16 %v1022, %v1020
  %v1421 = vpack.c.b16 %v1023, %v1021
  %v1422 = vpack.c.b16 %v1026, %v1024
  %v1423 = vpack.c.b16 %v1027, %v1025
  %v1424 = vpack.c.b16 %v1030, %v1028
  %v1425 = vpack.c.b16 %v1031, %v1029
  %v1426 = vpack.c.b16 %v1034, %v1032
  %v1427 = vpack.c.b16 %v1035, %v1033
  %v1428 = vpack.c.b16 %v1038, %v1036
  %v1429 = vpack.c.b16 %v1039, %v1037
  %v1430 = vpack.c.b16 %v1042, %v1040
  %v1431 = vpack.c.b16 %v1043, %v1041
  %v1432 = vpack.c.b16 %v1046, %v1044
  %v1433 = vpack.c.b16 %v1047, %v1045
  %v1434 = vpack.c.b16 %v1050, %v1048
  %v1435 = vpack.c.b16 %v1051, %v1049
  %v1436 = vpack.c.b16 %v1054, %v1052
  %v1437 = vpack.c.b16 %v1055, %v1053
  %v1438 = vpack.c.b16 %v1058, %v1056
  %v1439 = vpack.c.b16 %v1059, %v1057
  %v1440 = vpack.c.b16 %v1062, %v1060
  %v1441 = vpack.c.b16 %v1063, %v1061
  %v1442 = vpack.c.b16 %v1066, %v1064
  %v1443 = vpack.c.b16 %v1067, %v1065
  %v1444 = vpack.c.b16 %v1070, %v1068
  %v1445 = vpack.c.b16 %v1071, %v1069
  %v1446 = vpack.c.b16 %v1074, %v1072
  %v1447 = vpack.c.b16 %v1075, %v1073
  %v1448 = vpack.c.b16 %v1078, %v1076
  %v1449 = vpack.c.b16 %v1079, %v1077
  %v1450 = vpack.c.b16 %v1082, %v1080
  %v1451 = vpack.c.b16 %v1083, %v1081
  %v1452 = vpack.c.b16 %v1086, %v1084
  %v1453 = vpack.c.b16 %v1087, %v1085
  %v1454 = vpack.c.b16 %v1090, %v1088
  %v1455 = vpack.c.b16 %v1091, %v1089
  %v1456 = vpack.c.b16 %v1094, %v1092
  %v1457 = vpack.c.b16 %v1095, %v1093
  %v1458 = vpack.c.b16 %v1098, %v1096
  %v1459 = vpack.c.b16 %v1099, %v1097
  %v1460 = vpack.c.b16 %v1102, %v1100
  %v1461 = vpack.c.b16 %v1103, %v1101
  %v1462 = vpack.c.b16 %v1106, %v1104
  %v1463 = vpack.c.b16 %v1107, %v1105
  %v1464 = vpack.c.b16 %v1110, %v1108
  %v1465 = vpack.c.b16 %v1111, %v1109
  %v1466 = vpack.c.b16 %v1114, %v1112
  %v1467 = vpack.c.b16 %v1115, %v1113
  %v1468 = vpack.c.b16 %v1118, %v1116
  %v1469 = vpack.c.b16 %v1119, %v1117
  %v1470 = vpack.c.b16 %v1122, %v1120
  %v1471 = vpack.c.b16 %v1123, %v1121
  %v1472 = vpack.c.b16 %v1126, %v1124
  %v1473 = vpack.c.b16 %v1127, %v1125
  %v1474 = vpack.c.b16 %v1130, %v1128
  %v1475 = vpack.c.b16 %v1131, %v1129
  %v1476 = vpack.c.b16 %v1134, %v1132
  %v1477 = vpack.c.b16 %v1135, %v1133
  %v1478 = vpack.c.b16 %v1138, %v1136
  %v1479 = vpack.c.b16 %v1139, %v1137
  %v1480 = vpack.c.b16 %v1142, %v1140
  %v1481 = vpack.c.b16 %v1143, %v1141
  %v1482 = vpack.c.b16 %v1146, %v1144
  %v1483 = vpack.c.b16 %v1147, %v1145
  %v1484 = vpack.c.b16 %v1150, %v1148
  %v1485 = vpack.c.b16 %v1151, %v1149
  %v1486 = vpack.c.b16 %v1154, %v1152
  %v1487 = vpack.c.b16 %v1155, %v1153
  %v1488 = vpack.c.b16 %v1158, %v1156
  %v1489 = vpack.c.b16 %v1159, %v1157
  %v1490 = vpack.c.b16 %v1162, %v1160
  %v1491 = vpack.c.b16 %v1163, %v1161
  %v1492 = vpack.c.b16 %v1166, %v1164
  %v1493 = vpack.c.b16 %v1167, %v1165
  %v1494 = vpack.c.b16 %v1170, %v1168
  %v1495 = vpack.c.b16 %v1171, %v1169
  %v1496 = vpack.c.b16 %v1174, %v1172
  %v1497 = vpack.c.b16 %v1175, %v1173
  %v1498 = vpack.c.b16 %v1178, %v1176
  %v1499 = vpack.c.b16 %v1179, %v1177
  %v1500 = vpack.c.b16 %v1182, %v1180
  %v1501 = vpack.c.b16 %v1183, %v1181
  %v1502 = vpack.c.b16 %v1186, %v1184
  %v1503 = vpack.c.b16 %v1187, %v1185
  %v1504 = vpack.c.b16 %v1190, %v1188
  %v1505 = vpack.c.b16 %v1191, %v1189
  %v1506 = vpack.c.b16 %v1194, %v1192
  %v1507 = vpack.c.b16 %v1195, %v1193
  %v1508 = vpack.c.b16 %v1198, %v1196
  %v1509 = vpack.c.b16 %v1199, %v1197
  %v1510 = vpack.c.b16 %v1202, %v1200
  %v1511 = vpack.c.b16 %v1203, %v1201
  %v1512 = vpack.c.b16 %v1206, %v1204
  %v1513 = vpack.c.b16 %v1207, %v1205
  %v1514 = vpack.c.b16 %v1210, %v1208
  %v1515 = vpack.c.b16 %v1211, %v1209
  %v1516 = vpack.c.b16 %v1214, %v1212
  %v1517 = vpack.c.b16 %v1215, %v1213
  %v1518 = vpack.c.b16 %v1218, %v1216
  %v1519 = vpack.c.b16 %v1219, %v1217
  %v1520 = vpack.c.b16 %v1222, %v1220
  %v1521 = vpack.c.b16 %v1223, %v1221
  %v1522 = vpack.c.b16 %v1226, %v1224
  %v1523 = vpack.c.b16 %v1227, %v1225
  %v1524 = vpack.c.b16 %v1230, %v1228
  %v1525 = vpack.c.b16 %v1231, %v1229
  %v1526 = vpack.c.b16 %v1234, %v1232
  %v1527 = vpack.c.b16 %v1235, %v1233
  %v1528 = vpack.c.b16 %v1238, %v1236
  %v1529 = vpack.c.b16 %v1239, %v1237
  %v1530 = vpack.c.b16 %v1242, %v1240
  %v1531 = vpack.c.b16 %v1243, %v1241
  %1820 = vmatpush.bf16.msra.mxu0 %v1258
  %1821 = vmatpush.bf16.msra.mxu0 %v1256
  %1822 = vmatpush.bf16.msra.mxu0 %v1254
  %1823 = vmatpush.bf16.msra.mxu0 %v1252
  %1824 = vmatpush.bf16.msra.mxu0 %v1250
  %1825 = vmatpush.bf16.msra.mxu0 %v1248
  %1826 = vmatpush.bf16.msra.mxu0 %v1246
  %1827 = vmatpush.bf16.msra.mxu0 %v1244
  %1828 = vmatmul.bf16.gmra.mxu0 %v344
  %v1829 = vpop.f32.mrf.mxu0
  %v1830 = vadd.f32 0.0, %v1829
  %v1831 = vpop.f32.mrf.mxu0
  %1832 = vdwg.mxu0
  %1833 = vmatpush.bf16.msra.mxu0 %v1274
  %1834 = vmatpush.bf16.msra.mxu0 %v1272
  %1835 = vmatpush.bf16.msra.mxu0 %v1270
  %1836 = vmatpush.bf16.msra.mxu0 %v1268
  %1837 = vmatpush.bf16.msra.mxu0 %v1266
  %1838 = vmatpush.bf16.msra.mxu0 %v1264
  %1839 = vmatpush.bf16.msra.mxu0 %v1262
  %1840 = vmatpush.bf16.msra.mxu0 %v1260
  %1841 = vmatmul.bf16.gmra.mxu0 %v345
  %v1842 = vpop.f32.mrf.mxu0
  %v1843 = vadd.f32 %v1830, %v1842
  %v1844 = vpop.f32.mrf.mxu0
  %1845 = vdwg.mxu0
  %1846 = vmatpush.bf16.msra.mxu0 %v1290
  %1847 = vmatpush.bf16.msra.mxu0 %v1288
  %1848 = vmatpush.bf16.msra.mxu0 %v1286
  %1849 = vmatpush.bf16.msra.mxu0 %v1284
  %1850 = vmatpush.bf16.msra.mxu0 %v1282
  %1851 = vmatpush.bf16.msra.mxu0 %v1280
  %1852 = vmatpush.bf16.msra.mxu0 %v1278
  %1853 = vmatpush.bf16.msra.mxu0 %v1276
  %1854 = vmatmul.bf16.gmra.mxu0 %v346
  %v1855 = vpop.f32.mrf.mxu0
  %v1856 = vadd.f32 %v1843, %v1855
  %v1857 = vpop.f32.mrf.mxu0
  %1858 = vdwg.mxu0
  %1859 = vmatpush.bf16.msra.mxu0 %v1306
  %1860 = vmatpush.bf16.msra.mxu0 %v1304
  %1861 = vmatpush.bf16.msra.mxu0 %v1302
  %1862 = vmatpush.bf16.msra.mxu0 %v1300
  %1863 = vmatpush.bf16.msra.mxu0 %v1298
  %1864 = vmatpush.bf16.msra.mxu0 %v1296
  %1865 = vmatpush.bf16.msra.mxu0 %v1294
  %1866 = vmatpush.bf16.msra.mxu0 %v1292
  %1867 = vmatmul.bf16.gmra.mxu0 %v347
  %v1868 = vpop.f32.mrf.mxu0
  %v1869 = vadd.f32 %v1856, %v1868
  %v1870 = vpop.f32.mrf.mxu0
  %1871 = vdwg.mxu0
  %1872 = vmatpush.bf16.msra.mxu0 %v1322
  %1873 = vmatpush.bf16.msra.mxu0 %v1320
  %1874 = vmatpush.bf16.msra.mxu0 %v1318
  %1875 = vmatpush.bf16.msra.mxu0 %v1316
  %1876 = vmatpush.bf16.msra.mxu0 %v1314
  %1877 = vmatpush.bf16.msra.mxu0 %v1312
  %1878 = vmatpush.bf16.msra.mxu0 %v1310
  %1879 = vmatpush.bf16.msra.mxu0 %v1308
  %1880 = vmatmul.bf16.gmra.mxu0 %v348
  %v1881 = vpop.f32.mrf.mxu0
  %v1882 = vadd.f32 %v1869, %v1881
  %v1883 = vpop.f32.mrf.mxu0
  %1884 = vdwg.mxu0
  %1885 = vmatpush.bf16.msra.mxu0 %v1338
  %1886 = vmatpush.bf16.msra.mxu0 %v1336
  %1887 = vmatpush.bf16.msra.mxu0 %v1334
  %1888 = vmatpush.bf16.msra.mxu0 %v1332
  %1889 = vmatpush.bf16.msra.mxu0 %v1330
  %1890 = vmatpush.bf16.msra.mxu0 %v1328
  %1891 = vmatpush.bf16.msra.mxu0 %v1326
  %1892 = vmatpush.bf16.msra.mxu0 %v1324
  %1893 = vmatmul.bf16.gmra.mxu0 %v349
  %v1894 = vpop.f32.mrf.mxu0
  %v1895 = vadd.f32 %v1882, %v1894
  %v1896 = vpop.f32.mrf.mxu0
  %1897 = vdwg.mxu0
  %1898 = vmatpush.bf16.msra.mxu0 %v1354
  %1899 = vmatpush.bf16.msra.mxu0 %v1352
  %1900 = vmatpush.bf16.msra.mxu0 %v1350
  %1901 = vmatpush.bf16.msra.mxu0 %v1348
  %1902 = vmatpush.bf16.msra.mxu0 %v1346
  %1903 = vmatpush.bf16.msra.mxu0 %v1344
  %1904 = vmatpush.bf16.msra.mxu0 %v1342
  %1905 = vmatpush.bf16.msra.mxu0 %v1340
  %1906 = vmatmul.bf16.gmra.mxu0 %v350
  %v1907 = vpop.f32.mrf.mxu0
  %v1908 = vadd.f32 %v1895, %v1907
  %v1909 = vpop.f32.mrf.mxu0
  %1910 = vdwg.mxu0
  %1911 = vmatpush.bf16.msra.mxu0 %v1370
  %1912 = vmatpush.bf16.msra.mxu0 %v1368
  %1913 = vmatpush.bf16.msra.mxu0 %v1366
  %1914 = vmatpush.bf16.msra.mxu0 %v1364
  %1915 = vmatpush.bf16.msra.mxu0 %v1362
  %1916 = vmatpush.bf16.msra.mxu0 %v1360
  %1917 = vmatpush.bf16.msra.mxu0 %v1358
  %1918 = vmatpush.bf16.msra.mxu0 %v1356
  %1919 = vmatmul.bf16.gmra.mxu0 %v351
  %v1920 = vpop.f32.mrf.mxu0
  %v1921 = vadd.f32 %v1908, %v1920
  %v1922 = vpop.f32.mrf.mxu0
  %1923 = vdwg.mxu0
  %1924 = vmatpush.bf16.msra.mxu0 %v1386
  %1925 = vmatpush.bf16.msra.mxu0 %v1384
  %1926 = vmatpush.bf16.msra.mxu0 %v1382
  %1927 = vmatpush.bf16.msra.mxu0 %v1380
  %1928 = vmatpush.bf16.msra.mxu0 %v1378
  %1929 = vmatpush.bf16.msra.mxu0 %v1376
  %1930 = vmatpush.bf16.msra.mxu0 %v1374
  %1931 = vmatpush.bf16.msra.mxu0 %v1372
  %1932 = vmatmul.bf16.gmra.mxu0 %v352
  %v1933 = vpop.f32.mrf.mxu0
  %v1934 = vadd.f32 %v1921, %v1933
  %v1935 = vpop.f32.mrf.mxu0
  %1936 = vdwg.mxu0
  %1937 = vmatpush.bf16.msra.mxu0 %v1402
  %1938 = vmatpush.bf16.msra.mxu0 %v1400
  %1939 = vmatpush.bf16.msra.mxu0 %v1398
  %1940 = vmatpush.bf16.msra.mxu0 %v1396
  %1941 = vmatpush.bf16.msra.mxu0 %v1394
  %1942 = vmatpush.bf16.msra.mxu0 %v1392
  %1943 = vmatpush.bf16.msra.mxu0 %v1390
  %1944 = vmatpush.bf16.msra.mxu0 %v1388
  %1945 = vmatmul.bf16.gmra.mxu0 %v353
  %v1946 = vpop.f32.mrf.mxu0
  %v1947 = vadd.f32 %v1934, %v1946
  %v1948 = vpop.f32.mrf.mxu0
  %1949 = vdwg.mxu0
  %1950 = vmatpush.bf16.msra.mxu0 %v1418
  %1951 = vmatpush.bf16.msra.mxu0 %v1416
  %1952 = vmatpush.bf16.msra.mxu0 %v1414
  %1953 = vmatpush.bf16.msra.mxu0 %v1412
  %1954 = vmatpush.bf16.msra.mxu0 %v1410
  %1955 = vmatpush.bf16.msra.mxu0 %v1408
  %1956 = vmatpush.bf16.msra.mxu0 %v1406
  %1957 = vmatpush.bf16.msra.mxu0 %v1404
  %1958 = vmatmul.bf16.gmra.mxu0 %v354
  %v1959 = vpop.f32.mrf.mxu0
  %v1960 = vadd.f32 %v1947, %v1959
  %v1961 = vpop.f32.mrf.mxu0
  %1962 = vdwg.mxu0
  %1963 = vmatpush.bf16.msra.mxu0 %v1434
  %1964 = vmatpush.bf16.msra.mxu0 %v1432
  %1965 = vmatpush.bf16.msra.mxu0 %v1430
  %1966 = vmatpush.bf16.msra.mxu0 %v1428
  %1967 = vmatpush.bf16.msra.mxu0 %v1426
  %1968 = vmatpush.bf16.msra.mxu0 %v1424
  %1969 = vmatpush.bf16.msra.mxu0 %v1422
  %1970 = vmatpush.bf16.msra.mxu0 %v1420
  %1971 = vmatmul.bf16.gmra.mxu0 %v355
  %v1972 = vpop.f32.mrf.mxu0
  %v1973 = vadd.f32 %v1960, %v1972
  %v1974 = vpop.f32.mrf.mxu0
  %1975 = vdwg.mxu0
  %1976 = vmatpush.bf16.msra.mxu0 %v1450
  %1977 = vmatpush.bf16.msra.mxu0 %v1448
  %1978 = vmatpush.bf16.msra.mxu0 %v1446
  %1979 = vmatpush.bf16.msra.mxu0 %v1444
  %1980 = vmatpush.bf16.msra.mxu0 %v1442
  %1981 = vmatpush.bf16.msra.mxu0 %v1440
  %1982 = vmatpush.bf16.msra.mxu0 %v1438
  %1983 = vmatpush.bf16.msra.mxu0 %v1436
  %1984 = vmatmul.bf16.gmra.mxu0 %v356
  %v1985 = vpop.f32.mrf.mxu0
  %v1986 = vadd.f32 %v1973, %v1985
  %v1987 = vpop.f32.mrf.mxu0
  %1988 = vdwg.mxu0
  %1989 = vmatpush.bf16.msra.mxu0 %v1466
  %1990 = vmatpush.bf16.msra.mxu0 %v1464
  %1991 = vmatpush.bf16.msra.mxu0 %v1462
  %1992 = vmatpush.bf16.msra.mxu0 %v1460
  %1993 = vmatpush.bf16.msra.mxu0 %v1458
  %1994 = vmatpush.bf16.msra.mxu0 %v1456
  %1995 = vmatpush.bf16.msra.mxu0 %v1454
  %1996 = vmatpush.bf16.msra.mxu0 %v1452
  %1997 = vmatmul.bf16.gmra.mxu0 %v357
  %v1998 = vpop.f32.mrf.mxu0
  %v1999 = vadd.f32 %v1986, %v1998
  %v2000 = vpop.f32.mrf.mxu0
  %2001 = vdwg.mxu0
  %2002 = vmatpush.bf16.msra.mxu0 %v1482
  %2003 = vmatpush.bf16.msra.mxu0 %v1480
  %2004 = vmatpush.bf16.msra.mxu0 %v1478
  %2005 = vmatpush.bf16.msra.mxu0 %v1476
  %2006 = vmatpush.bf16.msra.mxu0 %v1474
  %2007 = vmatpush.bf16.msra.mxu0 %v1472
  %2008 = vmatpush.bf16.msra.mxu0 %v1470
  %2009 = vmatpush.bf16.msra.mxu0 %v1468
  %2010 = vmatmul.bf16.gmra.mxu0 %v358
  %v2011 = vpop.f32.mrf.mxu0
  %v2012 = vadd.f32 %v1999, %v2011
  %v2013 = vpop.f32.mrf.mxu0
  %2014 = vdwg.mxu0
  %2015 = vmatpush.bf16.msra.mxu0 %v1498
  %2016 = vmatpush.bf16.msra.mxu0 %v1496
  %2017 = vmatpush.bf16.msra.mxu0 %v1494
  %2018 = vmatpush.bf16.msra.mxu0 %v1492
  %2019 = vmatpush.bf16.msra.mxu0 %v1490
  %2020 = vmatpush.bf16.msra.mxu0 %v1488
  %2021 = vmatpush.bf16.msra.mxu0 %v1486
  %2022 = vmatpush.bf16.msra.mxu0 %v1484
  %2023 = vmatmul.bf16.gmra.mxu0 %v359
  %v2024 = vpop.f32.mrf.mxu0
  %v2025 = vadd.f32 %v2012, %v2024
  %v2026 = vpop.f32.mrf.mxu0
  %2027 = vdwg.mxu0
  %2028 = vmatpush.bf16.msra.mxu0 %v1514
  %2029 = vmatpush.bf16.msra.mxu0 %v1512
  %2030 = vmatpush.bf16.msra.mxu0 %v1510
  %2031 = vmatpush.bf16.msra.mxu0 %v1508
  %2032 = vmatpush.bf16.msra.mxu0 %v1506
  %2033 = vmatpush.bf16.msra.mxu0 %v1504
  %2034 = vmatpush.bf16.msra.mxu0 %v1502
  %2035 = vmatpush.bf16.msra.mxu0 %v1500
  %2036 = vmatmul.bf16.gmra.mxu0 %v360
  %v2037 = vpop.f32.mrf.mxu0
  %v2038 = vadd.f32 %v2025, %v2037
  %v2039 = vpop.f32.mrf.mxu0
  %2040 = vdwg.mxu0
  %2041 = vmatpush.bf16.msra.mxu0 %v1530
  %2042 = vmatpush.bf16.msra.mxu0 %v1528
  %2043 = vmatpush.bf16.msra.mxu0 %v1526
  %2044 = vmatpush.bf16.msra.mxu0 %v1524
  %2045 = vmatpush.bf16.msra.mxu0 %v1522
  %2046 = vmatpush.bf16.msra.mxu0 %v1520
  %2047 = vmatpush.bf16.msra.mxu0 %v1518
  %2048 = vmatpush.bf16.msra.mxu0 %v1516
  %2049 = vmatmul.bf16.gmra.mxu0 %v361
  %v2050 = vpop.f32.mrf.mxu0
  %v2051 = vadd.f32 %v2038, %v2050
  %v2052 = vpop.f32.mrf.mxu0
  %2053 = vdwg.mxu0
  %2054 = vmatpush.bf16.msra.mxu0 %v1259
  %2055 = vmatpush.bf16.msra.mxu0 %v1257
  %2056 = vmatpush.bf16.msra.mxu0 %v1255
  %2057 = vmatpush.bf16.msra.mxu0 %v1253
  %2058 = vmatpush.bf16.msra.mxu0 %v1251
  %2059 = vmatpush.bf16.msra.mxu0 %v1249
  %2060 = vmatpush.bf16.msra.mxu0 %v1247
  %2061 = vmatpush.bf16.msra.mxu0 %v1245
  %2062 = vmatmul.bf16.gmra.mxu0 %v344
  %v2063 = vpop.f32.mrf.mxu0
  %v2064 = vadd.f32 0.0, %v2063
  %v2065 = vpop.f32.mrf.mxu0
  %2066 = vdwg.mxu0
  %2067 = vmatpush.bf16.msra.mxu0 %v1275
  %2068 = vmatpush.bf16.msra.mxu0 %v1273
  %2069 = vmatpush.bf16.msra.mxu0 %v1271
  %2070 = vmatpush.bf16.msra.mxu0 %v1269
  %2071 = vmatpush.bf16.msra.mxu0 %v1267
  %2072 = vmatpush.bf16.msra.mxu0 %v1265
  %2073 = vmatpush.bf16.msra.mxu0 %v1263
  %2074 = vmatpush.bf16.msra.mxu0 %v1261
  %2075 = vmatmul.bf16.gmra.mxu0 %v345
  %v2076 = vpop.f32.mrf.mxu0
  %v2077 = vadd.f32 %v2064, %v2076
  %v2078 = vpop.f32.mrf.mxu0
  %2079 = vdwg.mxu0
  %2080 = vmatpush.bf16.msra.mxu0 %v1291
  %2081 = vmatpush.bf16.msra.mxu0 %v1289
  %2082 = vmatpush.bf16.msra.mxu0 %v1287
  %2083 = vmatpush.bf16.msra.mxu0 %v1285
  %2084 = vmatpush.bf16.msra.mxu0 %v1283
  %2085 = vmatpush.bf16.msra.mxu0 %v1281
  %2086 = vmatpush.bf16.msra.mxu0 %v1279
  %2087 = vmatpush.bf16.msra.mxu0 %v1277
  %2088 = vmatmul.bf16.gmra.mxu0 %v346
  %v2089 = vpop.f32.mrf.mxu0
  %v2090 = vadd.f32 %v2077, %v2089
  %v2091 = vpop.f32.mrf.mxu0
  %2092 = vdwg.mxu0
  %2093 = vmatpush.bf16.msra.mxu0 %v1307
  %2094 = vmatpush.bf16.msra.mxu0 %v1305
  %2095 = vmatpush.bf16.msra.mxu0 %v1303
  %2096 = vmatpush.bf16.msra.mxu0 %v1301
  %2097 = vmatpush.bf16.msra.mxu0 %v1299
  %2098 = vmatpush.bf16.msra.mxu0 %v1297
  %2099 = vmatpush.bf16.msra.mxu0 %v1295
  %2100 = vmatpush.bf16.msra.mxu0 %v1293
  %2101 = vmatmul.bf16.gmra.mxu0 %v347
  %v2102 = vpop.f32.mrf.mxu0
  %v2103 = vadd.f32 %v2090, %v2102
  %v2104 = vpop.f32.mrf.mxu0
  %2105 = vdwg.mxu0
  %2106 = vmatpush.bf16.msra.mxu0 %v1323
  %2107 = vmatpush.bf16.msra.mxu0 %v1321
  %2108 = vmatpush.bf16.msra.mxu0 %v1319
  %2109 = vmatpush.bf16.msra.mxu0 %v1317
  %2110 = vmatpush.bf16.msra.mxu0 %v1315
  %2111 = vmatpush.bf16.msra.mxu0 %v1313
  %2112 = vmatpush.bf16.msra.mxu0 %v1311
  %2113 = vmatpush.bf16.msra.mxu0 %v1309
  %2114 = vmatmul.bf16.gmra.mxu0 %v348
  %v2115 = vpop.f32.mrf.mxu0
  %v2116 = vadd.f32 %v2103, %v2115
  %v2117 = vpop.f32.mrf.mxu0
  %2118 = vdwg.mxu0
  %2119 = vmatpush.bf16.msra.mxu0 %v1339
  %2120 = vmatpush.bf16.msra.mxu0 %v1337
  %2121 = vmatpush.bf16.msra.mxu0 %v1335
  %2122 = vmatpush.bf16.msra.mxu0 %v1333
  %2123 = vmatpush.bf16.msra.mxu0 %v1331
  %2124 = vmatpush.bf16.msra.mxu0 %v1329
  %2125 = vmatpush.bf16.msra.mxu0 %v1327
  %2126 = vmatpush.bf16.msra.mxu0 %v1325
  %2127 = vmatmul.bf16.gmra.mxu0 %v349
  %v2128 = vpop.f32.mrf.mxu0
  %v2129 = vadd.f32 %v2116, %v2128
  %v2130 = vpop.f32.mrf.mxu0
  %2131 = vdwg.mxu0
  %2132 = vmatpush.bf16.msra.mxu0 %v1355
  %2133 = vmatpush.bf16.msra.mxu0 %v1353
  %2134 = vmatpush.bf16.msra.mxu0 %v1351
  %2135 = vmatpush.bf16.msra.mxu0 %v1349
  %2136 = vmatpush.bf16.msra.mxu0 %v1347
  %2137 = vmatpush.bf16.msra.mxu0 %v1345
  %2138 = vmatpush.bf16.msra.mxu0 %v1343
  %2139 = vmatpush.bf16.msra.mxu0 %v1341
  %2140 = vmatmul.bf16.gmra.mxu0 %v350
  %v2141 = vpop.f32.mrf.mxu0
  %v2142 = vadd.f32 %v2129, %v2141
  %v2143 = vpop.f32.mrf.mxu0
  %2144 = vdwg.mxu0
  %2145 = vmatpush.bf16.msra.mxu0 %v1371
  %2146 = vmatpush.bf16.msra.mxu0 %v1369
  %2147 = vmatpush.bf16.msra.mxu0 %v1367
  %2148 = vmatpush.bf16.msra.mxu0 %v1365
  %2149 = vmatpush.bf16.msra.mxu0 %v1363
  %2150 = vmatpush.bf16.msra.mxu0 %v1361
  %2151 = vmatpush.bf16.msra.mxu0 %v1359
  %2152 = vmatpush.bf16.msra.mxu0 %v1357
  %2153 = vmatmul.bf16.gmra.mxu0 %v351
  %v2154 = vpop.f32.mrf.mxu0
  %v2155 = vadd.f32 %v2142, %v2154
  %v2156 = vpop.f32.mrf.mxu0
  %2157 = vdwg.mxu0
  %2158 = vmatpush.bf16.msra.mxu0 %v1387
  %2159 = vmatpush.bf16.msra.mxu0 %v1385
  %2160 = vmatpush.bf16.msra.mxu0 %v1383
  %2161 = vmatpush.bf16.msra.mxu0 %v1381
  %2162 = vmatpush.bf16.msra.mxu0 %v1379
  %2163 = vmatpush.bf16.msra.mxu0 %v1377
  %2164 = vmatpush.bf16.msra.mxu0 %v1375
  %2165 = vmatpush.bf16.msra.mxu0 %v1373
  %2166 = vmatmul.bf16.gmra.mxu0 %v352
  %v2167 = vpop.f32.mrf.mxu0
  %v2168 = vadd.f32 %v2155, %v2167
  %v2169 = vpop.f32.mrf.mxu0
  %2170 = vdwg.mxu0
  %2171 = vmatpush.bf16.msra.mxu0 %v1403
  %2172 = vmatpush.bf16.msra.mxu0 %v1401
  %2173 = vmatpush.bf16.msra.mxu0 %v1399
  %2174 = vmatpush.bf16.msra.mxu0 %v1397
  %2175 = vmatpush.bf16.msra.mxu0 %v1395
  %2176 = vmatpush.bf16.msra.mxu0 %v1393
  %2177 = vmatpush.bf16.msra.mxu0 %v1391
  %2178 = vmatpush.bf16.msra.mxu0 %v1389
  %2179 = vmatmul.bf16.gmra.mxu0 %v353
  %v2180 = vpop.f32.mrf.mxu0
  %v2181 = vadd.f32 %v2168, %v2180
  %v2182 = vpop.f32.mrf.mxu0
  %2183 = vdwg.mxu0
  %2184 = vmatpush.bf16.msra.mxu0 %v1419
  %2185 = vmatpush.bf16.msra.mxu0 %v1417
  %2186 = vmatpush.bf16.msra.mxu0 %v1415
  %2187 = vmatpush.bf16.msra.mxu0 %v1413
  %2188 = vmatpush.bf16.msra.mxu0 %v1411
  %2189 = vmatpush.bf16.msra.mxu0 %v1409
  %2190 = vmatpush.bf16.msra.mxu0 %v1407
  %2191 = vmatpush.bf16.msra.mxu0 %v1405
  %2192 = vmatmul.bf16.gmra.mxu0 %v354
  %v2193 = vpop.f32.mrf.mxu0
  %v2194 = vadd.f32 %v2181, %v2193
  %v2195 = vpop.f32.mrf.mxu0
  %2196 = vdwg.mxu0
  %2197 = vmatpush.bf16.msra.mxu0 %v1435
  %2198 = vmatpush.bf16.msra.mxu0 %v1433
  %2199 = vmatpush.bf16.msra.mxu0 %v1431
  %2200 = vmatpush.bf16.msra.mxu0 %v1429
  %2201 = vmatpush.bf16.msra.mxu0 %v1427
  %2202 = vmatpush.bf16.msra.mxu0 %v1425
  %2203 = vmatpush.bf16.msra.mxu0 %v1423
  %2204 = vmatpush.bf16.msra.mxu0 %v1421
  %2205 = vmatmul.bf16.gmra.mxu0 %v355
  %v2206 = vpop.f32.mrf.mxu0
  %v2207 = vadd.f32 %v2194, %v2206
  %v2208 = vpop.f32.mrf.mxu0
  %2209 = vdwg.mxu0
  %2210 = vmatpush.bf16.msra.mxu0 %v1451
  %2211 = vmatpush.bf16.msra.mxu0 %v1449
  %2212 = vmatpush.bf16.msra.mxu0 %v1447
  %2213 = vmatpush.bf16.msra.mxu0 %v1445
  %2214 = vmatpush.bf16.msra.mxu0 %v1443
  %2215 = vmatpush.bf16.msra.mxu0 %v1441
  %2216 = vmatpush.bf16.msra.mxu0 %v1439
  %2217 = vmatpush.bf16.msra.mxu0 %v1437
  %2218 = vmatmul.bf16.gmra.mxu0 %v356
  %v2219 = vpop.f32.mrf.mxu0
  %v2220 = vadd.f32 %v2207, %v2219
  %v2221 = vpop.f32.mrf.mxu0
  %2222 = vdwg.mxu0
  %2223 = vmatpush.bf16.msra.mxu0 %v1467
  %2224 = vmatpush.bf16.msra.mxu0 %v1465
  %2225 = vmatpush.bf16.msra.mxu0 %v1463
  %2226 = vmatpush.bf16.msra.mxu0 %v1461
  %2227 = vmatpush.bf16.msra.mxu0 %v1459
  %2228 = vmatpush.bf16.msra.mxu0 %v1457
  %2229 = vmatpush.bf16.msra.mxu0 %v1455
  %2230 = vmatpush.bf16.msra.mxu0 %v1453
  %2231 = vmatmul.bf16.gmra.mxu0 %v357
  %v2232 = vpop.f32.mrf.mxu0
  %v2233 = vadd.f32 %v2220, %v2232
  %v2234 = vpop.f32.mrf.mxu0
  %2235 = vdwg.mxu0
  %2236 = vmatpush.bf16.msra.mxu0 %v1483
  %2237 = vmatpush.bf16.msra.mxu0 %v1481
  %2238 = vmatpush.bf16.msra.mxu0 %v1479
  %2239 = vmatpush.bf16.msra.mxu0 %v1477
  %2240 = vmatpush.bf16.msra.mxu0 %v1475
  %2241 = vmatpush.bf16.msra.mxu0 %v1473
  %2242 = vmatpush.bf16.msra.mxu0 %v1471
  %2243 = vmatpush.bf16.msra.mxu0 %v1469
  %2244 = vmatmul.bf16.gmra.mxu0 %v358
  %v2245 = vpop.f32.mrf.mxu0
  %v2246 = vadd.f32 %v2233, %v2245
  %v2247 = vpop.f32.mrf.mxu0
  %2248 = vdwg.mxu0
  %2249 = vmatpush.bf16.msra.mxu0 %v1499
  %2250 = vmatpush.bf16.msra.mxu0 %v1497
  %2251 = vmatpush.bf16.msra.mxu0 %v1495
  %2252 = vmatpush.bf16.msra.mxu0 %v1493
  %2253 = vmatpush.bf16.msra.mxu0 %v1491
  %2254 = vmatpush.bf16.msra.mxu0 %v1489
  %2255 = vmatpush.bf16.msra.mxu0 %v1487
  %2256 = vmatpush.bf16.msra.mxu0 %v1485
  %2257 = vmatmul.bf16.gmra.mxu0 %v359
  %v2258 = vpop.f32.mrf.mxu0
  %v2259 = vadd.f32 %v2246, %v2258
  %v2260 = vpop.f32.mrf.mxu0
  %2261 = vdwg.mxu0
  %2262 = vmatpush.bf16.msra.mxu0 %v1515
  %2263 = vmatpush.bf16.msra.mxu0 %v1513
  %2264 = vmatpush.bf16.msra.mxu0 %v1511
  %2265 = vmatpush.bf16.msra.mxu0 %v1509
  %2266 = vmatpush.bf16.msra.mxu0 %v1507
  %2267 = vmatpush.bf16.msra.mxu0 %v1505
  %2268 = vmatpush.bf16.msra.mxu0 %v1503
  %2269 = vmatpush.bf16.msra.mxu0 %v1501
  %2270 = vmatmul.bf16.gmra.mxu0 %v360
  %v2271 = vpop.f32.mrf.mxu0
  %v2272 = vadd.f32 %v2259, %v2271
  %v2273 = vpop.f32.mrf.mxu0
  %2274 = vdwg.mxu0
  %2275 = vmatpush.bf16.msra.mxu0 %v1531
  %2276 = vmatpush.bf16.msra.mxu0 %v1529
  %2277 = vmatpush.bf16.msra.mxu0 %v1527
  %2278 = vmatpush.bf16.msra.mxu0 %v1525
  %2279 = vmatpush.bf16.msra.mxu0 %v1523
  %2280 = vmatpush.bf16.msra.mxu0 %v1521
  %2281 = vmatpush.bf16.msra.mxu0 %v1519
  %2282 = vmatpush.bf16.msra.mxu0 %v1517
  %2283 = vmatmul.bf16.gmra.mxu0 %v361
  %v2284 = vpop.f32.mrf.mxu0
  %v2285 = vadd.f32 %v2272, %v2284
  %v2286 = vpop.f32.mrf.mxu0
  %2287 = vdwg.mxu0
  %v2288 = vld [vmem:[%s2] sm:$0x3]
  %v2290 = vperm.slane %v2288, 0
  %v2291 = vperm.slane %v2288, 1
  %v2294 = vmul.f32 %v2051, %v2290
  %v2295 = vmul.f32 %v2285, %v2291
  %v2296 = vld [vmem:[%s3] sm:$0x3]
  %v2298 = vperm.slane %v2296, 0
  %v2299 = vperm.slane %v2296, 1
  %v2302 = vadd.f32 %v2294, %v2298
  %v2303 = vadd.f32 %v2295, %v2299
  %v2304 = vld [vmem:[%s4] sm:$0xff]
  %v2305 = vunpack.c.l.bf16 %v2304
  %v2306 = vunpack.c.h.bf16 %v2304
  %v2307 = vadd.f32 %v2302, %v2305
  %v2308 = vadd.f32 %v2303, %v2306
  %v2309 = vmax.f32 %v2307, 0.0
  %v2310 = vmax.f32 %v2308, 0.0
  %v2311 = vpack.c.bf16 %v2310, %v2309
  %2312 = vst [vmem:[%s5] sm:$0xff] %v2311
  // Predicated region
  $region22: #{feature_extractor_with_attention.30} parent=0 // pred_check
    _
  $region23: #{feature_extractor_with_attention.30} parent=0 // pred_check_branch
    %2314 = sbr.rel (0) target = $region25
  $region24: #{feature_extractor_with_attention.30} parent=0 // pred_region
    _
  $region25: #{feature_extractor_with_attention.30} parent=0 // pred_fallthru
    _
  // Predicated region
  $region26: #{feature_extractor_with_attention.30} parent=0 // pred_check
    _
  $region27: #{feature_extractor_with_attention.30} parent=0 // pred_check_branch
    %2316 = sbr.rel (0) target = $region29
  $region28: #{feature_extractor_with_attention.30} parent=0 // pred_region
    _
  $region29: #{feature_extractor_with_attention.30} parent=0 // pred_fallthru
    _

// kernel: feature_extractor_with_attention.31
$region0: #{feature_extractor_with_attention.31}
  #allocation0 [shape = 'u32[]', space=smem, size = 0x4, offset = 0x4, fixed_abs, tag = 'smem constant byte address 0x4 - core index']
  #allocation1 [shape = 'u32[72,128]{1,0:T(1,128)}', space=vmem, size = 0x9000, scoped, tag = 'internal scratch']
  %s0 = inlined_call_operand.vmem [shape: bf16[8,2304], index: 0, kind: input, shape index: {}]
  %s1 = inlined_call_operand.vmem [shape: bf16[2304,256], index: 1, kind: input, shape index: {}]
  %s2 = inlined_call_operand.vmem [shape: f32[1,256], index: 2, kind: input, shape index: {}]
  %s3 = inlined_call_operand.vmem [shape: f32[1,256], index: 3, kind: input, shape index: {}]
  %s4 = inlined_call_operand.vmem [shape: bf16[8,256], index: 4, kind: output, shape index: {}]
  %s5 = sld [smem:[#allocation0]]
  $region26: #{feature_extractor_with_attention.31} parent=0
    _
  %s7 = ssub.s32 1, %s5
  %s8 = scalar_select 0, %s7, %s5
  // Predicated region
  $region2: #{feature_extractor_with_attention.31} parent=0 // pred_check
    _
  $region3: #{feature_extractor_with_attention.31} parent=0 // pred_check_branch
    %10 = sbr.rel (0) target = $region5
  $region4: #{feature_extractor_with_attention.31} parent=0 // pred_region
    _
  $region5: #{feature_extractor_with_attention.31} parent=0 // pred_fallthru
    _
  // Predicated region
  $region6: #{feature_extractor_with_attention.31} parent=0 // pred_check
    _
  $region7: #{feature_extractor_with_attention.31} parent=0 // pred_check_branch
    %12 = sbr.rel (0) target = $region9
  $region8: #{feature_extractor_with_attention.31} parent=0 // pred_region
    _
  $region9: #{feature_extractor_with_attention.31} parent=0 // pred_fallthru
    _
  // Predicated region
  $region10: #{feature_extractor_with_attention.31} parent=0 // pred_check
    _
  $region11: #{feature_extractor_with_attention.31} parent=0 // pred_check_branch
    %14 = sbr.rel (0) target = $region13
  $region12: #{feature_extractor_with_attention.31} parent=0 // pred_region
    _
  $region13: #{feature_extractor_with_attention.31} parent=0 // pred_fallthru
    _
  // Predicated region
  $region14: #{feature_extractor_with_attention.31} parent=0 // pred_check
    _
  $region15: #{feature_extractor_with_attention.31} parent=0 // pred_check_branch
    %16 = sbr.rel (0) target = $region17
  $region16: #{feature_extractor_with_attention.31} parent=0 // pred_region
    _
  $region17: #{feature_extractor_with_attention.31} parent=0 // pred_fallthru
    _
  %v17 = vld [vmem:[%s0] sm:$0xff]
  %v18 = vld [vmem:[%s0 + $0x8] sm:$0xff]
  %v19 = vld [vmem:[%s0 + $0x10] sm:$0xff]
  %v20 = vld [vmem:[%s0 + $0x18] sm:$0xff]
  %v21 = vld [vmem:[%s0 + $0x20] sm:$0xff]
  %v22 = vld [vmem:[%s0 + $0x28] sm:$0xff]
  %v23 = vld [vmem:[%s0 + $0x30] sm:$0xff]
  %v24 = vld [vmem:[%s0 + $0x38] sm:$0xff]
  %v25 = vld [vmem:[%s0 + $0x40] sm:$0xff]
  %v26 = vld [vmem:[%s1] sm:$0xff]
  %v27 = vld [vmem:[%s1 + $0x8] sm:$0xff]
  %v28 = vld [vmem:[%s1 + $0x10] sm:$0xff]
  %v29 = vld [vmem:[%s1 + $0x18] sm:$0xff]
  %v30 = vld [vmem:[%s1 + $0x20] sm:$0xff]
  %v31 = vld [vmem:[%s1 + $0x28] sm:$0xff]
  %v32 = vld [vmem:[%s1 + $0x30] sm:$0xff]
  %v33 = vld [vmem:[%s1 + $0x38] sm:$0xff]
  %v34 = vld [vmem:[%s1 + $0x40] sm:$0xff]
  %v35 = vld [vmem:[%s1 + $0x48] sm:$0xff]
  %v36 = vld [vmem:[%s1 + $0x50] sm:$0xff]
  %v37 = vld [vmem:[%s1 + $0x58] sm:$0xff]
  %v38 = vld [vmem:[%s1 + $0x60] sm:$0xff]
  %v39 = vld [vmem:[%s1 + $0x68] sm:$0xff]
  %v40 = vld [vmem:[%s1 + $0x70] sm:$0xff]
  %v41 = vld [vmem:[%s1 + $0x78] sm:$0xff]
  %v42 = vld [vmem:[%s1 + $0x80] sm:$0xff]
  %v43 = vld [vmem:[%s1 + $0x88] sm:$0xff]
  %v44 = vld [vmem:[%s1 + $0x90] sm:$0xff]
  %v45 = vld [vmem:[%s1 + $0x98] sm:$0xff]
  %v46 = vld [vmem:[%s1 + $0xa0] sm:$0xff]
  %v47 = vld [vmem:[%s1 + $0xa8] sm:$0xff]
  %v48 = vld [vmem:[%s1 + $0xb0] sm:$0xff]
  %v49 = vld [vmem:[%s1 + $0xb8] sm:$0xff]
  %v50 = vld [vmem:[%s1 + $0xc0] sm:$0xff]
  %v51 = vld [vmem:[%s1 + $0xc8] sm:$0xff]
  %v52 = vld [vmem:[%s1 + $0xd0] sm:$0xff]
  %v53 = vld [vmem:[%s1 + $0xd8] sm:$0xff]
  %v54 = vld [vmem:[%s1 + $0xe0] sm:$0xff]
  %v55 = vld [vmem:[%s1 + $0xe8] sm:$0xff]
  %v56 = vld [vmem:[%s1 + $0xf0] sm:$0xff]
  %v57 = vld [vmem:[%s1 + $0xf8] sm:$0xff]
  %v58 = vld [vmem:[%s1 + $0x100] sm:$0xff]
  %v59 = vld [vmem:[%s1 + $0x108] sm:$0xff]
  %v60 = vld [vmem:[%s1 + $0x110] sm:$0xff]
  %v61 = vld [vmem:[%s1 + $0x118] sm:$0xff]
  %v62 = vld [vmem:[%s1 + $0x120] sm:$0xff]
  %v63 = vld [vmem:[%s1 + $0x128] sm:$0xff]
  %v64 = vld [vmem:[%s1 + $0x130] sm:$0xff]
  %v65 = vld [vmem:[%s1 + $0x138] sm:$0xff]
  %v66 = vld [vmem:[%s1 + $0x140] sm:$0xff]
  %v67 = vld [vmem:[%s1 + $0x148] sm:$0xff]
  %v68 = vld [vmem:[%s1 + $0x150] sm:$0xff]
  %v69 = vld [vmem:[%s1 + $0x158] sm:$0xff]
  %v70 = vld [vmem:[%s1 + $0x160] sm:$0xff]
  %v71 = vld [vmem:[%s1 + $0x168] sm:$0xff]
  %v72 = vld [vmem:[%s1 + $0x170] sm:$0xff]
  %v73 = vld [vmem:[%s1 + $0x178] sm:$0xff]
  %v74 = vld [vmem:[%s1 + $0x180] sm:$0xff]
  %v75 = vld [vmem:[%s1 + $0x188] sm:$0xff]
  %v76 = vld [vmem:[%s1 + $0x190] sm:$0xff]
  %v77 = vld [vmem:[%s1 + $0x198] sm:$0xff]
  %v78 = vld [vmem:[%s1 + $0x1a0] sm:$0xff]
  %v79 = vld [vmem:[%s1 + $0x1a8] sm:$0xff]
  %v80 = vld [vmem:[%s1 + $0x1b0] sm:$0xff]
  %v81 = vld [vmem:[%s1 + $0x1b8] sm:$0xff]
  %v82 = vld [vmem:[%s1 + $0x1c0] sm:$0xff]
  %v83 = vld [vmem:[%s1 + $0x1c8] sm:$0xff]
  %v84 = vld [vmem:[%s1 + $0x1d0] sm:$0xff]
  %v85 = vld [vmem:[%s1 + $0x1d8] sm:$0xff]
  %v86 = vld [vmem:[%s1 + $0x1e0] sm:$0xff]
  %v87 = vld [vmem:[%s1 + $0x1e8] sm:$0xff]
  %v88 = vld [vmem:[%s1 + $0x1f0] sm:$0xff]
  %v89 = vld [vmem:[%s1 + $0x1f8] sm:$0xff]
  %v90 = vld [vmem:[%s1 + $0x200] sm:$0xff]
  %v91 = vld [vmem:[%s1 + $0x208] sm:$0xff]
  %v92 = vld [vmem:[%s1 + $0x210] sm:$0xff]
  %v93 = vld [vmem:[%s1 + $0x218] sm:$0xff]
  %v94 = vld [vmem:[%s1 + $0x220] sm:$0xff]
  %v95 = vld [vmem:[%s1 + $0x228] sm:$0xff]
  %v96 = vld [vmem:[%s1 + $0x230] sm:$0xff]
  %v97 = vld [vmem:[%s1 + $0x238] sm:$0xff]
  %v98 = vld [vmem:[%s1 + $0x240] sm:$0xff]
  %v99 = vld [vmem:[%s1 + $0x248] sm:$0xff]
  %v100 = vld [vmem:[%s1 + $0x250] sm:$0xff]
  %v101 = vld [vmem:[%s1 + $0x258] sm:$0xff]
  %v102 = vld [vmem:[%s1 + $0x260] sm:$0xff]
  %v103 = vld [vmem:[%s1 + $0x268] sm:$0xff]
  %v104 = vld [vmem:[%s1 + $0x270] sm:$0xff]
  %v105 = vld [vmem:[%s1 + $0x278] sm:$0xff]
  %v106 = vld [vmem:[%s1 + $0x280] sm:$0xff]
  %v107 = vld [vmem:[%s1 + $0x288] sm:$0xff]
  %v108 = vld [vmem:[%s1 + $0x290] sm:$0xff]
  %v109 = vld [vmem:[%s1 + $0x298] sm:$0xff]
  %v110 = vld [vmem:[%s1 + $0x2a0] sm:$0xff]
  %v111 = vld [vmem:[%s1 + $0x2a8] sm:$0xff]
  %v112 = vld [vmem:[%s1 + $0x2b0] sm:$0xff]
  %v113 = vld [vmem:[%s1 + $0x2b8] sm:$0xff]
  %v114 = vld [vmem:[%s1 + $0x2c0] sm:$0xff]
  %v115 = vld [vmem:[%s1 + $0x2c8] sm:$0xff]
  %v116 = vld [vmem:[%s1 + $0x2d0] sm:$0xff]
  %v117 = vld [vmem:[%s1 + $0x2d8] sm:$0xff]
  %v118 = vld [vmem:[%s1 + $0x2e0] sm:$0xff]
  %v119 = vld [vmem:[%s1 + $0x2e8] sm:$0xff]
  %v120 = vld [vmem:[%s1 + $0x2f0] sm:$0xff]
  %v121 = vld [vmem:[%s1 + $0x2f8] sm:$0xff]
  %v122 = vld [vmem:[%s1 + $0x300] sm:$0xff]
  %v123 = vld [vmem:[%s1 + $0x308] sm:$0xff]
  %v124 = vld [vmem:[%s1 + $0x310] sm:$0xff]
  %v125 = vld [vmem:[%s1 + $0x318] sm:$0xff]
  %v126 = vld [vmem:[%s1 + $0x320] sm:$0xff]
  %v127 = vld [vmem:[%s1 + $0x328] sm:$0xff]
  %v128 = vld [vmem:[%s1 + $0x330] sm:$0xff]
  %v129 = vld [vmem:[%s1 + $0x338] sm:$0xff]
  %v130 = vld [vmem:[%s1 + $0x340] sm:$0xff]
  %v131 = vld [vmem:[%s1 + $0x348] sm:$0xff]
  %v132 = vld [vmem:[%s1 + $0x350] sm:$0xff]
  %v133 = vld [vmem:[%s1 + $0x358] sm:$0xff]
  %v134 = vld [vmem:[%s1 + $0x360] sm:$0xff]
  %v135 = vld [vmem:[%s1 + $0x368] sm:$0xff]
  %v136 = vld [vmem:[%s1 + $0x370] sm:$0xff]
  %v137 = vld [vmem:[%s1 + $0x378] sm:$0xff]
  %v138 = vld [vmem:[%s1 + $0x380] sm:$0xff]
  %v139 = vld [vmem:[%s1 + $0x388] sm:$0xff]
  %v140 = vld [vmem:[%s1 + $0x390] sm:$0xff]
  %v141 = vld [vmem:[%s1 + $0x398] sm:$0xff]
  %v142 = vld [vmem:[%s1 + $0x3a0] sm:$0xff]
  %v143 = vld [vmem:[%s1 + $0x3a8] sm:$0xff]
  %v144 = vld [vmem:[%s1 + $0x3b0] sm:$0xff]
  %v145 = vld [vmem:[%s1 + $0x3b8] sm:$0xff]
  %v146 = vld [vmem:[%s1 + $0x3c0] sm:$0xff]
  %v147 = vld [vmem:[%s1 + $0x3c8] sm:$0xff]
  %v148 = vld [vmem:[%s1 + $0x3d0] sm:$0xff]
  %v149 = vld [vmem:[%s1 + $0x3d8] sm:$0xff]
  %v150 = vld [vmem:[%s1 + $0x3e0] sm:$0xff]
  %v151 = vld [vmem:[%s1 + $0x3e8] sm:$0xff]
  %v152 = vld [vmem:[%s1 + $0x3f0] sm:$0xff]
  %v153 = vld [vmem:[%s1 + $0x3f8] sm:$0xff]
  %v154 = vld [vmem:[%s1 + $0x400] sm:$0xff]
  %v155 = vld [vmem:[%s1 + $0x408] sm:$0xff]
  %v156 = vld [vmem:[%s1 + $0x410] sm:$0xff]
  %v157 = vld [vmem:[%s1 + $0x418] sm:$0xff]
  %v158 = vld [vmem:[%s1 + $0x420] sm:$0xff]
  %v159 = vld [vmem:[%s1 + $0x428] sm:$0xff]
  %v160 = vld [vmem:[%s1 + $0x430] sm:$0xff]
  %v161 = vld [vmem:[%s1 + $0x438] sm:$0xff]
  %v162 = vld [vmem:[%s1 + $0x440] sm:$0xff]
  %v163 = vld [vmem:[%s1 + $0x448] sm:$0xff]
  %v164 = vld [vmem:[%s1 + $0x450] sm:$0xff]
  %v165 = vld [vmem:[%s1 + $0x458] sm:$0xff]
  %v166 = vld [vmem:[%s1 + $0x460] sm:$0xff]
  %v167 = vld [vmem:[%s1 + $0x468] sm:$0xff]
  %v168 = vld [vmem:[%s1 + $0x470] sm:$0xff]
  %v169 = vld [vmem:[%s1 + $0x478] sm:$0xff]
  %v170 = vld [vmem:[%s1 + $0x480] sm:$0xff]
  %v171 = vld [vmem:[%s1 + $0x488] sm:$0xff]
  %v172 = vld [vmem:[%s1 + $0x490] sm:$0xff]
  %v173 = vld [vmem:[%s1 + $0x498] sm:$0xff]
  %v174 = vld [vmem:[%s1 + $0x4a0] sm:$0xff]
  %v175 = vld [vmem:[%s1 + $0x4a8] sm:$0xff]
  %v176 = vld [vmem:[%s1 + $0x4b0] sm:$0xff]
  %v177 = vld [vmem:[%s1 + $0x4b8] sm:$0xff]
  %v178 = vld [vmem:[%s1 + $0x4c0] sm:$0xff]
  %v179 = vld [vmem:[%s1 + $0x4c8] sm:$0xff]
  %v180 = vld [vmem:[%s1 + $0x4d0] sm:$0xff]
  %v181 = vld [vmem:[%s1 + $0x4d8] sm:$0xff]
  %v182 = vld [vmem:[%s1 + $0x4e0] sm:$0xff]
  %v183 = vld [vmem:[%s1 + $0x4e8] sm:$0xff]
  %v184 = vld [vmem:[%s1 + $0x4f0] sm:$0xff]
  %v185 = vld [vmem:[%s1 + $0x4f8] sm:$0xff]
  %v186 = vld [vmem:[%s1 + $0x500] sm:$0xff]
  %v187 = vld [vmem:[%s1 + $0x508] sm:$0xff]
  %v188 = vld [vmem:[%s1 + $0x510] sm:$0xff]
  %v189 = vld [vmem:[%s1 + $0x518] sm:$0xff]
  %v190 = vld [vmem:[%s1 + $0x520] sm:$0xff]
  %v191 = vld [vmem:[%s1 + $0x528] sm:$0xff]
  %v192 = vld [vmem:[%s1 + $0x530] sm:$0xff]
  %v193 = vld [vmem:[%s1 + $0x538] sm:$0xff]
  %v194 = vld [vmem:[%s1 + $0x540] sm:$0xff]
  %v195 = vld [vmem:[%s1 + $0x548] sm:$0xff]
  %v196 = vld [vmem:[%s1 + $0x550] sm:$0xff]
  %v197 = vld [vmem:[%s1 + $0x558] sm:$0xff]
  %v198 = vld [vmem:[%s1 + $0x560] sm:$0xff]
  %v199 = vld [vmem:[%s1 + $0x568] sm:$0xff]
  %v200 = vld [vmem:[%s1 + $0x570] sm:$0xff]
  %v201 = vld [vmem:[%s1 + $0x578] sm:$0xff]
  %v202 = vld [vmem:[%s1 + $0x580] sm:$0xff]
  %v203 = vld [vmem:[%s1 + $0x588] sm:$0xff]
  %v204 = vld [vmem:[%s1 + $0x590] sm:$0xff]
  %v205 = vld [vmem:[%s1 + $0x598] sm:$0xff]
  %v206 = vld [vmem:[%s1 + $0x5a0] sm:$0xff]
  %v207 = vld [vmem:[%s1 + $0x5a8] sm:$0xff]
  %v208 = vld [vmem:[%s1 + $0x5b0] sm:$0xff]
  %v209 = vld [vmem:[%s1 + $0x5b8] sm:$0xff]
  %v210 = vld [vmem:[%s1 + $0x5c0] sm:$0xff]
  %v211 = vld [vmem:[%s1 + $0x5c8] sm:$0xff]
  %v212 = vld [vmem:[%s1 + $0x5d0] sm:$0xff]
  %v213 = vld [vmem:[%s1 + $0x5d8] sm:$0xff]
  %v214 = vld [vmem:[%s1 + $0x5e0] sm:$0xff]
  %v215 = vld [vmem:[%s1 + $0x5e8] sm:$0xff]
  %v216 = vld [vmem:[%s1 + $0x5f0] sm:$0xff]
  %v217 = vld [vmem:[%s1 + $0x5f8] sm:$0xff]
  %v218 = vld [vmem:[%s1 + $0x600] sm:$0xff]
  %v219 = vld [vmem:[%s1 + $0x608] sm:$0xff]
  %v220 = vld [vmem:[%s1 + $0x610] sm:$0xff]
  %v221 = vld [vmem:[%s1 + $0x618] sm:$0xff]
  %v222 = vld [vmem:[%s1 + $0x620] sm:$0xff]
  %v223 = vld [vmem:[%s1 + $0x628] sm:$0xff]
  %v224 = vld [vmem:[%s1 + $0x630] sm:$0xff]
  %v225 = vld [vmem:[%s1 + $0x638] sm:$0xff]
  %v226 = vld [vmem:[%s1 + $0x640] sm:$0xff]
  %v227 = vld [vmem:[%s1 + $0x648] sm:$0xff]
  %v228 = vld [vmem:[%s1 + $0x650] sm:$0xff]
  %v229 = vld [vmem:[%s1 + $0x658] sm:$0xff]
  %v230 = vld [vmem:[%s1 + $0x660] sm:$0xff]
  %v231 = vld [vmem:[%s1 + $0x668] sm:$0xff]
  %v232 = vld [vmem:[%s1 + $0x670] sm:$0xff]
  %v233 = vld [vmem:[%s1 + $0x678] sm:$0xff]
  %v234 = vld [vmem:[%s1 + $0x680] sm:$0xff]
  %v235 = vld [vmem:[%s1 + $0x688] sm:$0xff]
  %v236 = vld [vmem:[%s1 + $0x690] sm:$0xff]
  %v237 = vld [vmem:[%s1 + $0x698] sm:$0xff]
  %v238 = vld [vmem:[%s1 + $0x6a0] sm:$0xff]
  %v239 = vld [vmem:[%s1 + $0x6a8] sm:$0xff]
  %v240 = vld [vmem:[%s1 + $0x6b0] sm:$0xff]
  %v241 = vld [vmem:[%s1 + $0x6b8] sm:$0xff]
  %v242 = vld [vmem:[%s1 + $0x6c0] sm:$0xff]
  %v243 = vld [vmem:[%s1 + $0x6c8] sm:$0xff]
  %v244 = vld [vmem:[%s1 + $0x6d0] sm:$0xff]
  %v245 = vld [vmem:[%s1 + $0x6d8] sm:$0xff]
  %v246 = vld [vmem:[%s1 + $0x6e0] sm:$0xff]
  %v247 = vld [vmem:[%s1 + $0x6e8] sm:$0xff]
  %v248 = vld [vmem:[%s1 + $0x6f0] sm:$0xff]
  %v249 = vld [vmem:[%s1 + $0x6f8] sm:$0xff]
  %v250 = vld [vmem:[%s1 + $0x700] sm:$0xff]
  %v251 = vld [vmem:[%s1 + $0x708] sm:$0xff]
  %v252 = vld [vmem:[%s1 + $0x710] sm:$0xff]
  %v253 = vld [vmem:[%s1 + $0x718] sm:$0xff]
  %v254 = vld [vmem:[%s1 + $0x720] sm:$0xff]
  %v255 = vld [vmem:[%s1 + $0x728] sm:$0xff]
  %v256 = vld [vmem:[%s1 + $0x730] sm:$0xff]
  %v257 = vld [vmem:[%s1 + $0x738] sm:$0xff]
  %v258 = vld [vmem:[%s1 + $0x740] sm:$0xff]
  %v259 = vld [vmem:[%s1 + $0x748] sm:$0xff]
  %v260 = vld [vmem:[%s1 + $0x750] sm:$0xff]
  %v261 = vld [vmem:[%s1 + $0x758] sm:$0xff]
  %v262 = vld [vmem:[%s1 + $0x760] sm:$0xff]
  %v263 = vld [vmem:[%s1 + $0x768] sm:$0xff]
  %v264 = vld [vmem:[%s1 + $0x770] sm:$0xff]
  %v265 = vld [vmem:[%s1 + $0x778] sm:$0xff]
  %v266 = vld [vmem:[%s1 + $0x780] sm:$0xff]
  %v267 = vld [vmem:[%s1 + $0x788] sm:$0xff]
  %v268 = vld [vmem:[%s1 + $0x790] sm:$0xff]
  %v269 = vld [vmem:[%s1 + $0x798] sm:$0xff]
  %v270 = vld [vmem:[%s1 + $0x7a0] sm:$0xff]
  %v271 = vld [vmem:[%s1 + $0x7a8] sm:$0xff]
  %v272 = vld [vmem:[%s1 + $0x7b0] sm:$0xff]
  %v273 = vld [vmem:[%s1 + $0x7b8] sm:$0xff]
  %v274 = vld [vmem:[%s1 + $0x7c0] sm:$0xff]
  %v275 = vld [vmem:[%s1 + $0x7c8] sm:$0xff]
  %v276 = vld [vmem:[%s1 + $0x7d0] sm:$0xff]
  %v277 = vld [vmem:[%s1 + $0x7d8] sm:$0xff]
  %v278 = vld [vmem:[%s1 + $0x7e0] sm:$0xff]
  %v279 = vld [vmem:[%s1 + $0x7e8] sm:$0xff]
  %v280 = vld [vmem:[%s1 + $0x7f0] sm:$0xff]
  %v281 = vld [vmem:[%s1 + $0x7f8] sm:$0xff]
  %v282 = vld [vmem:[%s1 + $0x800] sm:$0xff]
  %v283 = vld [vmem:[%s1 + $0x808] sm:$0xff]
  %v284 = vld [vmem:[%s1 + $0x810] sm:$0xff]
  %v285 = vld [vmem:[%s1 + $0x818] sm:$0xff]
  %v286 = vld [vmem:[%s1 + $0x820] sm:$0xff]
  %v287 = vld [vmem:[%s1 + $0x828] sm:$0xff]
  %v288 = vld [vmem:[%s1 + $0x830] sm:$0xff]
  %v289 = vld [vmem:[%s1 + $0x838] sm:$0xff]
  %v290 = vld [vmem:[%s1 + $0x840] sm:$0xff]
  %v291 = vld [vmem:[%s1 + $0x848] sm:$0xff]
  %v292 = vld [vmem:[%s1 + $0x850] sm:$0xff]
  %v293 = vld [vmem:[%s1 + $0x858] sm:$0xff]
  %v294 = vld [vmem:[%s1 + $0x860] sm:$0xff]
  %v295 = vld [vmem:[%s1 + $0x868] sm:$0xff]
  %v296 = vld [vmem:[%s1 + $0x870] sm:$0xff]
  %v297 = vld [vmem:[%s1 + $0x878] sm:$0xff]
  %v298 = vld [vmem:[%s1 + $0x880] sm:$0xff]
  %v299 = vld [vmem:[%s1 + $0x888] sm:$0xff]
  %v300 = vld [vmem:[%s1 + $0x890] sm:$0xff]
  %v301 = vld [vmem:[%s1 + $0x898] sm:$0xff]
  %v302 = vld [vmem:[%s1 + $0x8a0] sm:$0xff]
  %v303 = vld [vmem:[%s1 + $0x8a8] sm:$0xff]
  %v304 = vld [vmem:[%s1 + $0x8b0] sm:$0xff]
  %v305 = vld [vmem:[%s1 + $0x8b8] sm:$0xff]
  %v306 = vld [vmem:[%s1 + $0x8c0] sm:$0xff]
  %v307 = vld [vmem:[%s1 + $0x8c8] sm:$0xff]
  %v308 = vld [vmem:[%s1 + $0x8d0] sm:$0xff]
  %v309 = vld [vmem:[%s1 + $0x8d8] sm:$0xff]
  %v310 = vld [vmem:[%s1 + $0x8e0] sm:$0xff]
  %v311 = vld [vmem:[%s1 + $0x8e8] sm:$0xff]
  %v312 = vld [vmem:[%s1 + $0x8f0] sm:$0xff]
  %v313 = vld [vmem:[%s1 + $0x8f8] sm:$0xff]
  %v323 = vunpack.c.l.b16 %v17
  %v324 = vunpack.c.h.b16 %v17
  %v325 = vunpack.c.l.b16 %v18
  %v326 = vunpack.c.h.b16 %v18
  %v327 = vunpack.c.l.b16 %v19
  %v328 = vunpack.c.h.b16 %v19
  %v329 = vunpack.c.l.b16 %v20
  %v330 = vunpack.c.h.b16 %v20
  %v331 = vunpack.c.l.b16 %v21
  %v332 = vunpack.c.h.b16 %v21
  %v333 = vunpack.c.l.b16 %v22
  %v334 = vunpack.c.h.b16 %v22
  %v335 = vunpack.c.l.b16 %v23
  %v336 = vunpack.c.h.b16 %v23
  %v337 = vunpack.c.l.b16 %v24
  %v338 = vunpack.c.h.b16 %v24
  %v339 = vunpack.c.l.b16 %v25
  %v340 = vunpack.c.h.b16 %v25
  %v341 = vpack.c.b16 %v323, %v323
  %v342 = vpack.c.b16 %v324, %v324
  %v343 = vpack.c.b16 %v325, %v325
  %v344 = vpack.c.b16 %v326, %v326
  %v345 = vpack.c.b16 %v327, %v327
  %v346 = vpack.c.b16 %v328, %v328
  %v347 = vpack.c.b16 %v329, %v329
  %v348 = vpack.c.b16 %v330, %v330
  %v349 = vpack.c.b16 %v331, %v331
  %v350 = vpack.c.b16 %v332, %v332
  %v351 = vpack.c.b16 %v333, %v333
  %v352 = vpack.c.b16 %v334, %v334
  %v353 = vpack.c.b16 %v335, %v335
  %v354 = vpack.c.b16 %v336, %v336
  %v355 = vpack.c.b16 %v337, %v337
  %v356 = vpack.c.b16 %v338, %v338
  %v357 = vpack.c.b16 %v339, %v339
  %v358 = vpack.c.b16 %v340, %v340
  %v665 = vunpack.c.l.b16 %v26
  %v666 = vunpack.c.h.b16 %v26
  %v667 = vunpack.c.l.b16 %v27
  %v668 = vunpack.c.h.b16 %v27
  %v669 = vunpack.c.l.b16 %v28
  %v670 = vunpack.c.h.b16 %v28
  %v671 = vunpack.c.l.b16 %v29
  %v672 = vunpack.c.h.b16 %v29
  %v673 = vunpack.c.l.b16 %v30
  %v674 = vunpack.c.h.b16 %v30
  %v675 = vunpack.c.l.b16 %v31
  %v676 = vunpack.c.h.b16 %v31
  %v677 = vunpack.c.l.b16 %v32
  %v678 = vunpack.c.h.b16 %v32
  %v679 = vunpack.c.l.b16 %v33
  %v680 = vunpack.c.h.b16 %v33
  %v681 = vunpack.c.l.b16 %v34
  %v682 = vunpack.c.h.b16 %v34
  %v683 = vunpack.c.l.b16 %v35
  %v684 = vunpack.c.h.b16 %v35
  %v685 = vunpack.c.l.b16 %v36
  %v686 = vunpack.c.h.b16 %v36
  %v687 = vunpack.c.l.b16 %v37
  %v688 = vunpack.c.h.b16 %v37
  %v689 = vunpack.c.l.b16 %v38
  %v690 = vunpack.c.h.b16 %v38
  %v691 = vunpack.c.l.b16 %v39
  %v692 = vunpack.c.h.b16 %v39
  %v693 = vunpack.c.l.b16 %v40
  %v694 = vunpack.c.h.b16 %v40
  %v695 = vunpack.c.l.b16 %v41
  %v696 = vunpack.c.h.b16 %v41
  %v697 = vunpack.c.l.b16 %v42
  %v698 = vunpack.c.h.b16 %v42
  %v699 = vunpack.c.l.b16 %v43
  %v700 = vunpack.c.h.b16 %v43
  %v701 = vunpack.c.l.b16 %v44
  %v702 = vunpack.c.h.b16 %v44
  %v703 = vunpack.c.l.b16 %v45
  %v704 = vunpack.c.h.b16 %v45
  %v705 = vunpack.c.l.b16 %v46
  %v706 = vunpack.c.h.b16 %v46
  %v707 = vunpack.c.l.b16 %v47
  %v708 = vunpack.c.h.b16 %v47
  %v709 = vunpack.c.l.b16 %v48
  %v710 = vunpack.c.h.b16 %v48
  %v711 = vunpack.c.l.b16 %v49
  %v712 = vunpack.c.h.b16 %v49
  %v713 = vunpack.c.l.b16 %v50
  %v714 = vunpack.c.h.b16 %v50
  %v715 = vunpack.c.l.b16 %v51
  %v716 = vunpack.c.h.b16 %v51
  %v717 = vunpack.c.l.b16 %v52
  %v718 = vunpack.c.h.b16 %v52
  %v719 = vunpack.c.l.b16 %v53
  %v720 = vunpack.c.h.b16 %v53
  %v721 = vunpack.c.l.b16 %v54
  %v722 = vunpack.c.h.b16 %v54
  %v723 = vunpack.c.l.b16 %v55
  %v724 = vunpack.c.h.b16 %v55
  %v725 = vunpack.c.l.b16 %v56
  %v726 = vunpack.c.h.b16 %v56
  %v727 = vunpack.c.l.b16 %v57
  %v728 = vunpack.c.h.b16 %v57
  %v729 = vunpack.c.l.b16 %v58
  %v730 = vunpack.c.h.b16 %v58
  %v731 = vunpack.c.l.b16 %v59
  %v732 = vunpack.c.h.b16 %v59
  %v733 = vunpack.c.l.b16 %v60
  %v734 = vunpack.c.h.b16 %v60
  %v735 = vunpack.c.l.b16 %v61
  %v736 = vunpack.c.h.b16 %v61
  %v737 = vunpack.c.l.b16 %v62
  %v738 = vunpack.c.h.b16 %v62
  %v739 = vunpack.c.l.b16 %v63
  %v740 = vunpack.c.h.b16 %v63
  %v741 = vunpack.c.l.b16 %v64
  %v742 = vunpack.c.h.b16 %v64
  %v743 = vunpack.c.l.b16 %v65
  %v744 = vunpack.c.h.b16 %v65
  %v745 = vunpack.c.l.b16 %v66
  %v746 = vunpack.c.h.b16 %v66
  %v747 = vunpack.c.l.b16 %v67
  %v748 = vunpack.c.h.b16 %v67
  %v749 = vunpack.c.l.b16 %v68
  %v750 = vunpack.c.h.b16 %v68
  %v751 = vunpack.c.l.b16 %v69
  %v752 = vunpack.c.h.b16 %v69
  %v753 = vunpack.c.l.b16 %v70
  %v754 = vunpack.c.h.b16 %v70
  %v755 = vunpack.c.l.b16 %v71
  %v756 = vunpack.c.h.b16 %v71
  %v757 = vunpack.c.l.b16 %v72
  %v758 = vunpack.c.h.b16 %v72
  %v759 = vunpack.c.l.b16 %v73
  %v760 = vunpack.c.h.b16 %v73
  %v761 = vunpack.c.l.b16 %v74
  %v762 = vunpack.c.h.b16 %v74
  %v763 = vunpack.c.l.b16 %v75
  %v764 = vunpack.c.h.b16 %v75
  %v765 = vunpack.c.l.b16 %v76
  %v766 = vunpack.c.h.b16 %v76
  %v767 = vunpack.c.l.b16 %v77
  %v768 = vunpack.c.h.b16 %v77
  %v769 = vunpack.c.l.b16 %v78
  %v770 = vunpack.c.h.b16 %v78
  %v771 = vunpack.c.l.b16 %v79
  %v772 = vunpack.c.h.b16 %v79
  %v773 = vunpack.c.l.b16 %v80
  %v774 = vunpack.c.h.b16 %v80
  %v775 = vunpack.c.l.b16 %v81
  %v776 = vunpack.c.h.b16 %v81
  %v777 = vunpack.c.l.b16 %v82
  %v778 = vunpack.c.h.b16 %v82
  %v779 = vunpack.c.l.b16 %v83
  %v780 = vunpack.c.h.b16 %v83
  %v781 = vunpack.c.l.b16 %v84
  %v782 = vunpack.c.h.b16 %v84
  %v783 = vunpack.c.l.b16 %v85
  %v784 = vunpack.c.h.b16 %v85
  %v785 = vunpack.c.l.b16 %v86
  %v786 = vunpack.c.h.b16 %v86
  %v787 = vunpack.c.l.b16 %v87
  %v788 = vunpack.c.h.b16 %v87
  %v789 = vunpack.c.l.b16 %v88
  %v790 = vunpack.c.h.b16 %v88
  %v791 = vunpack.c.l.b16 %v89
  %v792 = vunpack.c.h.b16 %v89
  %v793 = vunpack.c.l.b16 %v90
  %v794 = vunpack.c.h.b16 %v90
  %v795 = vunpack.c.l.b16 %v91
  %v796 = vunpack.c.h.b16 %v91
  %v797 = vunpack.c.l.b16 %v92
  %v798 = vunpack.c.h.b16 %v92
  %v799 = vunpack.c.l.b16 %v93
  %v800 = vunpack.c.h.b16 %v93
  %v801 = vunpack.c.l.b16 %v94
  %v802 = vunpack.c.h.b16 %v94
  %v803 = vunpack.c.l.b16 %v95
  %v804 = vunpack.c.h.b16 %v95
  %v805 = vunpack.c.l.b16 %v96
  %v806 = vunpack.c.h.b16 %v96
  %v807 = vunpack.c.l.b16 %v97
  %v808 = vunpack.c.h.b16 %v97
  %v809 = vunpack.c.l.b16 %v98
  %v810 = vunpack.c.h.b16 %v98
  %v811 = vunpack.c.l.b16 %v99
  %v812 = vunpack.c.h.b16 %v99
  %v813 = vunpack.c.l.b16 %v100
  %v814 = vunpack.c.h.b16 %v100
  %v815 = vunpack.c.l.b16 %v101
  %v816 = vunpack.c.h.b16 %v101
  %v817 = vunpack.c.l.b16 %v102
  %v818 = vunpack.c.h.b16 %v102
  %v819 = vunpack.c.l.b16 %v103
  %v820 = vunpack.c.h.b16 %v103
  %v821 = vunpack.c.l.b16 %v104
  %v822 = vunpack.c.h.b16 %v104
  %v823 = vunpack.c.l.b16 %v105
  %v824 = vunpack.c.h.b16 %v105
  %v825 = vunpack.c.l.b16 %v106
  %v826 = vunpack.c.h.b16 %v106
  %v827 = vunpack.c.l.b16 %v107
  %v828 = vunpack.c.h.b16 %v107
  %v829 = vunpack.c.l.b16 %v108
  %v830 = vunpack.c.h.b16 %v108
  %v831 = vunpack.c.l.b16 %v109
  %v832 = vunpack.c.h.b16 %v109
  %v833 = vunpack.c.l.b16 %v110
  %v834 = vunpack.c.h.b16 %v110
  %v835 = vunpack.c.l.b16 %v111
  %v836 = vunpack.c.h.b16 %v111
  %v837 = vunpack.c.l.b16 %v112
  %v838 = vunpack.c.h.b16 %v112
  %v839 = vunpack.c.l.b16 %v113
  %v840 = vunpack.c.h.b16 %v113
  %v841 = vunpack.c.l.b16 %v114
  %v842 = vunpack.c.h.b16 %v114
  %v843 = vunpack.c.l.b16 %v115
  %v844 = vunpack.c.h.b16 %v115
  %v845 = vunpack.c.l.b16 %v116
  %v846 = vunpack.c.h.b16 %v116
  %v847 = vunpack.c.l.b16 %v117
  %v848 = vunpack.c.h.b16 %v117
  %v849 = vunpack.c.l.b16 %v118
  %v850 = vunpack.c.h.b16 %v118
  %v851 = vunpack.c.l.b16 %v119
  %v852 = vunpack.c.h.b16 %v119
  %v853 = vunpack.c.l.b16 %v120
  %v854 = vunpack.c.h.b16 %v120
  %v855 = vunpack.c.l.b16 %v121
  %v856 = vunpack.c.h.b16 %v121
  %v857 = vunpack.c.l.b16 %v122
  %v858 = vunpack.c.h.b16 %v122
  %v859 = vunpack.c.l.b16 %v123
  %v860 = vunpack.c.h.b16 %v123
  %v861 = vunpack.c.l.b16 %v124
  %v862 = vunpack.c.h.b16 %v124
  %v863 = vunpack.c.l.b16 %v125
  %v864 = vunpack.c.h.b16 %v125
  %v865 = vunpack.c.l.b16 %v126
  %v866 = vunpack.c.h.b16 %v126
  %v867 = vunpack.c.l.b16 %v127
  %v868 = vunpack.c.h.b16 %v127
  %v869 = vunpack.c.l.b16 %v128
  %v870 = vunpack.c.h.b16 %v128
  %v871 = vunpack.c.l.b16 %v129
  %v872 = vunpack.c.h.b16 %v129
  %v873 = vunpack.c.l.b16 %v130
  %v874 = vunpack.c.h.b16 %v130
  %v875 = vunpack.c.l.b16 %v131
  %v876 = vunpack.c.h.b16 %v131
  %v877 = vunpack.c.l.b16 %v132
  %v878 = vunpack.c.h.b16 %v132
  %v879 = vunpack.c.l.b16 %v133
  %v880 = vunpack.c.h.b16 %v133
  %v881 = vunpack.c.l.b16 %v134
  %v882 = vunpack.c.h.b16 %v134
  %v883 = vunpack.c.l.b16 %v135
  %v884 = vunpack.c.h.b16 %v135
  %v885 = vunpack.c.l.b16 %v136
  %v886 = vunpack.c.h.b16 %v136
  %v887 = vunpack.c.l.b16 %v137
  %v888 = vunpack.c.h.b16 %v137
  %v889 = vunpack.c.l.b16 %v138
  %v890 = vunpack.c.h.b16 %v138
  %v891 = vunpack.c.l.b16 %v139
  %v892 = vunpack.c.h.b16 %v139
  %v893 = vunpack.c.l.b16 %v140
  %v894 = vunpack.c.h.b16 %v140
  %v895 = vunpack.c.l.b16 %v141
  %v896 = vunpack.c.h.b16 %v141
  %v897 = vunpack.c.l.b16 %v142
  %v898 = vunpack.c.h.b16 %v142
  %v899 = vunpack.c.l.b16 %v143
  %v900 = vunpack.c.h.b16 %v143
  %v901 = vunpack.c.l.b16 %v144
  %v902 = vunpack.c.h.b16 %v144
  %v903 = vunpack.c.l.b16 %v145
  %v904 = vunpack.c.h.b16 %v145
  %v905 = vunpack.c.l.b16 %v146
  %v906 = vunpack.c.h.b16 %v146
  %v907 = vunpack.c.l.b16 %v147
  %v908 = vunpack.c.h.b16 %v147
  %v909 = vunpack.c.l.b16 %v148
  %v910 = vunpack.c.h.b16 %v148
  %v911 = vunpack.c.l.b16 %v149
  %v912 = vunpack.c.h.b16 %v149
  %v913 = vunpack.c.l.b16 %v150
  %v914 = vunpack.c.h.b16 %v150
  %v915 = vunpack.c.l.b16 %v151
  %v916 = vunpack.c.h.b16 %v151
  %v917 = vunpack.c.l.b16 %v152
  %v918 = vunpack.c.h.b16 %v152
  %v919 = vunpack.c.l.b16 %v153
  %v920 = vunpack.c.h.b16 %v153
  %v921 = vunpack.c.l.b16 %v154
  %v922 = vunpack.c.h.b16 %v154
  %v923 = vunpack.c.l.b16 %v155
  %v924 = vunpack.c.h.b16 %v155
  %v925 = vunpack.c.l.b16 %v156
  %v926 = vunpack.c.h.b16 %v156
  %v927 = vunpack.c.l.b16 %v157
  %v928 = vunpack.c.h.b16 %v157
  %v929 = vunpack.c.l.b16 %v158
  %v930 = vunpack.c.h.b16 %v158
  %v931 = vunpack.c.l.b16 %v159
  %v932 = vunpack.c.h.b16 %v159
  %v933 = vunpack.c.l.b16 %v160
  %v934 = vunpack.c.h.b16 %v160
  %v935 = vunpack.c.l.b16 %v161
  %v936 = vunpack.c.h.b16 %v161
  %v937 = vunpack.c.l.b16 %v162
  %v938 = vunpack.c.h.b16 %v162
  %v939 = vunpack.c.l.b16 %v163
  %v940 = vunpack.c.h.b16 %v163
  %v941 = vunpack.c.l.b16 %v164
  %v942 = vunpack.c.h.b16 %v164
  %v943 = vunpack.c.l.b16 %v165
  %v944 = vunpack.c.h.b16 %v165
  %v945 = vunpack.c.l.b16 %v166
  %v946 = vunpack.c.h.b16 %v166
  %v947 = vunpack.c.l.b16 %v167
  %v948 = vunpack.c.h.b16 %v167
  %v949 = vunpack.c.l.b16 %v168
  %v950 = vunpack.c.h.b16 %v168
  %v951 = vunpack.c.l.b16 %v169
  %v952 = vunpack.c.h.b16 %v169
  %v953 = vunpack.c.l.b16 %v170
  %v954 = vunpack.c.h.b16 %v170
  %v955 = vunpack.c.l.b16 %v171
  %v956 = vunpack.c.h.b16 %v171
  %v957 = vunpack.c.l.b16 %v172
  %v958 = vunpack.c.h.b16 %v172
  %v959 = vunpack.c.l.b16 %v173
  %v960 = vunpack.c.h.b16 %v173
  %v961 = vunpack.c.l.b16 %v174
  %v962 = vunpack.c.h.b16 %v174
  %v963 = vunpack.c.l.b16 %v175
  %v964 = vunpack.c.h.b16 %v175
  %v965 = vunpack.c.l.b16 %v176
  %v966 = vunpack.c.h.b16 %v176
  %v967 = vunpack.c.l.b16 %v177
  %v968 = vunpack.c.h.b16 %v177
  %v969 = vunpack.c.l.b16 %v178
  %v970 = vunpack.c.h.b16 %v178
  %v971 = vunpack.c.l.b16 %v179
  %v972 = vunpack.c.h.b16 %v179
  %v973 = vunpack.c.l.b16 %v180
  %v974 = vunpack.c.h.b16 %v180
  %v975 = vunpack.c.l.b16 %v181
  %v976 = vunpack.c.h.b16 %v181
  %v977 = vunpack.c.l.b16 %v182
  %v978 = vunpack.c.h.b16 %v182
  %v979 = vunpack.c.l.b16 %v183
  %v980 = vunpack.c.h.b16 %v183
  %v981 = vunpack.c.l.b16 %v184
  %v982 = vunpack.c.h.b16 %v184
  %v983 = vunpack.c.l.b16 %v185
  %v984 = vunpack.c.h.b16 %v185
  %v985 = vunpack.c.l.b16 %v186
  %v986 = vunpack.c.h.b16 %v186
  %v987 = vunpack.c.l.b16 %v187
  %v988 = vunpack.c.h.b16 %v187
  %v989 = vunpack.c.l.b16 %v188
  %v990 = vunpack.c.h.b16 %v188
  %v991 = vunpack.c.l.b16 %v189
  %v992 = vunpack.c.h.b16 %v189
  %v993 = vunpack.c.l.b16 %v190
  %v994 = vunpack.c.h.b16 %v190
  %v995 = vunpack.c.l.b16 %v191
  %v996 = vunpack.c.h.b16 %v191
  %v997 = vunpack.c.l.b16 %v192
  %v998 = vunpack.c.h.b16 %v192
  %v999 = vunpack.c.l.b16 %v193
  %v1000 = vunpack.c.h.b16 %v193
  %v1001 = vunpack.c.l.b16 %v194
  %v1002 = vunpack.c.h.b16 %v194
  %v1003 = vunpack.c.l.b16 %v195
  %v1004 = vunpack.c.h.b16 %v195
  %v1005 = vunpack.c.l.b16 %v196
  %v1006 = vunpack.c.h.b16 %v196
  %v1007 = vunpack.c.l.b16 %v197
  %v1008 = vunpack.c.h.b16 %v197
  %v1009 = vunpack.c.l.b16 %v198
  %v1010 = vunpack.c.h.b16 %v198
  %v1011 = vunpack.c.l.b16 %v199
  %v1012 = vunpack.c.h.b16 %v199
  %v1013 = vunpack.c.l.b16 %v200
  %v1014 = vunpack.c.h.b16 %v200
  %v1015 = vunpack.c.l.b16 %v201
  %v1016 = vunpack.c.h.b16 %v201
  %v1017 = vunpack.c.l.b16 %v202
  %v1018 = vunpack.c.h.b16 %v202
  %v1019 = vunpack.c.l.b16 %v203
  %v1020 = vunpack.c.h.b16 %v203
  %v1021 = vunpack.c.l.b16 %v204
  %v1022 = vunpack.c.h.b16 %v204
  %v1023 = vunpack.c.l.b16 %v205
  %v1024 = vunpack.c.h.b16 %v205
  %v1025 = vunpack.c.l.b16 %v206
  %v1026 = vunpack.c.h.b16 %v206
  %v1027 = vunpack.c.l.b16 %v207
  %v1028 = vunpack.c.h.b16 %v207
  %v1029 = vunpack.c.l.b16 %v208
  %v1030 = vunpack.c.h.b16 %v208
  %v1031 = vunpack.c.l.b16 %v209
  %v1032 = vunpack.c.h.b16 %v209
  %v1033 = vunpack.c.l.b16 %v210
  %v1034 = vunpack.c.h.b16 %v210
  %v1035 = vunpack.c.l.b16 %v211
  %v1036 = vunpack.c.h.b16 %v211
  %v1037 = vunpack.c.l.b16 %v212
  %v1038 = vunpack.c.h.b16 %v212
  %v1039 = vunpack.c.l.b16 %v213
  %v1040 = vunpack.c.h.b16 %v213
  %v1041 = vunpack.c.l.b16 %v214
  %v1042 = vunpack.c.h.b16 %v214
  %v1043 = vunpack.c.l.b16 %v215
  %v1044 = vunpack.c.h.b16 %v215
  %v1045 = vunpack.c.l.b16 %v216
  %v1046 = vunpack.c.h.b16 %v216
  %v1047 = vunpack.c.l.b16 %v217
  %v1048 = vunpack.c.h.b16 %v217
  %v1049 = vunpack.c.l.b16 %v218
  %v1050 = vunpack.c.h.b16 %v218
  %v1051 = vunpack.c.l.b16 %v219
  %v1052 = vunpack.c.h.b16 %v219
  %v1053 = vunpack.c.l.b16 %v220
  %v1054 = vunpack.c.h.b16 %v220
  %v1055 = vunpack.c.l.b16 %v221
  %v1056 = vunpack.c.h.b16 %v221
  %v1057 = vunpack.c.l.b16 %v222
  %v1058 = vunpack.c.h.b16 %v222
  %v1059 = vunpack.c.l.b16 %v223
  %v1060 = vunpack.c.h.b16 %v223
  %v1061 = vunpack.c.l.b16 %v224
  %v1062 = vunpack.c.h.b16 %v224
  %v1063 = vunpack.c.l.b16 %v225
  %v1064 = vunpack.c.h.b16 %v225
  %v1065 = vunpack.c.l.b16 %v226
  %v1066 = vunpack.c.h.b16 %v226
  %v1067 = vunpack.c.l.b16 %v227
  %v1068 = vunpack.c.h.b16 %v227
  %v1069 = vunpack.c.l.b16 %v228
  %v1070 = vunpack.c.h.b16 %v228
  %v1071 = vunpack.c.l.b16 %v229
  %v1072 = vunpack.c.h.b16 %v229
  %v1073 = vunpack.c.l.b16 %v230
  %v1074 = vunpack.c.h.b16 %v230
  %v1075 = vunpack.c.l.b16 %v231
  %v1076 = vunpack.c.h.b16 %v231
  %v1077 = vunpack.c.l.b16 %v232
  %v1078 = vunpack.c.h.b16 %v232
  %v1079 = vunpack.c.l.b16 %v233
  %v1080 = vunpack.c.h.b16 %v233
  %v1081 = vunpack.c.l.b16 %v234
  %v1082 = vunpack.c.h.b16 %v234
  %v1083 = vunpack.c.l.b16 %v235
  %v1084 = vunpack.c.h.b16 %v235
  %v1085 = vunpack.c.l.b16 %v236
  %v1086 = vunpack.c.h.b16 %v236
  %v1087 = vunpack.c.l.b16 %v237
  %v1088 = vunpack.c.h.b16 %v237
  %v1089 = vunpack.c.l.b16 %v238
  %v1090 = vunpack.c.h.b16 %v238
  %v1091 = vunpack.c.l.b16 %v239
  %v1092 = vunpack.c.h.b16 %v239
  %v1093 = vunpack.c.l.b16 %v240
  %v1094 = vunpack.c.h.b16 %v240
  %v1095 = vunpack.c.l.b16 %v241
  %v1096 = vunpack.c.h.b16 %v241
  %v1097 = vunpack.c.l.b16 %v242
  %v1098 = vunpack.c.h.b16 %v242
  %v1099 = vunpack.c.l.b16 %v243
  %v1100 = vunpack.c.h.b16 %v243
  %v1101 = vunpack.c.l.b16 %v244
  %v1102 = vunpack.c.h.b16 %v244
  %v1103 = vunpack.c.l.b16 %v245
  %v1104 = vunpack.c.h.b16 %v245
  %v1105 = vunpack.c.l.b16 %v246
  %v1106 = vunpack.c.h.b16 %v246
  %v1107 = vunpack.c.l.b16 %v247
  %v1108 = vunpack.c.h.b16 %v247
  %v1109 = vunpack.c.l.b16 %v248
  %v1110 = vunpack.c.h.b16 %v248
  %v1111 = vunpack.c.l.b16 %v249
  %v1112 = vunpack.c.h.b16 %v249
  %v1113 = vunpack.c.l.b16 %v250
  %v1114 = vunpack.c.h.b16 %v250
  %v1115 = vunpack.c.l.b16 %v251
  %v1116 = vunpack.c.h.b16 %v251
  %v1117 = vunpack.c.l.b16 %v252
  %v1118 = vunpack.c.h.b16 %v252
  %v1119 = vunpack.c.l.b16 %v253
  %v1120 = vunpack.c.h.b16 %v253
  %v1121 = vunpack.c.l.b16 %v254
  %v1122 = vunpack.c.h.b16 %v254
  %v1123 = vunpack.c.l.b16 %v255
  %v1124 = vunpack.c.h.b16 %v255
  %v1125 = vunpack.c.l.b16 %v256
  %v1126 = vunpack.c.h.b16 %v256
  %v1127 = vunpack.c.l.b16 %v257
  %v1128 = vunpack.c.h.b16 %v257
  %v1129 = vunpack.c.l.b16 %v258
  %v1130 = vunpack.c.h.b16 %v258
  %v1131 = vunpack.c.l.b16 %v259
  %v1132 = vunpack.c.h.b16 %v259
  %v1133 = vunpack.c.l.b16 %v260
  %v1134 = vunpack.c.h.b16 %v260
  %v1135 = vunpack.c.l.b16 %v261
  %v1136 = vunpack.c.h.b16 %v261
  %v1137 = vunpack.c.l.b16 %v262
  %v1138 = vunpack.c.h.b16 %v262
  %v1139 = vunpack.c.l.b16 %v263
  %v1140 = vunpack.c.h.b16 %v263
  %v1141 = vunpack.c.l.b16 %v264
  %v1142 = vunpack.c.h.b16 %v264
  %v1143 = vunpack.c.l.b16 %v265
  %v1144 = vunpack.c.h.b16 %v265
  %v1145 = vunpack.c.l.b16 %v266
  %v1146 = vunpack.c.h.b16 %v266
  %v1147 = vunpack.c.l.b16 %v267
  %v1148 = vunpack.c.h.b16 %v267
  %v1149 = vunpack.c.l.b16 %v268
  %v1150 = vunpack.c.h.b16 %v268
  %v1151 = vunpack.c.l.b16 %v269
  %v1152 = vunpack.c.h.b16 %v269
  %v1153 = vunpack.c.l.b16 %v270
  %v1154 = vunpack.c.h.b16 %v270
  %v1155 = vunpack.c.l.b16 %v271
  %v1156 = vunpack.c.h.b16 %v271
  %v1157 = vunpack.c.l.b16 %v272
  %v1158 = vunpack.c.h.b16 %v272
  %v1159 = vunpack.c.l.b16 %v273
  %v1160 = vunpack.c.h.b16 %v273
  %v1161 = vunpack.c.l.b16 %v274
  %v1162 = vunpack.c.h.b16 %v274
  %v1163 = vunpack.c.l.b16 %v275
  %v1164 = vunpack.c.h.b16 %v275
  %v1165 = vunpack.c.l.b16 %v276
  %v1166 = vunpack.c.h.b16 %v276
  %v1167 = vunpack.c.l.b16 %v277
  %v1168 = vunpack.c.h.b16 %v277
  %v1169 = vunpack.c.l.b16 %v278
  %v1170 = vunpack.c.h.b16 %v278
  %v1171 = vunpack.c.l.b16 %v279
  %v1172 = vunpack.c.h.b16 %v279
  %v1173 = vunpack.c.l.b16 %v280
  %v1174 = vunpack.c.h.b16 %v280
  %v1175 = vunpack.c.l.b16 %v281
  %v1176 = vunpack.c.h.b16 %v281
  %v1177 = vunpack.c.l.b16 %v282
  %v1178 = vunpack.c.h.b16 %v282
  %v1179 = vunpack.c.l.b16 %v283
  %v1180 = vunpack.c.h.b16 %v283
  %v1181 = vunpack.c.l.b16 %v284
  %v1182 = vunpack.c.h.b16 %v284
  %v1183 = vunpack.c.l.b16 %v285
  %v1184 = vunpack.c.h.b16 %v285
  %v1185 = vunpack.c.l.b16 %v286
  %v1186 = vunpack.c.h.b16 %v286
  %v1187 = vunpack.c.l.b16 %v287
  %v1188 = vunpack.c.h.b16 %v287
  %v1189 = vunpack.c.l.b16 %v288
  %v1190 = vunpack.c.h.b16 %v288
  %v1191 = vunpack.c.l.b16 %v289
  %v1192 = vunpack.c.h.b16 %v289
  %v1193 = vunpack.c.l.b16 %v290
  %v1194 = vunpack.c.h.b16 %v290
  %v1195 = vunpack.c.l.b16 %v291
  %v1196 = vunpack.c.h.b16 %v291
  %v1197 = vunpack.c.l.b16 %v292
  %v1198 = vunpack.c.h.b16 %v292
  %v1199 = vunpack.c.l.b16 %v293
  %v1200 = vunpack.c.h.b16 %v293
  %v1201 = vunpack.c.l.b16 %v294
  %v1202 = vunpack.c.h.b16 %v294
  %v1203 = vunpack.c.l.b16 %v295
  %v1204 = vunpack.c.h.b16 %v295
  %v1205 = vunpack.c.l.b16 %v296
  %v1206 = vunpack.c.h.b16 %v296
  %v1207 = vunpack.c.l.b16 %v297
  %v1208 = vunpack.c.h.b16 %v297
  %v1209 = vunpack.c.l.b16 %v298
  %v1210 = vunpack.c.h.b16 %v298
  %v1211 = vunpack.c.l.b16 %v299
  %v1212 = vunpack.c.h.b16 %v299
  %v1213 = vunpack.c.l.b16 %v300
  %v1214 = vunpack.c.h.b16 %v300
  %v1215 = vunpack.c.l.b16 %v301
  %v1216 = vunpack.c.h.b16 %v301
  %v1217 = vunpack.c.l.b16 %v302
  %v1218 = vunpack.c.h.b16 %v302
  %v1219 = vunpack.c.l.b16 %v303
  %v1220 = vunpack.c.h.b16 %v303
  %v1221 = vunpack.c.l.b16 %v304
  %v1222 = vunpack.c.h.b16 %v304
  %v1223 = vunpack.c.l.b16 %v305
  %v1224 = vunpack.c.h.b16 %v305
  %v1225 = vunpack.c.l.b16 %v306
  %v1226 = vunpack.c.h.b16 %v306
  %v1227 = vunpack.c.l.b16 %v307
  %v1228 = vunpack.c.h.b16 %v307
  %v1229 = vunpack.c.l.b16 %v308
  %v1230 = vunpack.c.h.b16 %v308
  %v1231 = vunpack.c.l.b16 %v309
  %v1232 = vunpack.c.h.b16 %v309
  %v1233 = vunpack.c.l.b16 %v310
  %v1234 = vunpack.c.h.b16 %v310
  %v1235 = vunpack.c.l.b16 %v311
  %v1236 = vunpack.c.h.b16 %v311
  %v1237 = vunpack.c.l.b16 %v312
  %v1238 = vunpack.c.h.b16 %v312
  %v1239 = vunpack.c.l.b16 %v313
  %v1240 = vunpack.c.h.b16 %v313
  %v1241 = vpack.c.b16 %v667, %v665
  %v1242 = vpack.c.b16 %v668, %v666
  %v1243 = vpack.c.b16 %v671, %v669
  %v1244 = vpack.c.b16 %v672, %v670
  %v1245 = vpack.c.b16 %v675, %v673
  %v1246 = vpack.c.b16 %v676, %v674
  %v1247 = vpack.c.b16 %v679, %v677
  %v1248 = vpack.c.b16 %v680, %v678
  %v1249 = vpack.c.b16 %v683, %v681
  %v1250 = vpack.c.b16 %v684, %v682
  %v1251 = vpack.c.b16 %v687, %v685
  %v1252 = vpack.c.b16 %v688, %v686
  %v1253 = vpack.c.b16 %v691, %v689
  %v1254 = vpack.c.b16 %v692, %v690
  %v1255 = vpack.c.b16 %v695, %v693
  %v1256 = vpack.c.b16 %v696, %v694
  %v1257 = vpack.c.b16 %v699, %v697
  %v1258 = vpack.c.b16 %v700, %v698
  %v1259 = vpack.c.b16 %v703, %v701
  %v1260 = vpack.c.b16 %v704, %v702
  %v1261 = vpack.c.b16 %v707, %v705
  %v1262 = vpack.c.b16 %v708, %v706
  %v1263 = vpack.c.b16 %v711, %v709
  %v1264 = vpack.c.b16 %v712, %v710
  %v1265 = vpack.c.b16 %v715, %v713
  %v1266 = vpack.c.b16 %v716, %v714
  %v1267 = vpack.c.b16 %v719, %v717
  %v1268 = vpack.c.b16 %v720, %v718
  %v1269 = vpack.c.b16 %v723, %v721
  %v1270 = vpack.c.b16 %v724, %v722
  %v1271 = vpack.c.b16 %v727, %v725
  %v1272 = vpack.c.b16 %v728, %v726
  %v1273 = vpack.c.b16 %v731, %v729
  %v1274 = vpack.c.b16 %v732, %v730
  %v1275 = vpack.c.b16 %v735, %v733
  %v1276 = vpack.c.b16 %v736, %v734
  %v1277 = vpack.c.b16 %v739, %v737
  %v1278 = vpack.c.b16 %v740, %v738
  %v1279 = vpack.c.b16 %v743, %v741
  %v1280 = vpack.c.b16 %v744, %v742
  %v1281 = vpack.c.b16 %v747, %v745
  %v1282 = vpack.c.b16 %v748, %v746
  %v1283 = vpack.c.b16 %v751, %v749
  %v1284 = vpack.c.b16 %v752, %v750
  %v1285 = vpack.c.b16 %v755, %v753
  %v1286 = vpack.c.b16 %v756, %v754
  %v1287 = vpack.c.b16 %v759, %v757
  %v1288 = vpack.c.b16 %v760, %v758
  %v1289 = vpack.c.b16 %v763, %v761
  %v1290 = vpack.c.b16 %v764, %v762
  %v1291 = vpack.c.b16 %v767, %v765
  %v1292 = vpack.c.b16 %v768, %v766
  %v1293 = vpack.c.b16 %v771, %v769
  %v1294 = vpack.c.b16 %v772, %v770
  %v1295 = vpack.c.b16 %v775, %v773
  %v1296 = vpack.c.b16 %v776, %v774
  %v1297 = vpack.c.b16 %v779, %v777
  %v1298 = vpack.c.b16 %v780, %v778
  %v1299 = vpack.c.b16 %v783, %v781
  %v1300 = vpack.c.b16 %v784, %v782
  %v1301 = vpack.c.b16 %v787, %v785
  %v1302 = vpack.c.b16 %v788, %v786
  %v1303 = vpack.c.b16 %v791, %v789
  %v1304 = vpack.c.b16 %v792, %v790
  %v1305 = vpack.c.b16 %v795, %v793
  %v1306 = vpack.c.b16 %v796, %v794
  %v1307 = vpack.c.b16 %v799, %v797
  %v1308 = vpack.c.b16 %v800, %v798
  %v1309 = vpack.c.b16 %v803, %v801
  %v1310 = vpack.c.b16 %v804, %v802
  %v1311 = vpack.c.b16 %v807, %v805
  %v1312 = vpack.c.b16 %v808, %v806
  %v1313 = vpack.c.b16 %v811, %v809
  %v1314 = vpack.c.b16 %v812, %v810
  %v1315 = vpack.c.b16 %v815, %v813
  %v1316 = vpack.c.b16 %v816, %v814
  %v1317 = vpack.c.b16 %v819, %v817
  %v1318 = vpack.c.b16 %v820, %v818
  %v1319 = vpack.c.b16 %v823, %v821
  %v1320 = vpack.c.b16 %v824, %v822
  %v1321 = vpack.c.b16 %v827, %v825
  %v1322 = vpack.c.b16 %v828, %v826
  %v1323 = vpack.c.b16 %v831, %v829
  %v1324 = vpack.c.b16 %v832, %v830
  %v1325 = vpack.c.b16 %v835, %v833
  %v1326 = vpack.c.b16 %v836, %v834
  %v1327 = vpack.c.b16 %v839, %v837
  %v1328 = vpack.c.b16 %v840, %v838
  %v1329 = vpack.c.b16 %v843, %v841
  %v1330 = vpack.c.b16 %v844, %v842
  %v1331 = vpack.c.b16 %v847, %v845
  %v1332 = vpack.c.b16 %v848, %v846
  %v1333 = vpack.c.b16 %v851, %v849
  %v1334 = vpack.c.b16 %v852, %v850
  %v1335 = vpack.c.b16 %v855, %v853
  %v1336 = vpack.c.b16 %v856, %v854
  %v1337 = vpack.c.b16 %v859, %v857
  %v1338 = vpack.c.b16 %v860, %v858
  %v1339 = vpack.c.b16 %v863, %v861
  %v1340 = vpack.c.b16 %v864, %v862
  %v1341 = vpack.c.b16 %v867, %v865
  %v1342 = vpack.c.b16 %v868, %v866
  %v1343 = vpack.c.b16 %v871, %v869
  %v1344 = vpack.c.b16 %v872, %v870
  %v1345 = vpack.c.b16 %v875, %v873
  %v1346 = vpack.c.b16 %v876, %v874
  %v1347 = vpack.c.b16 %v879, %v877
  %v1348 = vpack.c.b16 %v880, %v878
  %v1349 = vpack.c.b16 %v883, %v881
  %v1350 = vpack.c.b16 %v884, %v882
  %v1351 = vpack.c.b16 %v887, %v885
  %v1352 = vpack.c.b16 %v888, %v886
  %v1353 = vpack.c.b16 %v891, %v889
  %v1354 = vpack.c.b16 %v892, %v890
  %v1355 = vpack.c.b16 %v895, %v893
  %v1356 = vpack.c.b16 %v896, %v894
  %v1357 = vpack.c.b16 %v899, %v897
  %v1358 = vpack.c.b16 %v900, %v898
  %v1359 = vpack.c.b16 %v903, %v901
  %v1360 = vpack.c.b16 %v904, %v902
  %v1361 = vpack.c.b16 %v907, %v905
  %v1362 = vpack.c.b16 %v908, %v906
  %v1363 = vpack.c.b16 %v911, %v909
  %v1364 = vpack.c.b16 %v912, %v910
  %v1365 = vpack.c.b16 %v915, %v913
  %v1366 = vpack.c.b16 %v916, %v914
  %v1367 = vpack.c.b16 %v919, %v917
  %v1368 = vpack.c.b16 %v920, %v918
  %v1369 = vpack.c.b16 %v923, %v921
  %v1370 = vpack.c.b16 %v924, %v922
  %v1371 = vpack.c.b16 %v927, %v925
  %v1372 = vpack.c.b16 %v928, %v926
  %v1373 = vpack.c.b16 %v931, %v929
  %v1374 = vpack.c.b16 %v932, %v930
  %v1375 = vpack.c.b16 %v935, %v933
  %v1376 = vpack.c.b16 %v936, %v934
  %v1377 = vpack.c.b16 %v939, %v937
  %v1378 = vpack.c.b16 %v940, %v938
  %v1379 = vpack.c.b16 %v943, %v941
  %v1380 = vpack.c.b16 %v944, %v942
  %v1381 = vpack.c.b16 %v947, %v945
  %v1382 = vpack.c.b16 %v948, %v946
  %v1383 = vpack.c.b16 %v951, %v949
  %v1384 = vpack.c.b16 %v952, %v950
  %v1385 = vpack.c.b16 %v955, %v953
  %v1386 = vpack.c.b16 %v956, %v954
  %v1387 = vpack.c.b16 %v959, %v957
  %v1388 = vpack.c.b16 %v960, %v958
  %v1389 = vpack.c.b16 %v963, %v961
  %v1390 = vpack.c.b16 %v964, %v962
  %v1391 = vpack.c.b16 %v967, %v965
  %v1392 = vpack.c.b16 %v968, %v966
  %v1393 = vpack.c.b16 %v971, %v969
  %v1394 = vpack.c.b16 %v972, %v970
  %v1395 = vpack.c.b16 %v975, %v973
  %v1396 = vpack.c.b16 %v976, %v974
  %v1397 = vpack.c.b16 %v979, %v977
  %v1398 = vpack.c.b16 %v980, %v978
  %v1399 = vpack.c.b16 %v983, %v981
  %v1400 = vpack.c.b16 %v984, %v982
  %v1401 = vpack.c.b16 %v987, %v985
  %v1402 = vpack.c.b16 %v988, %v986
  %v1403 = vpack.c.b16 %v991, %v989
  %v1404 = vpack.c.b16 %v992, %v990
  %v1405 = vpack.c.b16 %v995, %v993
  %v1406 = vpack.c.b16 %v996, %v994
  %v1407 = vpack.c.b16 %v999, %v997
  %v1408 = vpack.c.b16 %v1000, %v998
  %v1409 = vpack.c.b16 %v1003, %v1001
  %v1410 = vpack.c.b16 %v1004, %v1002
  %v1411 = vpack.c.b16 %v1007, %v1005
  %v1412 = vpack.c.b16 %v1008, %v1006
  %v1413 = vpack.c.b16 %v1011, %v1009
  %v1414 = vpack.c.b16 %v1012, %v1010
  %v1415 = vpack.c.b16 %v1015, %v1013
  %v1416 = vpack.c.b16 %v1016, %v1014
  %v1417 = vpack.c.b16 %v1019, %v1017
  %v1418 = vpack.c.b16 %v1020, %v1018
  %v1419 = vpack.c.b16 %v1023, %v1021
  %v1420 = vpack.c.b16 %v1024, %v1022
  %v1421 = vpack.c.b16 %v1027, %v1025
  %v1422 = vpack.c.b16 %v1028, %v1026
  %v1423 = vpack.c.b16 %v1031, %v1029
  %v1424 = vpack.c.b16 %v1032, %v1030
  %v1425 = vpack.c.b16 %v1035, %v1033
  %v1426 = vpack.c.b16 %v1036, %v1034
  %v1427 = vpack.c.b16 %v1039, %v1037
  %v1428 = vpack.c.b16 %v1040, %v1038
  %v1429 = vpack.c.b16 %v1043, %v1041
  %v1430 = vpack.c.b16 %v1044, %v1042
  %v1431 = vpack.c.b16 %v1047, %v1045
  %v1432 = vpack.c.b16 %v1048, %v1046
  %v1433 = vpack.c.b16 %v1051, %v1049
  %v1434 = vpack.c.b16 %v1052, %v1050
  %v1435 = vpack.c.b16 %v1055, %v1053
  %v1436 = vpack.c.b16 %v1056, %v1054
  %v1437 = vpack.c.b16 %v1059, %v1057
  %v1438 = vpack.c.b16 %v1060, %v1058
  %v1439 = vpack.c.b16 %v1063, %v1061
  %v1440 = vpack.c.b16 %v1064, %v1062
  %v1441 = vpack.c.b16 %v1067, %v1065
  %v1442 = vpack.c.b16 %v1068, %v1066
  %v1443 = vpack.c.b16 %v1071, %v1069
  %v1444 = vpack.c.b16 %v1072, %v1070
  %v1445 = vpack.c.b16 %v1075, %v1073
  %v1446 = vpack.c.b16 %v1076, %v1074
  %v1447 = vpack.c.b16 %v1079, %v1077
  %v1448 = vpack.c.b16 %v1080, %v1078
  %v1449 = vpack.c.b16 %v1083, %v1081
  %v1450 = vpack.c.b16 %v1084, %v1082
  %v1451 = vpack.c.b16 %v1087, %v1085
  %v1452 = vpack.c.b16 %v1088, %v1086
  %v1453 = vpack.c.b16 %v1091, %v1089
  %v1454 = vpack.c.b16 %v1092, %v1090
  %v1455 = vpack.c.b16 %v1095, %v1093
  %v1456 = vpack.c.b16 %v1096, %v1094
  %v1457 = vpack.c.b16 %v1099, %v1097
  %v1458 = vpack.c.b16 %v1100, %v1098
  %v1459 = vpack.c.b16 %v1103, %v1101
  %v1460 = vpack.c.b16 %v1104, %v1102
  %v1461 = vpack.c.b16 %v1107, %v1105
  %v1462 = vpack.c.b16 %v1108, %v1106
  %v1463 = vpack.c.b16 %v1111, %v1109
  %v1464 = vpack.c.b16 %v1112, %v1110
  %v1465 = vpack.c.b16 %v1115, %v1113
  %v1466 = vpack.c.b16 %v1116, %v1114
  %v1467 = vpack.c.b16 %v1119, %v1117
  %v1468 = vpack.c.b16 %v1120, %v1118
  %v1469 = vpack.c.b16 %v1123, %v1121
  %v1470 = vpack.c.b16 %v1124, %v1122
  %v1471 = vpack.c.b16 %v1127, %v1125
  %v1472 = vpack.c.b16 %v1128, %v1126
  %v1473 = vpack.c.b16 %v1131, %v1129
  %v1474 = vpack.c.b16 %v1132, %v1130
  %v1475 = vpack.c.b16 %v1135, %v1133
  %v1476 = vpack.c.b16 %v1136, %v1134
  %v1477 = vpack.c.b16 %v1139, %v1137
  %v1478 = vpack.c.b16 %v1140, %v1138
  %v1479 = vpack.c.b16 %v1143, %v1141
  %v1480 = vpack.c.b16 %v1144, %v1142
  %v1481 = vpack.c.b16 %v1147, %v1145
  %v1482 = vpack.c.b16 %v1148, %v1146
  %v1483 = vpack.c.b16 %v1151, %v1149
  %v1484 = vpack.c.b16 %v1152, %v1150
  %v1485 = vpack.c.b16 %v1155, %v1153
  %v1486 = vpack.c.b16 %v1156, %v1154
  %v1487 = vpack.c.b16 %v1159, %v1157
  %v1488 = vpack.c.b16 %v1160, %v1158
  %v1489 = vpack.c.b16 %v1163, %v1161
  %v1490 = vpack.c.b16 %v1164, %v1162
  %v1491 = vpack.c.b16 %v1167, %v1165
  %v1492 = vpack.c.b16 %v1168, %v1166
  %v1493 = vpack.c.b16 %v1171, %v1169
  %v1494 = vpack.c.b16 %v1172, %v1170
  %v1495 = vpack.c.b16 %v1175, %v1173
  %v1496 = vpack.c.b16 %v1176, %v1174
  %v1497 = vpack.c.b16 %v1179, %v1177
  %v1498 = vpack.c.b16 %v1180, %v1178
  %v1499 = vpack.c.b16 %v1183, %v1181
  %v1500 = vpack.c.b16 %v1184, %v1182
  %v1501 = vpack.c.b16 %v1187, %v1185
  %v1502 = vpack.c.b16 %v1188, %v1186
  %v1503 = vpack.c.b16 %v1191, %v1189
  %v1504 = vpack.c.b16 %v1192, %v1190
  %v1505 = vpack.c.b16 %v1195, %v1193
  %v1506 = vpack.c.b16 %v1196, %v1194
  %v1507 = vpack.c.b16 %v1199, %v1197
  %v1508 = vpack.c.b16 %v1200, %v1198
  %v1509 = vpack.c.b16 %v1203, %v1201
  %v1510 = vpack.c.b16 %v1204, %v1202
  %v1511 = vpack.c.b16 %v1207, %v1205
  %v1512 = vpack.c.b16 %v1208, %v1206
  %v1513 = vpack.c.b16 %v1211, %v1209
  %v1514 = vpack.c.b16 %v1212, %v1210
  %v1515 = vpack.c.b16 %v1215, %v1213
  %v1516 = vpack.c.b16 %v1216, %v1214
  %v1517 = vpack.c.b16 %v1219, %v1217
  %v1518 = vpack.c.b16 %v1220, %v1218
  %v1519 = vpack.c.b16 %v1223, %v1221
  %v1520 = vpack.c.b16 %v1224, %v1222
  %v1521 = vpack.c.b16 %v1227, %v1225
  %v1522 = vpack.c.b16 %v1228, %v1226
  %v1523 = vpack.c.b16 %v1231, %v1229
  %v1524 = vpack.c.b16 %v1232, %v1230
  %v1525 = vpack.c.b16 %v1235, %v1233
  %v1526 = vpack.c.b16 %v1236, %v1234
  %v1527 = vpack.c.b16 %v1239, %v1237
  %v1528 = vpack.c.b16 %v1240, %v1238
  %1817 = vmatpush.bf16.msra.mxu0 %v1255
  %1818 = vmatpush.bf16.msra.mxu0 %v1253
  %1819 = vmatpush.bf16.msra.mxu0 %v1251
  %1820 = vmatpush.bf16.msra.mxu0 %v1249
  %1821 = vmatpush.bf16.msra.mxu0 %v1247
  %1822 = vmatpush.bf16.msra.mxu0 %v1245
  %1823 = vmatpush.bf16.msra.mxu0 %v1243
  %1824 = vmatpush.bf16.msra.mxu0 %v1241
  %1825 = vmatmul.bf16.gmra.mxu0 %v341
  %v1826 = vpop.f32.mrf.mxu0
  %v1827 = vadd.f32 0.0, %v1826
  %v1828 = vpop.f32.mrf.mxu0
  %1829 = vdwg.mxu0
  %1830 = vmatpush.bf16.msra.mxu0 %v1271
  %1831 = vmatpush.bf16.msra.mxu0 %v1269
  %1832 = vmatpush.bf16.msra.mxu0 %v1267
  %1833 = vmatpush.bf16.msra.mxu0 %v1265
  %1834 = vmatpush.bf16.msra.mxu0 %v1263
  %1835 = vmatpush.bf16.msra.mxu0 %v1261
  %1836 = vmatpush.bf16.msra.mxu0 %v1259
  %1837 = vmatpush.bf16.msra.mxu0 %v1257
  %1838 = vmatmul.bf16.gmra.mxu0 %v342
  %v1839 = vpop.f32.mrf.mxu0
  %v1840 = vadd.f32 %v1827, %v1839
  %v1841 = vpop.f32.mrf.mxu0
  %1842 = vdwg.mxu0
  %1843 = vmatpush.bf16.msra.mxu0 %v1287
  %1844 = vmatpush.bf16.msra.mxu0 %v1285
  %1845 = vmatpush.bf16.msra.mxu0 %v1283
  %1846 = vmatpush.bf16.msra.mxu0 %v1281
  %1847 = vmatpush.bf16.msra.mxu0 %v1279
  %1848 = vmatpush.bf16.msra.mxu0 %v1277
  %1849 = vmatpush.bf16.msra.mxu0 %v1275
  %1850 = vmatpush.bf16.msra.mxu0 %v1273
  %1851 = vmatmul.bf16.gmra.mxu0 %v343
  %v1852 = vpop.f32.mrf.mxu0
  %v1853 = vadd.f32 %v1840, %v1852
  %v1854 = vpop.f32.mrf.mxu0
  %1855 = vdwg.mxu0
  %1856 = vmatpush.bf16.msra.mxu0 %v1303
  %1857 = vmatpush.bf16.msra.mxu0 %v1301
  %1858 = vmatpush.bf16.msra.mxu0 %v1299
  %1859 = vmatpush.bf16.msra.mxu0 %v1297
  %1860 = vmatpush.bf16.msra.mxu0 %v1295
  %1861 = vmatpush.bf16.msra.mxu0 %v1293
  %1862 = vmatpush.bf16.msra.mxu0 %v1291
  %1863 = vmatpush.bf16.msra.mxu0 %v1289
  %1864 = vmatmul.bf16.gmra.mxu0 %v344
  %v1865 = vpop.f32.mrf.mxu0
  %v1866 = vadd.f32 %v1853, %v1865
  %v1867 = vpop.f32.mrf.mxu0
  %1868 = vdwg.mxu0
  %1869 = vmatpush.bf16.msra.mxu0 %v1319
  %1870 = vmatpush.bf16.msra.mxu0 %v1317
  %1871 = vmatpush.bf16.msra.mxu0 %v1315
  %1872 = vmatpush.bf16.msra.mxu0 %v1313
  %1873 = vmatpush.bf16.msra.mxu0 %v1311
  %1874 = vmatpush.bf16.msra.mxu0 %v1309
  %1875 = vmatpush.bf16.msra.mxu0 %v1307
  %1876 = vmatpush.bf16.msra.mxu0 %v1305
  %1877 = vmatmul.bf16.gmra.mxu0 %v345
  %v1878 = vpop.f32.mrf.mxu0
  %v1879 = vadd.f32 %v1866, %v1878
  %v1880 = vpop.f32.mrf.mxu0
  %1881 = vdwg.mxu0
  %1882 = vmatpush.bf16.msra.mxu0 %v1335
  %1883 = vmatpush.bf16.msra.mxu0 %v1333
  %1884 = vmatpush.bf16.msra.mxu0 %v1331
  %1885 = vmatpush.bf16.msra.mxu0 %v1329
  %1886 = vmatpush.bf16.msra.mxu0 %v1327
  %1887 = vmatpush.bf16.msra.mxu0 %v1325
  %1888 = vmatpush.bf16.msra.mxu0 %v1323
  %1889 = vmatpush.bf16.msra.mxu0 %v1321
  %1890 = vmatmul.bf16.gmra.mxu0 %v346
  %v1891 = vpop.f32.mrf.mxu0
  %v1892 = vadd.f32 %v1879, %v1891
  %v1893 = vpop.f32.mrf.mxu0
  %1894 = vdwg.mxu0
  %1895 = vmatpush.bf16.msra.mxu0 %v1351
  %1896 = vmatpush.bf16.msra.mxu0 %v1349
  %1897 = vmatpush.bf16.msra.mxu0 %v1347
  %1898 = vmatpush.bf16.msra.mxu0 %v1345
  %1899 = vmatpush.bf16.msra.mxu0 %v1343
  %1900 = vmatpush.bf16.msra.mxu0 %v1341
  %1901 = vmatpush.bf16.msra.mxu0 %v1339
  %1902 = vmatpush.bf16.msra.mxu0 %v1337
  %1903 = vmatmul.bf16.gmra.mxu0 %v347
  %v1904 = vpop.f32.mrf.mxu0
  %v1905 = vadd.f32 %v1892, %v1904
  %v1906 = vpop.f32.mrf.mxu0
  %1907 = vdwg.mxu0
  %1908 = vmatpush.bf16.msra.mxu0 %v1367
  %1909 = vmatpush.bf16.msra.mxu0 %v1365
  %1910 = vmatpush.bf16.msra.mxu0 %v1363
  %1911 = vmatpush.bf16.msra.mxu0 %v1361
  %1912 = vmatpush.bf16.msra.mxu0 %v1359
  %1913 = vmatpush.bf16.msra.mxu0 %v1357
  %1914 = vmatpush.bf16.msra.mxu0 %v1355
  %1915 = vmatpush.bf16.msra.mxu0 %v1353
  %1916 = vmatmul.bf16.gmra.mxu0 %v348
  %v1917 = vpop.f32.mrf.mxu0
  %v1918 = vadd.f32 %v1905, %v1917
  %v1919 = vpop.f32.mrf.mxu0
  %1920 = vdwg.mxu0
  %1921 = vmatpush.bf16.msra.mxu0 %v1383
  %1922 = vmatpush.bf16.msra.mxu0 %v1381
  %1923 = vmatpush.bf16.msra.mxu0 %v1379
  %1924 = vmatpush.bf16.msra.mxu0 %v1377
  %1925 = vmatpush.bf16.msra.mxu0 %v1375
  %1926 = vmatpush.bf16.msra.mxu0 %v1373
  %1927 = vmatpush.bf16.msra.mxu0 %v1371
  %1928 = vmatpush.bf16.msra.mxu0 %v1369
  %1929 = vmatmul.bf16.gmra.mxu0 %v349
  %v1930 = vpop.f32.mrf.mxu0
  %v1931 = vadd.f32 %v1918, %v1930
  %v1932 = vpop.f32.mrf.mxu0
  %1933 = vdwg.mxu0
  %1934 = vmatpush.bf16.msra.mxu0 %v1399
  %1935 = vmatpush.bf16.msra.mxu0 %v1397
  %1936 = vmatpush.bf16.msra.mxu0 %v1395
  %1937 = vmatpush.bf16.msra.mxu0 %v1393
  %1938 = vmatpush.bf16.msra.mxu0 %v1391
  %1939 = vmatpush.bf16.msra.mxu0 %v1389
  %1940 = vmatpush.bf16.msra.mxu0 %v1387
  %1941 = vmatpush.bf16.msra.mxu0 %v1385
  %1942 = vmatmul.bf16.gmra.mxu0 %v350
  %v1943 = vpop.f32.mrf.mxu0
  %v1944 = vadd.f32 %v1931, %v1943
  %v1945 = vpop.f32.mrf.mxu0
  %1946 = vdwg.mxu0
  %1947 = vmatpush.bf16.msra.mxu0 %v1415
  %1948 = vmatpush.bf16.msra.mxu0 %v1413
  %1949 = vmatpush.bf16.msra.mxu0 %v1411
  %1950 = vmatpush.bf16.msra.mxu0 %v1409
  %1951 = vmatpush.bf16.msra.mxu0 %v1407
  %1952 = vmatpush.bf16.msra.mxu0 %v1405
  %1953 = vmatpush.bf16.msra.mxu0 %v1403
  %1954 = vmatpush.bf16.msra.mxu0 %v1401
  %1955 = vmatmul.bf16.gmra.mxu0 %v351
  %v1956 = vpop.f32.mrf.mxu0
  %v1957 = vadd.f32 %v1944, %v1956
  %v1958 = vpop.f32.mrf.mxu0
  %1959 = vdwg.mxu0
  %1960 = vmatpush.bf16.msra.mxu0 %v1431
  %1961 = vmatpush.bf16.msra.mxu0 %v1429
  %1962 = vmatpush.bf16.msra.mxu0 %v1427
  %1963 = vmatpush.bf16.msra.mxu0 %v1425
  %1964 = vmatpush.bf16.msra.mxu0 %v1423
  %1965 = vmatpush.bf16.msra.mxu0 %v1421
  %1966 = vmatpush.bf16.msra.mxu0 %v1419
  %1967 = vmatpush.bf16.msra.mxu0 %v1417
  %1968 = vmatmul.bf16.gmra.mxu0 %v352
  %v1969 = vpop.f32.mrf.mxu0
  %v1970 = vadd.f32 %v1957, %v1969
  %v1971 = vpop.f32.mrf.mxu0
  %1972 = vdwg.mxu0
  %1973 = vmatpush.bf16.msra.mxu0 %v1447
  %1974 = vmatpush.bf16.msra.mxu0 %v1445
  %1975 = vmatpush.bf16.msra.mxu0 %v1443
  %1976 = vmatpush.bf16.msra.mxu0 %v1441
  %1977 = vmatpush.bf16.msra.mxu0 %v1439
  %1978 = vmatpush.bf16.msra.mxu0 %v1437
  %1979 = vmatpush.bf16.msra.mxu0 %v1435
  %1980 = vmatpush.bf16.msra.mxu0 %v1433
  %1981 = vmatmul.bf16.gmra.mxu0 %v353
  %v1982 = vpop.f32.mrf.mxu0
  %v1983 = vadd.f32 %v1970, %v1982
  %v1984 = vpop.f32.mrf.mxu0
  %1985 = vdwg.mxu0
  %1986 = vmatpush.bf16.msra.mxu0 %v1463
  %1987 = vmatpush.bf16.msra.mxu0 %v1461
  %1988 = vmatpush.bf16.msra.mxu0 %v1459
  %1989 = vmatpush.bf16.msra.mxu0 %v1457
  %1990 = vmatpush.bf16.msra.mxu0 %v1455
  %1991 = vmatpush.bf16.msra.mxu0 %v1453
  %1992 = vmatpush.bf16.msra.mxu0 %v1451
  %1993 = vmatpush.bf16.msra.mxu0 %v1449
  %1994 = vmatmul.bf16.gmra.mxu0 %v354
  %v1995 = vpop.f32.mrf.mxu0
  %v1996 = vadd.f32 %v1983, %v1995
  %v1997 = vpop.f32.mrf.mxu0
  %1998 = vdwg.mxu0
  %1999 = vmatpush.bf16.msra.mxu0 %v1479
  %2000 = vmatpush.bf16.msra.mxu0 %v1477
  %2001 = vmatpush.bf16.msra.mxu0 %v1475
  %2002 = vmatpush.bf16.msra.mxu0 %v1473
  %2003 = vmatpush.bf16.msra.mxu0 %v1471
  %2004 = vmatpush.bf16.msra.mxu0 %v1469
  %2005 = vmatpush.bf16.msra.mxu0 %v1467
  %2006 = vmatpush.bf16.msra.mxu0 %v1465
  %2007 = vmatmul.bf16.gmra.mxu0 %v355
  %v2008 = vpop.f32.mrf.mxu0
  %v2009 = vadd.f32 %v1996, %v2008
  %v2010 = vpop.f32.mrf.mxu0
  %2011 = vdwg.mxu0
  %2012 = vmatpush.bf16.msra.mxu0 %v1495
  %2013 = vmatpush.bf16.msra.mxu0 %v1493
  %2014 = vmatpush.bf16.msra.mxu0 %v1491
  %2015 = vmatpush.bf16.msra.mxu0 %v1489
  %2016 = vmatpush.bf16.msra.mxu0 %v1487
  %2017 = vmatpush.bf16.msra.mxu0 %v1485
  %2018 = vmatpush.bf16.msra.mxu0 %v1483
  %2019 = vmatpush.bf16.msra.mxu0 %v1481
  %2020 = vmatmul.bf16.gmra.mxu0 %v356
  %v2021 = vpop.f32.mrf.mxu0
  %v2022 = vadd.f32 %v2009, %v2021
  %v2023 = vpop.f32.mrf.mxu0
  %2024 = vdwg.mxu0
  %2025 = vmatpush.bf16.msra.mxu0 %v1511
  %2026 = vmatpush.bf16.msra.mxu0 %v1509
  %2027 = vmatpush.bf16.msra.mxu0 %v1507
  %2028 = vmatpush.bf16.msra.mxu0 %v1505
  %2029 = vmatpush.bf16.msra.mxu0 %v1503
  %2030 = vmatpush.bf16.msra.mxu0 %v1501
  %2031 = vmatpush.bf16.msra.mxu0 %v1499
  %2032 = vmatpush.bf16.msra.mxu0 %v1497
  %2033 = vmatmul.bf16.gmra.mxu0 %v357
  %v2034 = vpop.f32.mrf.mxu0
  %v2035 = vadd.f32 %v2022, %v2034
  %v2036 = vpop.f32.mrf.mxu0
  %2037 = vdwg.mxu0
  %2038 = vmatpush.bf16.msra.mxu0 %v1527
  %2039 = vmatpush.bf16.msra.mxu0 %v1525
  %2040 = vmatpush.bf16.msra.mxu0 %v1523
  %2041 = vmatpush.bf16.msra.mxu0 %v1521
  %2042 = vmatpush.bf16.msra.mxu0 %v1519
  %2043 = vmatpush.bf16.msra.mxu0 %v1517
  %2044 = vmatpush.bf16.msra.mxu0 %v1515
  %2045 = vmatpush.bf16.msra.mxu0 %v1513
  %2046 = vmatmul.bf16.gmra.mxu0 %v358
  %v2047 = vpop.f32.mrf.mxu0
  %v2048 = vadd.f32 %v2035, %v2047
  %v2049 = vpop.f32.mrf.mxu0
  %2050 = vdwg.mxu0
  %2051 = vmatpush.bf16.msra.mxu0 %v1256
  %2052 = vmatpush.bf16.msra.mxu0 %v1254
  %2053 = vmatpush.bf16.msra.mxu0 %v1252
  %2054 = vmatpush.bf16.msra.mxu0 %v1250
  %2055 = vmatpush.bf16.msra.mxu0 %v1248
  %2056 = vmatpush.bf16.msra.mxu0 %v1246
  %2057 = vmatpush.bf16.msra.mxu0 %v1244
  %2058 = vmatpush.bf16.msra.mxu0 %v1242
  %2059 = vmatmul.bf16.gmra.mxu0 %v341
  %v2060 = vpop.f32.mrf.mxu0
  %v2061 = vadd.f32 0.0, %v2060
  %v2062 = vpop.f32.mrf.mxu0
  %2063 = vdwg.mxu0
  %2064 = vmatpush.bf16.msra.mxu0 %v1272
  %2065 = vmatpush.bf16.msra.mxu0 %v1270
  %2066 = vmatpush.bf16.msra.mxu0 %v1268
  %2067 = vmatpush.bf16.msra.mxu0 %v1266
  %2068 = vmatpush.bf16.msra.mxu0 %v1264
  %2069 = vmatpush.bf16.msra.mxu0 %v1262
  %2070 = vmatpush.bf16.msra.mxu0 %v1260
  %2071 = vmatpush.bf16.msra.mxu0 %v1258
  %2072 = vmatmul.bf16.gmra.mxu0 %v342
  %v2073 = vpop.f32.mrf.mxu0
  %v2074 = vadd.f32 %v2061, %v2073
  %v2075 = vpop.f32.mrf.mxu0
  %2076 = vdwg.mxu0
  %2077 = vmatpush.bf16.msra.mxu0 %v1288
  %2078 = vmatpush.bf16.msra.mxu0 %v1286
  %2079 = vmatpush.bf16.msra.mxu0 %v1284
  %2080 = vmatpush.bf16.msra.mxu0 %v1282
  %2081 = vmatpush.bf16.msra.mxu0 %v1280
  %2082 = vmatpush.bf16.msra.mxu0 %v1278
  %2083 = vmatpush.bf16.msra.mxu0 %v1276
  %2084 = vmatpush.bf16.msra.mxu0 %v1274
  %2085 = vmatmul.bf16.gmra.mxu0 %v343
  %v2086 = vpop.f32.mrf.mxu0
  %v2087 = vadd.f32 %v2074, %v2086
  %v2088 = vpop.f32.mrf.mxu0
  %2089 = vdwg.mxu0
  %2090 = vmatpush.bf16.msra.mxu0 %v1304
  %2091 = vmatpush.bf16.msra.mxu0 %v1302
  %2092 = vmatpush.bf16.msra.mxu0 %v1300
  %2093 = vmatpush.bf16.msra.mxu0 %v1298
  %2094 = vmatpush.bf16.msra.mxu0 %v1296
  %2095 = vmatpush.bf16.msra.mxu0 %v1294
  %2096 = vmatpush.bf16.msra.mxu0 %v1292
  %2097 = vmatpush.bf16.msra.mxu0 %v1290
  %2098 = vmatmul.bf16.gmra.mxu0 %v344
  %v2099 = vpop.f32.mrf.mxu0
  %v2100 = vadd.f32 %v2087, %v2099
  %v2101 = vpop.f32.mrf.mxu0
  %2102 = vdwg.mxu0
  %2103 = vmatpush.bf16.msra.mxu0 %v1320
  %2104 = vmatpush.bf16.msra.mxu0 %v1318
  %2105 = vmatpush.bf16.msra.mxu0 %v1316
  %2106 = vmatpush.bf16.msra.mxu0 %v1314
  %2107 = vmatpush.bf16.msra.mxu0 %v1312
  %2108 = vmatpush.bf16.msra.mxu0 %v1310
  %2109 = vmatpush.bf16.msra.mxu0 %v1308
  %2110 = vmatpush.bf16.msra.mxu0 %v1306
  %2111 = vmatmul.bf16.gmra.mxu0 %v345
  %v2112 = vpop.f32.mrf.mxu0
  %v2113 = vadd.f32 %v2100, %v2112
  %v2114 = vpop.f32.mrf.mxu0
  %2115 = vdwg.mxu0
  %2116 = vmatpush.bf16.msra.mxu0 %v1336
  %2117 = vmatpush.bf16.msra.mxu0 %v1334
  %2118 = vmatpush.bf16.msra.mxu0 %v1332
  %2119 = vmatpush.bf16.msra.mxu0 %v1330
  %2120 = vmatpush.bf16.msra.mxu0 %v1328
  %2121 = vmatpush.bf16.msra.mxu0 %v1326
  %2122 = vmatpush.bf16.msra.mxu0 %v1324
  %2123 = vmatpush.bf16.msra.mxu0 %v1322
  %2124 = vmatmul.bf16.gmra.mxu0 %v346
  %v2125 = vpop.f32.mrf.mxu0
  %v2126 = vadd.f32 %v2113, %v2125
  %v2127 = vpop.f32.mrf.mxu0
  %2128 = vdwg.mxu0
  %2129 = vmatpush.bf16.msra.mxu0 %v1352
  %2130 = vmatpush.bf16.msra.mxu0 %v1350
  %2131 = vmatpush.bf16.msra.mxu0 %v1348
  %2132 = vmatpush.bf16.msra.mxu0 %v1346
  %2133 = vmatpush.bf16.msra.mxu0 %v1344
  %2134 = vmatpush.bf16.msra.mxu0 %v1342
  %2135 = vmatpush.bf16.msra.mxu0 %v1340
  %2136 = vmatpush.bf16.msra.mxu0 %v1338
  %2137 = vmatmul.bf16.gmra.mxu0 %v347
  %v2138 = vpop.f32.mrf.mxu0
  %v2139 = vadd.f32 %v2126, %v2138
  %v2140 = vpop.f32.mrf.mxu0
  %2141 = vdwg.mxu0
  %2142 = vmatpush.bf16.msra.mxu0 %v1368
  %2143 = vmatpush.bf16.msra.mxu0 %v1366
  %2144 = vmatpush.bf16.msra.mxu0 %v1364
  %2145 = vmatpush.bf16.msra.mxu0 %v1362
  %2146 = vmatpush.bf16.msra.mxu0 %v1360
  %2147 = vmatpush.bf16.msra.mxu0 %v1358
  %2148 = vmatpush.bf16.msra.mxu0 %v1356
  %2149 = vmatpush.bf16.msra.mxu0 %v1354
  %2150 = vmatmul.bf16.gmra.mxu0 %v348
  %v2151 = vpop.f32.mrf.mxu0
  %v2152 = vadd.f32 %v2139, %v2151
  %v2153 = vpop.f32.mrf.mxu0
  %2154 = vdwg.mxu0
  %2155 = vmatpush.bf16.msra.mxu0 %v1384
  %2156 = vmatpush.bf16.msra.mxu0 %v1382
  %2157 = vmatpush.bf16.msra.mxu0 %v1380
  %2158 = vmatpush.bf16.msra.mxu0 %v1378
  %2159 = vmatpush.bf16.msra.mxu0 %v1376
  %2160 = vmatpush.bf16.msra.mxu0 %v1374
  %2161 = vmatpush.bf16.msra.mxu0 %v1372
  %2162 = vmatpush.bf16.msra.mxu0 %v1370
  %2163 = vmatmul.bf16.gmra.mxu0 %v349
  %v2164 = vpop.f32.mrf.mxu0
  %v2165 = vadd.f32 %v2152, %v2164
  %v2166 = vpop.f32.mrf.mxu0
  %2167 = vdwg.mxu0
  %2168 = vmatpush.bf16.msra.mxu0 %v1400
  %2169 = vmatpush.bf16.msra.mxu0 %v1398
  %2170 = vmatpush.bf16.msra.mxu0 %v1396
  %2171 = vmatpush.bf16.msra.mxu0 %v1394
  %2172 = vmatpush.bf16.msra.mxu0 %v1392
  %2173 = vmatpush.bf16.msra.mxu0 %v1390
  %2174 = vmatpush.bf16.msra.mxu0 %v1388
  %2175 = vmatpush.bf16.msra.mxu0 %v1386
  %2176 = vmatmul.bf16.gmra.mxu0 %v350
  %v2177 = vpop.f32.mrf.mxu0
  %v2178 = vadd.f32 %v2165, %v2177
  %v2179 = vpop.f32.mrf.mxu0
  %2180 = vdwg.mxu0
  %2181 = vmatpush.bf16.msra.mxu0 %v1416
  %2182 = vmatpush.bf16.msra.mxu0 %v1414
  %2183 = vmatpush.bf16.msra.mxu0 %v1412
  %2184 = vmatpush.bf16.msra.mxu0 %v1410
  %2185 = vmatpush.bf16.msra.mxu0 %v1408
  %2186 = vmatpush.bf16.msra.mxu0 %v1406
  %2187 = vmatpush.bf16.msra.mxu0 %v1404
  %2188 = vmatpush.bf16.msra.mxu0 %v1402
  %2189 = vmatmul.bf16.gmra.mxu0 %v351
  %v2190 = vpop.f32.mrf.mxu0
  %v2191 = vadd.f32 %v2178, %v2190
  %v2192 = vpop.f32.mrf.mxu0
  %2193 = vdwg.mxu0
  %2194 = vmatpush.bf16.msra.mxu0 %v1432
  %2195 = vmatpush.bf16.msra.mxu0 %v1430
  %2196 = vmatpush.bf16.msra.mxu0 %v1428
  %2197 = vmatpush.bf16.msra.mxu0 %v1426
  %2198 = vmatpush.bf16.msra.mxu0 %v1424
  %2199 = vmatpush.bf16.msra.mxu0 %v1422
  %2200 = vmatpush.bf16.msra.mxu0 %v1420
  %2201 = vmatpush.bf16.msra.mxu0 %v1418
  %2202 = vmatmul.bf16.gmra.mxu0 %v352
  %v2203 = vpop.f32.mrf.mxu0
  %v2204 = vadd.f32 %v2191, %v2203
  %v2205 = vpop.f32.mrf.mxu0
  %2206 = vdwg.mxu0
  %2207 = vmatpush.bf16.msra.mxu0 %v1448
  %2208 = vmatpush.bf16.msra.mxu0 %v1446
  %2209 = vmatpush.bf16.msra.mxu0 %v1444
  %2210 = vmatpush.bf16.msra.mxu0 %v1442
  %2211 = vmatpush.bf16.msra.mxu0 %v1440
  %2212 = vmatpush.bf16.msra.mxu0 %v1438
  %2213 = vmatpush.bf16.msra.mxu0 %v1436
  %2214 = vmatpush.bf16.msra.mxu0 %v1434
  %2215 = vmatmul.bf16.gmra.mxu0 %v353
  %v2216 = vpop.f32.mrf.mxu0
  %v2217 = vadd.f32 %v2204, %v2216
  %v2218 = vpop.f32.mrf.mxu0
  %2219 = vdwg.mxu0
  %2220 = vmatpush.bf16.msra.mxu0 %v1464
  %2221 = vmatpush.bf16.msra.mxu0 %v1462
  %2222 = vmatpush.bf16.msra.mxu0 %v1460
  %2223 = vmatpush.bf16.msra.mxu0 %v1458
  %2224 = vmatpush.bf16.msra.mxu0 %v1456
  %2225 = vmatpush.bf16.msra.mxu0 %v1454
  %2226 = vmatpush.bf16.msra.mxu0 %v1452
  %2227 = vmatpush.bf16.msra.mxu0 %v1450
  %2228 = vmatmul.bf16.gmra.mxu0 %v354
  %v2229 = vpop.f32.mrf.mxu0
  %v2230 = vadd.f32 %v2217, %v2229
  %v2231 = vpop.f32.mrf.mxu0
  %2232 = vdwg.mxu0
  %2233 = vmatpush.bf16.msra.mxu0 %v1480
  %2234 = vmatpush.bf16.msra.mxu0 %v1478
  %2235 = vmatpush.bf16.msra.mxu0 %v1476
  %2236 = vmatpush.bf16.msra.mxu0 %v1474
  %2237 = vmatpush.bf16.msra.mxu0 %v1472
  %2238 = vmatpush.bf16.msra.mxu0 %v1470
  %2239 = vmatpush.bf16.msra.mxu0 %v1468
  %2240 = vmatpush.bf16.msra.mxu0 %v1466
  %2241 = vmatmul.bf16.gmra.mxu0 %v355
  %v2242 = vpop.f32.mrf.mxu0
  %v2243 = vadd.f32 %v2230, %v2242
  %v2244 = vpop.f32.mrf.mxu0
  %2245 = vdwg.mxu0
  %2246 = vmatpush.bf16.msra.mxu0 %v1496
  %2247 = vmatpush.bf16.msra.mxu0 %v1494
  %2248 = vmatpush.bf16.msra.mxu0 %v1492
  %2249 = vmatpush.bf16.msra.mxu0 %v1490
  %2250 = vmatpush.bf16.msra.mxu0 %v1488
  %2251 = vmatpush.bf16.msra.mxu0 %v1486
  %2252 = vmatpush.bf16.msra.mxu0 %v1484
  %2253 = vmatpush.bf16.msra.mxu0 %v1482
  %2254 = vmatmul.bf16.gmra.mxu0 %v356
  %v2255 = vpop.f32.mrf.mxu0
  %v2256 = vadd.f32 %v2243, %v2255
  %v2257 = vpop.f32.mrf.mxu0
  %2258 = vdwg.mxu0
  %2259 = vmatpush.bf16.msra.mxu0 %v1512
  %2260 = vmatpush.bf16.msra.mxu0 %v1510
  %2261 = vmatpush.bf16.msra.mxu0 %v1508
  %2262 = vmatpush.bf16.msra.mxu0 %v1506
  %2263 = vmatpush.bf16.msra.mxu0 %v1504
  %2264 = vmatpush.bf16.msra.mxu0 %v1502
  %2265 = vmatpush.bf16.msra.mxu0 %v1500
  %2266 = vmatpush.bf16.msra.mxu0 %v1498
  %2267 = vmatmul.bf16.gmra.mxu0 %v357
  %v2268 = vpop.f32.mrf.mxu0
  %v2269 = vadd.f32 %v2256, %v2268
  %v2270 = vpop.f32.mrf.mxu0
  %2271 = vdwg.mxu0
  %2272 = vmatpush.bf16.msra.mxu0 %v1528
  %2273 = vmatpush.bf16.msra.mxu0 %v1526
  %2274 = vmatpush.bf16.msra.mxu0 %v1524
  %2275 = vmatpush.bf16.msra.mxu0 %v1522
  %2276 = vmatpush.bf16.msra.mxu0 %v1520
  %2277 = vmatpush.bf16.msra.mxu0 %v1518
  %2278 = vmatpush.bf16.msra.mxu0 %v1516
  %2279 = vmatpush.bf16.msra.mxu0 %v1514
  %2280 = vmatmul.bf16.gmra.mxu0 %v358
  %v2281 = vpop.f32.mrf.mxu0
  %v2282 = vadd.f32 %v2269, %v2281
  %v2283 = vpop.f32.mrf.mxu0
  %2284 = vdwg.mxu0
  %v2285 = vld [vmem:[%s2] sm:$0x3]
  %v2287 = vperm.slane %v2285, 0
  %v2288 = vperm.slane %v2285, 1
  %v2291 = vmul.f32 %v2048, %v2287
  %v2292 = vmul.f32 %v2282, %v2288
  %v2293 = vld [vmem:[%s3] sm:$0x3]
  %v2295 = vperm.slane %v2293, 0
  %v2296 = vperm.slane %v2293, 1
  %v2299 = vadd.f32 %v2291, %v2295
  %v2300 = vadd.f32 %v2292, %v2296
  %v2301 = vmax.f32 %v2299, 0.0
  %v2302 = vmax.f32 %v2300, 0.0
  %v2303 = vpack.c.bf16 %v2302, %v2301
  %2304 = vst [vmem:[%s4] sm:$0xff] %v2303
  // Predicated region
  $region18: #{feature_extractor_with_attention.31} parent=0 // pred_check
    _
  $region19: #{feature_extractor_with_attention.31} parent=0 // pred_check_branch
    %2306 = sbr.rel (0) target = $region21
  $region20: #{feature_extractor_with_attention.31} parent=0 // pred_region
    _
  $region21: #{feature_extractor_with_attention.31} parent=0 // pred_fallthru
    _
  // Predicated region
  $region22: #{feature_extractor_with_attention.31} parent=0 // pred_check
    _
  $region23: #{feature_extractor_with_attention.31} parent=0 // pred_check_branch
    %2308 = sbr.rel (0) target = $region25
  $region24: #{feature_extractor_with_attention.31} parent=0 // pred_region
    _
  $region25: #{feature_extractor_with_attention.31} parent=0 // pred_fallthru
    _

</llo_original>
